<compile_context>
chip_gen: v7x
topology: tpu7x:2x2x1
jax: 0.10.0
libtpu: 0.0.40
codegen_flags: <defaults>
</compile_context>

<pallas_src>
import numpy as np
import jax
import jax.numpy as jnp
from jax.experimental import pallas as pl
from jax.experimental.pallas import tpu as pltpu

EPS = 1e-5
CP = 128  # lane-padded channel count (last-dim / MXU-N alignment)


def resnet_block_kernel(x_ref, w1_ref, b1_ref, g1_ref, be1_ref,
                        w2_ref, b2_ref, g2_ref, be2_ref,
                        o_ref, pad_ref, slab_ref):
    """Fused ResNetBlock forward (all activations channel-padded to CP lanes).

    x_ref    : (N, H, W, CP)          input, NHWC, lane-dense        (VMEM)
    w*_ref   : (9*CP, CP)             im2col-folded conv weights     (VMEM)
    b*,g*,be*: (1, CP)                conv bias / BN gamma / beta    (VMEM)
    o_ref    : (N, H, W, CP)          output                         (VMEM)
    pad_ref  : (N, H+2, W+2, CP)      zero-halo scratch (both stages)(VMEM scratch)
    slab_ref : (N*H*W, 9*CP)          im2col patch slab (both stages)(VMEM scratch)
    """
    N, H, W, C = x_ref.shape
    M = N * H * W

    # Zero only the halo (top/bottom rows and left/right columns); the interior
    # (all CP lanes) is fully overwritten by each stage below.
    pad_ref[:, 0:1, :, :] = jnp.zeros((N, 1, W + 2, C), jnp.float32)
    pad_ref[:, H + 1:H + 2, :, :] = jnp.zeros((N, 1, W + 2, C), jnp.float32)
    pad_ref[:, 1:H + 1, 0:1, :] = jnp.zeros((N, H, 1, C), jnp.float32)
    pad_ref[:, 1:H + 1, W + 1:W + 2, :] = jnp.zeros((N, H, 1, C), jnp.float32)

    def conv_bn_relu(w_mat, b, g, be):
        # im2col: fold the 9 taps into the contraction dim (K = 9*CP) so the
        # whole stage is a single MXU matmul with f32 accumulation.
        for kx in range(3):                          # hoist: 3 W-shifts, not 9
            xw = pad_ref[:, :, kx:kx + W, :]         # (N, H+2, W, CP)
            for ky in range(3):
                tap = ky * 3 + kx
                slab_ref[:, tap * C:(tap + 1) * C] = (
                    xw[:, ky:ky + H, :, :].reshape(M, C))
        acc = jnp.dot(slab_ref[...], w_mat,
                      preferred_element_type=jnp.float32) + b   # (M, CP)
        # Two-pass BatchNorm batch statistics (biased variance), all f32.
        mean = jnp.mean(acc, axis=0, keepdims=True)
        cen = acc - mean
        var = jnp.mean(cen * cen, axis=0, keepdims=True)
        y = cen * jax.lax.rsqrt(var + EPS) * g + be
        return jnp.maximum(y, 0.0)                               # (M, CP)

    # Stage 1: conv -> BN -> ReLU (h1 stays in VMEM).
    pad_ref[:, 1:H + 1, 1:W + 1, :] = x_ref[...]
    h1 = conv_bn_relu(w1_ref[...], b1_ref[...], g1_ref[...], be1_ref[...])

    # Stage 2: reuse the same padded scratch (halo is still zero).
    pad_ref[:, 1:H + 1, 1:W + 1, :] = h1.reshape(N, H, W, C)
    h2 = conv_bn_relu(w2_ref[...], b2_ref[...], g2_ref[...], be2_ref[...])

    # Residual add (padded lanes of x and h2 are both exactly zero).
    o_ref[...] = h2.reshape(N, H, W, C) + x_ref[...]


def _pack_weight(w_hwio, c):
    """(3,3,C,C) HWIO -> channel-padded, tap-folded (9*CP, CP) matrix."""
    w = jnp.pad(w_hwio, ((0, 0), (0, 0), (0, CP - c), (0, CP - c)))
    return w.reshape(9 * CP, CP)


def _pack_vec(v, c, fill=0.0):
    return jnp.pad(v.reshape(1, c), ((0, 0), (0, CP - c)), constant_values=fill)


@jax.jit
def resnet_block(x_nchw, params):
    """Full ResNetBlock forward. x_nchw: (N, C, H, W) float32."""
    w1, b1, g1, be1, w2, b2, g2, be2 = params
    # TODO(synk): keep activations NHWC with channel counts padded to 128 across
    # the whole model so these boundary transposes / channel pads disappear.
    x = jnp.transpose(x_nchw, (0, 2, 3, 1))                  # NCHW -> NHWC
    N, H, W, C = x.shape
    assert C <= CP, "tile Cout in 128/256-wide blocks for larger channel counts"
    x_p = jnp.pad(x, ((0, 0), (0, 0), (0, 0), (0, CP - C)))  # lane-dense input

    w1m = _pack_weight(w1, C)
    w2m = _pack_weight(w2, C)
    b1p, g1p, be1p = _pack_vec(b1, C), _pack_vec(g1, C, 1.0), _pack_vec(be1, C)
    b2p, g2p, be2p = _pack_vec(b2, C), _pack_vec(g2, C, 1.0), _pack_vec(be2, C)

    def whole(shape):
        return pl.BlockSpec(shape, lambda i, _n=len(shape): (0,) * _n)

    M = N * H * W
    out = pl.pallas_call(
        resnet_block_kernel,
        out_shape=jax.ShapeDtypeStruct((N, H, W, CP), jnp.float32),
        grid=(1,),
        in_specs=[
            whole((N, H, W, CP)),
            whole((9 * CP, CP)), whole((1, CP)), whole((1, CP)), whole((1, CP)),
            whole((9 * CP, CP)), whole((1, CP)), whole((1, CP)), whole((1, CP)),
        ],
        out_specs=whole((N, H, W, CP)),
        scratch_shapes=[
            pltpu.VMEM((N, H + 2, W + 2, CP), jnp.float32),   # zero-halo buffer
            pltpu.VMEM((M, 9 * CP), jnp.float32),             # im2col patch slab
        ],
        compiler_params=pltpu.CompilerParams(
            dimension_semantics=("arbitrary",)),
    )(x_p, w1m, b1p, g1p, be1p, w2m, b2p, g2p, be2p)

    return jnp.transpose(out[..., :C], (0, 3, 1, 2))          # NHWC -> NCHW


def reference_resnet_block(x_nchw, params):
    """Pure-JAX NCHW reference mirroring the PyTorch module (training-mode BN)."""
    w1, b1, g1, be1, w2, b2, g2, be2 = params

    def conv(x, w_hwio, b):
        w_oihw = jnp.transpose(w_hwio, (3, 2, 0, 1))
        y = jax.lax.conv_general_dilated(
            x, w_oihw, window_strides=(1, 1), padding=((1, 1), (1, 1)),
            dimension_numbers=("NCHW", "OIHW", "NCHW"))
        return y + b.reshape(1, -1, 1, 1)

    def bn_relu(x, g, be):
        mean = jnp.mean(x, axis=(0, 2, 3), keepdims=True)
        var = jnp.mean((x - mean) ** 2, axis=(0, 2, 3), keepdims=True)
        y = (x - mean) * jax.lax.rsqrt(var + EPS) * g.reshape(1, -1, 1, 1) \
            + be.reshape(1, -1, 1, 1)
        return jnp.maximum(y, 0.0)

    h = bn_relu(conv(x_nchw, w1, b1.reshape(-1)), g1.reshape(-1), be1.reshape(-1))
    h = bn_relu(conv(h, w2, b2.reshape(-1)), g2.reshape(-1), be2.reshape(-1))
    return h + x_nchw


if __name__ == "__main__":
    # Residual add requires in_ch == out_ch.
    N, C, H, W = 2, 4, 16, 16

    key = jax.random.PRNGKey(0)
    ks = jax.random.split(key, 9)

    # Deterministic synthetic parameters (shapes match nn.Conv2d(C,C,3,pad=1)
    # + nn.BatchNorm2d(C)); conv weights stored as HWIO.
    w1 = jax.random.normal(ks[0], (3, 3, C, C), jnp.float32) * 0.2
    b1 = jax.random.normal(ks[1], (1, C), jnp.float32) * 0.1
    g1 = 1.0 + 0.1 * jax.random.normal(ks[2], (1, C), jnp.float32)
    be1 = 0.1 * jax.random.normal(ks[3], (1, C), jnp.float32)
    w2 = jax.random.normal(ks[4], (3, 3, C, C), jnp.float32) * 0.2
    b2 = jax.random.normal(ks[5], (1, C), jnp.float32) * 0.1
    g2 = 1.0 + 0.1 * jax.random.normal(ks[6], (1, C), jnp.float32)
    be2 = 0.1 * jax.random.normal(ks[7], (1, C), jnp.float32)
    params = (w1, b1, g1, be1, w2, b2, g2, be2)

    x = jax.random.normal(ks[8], (N, C, H, W), jnp.float32)

    out = jax.block_until_ready(resnet_block(x, params))
    ref = jax.block_until_ready(reference_resnet_block(x, params))

    assert out.shape == (N, C, H, W), out.shape
    np.testing.assert_allclose(np.asarray(out), np.asarray(ref),
                               rtol=1e-4, atol=1e-4)
    print("KERNEL_OK")
</pallas_src>

<mosaic_0001>
module attributes {stable_mosaic.version = 11 : i64} {
  func.func @resnet_block_kernel(%arg0: i32, %arg1: memref<2x16x16x128xf32, #tpu.memory_space<vmem>>, %arg2: memref<1152x128xf32, #tpu.memory_space<vmem>>, %arg3: memref<1x128xf32, #tpu.memory_space<vmem>>, %arg4: memref<1x128xf32, #tpu.memory_space<vmem>>, %arg5: memref<1x128xf32, #tpu.memory_space<vmem>>, %arg6: memref<1152x128xf32, #tpu.memory_space<vmem>>, %arg7: memref<1x128xf32, #tpu.memory_space<vmem>>, %arg8: memref<1x128xf32, #tpu.memory_space<vmem>>, %arg9: memref<1x128xf32, #tpu.memory_space<vmem>>, %arg10: memref<2x16x16x128xf32, #tpu.memory_space<vmem>>, %arg11: memref<2x18x18x128xf32, #tpu.memory_space<vmem>>, %arg12: memref<512x1152xf32, #tpu.memory_space<vmem>>) attributes {dimension_semantics = [#tpu.dimension_semantics<arbitrary>], iteration_bounds = array<i64: 1>, scalar_prefetch = 0 : i64, scratch_operands = 2 : i64, tpu.core_type = #tpu.core_type<tc>, window_params = [{pipeline_mode = #tpu.pipeline_mode<synchronous>, transform_indices = @transform_0, window_bounds = array<i64: 2, 16, 16, 128>}, {pipeline_mode = #tpu.pipeline_mode<synchronous>, transform_indices = @transform_1, window_bounds = array<i64: 1152, 128>}, {pipeline_mode = #tpu.pipeline_mode<synchronous>, transform_indices = @transform_2, window_bounds = array<i64: 1, 128>}, {pipeline_mode = #tpu.pipeline_mode<synchronous>, transform_indices = @transform_3, window_bounds = array<i64: 1, 128>}, {pipeline_mode = #tpu.pipeline_mode<synchronous>, transform_indices = @transform_4, window_bounds = array<i64: 1, 128>}, {pipeline_mode = #tpu.pipeline_mode<synchronous>, transform_indices = @transform_5, window_bounds = array<i64: 1152, 128>}, {pipeline_mode = #tpu.pipeline_mode<synchronous>, transform_indices = @transform_6, window_bounds = array<i64: 1, 128>}, {pipeline_mode = #tpu.pipeline_mode<synchronous>, transform_indices = @transform_7, window_bounds = array<i64: 1, 128>}, {pipeline_mode = #tpu.pipeline_mode<synchronous>, transform_indices = @transform_8, window_bounds = array<i64: 1, 128>}, {pipeline_mode = #tpu.pipeline_mode<synchronous>, transform_indices = @transform_9, window_bounds = array<i64: 2, 16, 16, 128>}]} {
    %cst = arith.constant 0.000000e+00 : f32
    %0 = vector.broadcast %cst : f32 to vector<2x1x18x128xf32>
    %c0 = arith.constant 0 : index
    %c0_0 = arith.constant 0 : index
    %c0_1 = arith.constant 0 : index
    %c0_2 = arith.constant 0 : index
    %1 = vector.load %arg11[%c0, %c0_0, %c0_1, %c0_2] : memref<2x18x18x128xf32, #tpu.memory_space<vmem>>, vector<2x1x18x128xf32>
    tpu.vector_store %arg11[%c0, %c0_0, %c0_1, %c0_2], %0 {strides = array<i32>} : memref<2x18x18x128xf32, #tpu.memory_space<vmem>>, vector<2x1x18x128xf32>,
    %cst_3 = arith.constant 0.000000e+00 : f32
    %2 = vector.broadcast %cst_3 : f32 to vector<2x1x18x128xf32>
    %c0_4 = arith.constant 0 : index
    %c17 = arith.constant 17 : index
    %c0_5 = arith.constant 0 : index
    %c0_6 = arith.constant 0 : index
    %3 = vector.load %arg11[%c0_4, %c17, %c0_5, %c0_6] : memref<2x18x18x128xf32, #tpu.memory_space<vmem>>, vector<2x1x18x128xf32>
    tpu.vector_store %arg11[%c0_4, %c17, %c0_5, %c0_6], %2 {strides = array<i32>} : memref<2x18x18x128xf32, #tpu.memory_space<vmem>>, vector<2x1x18x128xf32>,
    %cst_7 = arith.constant 0.000000e+00 : f32
    %4 = vector.broadcast %cst_7 : f32 to vector<2x16x1x128xf32>
    %c0_8 = arith.constant 0 : index
    %c1 = arith.constant 1 : index
    %c0_9 = arith.constant 0 : index
    %c0_10 = arith.constant 0 : index
    %5 = vector.load %arg11[%c0_8, %c1, %c0_9, %c0_10] : memref<2x18x18x128xf32, #tpu.memory_space<vmem>>, vector<2x16x1x128xf32>
    tpu.vector_store %arg11[%c0_8, %c1, %c0_9, %c0_10], %4 {strides = array<i32>} : memref<2x18x18x128xf32, #tpu.memory_space<vmem>>, vector<2x16x1x128xf32>,
    %cst_11 = arith.constant 0.000000e+00 : f32
    %6 = vector.broadcast %cst_11 : f32 to vector<2x16x1x128xf32>
    %c0_12 = arith.constant 0 : index
    %c1_13 = arith.constant 1 : index
    %c17_14 = arith.constant 17 : index
    %c0_15 = arith.constant 0 : index
    %7 = vector.load %arg11[%c0_12, %c1_13, %c17_14, %c0_15] : memref<2x18x18x128xf32, #tpu.memory_space<vmem>>, vector<2x16x1x128xf32>
    tpu.vector_store %arg11[%c0_12, %c1_13, %c17_14, %c0_15], %6 {strides = array<i32>} : memref<2x18x18x128xf32, #tpu.memory_space<vmem>>, vector<2x16x1x128xf32>,
    %c0_16 = arith.constant 0 : index
    %c0_17 = arith.constant 0 : index
    %c0_18 = arith.constant 0 : index
    %c0_19 = arith.constant 0 : index
    %8 = vector.load %arg1[%c0_16, %c0_17, %c0_18, %c0_19] : memref<2x16x16x128xf32, #tpu.memory_space<vmem>>, vector<2x16x16x128xf32>
    %c0_20 = arith.constant 0 : index
    %c1_21 = arith.constant 1 : index
    %c1_22 = arith.constant 1 : index
    %c0_23 = arith.constant 0 : index
    %9 = vector.load %arg11[%c0_20, %c1_21, %c1_22, %c0_23] : memref<2x18x18x128xf32, #tpu.memory_space<vmem>>, vector<2x16x16x128xf32>
    tpu.vector_store %arg11[%c0_20, %c1_21, %c1_22, %c0_23], %8 {strides = array<i32>} : memref<2x18x18x128xf32, #tpu.memory_space<vmem>>, vector<2x16x16x128xf32>,
    %c0_24 = arith.constant 0 : index
    %c0_25 = arith.constant 0 : index
    %10 = vector.load %arg2[%c0_24, %c0_25] : memref<1152x128xf32, #tpu.memory_space<vmem>>, vector<1152x128xf32>
    %c0_26 = arith.constant 0 : index
    %c0_27 = arith.constant 0 : index
    %11 = vector.load %arg3[%c0_26, %c0_27] : memref<1x128xf32, #tpu.memory_space<vmem>>, vector<1x128xf32>
    %c0_28 = arith.constant 0 : index
    %c0_29 = arith.constant 0 : index
    %12 = vector.load %arg4[%c0_28, %c0_29] : memref<1x128xf32, #tpu.memory_space<vmem>>, vector<1x128xf32>
    %c0_30 = arith.constant 0 : index
    %c0_31 = arith.constant 0 : index
    %13 = vector.load %arg5[%c0_30, %c0_31] : memref<1x128xf32, #tpu.memory_space<vmem>>, vector<1x128xf32>
    %c0_32 = arith.constant 0 : index
    %c0_33 = arith.constant 0 : index
    %c0_34 = arith.constant 0 : index
    %c0_35 = arith.constant 0 : index
    %14 = vector.load %arg11[%c0_32, %c0_33, %c0_34, %c0_35] : memref<2x18x18x128xf32, #tpu.memory_space<vmem>>, vector<2x18x16x128xf32>
    %15 = vector.extract_strided_slice %14 {offsets = [0, 0, 0, 0], sizes = [2, 16, 16, 128], strides = [1, 1, 1, 1]} : vector<2x18x16x128xf32> to vector<2x16x16x128xf32>
    %16 = vector.shape_cast %15 : vector<2x16x16x128xf32> to vector<512x128xf32>
    %c0_36 = arith.constant 0 : index
    %c0_37 = arith.constant 0 : index
    %17 = vector.load %arg12[%c0_36, %c0_37] : memref<512x1152xf32, #tpu.memory_space<vmem>>, vector<512x128xf32>
    tpu.vector_store %arg12[%c0_36, %c0_37], %16 {strides = array<i32>} : memref<512x1152xf32, #tpu.memory_space<vmem>>, vector<512x128xf32>,
    %18 = vector.extract_strided_slice %14 {offsets = [0, 1, 0, 0], sizes = [2, 16, 16, 128], strides = [1, 1, 1, 1]} : vector<2x18x16x128xf32> to vector<2x16x16x128xf32>
    %19 = vector.shape_cast %18 : vector<2x16x16x128xf32> to vector<512x128xf32>
    %c0_38 = arith.constant 0 : index
    %c384 = arith.constant 384 : index
    %20 = vector.load %arg12[%c0_38, %c384] : memref<512x1152xf32, #tpu.memory_space<vmem>>, vector<512x128xf32>
    tpu.vector_store %arg12[%c0_38, %c384], %19 {strides = array<i32>} : memref<512x1152xf32, #tpu.memory_space<vmem>>, vector<512x128xf32>,
    %21 = vector.extract_strided_slice %14 {offsets = [0, 2, 0, 0], sizes = [2, 16, 16, 128], strides = [1, 1, 1, 1]} : vector<2x18x16x128xf32> to vector<2x16x16x128xf32>
    %22 = vector.shape_cast %21 : vector<2x16x16x128xf32> to vector<512x128xf32>
    %c0_39 = arith.constant 0 : index
    %c768 = arith.constant 768 : index
    %23 = vector.load %arg12[%c0_39, %c768] : memref<512x1152xf32, #tpu.memory_space<vmem>>, vector<512x128xf32>
    tpu.vector_store %arg12[%c0_39, %c768], %22 {strides = array<i32>} : memref<512x1152xf32, #tpu.memory_space<vmem>>, vector<512x128xf32>,
    %c0_40 = arith.constant 0 : index
    %c0_41 = arith.constant 0 : index
    %c1_42 = arith.constant 1 : index
    %c0_43 = arith.constant 0 : index
    %24 = vector.load %arg11[%c0_40, %c0_41, %c1_42, %c0_43] : memref<2x18x18x128xf32, #tpu.memory_space<vmem>>, vector<2x18x16x128xf32>
    %25 = vector.extract_strided_slice %24 {offsets = [0, 0, 0, 0], sizes = [2, 16, 16, 128], strides = [1, 1, 1, 1]} : vector<2x18x16x128xf32> to vector<2x16x16x128xf32>
    %26 = vector.shape_cast %25 : vector<2x16x16x128xf32> to vector<512x128xf32>
    %c0_44 = arith.constant 0 : index
    %c128 = arith.constant 128 : index
    %27 = vector.load %arg12[%c0_44, %c128] : memref<512x1152xf32, #tpu.memory_space<vmem>>, vector<512x128xf32>
    tpu.vector_store %arg12[%c0_44, %c128], %26 {strides = array<i32>} : memref<512x1152xf32, #tpu.memory_space<vmem>>, vector<512x128xf32>,
    %28 = vector.extract_strided_slice %24 {offsets = [0, 1, 0, 0], sizes = [2, 16, 16, 128], strides = [1, 1, 1, 1]} : vector<2x18x16x128xf32> to vector<2x16x16x128xf32>
    %29 = vector.shape_cast %28 : vector<2x16x16x128xf32> to vector<512x128xf32>
    %c0_45 = arith.constant 0 : index
    %c512 = arith.constant 512 : index
    %30 = vector.load %arg12[%c0_45, %c512] : memref<512x1152xf32, #tpu.memory_space<vmem>>, vector<512x128xf32>
    tpu.vector_store %arg12[%c0_45, %c512], %29 {strides = array<i32>} : memref<512x1152xf32, #tpu.memory_space<vmem>>, vector<512x128xf32>,
    %31 = vector.extract_strided_slice %24 {offsets = [0, 2, 0, 0], sizes = [2, 16, 16, 128], strides = [1, 1, 1, 1]} : vector<2x18x16x128xf32> to vector<2x16x16x128xf32>
    %32 = vector.shape_cast %31 : vector<2x16x16x128xf32> to vector<512x128xf32>
    %c0_46 = arith.constant 0 : index
    %c896 = arith.constant 896 : index
    %33 = vector.load %arg12[%c0_46, %c896] : memref<512x1152xf32, #tpu.memory_space<vmem>>, vector<512x128xf32>
    tpu.vector_store %arg12[%c0_46, %c896], %32 {strides = array<i32>} : memref<512x1152xf32, #tpu.memory_space<vmem>>, vector<512x128xf32>,
    %c0_47 = arith.constant 0 : index
    %c0_48 = arith.constant 0 : index
    %c2 = arith.constant 2 : index
    %c0_49 = arith.constant 0 : index
    %34 = vector.load %arg11[%c0_47, %c0_48, %c2, %c0_49] : memref<2x18x18x128xf32, #tpu.memory_space<vmem>>, vector<2x18x16x128xf32>
    %35 = vector.extract_strided_slice %34 {offsets = [0, 0, 0, 0], sizes = [2, 16, 16, 128], strides = [1, 1, 1, 1]} : vector<2x18x16x128xf32> to vector<2x16x16x128xf32>
    %36 = vector.shape_cast %35 : vector<2x16x16x128xf32> to vector<512x128xf32>
    %c0_50 = arith.constant 0 : index
    %c256 = arith.constant 256 : index
    %37 = vector.load %arg12[%c0_50, %c256] : memref<512x1152xf32, #tpu.memory_space<vmem>>, vector<512x128xf32>
    tpu.vector_store %arg12[%c0_50, %c256], %36 {strides = array<i32>} : memref<512x1152xf32, #tpu.memory_space<vmem>>, vector<512x128xf32>,
    %38 = vector.extract_strided_slice %34 {offsets = [0, 1, 0, 0], sizes = [2, 16, 16, 128], strides = [1, 1, 1, 1]} : vector<2x18x16x128xf32> to vector<2x16x16x128xf32>
    %39 = vector.shape_cast %38 : vector<2x16x16x128xf32> to vector<512x128xf32>
    %c0_51 = arith.constant 0 : index
    %c640 = arith.constant 640 : index
    %40 = vector.load %arg12[%c0_51, %c640] : memref<512x1152xf32, #tpu.memory_space<vmem>>, vector<512x128xf32>
    tpu.vector_store %arg12[%c0_51, %c640], %39 {strides = array<i32>} : memref<512x1152xf32, #tpu.memory_space<vmem>>, vector<512x128xf32>,
    %41 = vector.extract_strided_slice %34 {offsets = [0, 2, 0, 0], sizes = [2, 16, 16, 128], strides = [1, 1, 1, 1]} : vector<2x18x16x128xf32> to vector<2x16x16x128xf32>
    %42 = vector.shape_cast %41 : vector<2x16x16x128xf32> to vector<512x128xf32>
    %c0_52 = arith.constant 0 : index
    %c1024 = arith.constant 1024 : index
    %43 = vector.load %arg12[%c0_52, %c1024] : memref<512x1152xf32, #tpu.memory_space<vmem>>, vector<512x128xf32>
    tpu.vector_store %arg12[%c0_52, %c1024], %42 {strides = array<i32>} : memref<512x1152xf32, #tpu.memory_space<vmem>>, vector<512x128xf32>,
    %c0_53 = arith.constant 0 : index
    %c0_54 = arith.constant 0 : index
    %44 = vector.load %arg12[%c0_53, %c0_54] : memref<512x1152xf32, #tpu.memory_space<vmem>>, vector<512x1152xf32>
    %cst_55 = arith.constant dense<0.000000e+00> : vector<512x128xf32>
    %45 = tpu.matmul %44, %10, %cst_55 {dimension_numbers = #tpu.dot_dimension_numbers<[1], [0], [0], [1], [0, 0, 1, 1], [], []>} : vector<512x1152xf32>, vector<1152x128xf32>, vector<512x128xf32> -> vector<512x128xf32>
    %46 = vector.broadcast %11 : vector<1x128xf32> to vector<512x128xf32>
    %47 = arith.addf %45, %46 : vector<512x128xf32>
    %cst_56 = arith.constant dense<0.000000e+00> : vector<128xf32>
    %48 = vector.multi_reduction <add>, %47, %cst_56 [0] : vector<512x128xf32> to vector<128xf32>
    %49 = vector.shape_cast %48 : vector<128xf32> to vector<1x128xf32>
    %cst_57 = arith.constant 5.120000e+02 : f32
    %50 = vector.broadcast %cst_57 : f32 to vector<1x128xf32>
    %51 = arith.divf %49, %50 : vector<1x128xf32>
    %52 = vector.broadcast %51 : vector<1x128xf32> to vector<512x128xf32>
    %53 = arith.subf %47, %52 : vector<512x128xf32>
    %54 = arith.mulf %53, %53 : vector<512x128xf32>
    %cst_58 = arith.constant dense<0.000000e+00> : vector<128xf32>
    %55 = vector.multi_reduction <add>, %54, %cst_58 [0] : vector<512x128xf32> to vector<128xf32>
    %56 = vector.shape_cast %55 : vector<128xf32> to vector<1x128xf32>
    %cst_59 = arith.constant 5.120000e+02 : f32
    %57 = vector.broadcast %cst_59 : f32 to vector<1x128xf32>
    %58 = arith.divf %56, %57 : vector<1x128xf32>
    %cst_60 = arith.constant 9.99999974E-6 : f32
    %59 = vector.broadcast %cst_60 : f32 to vector<1x128xf32>
    %60 = arith.addf %58, %59 : vector<1x128xf32>
    %61 = math.rsqrt %60 : vector<1x128xf32>
    %62 = vector.broadcast %61 : vector<1x128xf32> to vector<512x128xf32>
    %63 = arith.mulf %53, %62 : vector<512x128xf32>
    %64 = vector.broadcast %12 : vector<1x128xf32> to vector<512x128xf32>
    %65 = arith.mulf %63, %64 : vector<512x128xf32>
    %66 = vector.broadcast %13 : vector<1x128xf32> to vector<512x128xf32>
    %67 = arith.addf %65, %66 : vector<512x128xf32>
    %cst_61 = arith.constant 0.000000e+00 : f32
    %68 = vector.broadcast %cst_61 : f32 to vector<512x128xf32>
    %69 = arith.maximumf %67, %68 : vector<512x128xf32>
    %70 = vector.shape_cast %69 : vector<512x128xf32> to vector<2x16x16x128xf32>
    %c0_62 = arith.constant 0 : index
    %c1_63 = arith.constant 1 : index
    %c1_64 = arith.constant 1 : index
    %c0_65 = arith.constant 0 : index
    %71 = vector.load %arg11[%c0_62, %c1_63, %c1_64, %c0_65] : memref<2x18x18x128xf32, #tpu.memory_space<vmem>>, vector<2x16x16x128xf32>
    tpu.vector_store %arg11[%c0_62, %c1_63, %c1_64, %c0_65], %70 {strides = array<i32>} : memref<2x18x18x128xf32, #tpu.memory_space<vmem>>, vector<2x16x16x128xf32>,
    %c0_66 = arith.constant 0 : index
    %c0_67 = arith.constant 0 : index
    %72 = vector.load %arg6[%c0_66, %c0_67] : memref<1152x128xf32, #tpu.memory_space<vmem>>, vector<1152x128xf32>
    %c0_68 = arith.constant 0 : index
    %c0_69 = arith.constant 0 : index
    %73 = vector.load %arg7[%c0_68, %c0_69] : memref<1x128xf32, #tpu.memory_space<vmem>>, vector<1x128xf32>
    %c0_70 = arith.constant 0 : index
    %c0_71 = arith.constant 0 : index
    %74 = vector.load %arg8[%c0_70, %c0_71] : memref<1x128xf32, #tpu.memory_space<vmem>>, vector<1x128xf32>
    %c0_72 = arith.constant 0 : index
    %c0_73 = arith.constant 0 : index
    %75 = vector.load %arg9[%c0_72, %c0_73] : memref<1x128xf32, #tpu.memory_space<vmem>>, vector<1x128xf32>
    %c0_74 = arith.constant 0 : index
    %c0_75 = arith.constant 0 : index
    %c0_76 = arith.constant 0 : index
    %c0_77 = arith.constant 0 : index
    %76 = vector.load %arg11[%c0_74, %c0_75, %c0_76, %c0_77] : memref<2x18x18x128xf32, #tpu.memory_space<vmem>>, vector<2x18x16x128xf32>
    %77 = vector.extract_strided_slice %76 {offsets = [0, 0, 0, 0], sizes = [2, 16, 16, 128], strides = [1, 1, 1, 1]} : vector<2x18x16x128xf32> to vector<2x16x16x128xf32>
    %78 = vector.shape_cast %77 : vector<2x16x16x128xf32> to vector<512x128xf32>
    %c0_78 = arith.constant 0 : index
    %c0_79 = arith.constant 0 : index
    %79 = vector.load %arg12[%c0_78, %c0_79] : memref<512x1152xf32, #tpu.memory_space<vmem>>, vector<512x128xf32>
    tpu.vector_store %arg12[%c0_78, %c0_79], %78 {strides = array<i32>} : memref<512x1152xf32, #tpu.memory_space<vmem>>, vector<512x128xf32>,
    %80 = vector.extract_strided_slice %76 {offsets = [0, 1, 0, 0], sizes = [2, 16, 16, 128], strides = [1, 1, 1, 1]} : vector<2x18x16x128xf32> to vector<2x16x16x128xf32>
    %81 = vector.shape_cast %80 : vector<2x16x16x128xf32> to vector<512x128xf32>
    %c0_80 = arith.constant 0 : index
    %c384_81 = arith.constant 384 : index
    %82 = vector.load %arg12[%c0_80, %c384_81] : memref<512x1152xf32, #tpu.memory_space<vmem>>, vector<512x128xf32>
    tpu.vector_store %arg12[%c0_80, %c384_81], %81 {strides = array<i32>} : memref<512x1152xf32, #tpu.memory_space<vmem>>, vector<512x128xf32>,
    %83 = vector.extract_strided_slice %76 {offsets = [0, 2, 0, 0], sizes = [2, 16, 16, 128], strides = [1, 1, 1, 1]} : vector<2x18x16x128xf32> to vector<2x16x16x128xf32>
    %84 = vector.shape_cast %83 : vector<2x16x16x128xf32> to vector<512x128xf32>
    %c0_82 = arith.constant 0 : index
    %c768_83 = arith.constant 768 : index
    %85 = vector.load %arg12[%c0_82, %c768_83] : memref<512x1152xf32, #tpu.memory_space<vmem>>, vector<512x128xf32>
    tpu.vector_store %arg12[%c0_82, %c768_83], %84 {strides = array<i32>} : memref<512x1152xf32, #tpu.memory_space<vmem>>, vector<512x128xf32>,
    %c0_84 = arith.constant 0 : index
    %c0_85 = arith.constant 0 : index
    %c1_86 = arith.constant 1 : index
    %c0_87 = arith.constant 0 : index
    %86 = vector.load %arg11[%c0_84, %c0_85, %c1_86, %c0_87] : memref<2x18x18x128xf32, #tpu.memory_space<vmem>>, vector<2x18x16x128xf32>
    %87 = vector.extract_strided_slice %86 {offsets = [0, 0, 0, 0], sizes = [2, 16, 16, 128], strides = [1, 1, 1, 1]} : vector<2x18x16x128xf32> to vector<2x16x16x128xf32>
    %88 = vector.shape_cast %87 : vector<2x16x16x128xf32> to vector<512x128xf32>
    %c0_88 = arith.constant 0 : index
    %c128_89 = arith.constant 128 : index
    %89 = vector.load %arg12[%c0_88, %c128_89] : memref<512x1152xf32, #tpu.memory_space<vmem>>, vector<512x128xf32>
    tpu.vector_store %arg12[%c0_88, %c128_89], %88 {strides = array<i32>} : memref<512x1152xf32, #tpu.memory_space<vmem>>, vector<512x128xf32>,
    %90 = vector.extract_strided_slice %86 {offsets = [0, 1, 0, 0], sizes = [2, 16, 16, 128], strides = [1, 1, 1, 1]} : vector<2x18x16x128xf32> to vector<2x16x16x128xf32>
    %91 = vector.shape_cast %90 : vector<2x16x16x128xf32> to vector<512x128xf32>
    %c0_90 = arith.constant 0 : index
    %c512_91 = arith.constant 512 : index
    %92 = vector.load %arg12[%c0_90, %c512_91] : memref<512x1152xf32, #tpu.memory_space<vmem>>, vector<512x128xf32>
    tpu.vector_store %arg12[%c0_90, %c512_91], %91 {strides = array<i32>} : memref<512x1152xf32, #tpu.memory_space<vmem>>, vector<512x128xf32>,
    %93 = vector.extract_strided_slice %86 {offsets = [0, 2, 0, 0], sizes = [2, 16, 16, 128], strides = [1, 1, 1, 1]} : vector<2x18x16x128xf32> to vector<2x16x16x128xf32>
    %94 = vector.shape_cast %93 : vector<2x16x16x128xf32> to vector<512x128xf32>
    %c0_92 = arith.constant 0 : index
    %c896_93 = arith.constant 896 : index
    %95 = vector.load %arg12[%c0_92, %c896_93] : memref<512x1152xf32, #tpu.memory_space<vmem>>, vector<512x128xf32>
    tpu.vector_store %arg12[%c0_92, %c896_93], %94 {strides = array<i32>} : memref<512x1152xf32, #tpu.memory_space<vmem>>, vector<512x128xf32>,
    %c0_94 = arith.constant 0 : index
    %c0_95 = arith.constant 0 : index
    %c2_96 = arith.constant 2 : index
    %c0_97 = arith.constant 0 : index
    %96 = vector.load %arg11[%c0_94, %c0_95, %c2_96, %c0_97] : memref<2x18x18x128xf32, #tpu.memory_space<vmem>>, vector<2x18x16x128xf32>
    %97 = vector.extract_strided_slice %96 {offsets = [0, 0, 0, 0], sizes = [2, 16, 16, 128], strides = [1, 1, 1, 1]} : vector<2x18x16x128xf32> to vector<2x16x16x128xf32>
    %98 = vector.shape_cast %97 : vector<2x16x16x128xf32> to vector<512x128xf32>
    %c0_98 = arith.constant 0 : index
    %c256_99 = arith.constant 256 : index
    %99 = vector.load %arg12[%c0_98, %c256_99] : memref<512x1152xf32, #tpu.memory_space<vmem>>, vector<512x128xf32>
    tpu.vector_store %arg12[%c0_98, %c256_99], %98 {strides = array<i32>} : memref<512x1152xf32, #tpu.memory_space<vmem>>, vector<512x128xf32>,
    %100 = vector.extract_strided_slice %96 {offsets = [0, 1, 0, 0], sizes = [2, 16, 16, 128], strides = [1, 1, 1, 1]} : vector<2x18x16x128xf32> to vector<2x16x16x128xf32>
    %101 = vector.shape_cast %100 : vector<2x16x16x128xf32> to vector<512x128xf32>
    %c0_100 = arith.constant 0 : index
    %c640_101 = arith.constant 640 : index
    %102 = vector.load %arg12[%c0_100, %c640_101] : memref<512x1152xf32, #tpu.memory_space<vmem>>, vector<512x128xf32>
    tpu.vector_store %arg12[%c0_100, %c640_101], %101 {strides = array<i32>} : memref<512x1152xf32, #tpu.memory_space<vmem>>, vector<512x128xf32>,
    %103 = vector.extract_strided_slice %96 {offsets = [0, 2, 0, 0], sizes = [2, 16, 16, 128], strides = [1, 1, 1, 1]} : vector<2x18x16x128xf32> to vector<2x16x16x128xf32>
    %104 = vector.shape_cast %103 : vector<2x16x16x128xf32> to vector<512x128xf32>
    %c0_102 = arith.constant 0 : index
    %c1024_103 = arith.constant 1024 : index
    %105 = vector.load %arg12[%c0_102, %c1024_103] : memref<512x1152xf32, #tpu.memory_space<vmem>>, vector<512x128xf32>
    tpu.vector_store %arg12[%c0_102, %c1024_103], %104 {strides = array<i32>} : memref<512x1152xf32, #tpu.memory_space<vmem>>, vector<512x128xf32>,
    %c0_104 = arith.constant 0 : index
    %c0_105 = arith.constant 0 : index
    %106 = vector.load %arg12[%c0_104, %c0_105] : memref<512x1152xf32, #tpu.memory_space<vmem>>, vector<512x1152xf32>
    %cst_106 = arith.constant dense<0.000000e+00> : vector<512x128xf32>
    %107 = tpu.matmul %106, %72, %cst_106 {dimension_numbers = #tpu.dot_dimension_numbers<[1], [0], [0], [1], [0, 0, 1, 1], [], []>} : vector<512x1152xf32>, vector<1152x128xf32>, vector<512x128xf32> -> vector<512x128xf32>
    %108 = vector.broadcast %73 : vector<1x128xf32> to vector<512x128xf32>
    %109 = arith.addf %107, %108 : vector<512x128xf32>
    %cst_107 = arith.constant dense<0.000000e+00> : vector<128xf32>
    %110 = vector.multi_reduction <add>, %109, %cst_107 [0] : vector<512x128xf32> to vector<128xf32>
    %111 = vector.shape_cast %110 : vector<128xf32> to vector<1x128xf32>
    %cst_108 = arith.constant 5.120000e+02 : f32
    %112 = vector.broadcast %cst_108 : f32 to vector<1x128xf32>
    %113 = arith.divf %111, %112 : vector<1x128xf32>
    %114 = vector.broadcast %113 : vector<1x128xf32> to vector<512x128xf32>
    %115 = arith.subf %109, %114 : vector<512x128xf32>
    %116 = arith.mulf %115, %115 : vector<512x128xf32>
    %cst_109 = arith.constant dense<0.000000e+00> : vector<128xf32>
    %117 = vector.multi_reduction <add>, %116, %cst_109 [0] : vector<512x128xf32> to vector<128xf32>
    %118 = vector.shape_cast %117 : vector<128xf32> to vector<1x128xf32>
    %cst_110 = arith.constant 5.120000e+02 : f32
    %119 = vector.broadcast %cst_110 : f32 to vector<1x128xf32>
    %120 = arith.divf %118, %119 : vector<1x128xf32>
    %cst_111 = arith.constant 9.99999974E-6 : f32
    %121 = vector.broadcast %cst_111 : f32 to vector<1x128xf32>
    %122 = arith.addf %120, %121 : vector<1x128xf32>
    %123 = math.rsqrt %122 : vector<1x128xf32>
    %124 = vector.broadcast %123 : vector<1x128xf32> to vector<512x128xf32>
    %125 = arith.mulf %115, %124 : vector<512x128xf32>
    %126 = vector.broadcast %74 : vector<1x128xf32> to vector<512x128xf32>
    %127 = arith.mulf %125, %126 : vector<512x128xf32>
    %128 = vector.broadcast %75 : vector<1x128xf32> to vector<512x128xf32>
    %129 = arith.addf %127, %128 : vector<512x128xf32>
    %cst_112 = arith.constant 0.000000e+00 : f32
    %130 = vector.broadcast %cst_112 : f32 to vector<512x128xf32>
    %131 = arith.maximumf %129, %130 : vector<512x128xf32>
    %132 = vector.shape_cast %131 : vector<512x128xf32> to vector<2x16x16x128xf32>
    %c0_113 = arith.constant 0 : index
    %c0_114 = arith.constant 0 : index
    %c0_115 = arith.constant 0 : index
    %c0_116 = arith.constant 0 : index
    %133 = vector.load %arg1[%c0_113, %c0_114, %c0_115, %c0_116] : memref<2x16x16x128xf32, #tpu.memory_space<vmem>>, vector<2x16x16x128xf32>
    %134 = arith.addf %132, %133 : vector<2x16x16x128xf32>
    %c0_117 = arith.constant 0 : index
    %c0_118 = arith.constant 0 : index
    %c0_119 = arith.constant 0 : index
    %c0_120 = arith.constant 0 : index
    %135 = vector.load %arg10[%c0_117, %c0_118, %c0_119, %c0_120] : memref<2x16x16x128xf32, #tpu.memory_space<vmem>>, vector<2x16x16x128xf32>
    tpu.vector_store %arg10[%c0_117, %c0_118, %c0_119, %c0_120], %134 {strides = array<i32>} : memref<2x16x16x128xf32, #tpu.memory_space<vmem>>, vector<2x16x16x128xf32>,
    return
  }
  func.func @transform_0(%arg0: i32) -> (i32, i32, i32, i32) {
    %c0_i32 = arith.constant 0 : i32
    %c0_i32_0 = arith.constant 0 : i32
    %c0_i32_1 = arith.constant 0 : i32
    %c0_i32_2 = arith.constant 0 : i32
    %c0_i32_3 = arith.constant 0 : i32
    return %c0_i32, %c0_i32_0, %c0_i32_1, %c0_i32_2 : i32, i32, i32, i32
  }
  func.func @transform_1(%arg0: i32) -> (i32, i32) {
    %c0_i32 = arith.constant 0 : i32
    %c0_i32_0 = arith.constant 0 : i32
    %c0_i32_1 = arith.constant 0 : i32
    return %c0_i32, %c0_i32_0 : i32, i32
  }
  func.func @transform_2(%arg0: i32) -> (i32, i32) {
    %c0_i32 = arith.constant 0 : i32
    %c0_i32_0 = arith.constant 0 : i32
    %c0_i32_1 = arith.constant 0 : i32
    return %c0_i32, %c0_i32_0 : i32, i32
  }
  func.func @transform_3(%arg0: i32) -> (i32, i32) {
    %c0_i32 = arith.constant 0 : i32
    %c0_i32_0 = arith.constant 0 : i32
    %c0_i32_1 = arith.constant 0 : i32
    return %c0_i32, %c0_i32_0 : i32, i32
  }
  func.func @transform_4(%arg0: i32) -> (i32, i32) {
    %c0_i32 = arith.constant 0 : i32
    %c0_i32_0 = arith.constant 0 : i32
    %c0_i32_1 = arith.constant 0 : i32
    return %c0_i32, %c0_i32_0 : i32, i32
  }
  func.func @transform_5(%arg0: i32) -> (i32, i32) {
    %c0_i32 = arith.constant 0 : i32
    %c0_i32_0 = arith.constant 0 : i32
    %c0_i32_1 = arith.constant 0 : i32
    return %c0_i32, %c0_i32_0 : i32, i32
  }
  func.func @transform_6(%arg0: i32) -> (i32, i32) {
    %c0_i32 = arith.constant 0 : i32
    %c0_i32_0 = arith.constant 0 : i32
    %c0_i32_1 = arith.constant 0 : i32
    return %c0_i32, %c0_i32_0 : i32, i32
  }
  func.func @transform_7(%arg0: i32) -> (i32, i32) {
    %c0_i32 = arith.constant 0 : i32
    %c0_i32_0 = arith.constant 0 : i32
    %c0_i32_1 = arith.constant 0 : i32
    return %c0_i32, %c0_i32_0 : i32, i32
  }
  func.func @transform_8(%arg0: i32) -> (i32, i32) {
    %c0_i32 = arith.constant 0 : i32
    %c0_i32_0 = arith.constant 0 : i32
    %c0_i32_1 = arith.constant 0 : i32
    return %c0_i32, %c0_i32_0 : i32, i32
  }
  func.func @transform_9(%arg0: i32) -> (i32, i32, i32, i32) {
    %c0_i32 = arith.constant 0 : i32
    %c0_i32_0 = arith.constant 0 : i32
    %c0_i32_1 = arith.constant 0 : i32
    %c0_i32_2 = arith.constant 0 : i32
    %c0_i32_3 = arith.constant 0 : i32
    return %c0_i32, %c0_i32_0, %c0_i32_1, %c0_i32_2 : i32, i32, i32, i32
  }
}

</mosaic_0001>

<llo_original>
// kernel: resnet_block.1
$region0: #{resnet_block.1}
  #allocation0 [shape = 'u32[]', space=smem, size = 0x4, offset = 0x4, fixed_abs, tag = 'smem constant byte address 0x4 - core index']
  #allocation1 [shape = 'u32[144,128]{1,0:T(1,128)}', space=vmem, size = 0x12000, scoped, tag = 'internal scratch']
  #allocation2 [shape = 'f32[2,18,18,128]{3,2,1,0:T(8,128)}', space=vmem, size = 0x6c000, scoped, tag = 'scratch operand']
  #allocation3 [shape = 'f32[512,1152]{1,0:T(8,128)}', space=vmem, size = 0x240000, scoped, tag = 'scratch operand']
  %s0 = inlined_call_operand.vmem [shape: f32[2,16,16,128], index: 0, kind: input, shape index: {}]
  %s1 = inlined_call_operand.vmem [shape: f32[1152,128], index: 1, kind: input, shape index: {}]
  %s2 = inlined_call_operand.vmem [shape: f32[1,128], index: 2, kind: input, shape index: {}]
  %s3 = inlined_call_operand.vmem [shape: f32[1,128], index: 3, kind: input, shape index: {}]
  %s4 = inlined_call_operand.vmem [shape: f32[1,128], index: 4, kind: input, shape index: {}]
  %s5 = inlined_call_operand.vmem [shape: f32[1152,128], index: 5, kind: input, shape index: {}]
  %s6 = inlined_call_operand.vmem [shape: f32[1,128], index: 6, kind: input, shape index: {}]
  %s7 = inlined_call_operand.vmem [shape: f32[1,128], index: 7, kind: input, shape index: {}]
  %s8 = inlined_call_operand.vmem [shape: f32[1,128], index: 8, kind: input, shape index: {}]
  %s9 = inlined_call_operand.vmem [shape: f32[2,16,16,128], index: 9, kind: output, shape index: {}]
  %s10 = sld [smem:[#allocation0]]
  $region46: #{resnet_block.1} parent=0
    _
  %s12 = ssub.s32 1, %s10
  %s13 = scalar_select 0, %s12, %s10
  // Predicated region
  $region2: #{resnet_block.1} parent=0 // pred_check
    _
  $region3: #{resnet_block.1} parent=0 // pred_check_branch
    %15 = sbr.rel (0) target = $region5
  $region4: #{resnet_block.1} parent=0 // pred_region
    _
  $region5: #{resnet_block.1} parent=0 // pred_fallthru
    _
  // Predicated region
  $region6: #{resnet_block.1} parent=0 // pred_check
    _
  $region7: #{resnet_block.1} parent=0 // pred_check_branch
    %17 = sbr.rel (0) target = $region9
  $region8: #{resnet_block.1} parent=0 // pred_region
    _
  $region9: #{resnet_block.1} parent=0 // pred_fallthru
    _
  // Predicated region
  $region10: #{resnet_block.1} parent=0 // pred_check
    _
  $region11: #{resnet_block.1} parent=0 // pred_check_branch
    %19 = sbr.rel (0) target = $region13
  $region12: #{resnet_block.1} parent=0 // pred_region
    _
  $region13: #{resnet_block.1} parent=0 // pred_fallthru
    _
  // Predicated region
  $region14: #{resnet_block.1} parent=0 // pred_check
    _
  $region15: #{resnet_block.1} parent=0 // pred_check_branch
    %21 = sbr.rel (0) target = $region17
  $region16: #{resnet_block.1} parent=0 // pred_region
    _
  $region17: #{resnet_block.1} parent=0 // pred_fallthru
    _
  // Predicated region
  $region18: #{resnet_block.1} parent=0 // pred_check
    _
  $region19: #{resnet_block.1} parent=0 // pred_check_branch
    %23 = sbr.rel (0) target = $region21
  $region20: #{resnet_block.1} parent=0 // pred_region
    _
  $region21: #{resnet_block.1} parent=0 // pred_fallthru
    _
  // Predicated region
  $region22: #{resnet_block.1} parent=0 // pred_check
    _
  $region23: #{resnet_block.1} parent=0 // pred_check_branch
    %25 = sbr.rel (0) target = $region25
  $region24: #{resnet_block.1} parent=0 // pred_region
    _
  $region25: #{resnet_block.1} parent=0 // pred_fallthru
    _
  // Predicated region
  $region26: #{resnet_block.1} parent=0 // pred_check
    _
  $region27: #{resnet_block.1} parent=0 // pred_check_branch
    %27 = sbr.rel (0) target = $region29
  $region28: #{resnet_block.1} parent=0 // pred_region
    _
  $region29: #{resnet_block.1} parent=0 // pred_fallthru
    _
  // Predicated region
  $region30: #{resnet_block.1} parent=0 // pred_check
    _
  $region31: #{resnet_block.1} parent=0 // pred_check_branch
    %29 = sbr.rel (0) target = $region33
  $region32: #{resnet_block.1} parent=0 // pred_region
    _
  $region33: #{resnet_block.1} parent=0 // pred_fallthru
    _
  // Predicated region
  $region34: #{resnet_block.1} parent=0 // pred_check
    _
  $region35: #{resnet_block.1} parent=0 // pred_check_branch
    %31 = sbr.rel (0) target = $region37
  $region36: #{resnet_block.1} parent=0 // pred_region
    _
  $region37: #{resnet_block.1} parent=0 // pred_fallthru
    _
  %32 = vst [vmem:[#allocation2] sm:$0xff] 0.0
  %33 = vst [vmem:[#allocation2 + $0x8] sm:$0xff] 0.0
  %34 = vst [vmem:[#allocation2 + $0x10] sm:$0x3] 0.0
  %35 = vst [vmem:[#allocation2 + $0x1b0] sm:$0xff] 0.0
  %36 = vst [vmem:[#allocation2 + $0x1b8] sm:$0xff] 0.0
  %37 = vst [vmem:[#allocation2 + $0x1c0] sm:$0x3] 0.0
  %s38 = scalar_lea.vmem [#allocation2], 408
  %39 = vst [vmem:[%s38] sm:$0xff] 0.0
  %40 = vst [vmem:[%s38 + $0x8] sm:$0xff] 0.0
  %41 = vst [vmem:[%s38 + $0x10] sm:$0x3] 0.0
  %42 = vst [vmem:[%s38 + $0x1b0] sm:$0xff] 0.0
  %43 = vst [vmem:[%s38 + $0x1b8] sm:$0xff] 0.0
  %44 = vst [vmem:[%s38 + $0x1c0] sm:$0x3] 0.0
  %s45 = scalar_lea.vmem [#allocation2], 24
  %46 = vst [vmem:[%s45] sm:$0x1] 0.0
  %47 = vst [vmem:[%s45 + $0x18] sm:$0x1] 0.0
  %48 = vst [vmem:[%s45 + $0x30] sm:$0x1] 0.0
  %49 = vst [vmem:[%s45 + $0x48] sm:$0x1] 0.0
  %50 = vst [vmem:[%s45 + $0x60] sm:$0x1] 0.0
  %51 = vst [vmem:[%s45 + $0x78] sm:$0x1] 0.0
  %52 = vst [vmem:[%s45 + $0x90] sm:$0x1] 0.0
  %53 = vst [vmem:[%s45 + $0xa8] sm:$0x1] 0.0
  %54 = vst [vmem:[%s45 + $0xc0] sm:$0x1] 0.0
  %55 = vst [vmem:[%s45 + $0xd8] sm:$0x1] 0.0
  %56 = vst [vmem:[%s45 + $0xf0] sm:$0x1] 0.0
  %57 = vst [vmem:[%s45 + $0x108] sm:$0x1] 0.0
  %58 = vst [vmem:[%s45 + $0x120] sm:$0x1] 0.0
  %59 = vst [vmem:[%s45 + $0x138] sm:$0x1] 0.0
  %60 = vst [vmem:[%s45 + $0x150] sm:$0x1] 0.0
  %61 = vst [vmem:[%s45 + $0x168] sm:$0x1] 0.0
  %62 = vst [vmem:[%s45 + $0x1b0] sm:$0x1] 0.0
  %63 = vst [vmem:[%s45 + $0x1c8] sm:$0x1] 0.0
  %64 = vst [vmem:[%s45 + $0x1e0] sm:$0x1] 0.0
  %65 = vst [vmem:[%s45 + $0x1f8] sm:$0x1] 0.0
  %66 = vst [vmem:[%s45 + $0x210] sm:$0x1] 0.0
  %67 = vst [vmem:[%s45 + $0x228] sm:$0x1] 0.0
  %68 = vst [vmem:[%s45 + $0x240] sm:$0x1] 0.0
  %69 = vst [vmem:[%s45 + $0x258] sm:$0x1] 0.0
  %70 = vst [vmem:[%s45 + $0x270] sm:$0x1] 0.0
  %71 = vst [vmem:[%s45 + $0x288] sm:$0x1] 0.0
  %72 = vst [vmem:[%s45 + $0x2a0] sm:$0x1] 0.0
  %73 = vst [vmem:[%s45 + $0x2b8] sm:$0x1] 0.0
  %74 = vst [vmem:[%s45 + $0x2d0] sm:$0x1] 0.0
  %75 = vst [vmem:[%s45 + $0x2e8] sm:$0x1] 0.0
  %76 = vst [vmem:[%s45 + $0x300] sm:$0x1] 0.0
  %77 = vst [vmem:[%s45 + $0x318] sm:$0x1] 0.0
  %78 = vst [vmem:[%s45 + $0x11] sm:$0x1] 0.0
  %79 = vst [vmem:[%s45 + $0x29] sm:$0x1] 0.0
  %80 = vst [vmem:[%s45 + $0x41] sm:$0x1] 0.0
  %81 = vst [vmem:[%s45 + $0x59] sm:$0x1] 0.0
  %82 = vst [vmem:[%s45 + $0x71] sm:$0x1] 0.0
  %83 = vst [vmem:[%s45 + $0x89] sm:$0x1] 0.0
  %84 = vst [vmem:[%s45 + $0xa1] sm:$0x1] 0.0
  %85 = vst [vmem:[%s45 + $0xb9] sm:$0x1] 0.0
  %86 = vst [vmem:[%s45 + $0xd1] sm:$0x1] 0.0
  %87 = vst [vmem:[%s45 + $0xe9] sm:$0x1] 0.0
  %88 = vst [vmem:[%s45 + $0x101] sm:$0x1] 0.0
  %89 = vst [vmem:[%s45 + $0x119] sm:$0x1] 0.0
  %90 = vst [vmem:[%s45 + $0x131] sm:$0x1] 0.0
  %91 = vst [vmem:[%s45 + $0x149] sm:$0x1] 0.0
  %92 = vst [vmem:[%s45 + $0x161] sm:$0x1] 0.0
  %93 = vst [vmem:[%s45 + $0x179] sm:$0x1] 0.0
  %94 = vst [vmem:[%s45 + $0x1c1] sm:$0x1] 0.0
  %95 = vst [vmem:[%s45 + $0x1d9] sm:$0x1] 0.0
  %96 = vst [vmem:[%s45 + $0x1f1] sm:$0x1] 0.0
  %97 = vst [vmem:[%s45 + $0x209] sm:$0x1] 0.0
  %98 = vst [vmem:[%s45 + $0x221] sm:$0x1] 0.0
  %99 = vst [vmem:[%s45 + $0x239] sm:$0x1] 0.0
  %100 = vst [vmem:[%s45 + $0x251] sm:$0x1] 0.0
  %101 = vst [vmem:[%s45 + $0x269] sm:$0x1] 0.0
  %102 = vst [vmem:[%s45 + $0x281] sm:$0x1] 0.0
  %103 = vst [vmem:[%s45 + $0x299] sm:$0x1] 0.0
  %104 = vst [vmem:[%s45 + $0x2b1] sm:$0x1] 0.0
  %105 = vst [vmem:[%s45 + $0x2c9] sm:$0x1] 0.0
  %106 = vst [vmem:[%s45 + $0x2e1] sm:$0x1] 0.0
  %107 = vst [vmem:[%s45 + $0x2f9] sm:$0x1] 0.0
  %108 = vst [vmem:[%s45 + $0x311] sm:$0x1] 0.0
  %109 = vst [vmem:[%s45 + $0x329] sm:$0x1] 0.0
  %v110 = vld [vmem:[%s0] sm:$0xff]
  %v111 = vld [vmem:[%s0 + $0x8] sm:$0xff]
  %v112 = vld [vmem:[%s0 + $0x10] sm:$0xff]
  %v113 = vld [vmem:[%s0 + $0x18] sm:$0xff]
  %v114 = vld [vmem:[%s0 + $0x20] sm:$0xff]
  %v115 = vld [vmem:[%s0 + $0x28] sm:$0xff]
  %v116 = vld [vmem:[%s0 + $0x30] sm:$0xff]
  %v117 = vld [vmem:[%s0 + $0x38] sm:$0xff]
  %v118 = vld [vmem:[%s0 + $0x40] sm:$0xff]
  %v119 = vld [vmem:[%s0 + $0x48] sm:$0xff]
  %v120 = vld [vmem:[%s0 + $0x50] sm:$0xff]
  %v121 = vld [vmem:[%s0 + $0x58] sm:$0xff]
  %v122 = vld [vmem:[%s0 + $0x60] sm:$0xff]
  %v123 = vld [vmem:[%s0 + $0x68] sm:$0xff]
  %v124 = vld [vmem:[%s0 + $0x70] sm:$0xff]
  %v125 = vld [vmem:[%s0 + $0x78] sm:$0xff]
  %v126 = vld [vmem:[%s0 + $0x80] sm:$0xff]
  %v127 = vld [vmem:[%s0 + $0x88] sm:$0xff]
  %v128 = vld [vmem:[%s0 + $0x90] sm:$0xff]
  %v129 = vld [vmem:[%s0 + $0x98] sm:$0xff]
  %v130 = vld [vmem:[%s0 + $0xa0] sm:$0xff]
  %v131 = vld [vmem:[%s0 + $0xa8] sm:$0xff]
  %v132 = vld [vmem:[%s0 + $0xb0] sm:$0xff]
  %v133 = vld [vmem:[%s0 + $0xb8] sm:$0xff]
  %v134 = vld [vmem:[%s0 + $0xc0] sm:$0xff]
  %v135 = vld [vmem:[%s0 + $0xc8] sm:$0xff]
  %v136 = vld [vmem:[%s0 + $0xd0] sm:$0xff]
  %v137 = vld [vmem:[%s0 + $0xd8] sm:$0xff]
  %v138 = vld [vmem:[%s0 + $0xe0] sm:$0xff]
  %v139 = vld [vmem:[%s0 + $0xe8] sm:$0xff]
  %v140 = vld [vmem:[%s0 + $0xf0] sm:$0xff]
  %v141 = vld [vmem:[%s0 + $0xf8] sm:$0xff]
  %v142 = vld [vmem:[%s0 + $0x100] sm:$0xff]
  %v143 = vld [vmem:[%s0 + $0x108] sm:$0xff]
  %v144 = vld [vmem:[%s0 + $0x110] sm:$0xff]
  %v145 = vld [vmem:[%s0 + $0x118] sm:$0xff]
  %v146 = vld [vmem:[%s0 + $0x120] sm:$0xff]
  %v147 = vld [vmem:[%s0 + $0x128] sm:$0xff]
  %v148 = vld [vmem:[%s0 + $0x130] sm:$0xff]
  %v149 = vld [vmem:[%s0 + $0x138] sm:$0xff]
  %v150 = vld [vmem:[%s0 + $0x140] sm:$0xff]
  %v151 = vld [vmem:[%s0 + $0x148] sm:$0xff]
  %v152 = vld [vmem:[%s0 + $0x150] sm:$0xff]
  %v153 = vld [vmem:[%s0 + $0x158] sm:$0xff]
  %v154 = vld [vmem:[%s0 + $0x160] sm:$0xff]
  %v155 = vld [vmem:[%s0 + $0x168] sm:$0xff]
  %v156 = vld [vmem:[%s0 + $0x170] sm:$0xff]
  %v157 = vld [vmem:[%s0 + $0x178] sm:$0xff]
  %v158 = vld [vmem:[%s0 + $0x180] sm:$0xff]
  %v159 = vld [vmem:[%s0 + $0x188] sm:$0xff]
  %v160 = vld [vmem:[%s0 + $0x190] sm:$0xff]
  %v161 = vld [vmem:[%s0 + $0x198] sm:$0xff]
  %v162 = vld [vmem:[%s0 + $0x1a0] sm:$0xff]
  %v163 = vld [vmem:[%s0 + $0x1a8] sm:$0xff]
  %v164 = vld [vmem:[%s0 + $0x1b0] sm:$0xff]
  %v165 = vld [vmem:[%s0 + $0x1b8] sm:$0xff]
  %v166 = vld [vmem:[%s0 + $0x1c0] sm:$0xff]
  %v167 = vld [vmem:[%s0 + $0x1c8] sm:$0xff]
  %v168 = vld [vmem:[%s0 + $0x1d0] sm:$0xff]
  %v169 = vld [vmem:[%s0 + $0x1d8] sm:$0xff]
  %v170 = vld [vmem:[%s0 + $0x1e0] sm:$0xff]
  %v171 = vld [vmem:[%s0 + $0x1e8] sm:$0xff]
  %v172 = vld [vmem:[%s0 + $0x1f0] sm:$0xff]
  %v173 = vld [vmem:[%s0 + $0x1f8] sm:$0xff]
  %174 = vst [vmem:[%s45 + $0x1] sm:$0xff] %v110
  %175 = vst [vmem:[%s45 + $0x9] sm:$0xff] %v111
  %176 = vst [vmem:[%s45 + $0x19] sm:$0xff] %v112
  %177 = vst [vmem:[%s45 + $0x21] sm:$0xff] %v113
  %178 = vst [vmem:[%s45 + $0x31] sm:$0xff] %v114
  %179 = vst [vmem:[%s45 + $0x39] sm:$0xff] %v115
  %180 = vst [vmem:[%s45 + $0x49] sm:$0xff] %v116
  %181 = vst [vmem:[%s45 + $0x51] sm:$0xff] %v117
  %182 = vst [vmem:[%s45 + $0x61] sm:$0xff] %v118
  %183 = vst [vmem:[%s45 + $0x69] sm:$0xff] %v119
  %184 = vst [vmem:[%s45 + $0x79] sm:$0xff] %v120
  %185 = vst [vmem:[%s45 + $0x81] sm:$0xff] %v121
  %186 = vst [vmem:[%s45 + $0x91] sm:$0xff] %v122
  %187 = vst [vmem:[%s45 + $0x99] sm:$0xff] %v123
  %188 = vst [vmem:[%s45 + $0xa9] sm:$0xff] %v124
  %189 = vst [vmem:[%s45 + $0xb1] sm:$0xff] %v125
  %190 = vst [vmem:[%s45 + $0xc1] sm:$0xff] %v126
  %191 = vst [vmem:[%s45 + $0xc9] sm:$0xff] %v127
  %192 = vst [vmem:[%s45 + $0xd9] sm:$0xff] %v128
  %193 = vst [vmem:[%s45 + $0xe1] sm:$0xff] %v129
  %194 = vst [vmem:[%s45 + $0xf1] sm:$0xff] %v130
  %195 = vst [vmem:[%s45 + $0xf9] sm:$0xff] %v131
  %196 = vst [vmem:[%s45 + $0x109] sm:$0xff] %v132
  %197 = vst [vmem:[%s45 + $0x111] sm:$0xff] %v133
  %198 = vst [vmem:[%s45 + $0x121] sm:$0xff] %v134
  %199 = vst [vmem:[%s45 + $0x129] sm:$0xff] %v135
  %200 = vst [vmem:[%s45 + $0x139] sm:$0xff] %v136
  %201 = vst [vmem:[%s45 + $0x141] sm:$0xff] %v137
  %202 = vst [vmem:[%s45 + $0x151] sm:$0xff] %v138
  %203 = vst [vmem:[%s45 + $0x159] sm:$0xff] %v139
  %204 = vst [vmem:[%s45 + $0x169] sm:$0xff] %v140
  %205 = vst [vmem:[%s45 + $0x171] sm:$0xff] %v141
  %206 = vst [vmem:[%s45 + $0x1b1] sm:$0xff] %v142
  %207 = vst [vmem:[%s45 + $0x1b9] sm:$0xff] %v143
  %208 = vst [vmem:[%s45 + $0x1c9] sm:$0xff] %v144
  %209 = vst [vmem:[%s45 + $0x1d1] sm:$0xff] %v145
  %210 = vst [vmem:[%s45 + $0x1e1] sm:$0xff] %v146
  %211 = vst [vmem:[%s45 + $0x1e9] sm:$0xff] %v147
  %212 = vst [vmem:[%s45 + $0x1f9] sm:$0xff] %v148
  %213 = vst [vmem:[%s45 + $0x201] sm:$0xff] %v149
  %214 = vst [vmem:[%s45 + $0x211] sm:$0xff] %v150
  %215 = vst [vmem:[%s45 + $0x219] sm:$0xff] %v151
  %216 = vst [vmem:[%s45 + $0x229] sm:$0xff] %v152
  %217 = vst [vmem:[%s45 + $0x231] sm:$0xff] %v153
  %218 = vst [vmem:[%s45 + $0x241] sm:$0xff] %v154
  %219 = vst [vmem:[%s45 + $0x249] sm:$0xff] %v155
  %220 = vst [vmem:[%s45 + $0x259] sm:$0xff] %v156
  %221 = vst [vmem:[%s45 + $0x261] sm:$0xff] %v157
  %222 = vst [vmem:[%s45 + $0x271] sm:$0xff] %v158
  %223 = vst [vmem:[%s45 + $0x279] sm:$0xff] %v159
  %224 = vst [vmem:[%s45 + $0x289] sm:$0xff] %v160
  %225 = vst [vmem:[%s45 + $0x291] sm:$0xff] %v161
  %226 = vst [vmem:[%s45 + $0x2a1] sm:$0xff] %v162
  %227 = vst [vmem:[%s45 + $0x2a9] sm:$0xff] %v163
  %228 = vst [vmem:[%s45 + $0x2b9] sm:$0xff] %v164
  %229 = vst [vmem:[%s45 + $0x2c1] sm:$0xff] %v165
  %230 = vst [vmem:[%s45 + $0x2d1] sm:$0xff] %v166
  %231 = vst [vmem:[%s45 + $0x2d9] sm:$0xff] %v167
  %232 = vst [vmem:[%s45 + $0x2e9] sm:$0xff] %v168
  %233 = vst [vmem:[%s45 + $0x2f1] sm:$0xff] %v169
  %234 = vst [vmem:[%s45 + $0x301] sm:$0xff] %v170
  %235 = vst [vmem:[%s45 + $0x309] sm:$0xff] %v171
  %236 = vst [vmem:[%s45 + $0x319] sm:$0xff] %v172
  %237 = vst [vmem:[%s45 + $0x321] sm:$0xff] %v173
  %v238 = vld [vmem:[%s1] sm:$0xff]
  %v239 = vld [vmem:[%s1 + $0x8] sm:$0xff]
  %v240 = vld [vmem:[%s1 + $0x10] sm:$0xff]
  %v241 = vld [vmem:[%s1 + $0x18] sm:$0xff]
  %v242 = vld [vmem:[%s1 + $0x20] sm:$0xff]
  %v243 = vld [vmem:[%s1 + $0x28] sm:$0xff]
  %v244 = vld [vmem:[%s1 + $0x30] sm:$0xff]
  %v245 = vld [vmem:[%s1 + $0x38] sm:$0xff]
  %v246 = vld [vmem:[%s1 + $0x40] sm:$0xff]
  %v247 = vld [vmem:[%s1 + $0x48] sm:$0xff]
  %v248 = vld [vmem:[%s1 + $0x50] sm:$0xff]
  %v249 = vld [vmem:[%s1 + $0x58] sm:$0xff]
  %v250 = vld [vmem:[%s1 + $0x60] sm:$0xff]
  %v251 = vld [vmem:[%s1 + $0x68] sm:$0xff]
  %v252 = vld [vmem:[%s1 + $0x70] sm:$0xff]
  %v253 = vld [vmem:[%s1 + $0x78] sm:$0xff]
  %v254 = vld [vmem:[%s1 + $0x80] sm:$0xff]
  %v255 = vld [vmem:[%s1 + $0x88] sm:$0xff]
  %v256 = vld [vmem:[%s1 + $0x90] sm:$0xff]
  %v257 = vld [vmem:[%s1 + $0x98] sm:$0xff]
  %v258 = vld [vmem:[%s1 + $0xa0] sm:$0xff]
  %v259 = vld [vmem:[%s1 + $0xa8] sm:$0xff]
  %v260 = vld [vmem:[%s1 + $0xb0] sm:$0xff]
  %v261 = vld [vmem:[%s1 + $0xb8] sm:$0xff]
  %v262 = vld [vmem:[%s1 + $0xc0] sm:$0xff]
  %v263 = vld [vmem:[%s1 + $0xc8] sm:$0xff]
  %v264 = vld [vmem:[%s1 + $0xd0] sm:$0xff]
  %v265 = vld [vmem:[%s1 + $0xd8] sm:$0xff]
  %v266 = vld [vmem:[%s1 + $0xe0] sm:$0xff]
  %v267 = vld [vmem:[%s1 + $0xe8] sm:$0xff]
  %v268 = vld [vmem:[%s1 + $0xf0] sm:$0xff]
  %v269 = vld [vmem:[%s1 + $0xf8] sm:$0xff]
  %v270 = vld [vmem:[%s1 + $0x100] sm:$0xff]
  %v271 = vld [vmem:[%s1 + $0x108] sm:$0xff]
  %v272 = vld [vmem:[%s1 + $0x110] sm:$0xff]
  %v273 = vld [vmem:[%s1 + $0x118] sm:$0xff]
  %v274 = vld [vmem:[%s1 + $0x120] sm:$0xff]
  %v275 = vld [vmem:[%s1 + $0x128] sm:$0xff]
  %v276 = vld [vmem:[%s1 + $0x130] sm:$0xff]
  %v277 = vld [vmem:[%s1 + $0x138] sm:$0xff]
  %v278 = vld [vmem:[%s1 + $0x140] sm:$0xff]
  %v279 = vld [vmem:[%s1 + $0x148] sm:$0xff]
  %v280 = vld [vmem:[%s1 + $0x150] sm:$0xff]
  %v281 = vld [vmem:[%s1 + $0x158] sm:$0xff]
  %v282 = vld [vmem:[%s1 + $0x160] sm:$0xff]
  %v283 = vld [vmem:[%s1 + $0x168] sm:$0xff]
  %v284 = vld [vmem:[%s1 + $0x170] sm:$0xff]
  %v285 = vld [vmem:[%s1 + $0x178] sm:$0xff]
  %v286 = vld [vmem:[%s1 + $0x180] sm:$0xff]
  %v287 = vld [vmem:[%s1 + $0x188] sm:$0xff]
  %v288 = vld [vmem:[%s1 + $0x190] sm:$0xff]
  %v289 = vld [vmem:[%s1 + $0x198] sm:$0xff]
  %v290 = vld [vmem:[%s1 + $0x1a0] sm:$0xff]
  %v291 = vld [vmem:[%s1 + $0x1a8] sm:$0xff]
  %v292 = vld [vmem:[%s1 + $0x1b0] sm:$0xff]
  %v293 = vld [vmem:[%s1 + $0x1b8] sm:$0xff]
  %v294 = vld [vmem:[%s1 + $0x1c0] sm:$0xff]
  %v295 = vld [vmem:[%s1 + $0x1c8] sm:$0xff]
  %v296 = vld [vmem:[%s1 + $0x1d0] sm:$0xff]
  %v297 = vld [vmem:[%s1 + $0x1d8] sm:$0xff]
  %v298 = vld [vmem:[%s1 + $0x1e0] sm:$0xff]
  %v299 = vld [vmem:[%s1 + $0x1e8] sm:$0xff]
  %v300 = vld [vmem:[%s1 + $0x1f0] sm:$0xff]
  %v301 = vld [vmem:[%s1 + $0x1f8] sm:$0xff]
  %v302 = vld [vmem:[%s1 + $0x200] sm:$0xff]
  %v303 = vld [vmem:[%s1 + $0x208] sm:$0xff]
  %v304 = vld [vmem:[%s1 + $0x210] sm:$0xff]
  %v305 = vld [vmem:[%s1 + $0x218] sm:$0xff]
  %v306 = vld [vmem:[%s1 + $0x220] sm:$0xff]
  %v307 = vld [vmem:[%s1 + $0x228] sm:$0xff]
  %v308 = vld [vmem:[%s1 + $0x230] sm:$0xff]
  %v309 = vld [vmem:[%s1 + $0x238] sm:$0xff]
  %v310 = vld [vmem:[%s1 + $0x240] sm:$0xff]
  %v311 = vld [vmem:[%s1 + $0x248] sm:$0xff]
  %v312 = vld [vmem:[%s1 + $0x250] sm:$0xff]
  %v313 = vld [vmem:[%s1 + $0x258] sm:$0xff]
  %v314 = vld [vmem:[%s1 + $0x260] sm:$0xff]
  %v315 = vld [vmem:[%s1 + $0x268] sm:$0xff]
  %v316 = vld [vmem:[%s1 + $0x270] sm:$0xff]
  %v317 = vld [vmem:[%s1 + $0x278] sm:$0xff]
  %v318 = vld [vmem:[%s1 + $0x280] sm:$0xff]
  %v319 = vld [vmem:[%s1 + $0x288] sm:$0xff]
  %v320 = vld [vmem:[%s1 + $0x290] sm:$0xff]
  %v321 = vld [vmem:[%s1 + $0x298] sm:$0xff]
  %v322 = vld [vmem:[%s1 + $0x2a0] sm:$0xff]
  %v323 = vld [vmem:[%s1 + $0x2a8] sm:$0xff]
  %v324 = vld [vmem:[%s1 + $0x2b0] sm:$0xff]
  %v325 = vld [vmem:[%s1 + $0x2b8] sm:$0xff]
  %v326 = vld [vmem:[%s1 + $0x2c0] sm:$0xff]
  %v327 = vld [vmem:[%s1 + $0x2c8] sm:$0xff]
  %v328 = vld [vmem:[%s1 + $0x2d0] sm:$0xff]
  %v329 = vld [vmem:[%s1 + $0x2d8] sm:$0xff]
  %v330 = vld [vmem:[%s1 + $0x2e0] sm:$0xff]
  %v331 = vld [vmem:[%s1 + $0x2e8] sm:$0xff]
  %v332 = vld [vmem:[%s1 + $0x2f0] sm:$0xff]
  %v333 = vld [vmem:[%s1 + $0x2f8] sm:$0xff]
  %v334 = vld [vmem:[%s1 + $0x300] sm:$0xff]
  %v335 = vld [vmem:[%s1 + $0x308] sm:$0xff]
  %v336 = vld [vmem:[%s1 + $0x310] sm:$0xff]
  %v337 = vld [vmem:[%s1 + $0x318] sm:$0xff]
  %v338 = vld [vmem:[%s1 + $0x320] sm:$0xff]
  %v339 = vld [vmem:[%s1 + $0x328] sm:$0xff]
  %v340 = vld [vmem:[%s1 + $0x330] sm:$0xff]
  %v341 = vld [vmem:[%s1 + $0x338] sm:$0xff]
  %v342 = vld [vmem:[%s1 + $0x340] sm:$0xff]
  %v343 = vld [vmem:[%s1 + $0x348] sm:$0xff]
  %v344 = vld [vmem:[%s1 + $0x350] sm:$0xff]
  %v345 = vld [vmem:[%s1 + $0x358] sm:$0xff]
  %v346 = vld [vmem:[%s1 + $0x360] sm:$0xff]
  %v347 = vld [vmem:[%s1 + $0x368] sm:$0xff]
  %v348 = vld [vmem:[%s1 + $0x370] sm:$0xff]
  %v349 = vld [vmem:[%s1 + $0x378] sm:$0xff]
  %v350 = vld [vmem:[%s1 + $0x380] sm:$0xff]
  %v351 = vld [vmem:[%s1 + $0x388] sm:$0xff]
  %v352 = vld [vmem:[%s1 + $0x390] sm:$0xff]
  %v353 = vld [vmem:[%s1 + $0x398] sm:$0xff]
  %v354 = vld [vmem:[%s1 + $0x3a0] sm:$0xff]
  %v355 = vld [vmem:[%s1 + $0x3a8] sm:$0xff]
  %v356 = vld [vmem:[%s1 + $0x3b0] sm:$0xff]
  %v357 = vld [vmem:[%s1 + $0x3b8] sm:$0xff]
  %v358 = vld [vmem:[%s1 + $0x3c0] sm:$0xff]
  %v359 = vld [vmem:[%s1 + $0x3c8] sm:$0xff]
  %v360 = vld [vmem:[%s1 + $0x3d0] sm:$0xff]
  %v361 = vld [vmem:[%s1 + $0x3d8] sm:$0xff]
  %v362 = vld [vmem:[%s1 + $0x3e0] sm:$0xff]
  %v363 = vld [vmem:[%s1 + $0x3e8] sm:$0xff]
  %v364 = vld [vmem:[%s1 + $0x3f0] sm:$0xff]
  %v365 = vld [vmem:[%s1 + $0x3f8] sm:$0xff]
  %v366 = vld [vmem:[%s1 + $0x400] sm:$0xff]
  %v367 = vld [vmem:[%s1 + $0x408] sm:$0xff]
  %v368 = vld [vmem:[%s1 + $0x410] sm:$0xff]
  %v369 = vld [vmem:[%s1 + $0x418] sm:$0xff]
  %v370 = vld [vmem:[%s1 + $0x420] sm:$0xff]
  %v371 = vld [vmem:[%s1 + $0x428] sm:$0xff]
  %v372 = vld [vmem:[%s1 + $0x430] sm:$0xff]
  %v373 = vld [vmem:[%s1 + $0x438] sm:$0xff]
  %v374 = vld [vmem:[%s1 + $0x440] sm:$0xff]
  %v375 = vld [vmem:[%s1 + $0x448] sm:$0xff]
  %v376 = vld [vmem:[%s1 + $0x450] sm:$0xff]
  %v377 = vld [vmem:[%s1 + $0x458] sm:$0xff]
  %v378 = vld [vmem:[%s1 + $0x460] sm:$0xff]
  %v379 = vld [vmem:[%s1 + $0x468] sm:$0xff]
  %v380 = vld [vmem:[%s1 + $0x470] sm:$0xff]
  %v381 = vld [vmem:[%s1 + $0x478] sm:$0xff]
  %v382 = vld [vmem:[%s2] sm:$0x1]
  %v383 = vld [vmem:[%s3] sm:$0x1]
  %v384 = vld [vmem:[%s4] sm:$0x1]
  %v385 = vld [vmem:[#allocation2] sm:$0xff]
  %v386 = vld [vmem:[#allocation2 + $0x8] sm:$0xff]
  %v387 = vld [vmem:[#allocation2 + $0x18] sm:$0xff]
  %v388 = vld [vmem:[#allocation2 + $0x20] sm:$0xff]
  %v389 = vld [vmem:[#allocation2 + $0x30] sm:$0xff]
  %v390 = vld [vmem:[#allocation2 + $0x38] sm:$0xff]
  %v391 = vld [vmem:[#allocation2 + $0x48] sm:$0xff]
  %v392 = vld [vmem:[#allocation2 + $0x50] sm:$0xff]
  %v393 = vld [vmem:[#allocation2 + $0x60] sm:$0xff]
  %v394 = vld [vmem:[#allocation2 + $0x68] sm:$0xff]
  %v395 = vld [vmem:[#allocation2 + $0x78] sm:$0xff]
  %v396 = vld [vmem:[#allocation2 + $0x80] sm:$0xff]
  %v397 = vld [vmem:[#allocation2 + $0x90] sm:$0xff]
  %v398 = vld [vmem:[#allocation2 + $0x98] sm:$0xff]
  %v399 = vld [vmem:[#allocation2 + $0xa8] sm:$0xff]
  %v400 = vld [vmem:[#allocation2 + $0xb0] sm:$0xff]
  %v401 = vld [vmem:[#allocation2 + $0xc0] sm:$0xff]
  %v402 = vld [vmem:[#allocation2 + $0xc8] sm:$0xff]
  %v403 = vld [vmem:[#allocation2 + $0xd8] sm:$0xff]
  %v404 = vld [vmem:[#allocation2 + $0xe0] sm:$0xff]
  %v405 = vld [vmem:[#allocation2 + $0xf0] sm:$0xff]
  %v406 = vld [vmem:[#allocation2 + $0xf8] sm:$0xff]
  %v407 = vld [vmem:[#allocation2 + $0x108] sm:$0xff]
  %v408 = vld [vmem:[#allocation2 + $0x110] sm:$0xff]
  %v409 = vld [vmem:[#allocation2 + $0x120] sm:$0xff]
  %v410 = vld [vmem:[#allocation2 + $0x128] sm:$0xff]
  %v411 = vld [vmem:[#allocation2 + $0x138] sm:$0xff]
  %v412 = vld [vmem:[#allocation2 + $0x140] sm:$0xff]
  %v413 = vld [vmem:[#allocation2 + $0x150] sm:$0xff]
  %v414 = vld [vmem:[#allocation2 + $0x158] sm:$0xff]
  %v415 = vld [vmem:[#allocation2 + $0x168] sm:$0xff]
  %v416 = vld [vmem:[#allocation2 + $0x170] sm:$0xff]
  %v417 = vld [vmem:[#allocation2 + $0x180] sm:$0xff]
  %v418 = vld [vmem:[#allocation2 + $0x188] sm:$0xff]
  %v419 = vld [vmem:[#allocation2 + $0x198] sm:$0xff]
  %v420 = vld [vmem:[#allocation2 + $0x1a0] sm:$0xff]
  %v421 = vld [vmem:[#allocation2 + $0x1b0] sm:$0xff]
  %v422 = vld [vmem:[#allocation2 + $0x1b8] sm:$0xff]
  %v423 = vld [vmem:[#allocation2 + $0x1c8] sm:$0xff]
  %v424 = vld [vmem:[#allocation2 + $0x1d0] sm:$0xff]
  %v425 = vld [vmem:[#allocation2 + $0x1e0] sm:$0xff]
  %v426 = vld [vmem:[#allocation2 + $0x1e8] sm:$0xff]
  %v427 = vld [vmem:[#allocation2 + $0x1f8] sm:$0xff]
  %v428 = vld [vmem:[#allocation2 + $0x200] sm:$0xff]
  %v429 = vld [vmem:[#allocation2 + $0x210] sm:$0xff]
  %v430 = vld [vmem:[#allocation2 + $0x218] sm:$0xff]
  %v431 = vld [vmem:[#allocation2 + $0x228] sm:$0xff]
  %v432 = vld [vmem:[#allocation2 + $0x230] sm:$0xff]
  %v433 = vld [vmem:[#allocation2 + $0x240] sm:$0xff]
  %v434 = vld [vmem:[#allocation2 + $0x248] sm:$0xff]
  %v435 = vld [vmem:[#allocation2 + $0x258] sm:$0xff]
  %v436 = vld [vmem:[#allocation2 + $0x260] sm:$0xff]
  %v437 = vld [vmem:[#allocation2 + $0x270] sm:$0xff]
  %v438 = vld [vmem:[#allocation2 + $0x278] sm:$0xff]
  %v439 = vld [vmem:[#allocation2 + $0x288] sm:$0xff]
  %v440 = vld [vmem:[#allocation2 + $0x290] sm:$0xff]
  %v441 = vld [vmem:[#allocation2 + $0x2a0] sm:$0xff]
  %v442 = vld [vmem:[#allocation2 + $0x2a8] sm:$0xff]
  %v443 = vld [vmem:[#allocation2 + $0x2b8] sm:$0xff]
  %v444 = vld [vmem:[#allocation2 + $0x2c0] sm:$0xff]
  %v445 = vld [vmem:[#allocation2 + $0x2d0] sm:$0xff]
  %v446 = vld [vmem:[#allocation2 + $0x2d8] sm:$0xff]
  %v447 = vld [vmem:[#allocation2 + $0x2e8] sm:$0xff]
  %v448 = vld [vmem:[#allocation2 + $0x2f0] sm:$0xff]
  %v449 = vld [vmem:[#allocation2 + $0x300] sm:$0xff]
  %v450 = vld [vmem:[#allocation2 + $0x308] sm:$0xff]
  %v451 = vld [vmem:[#allocation2 + $0x318] sm:$0xff]
  %v452 = vld [vmem:[#allocation2 + $0x320] sm:$0xff]
  %v453 = vld [vmem:[#allocation2 + $0x330] sm:$0xff]
  %v454 = vld [vmem:[#allocation2 + $0x338] sm:$0xff]
  %v455 = vld [vmem:[#allocation2 + $0x348] sm:$0xff]
  %v456 = vld [vmem:[#allocation2 + $0x350] sm:$0xff]
  %457 = vst [vmem:[#allocation3] sm:$0xff] %v385
  %458 = vst [vmem:[#allocation3 + $0x48] sm:$0xff] %v386
  %459 = vst [vmem:[#allocation3 + $0x90] sm:$0xff] %v387
  %460 = vst [vmem:[#allocation3 + $0xd8] sm:$0xff] %v388
  %461 = vst [vmem:[#allocation3 + $0x120] sm:$0xff] %v389
  %462 = vst [vmem:[#allocation3 + $0x168] sm:$0xff] %v390
  %463 = vst [vmem:[#allocation3 + $0x1b0] sm:$0xff] %v391
  %464 = vst [vmem:[#allocation3 + $0x1f8] sm:$0xff] %v392
  %465 = vst [vmem:[#allocation3 + $0x240] sm:$0xff] %v393
  %466 = vst [vmem:[#allocation3 + $0x288] sm:$0xff] %v394
  %467 = vst [vmem:[#allocation3 + $0x2d0] sm:$0xff] %v395
  %468 = vst [vmem:[#allocation3 + $0x318] sm:$0xff] %v396
  %469 = vst [vmem:[#allocation3 + $0x360] sm:$0xff] %v397
  %470 = vst [vmem:[#allocation3 + $0x3a8] sm:$0xff] %v398
  %471 = vst [vmem:[#allocation3 + $0x3f0] sm:$0xff] %v399
  %472 = vst [vmem:[#allocation3 + $0x438] sm:$0xff] %v400
  %473 = vst [vmem:[#allocation3 + $0x480] sm:$0xff] %v401
  %474 = vst [vmem:[#allocation3 + $0x4c8] sm:$0xff] %v402
  %475 = vst [vmem:[#allocation3 + $0x510] sm:$0xff] %v403
  %476 = vst [vmem:[#allocation3 + $0x558] sm:$0xff] %v404
  %477 = vst [vmem:[#allocation3 + $0x5a0] sm:$0xff] %v405
  %478 = vst [vmem:[#allocation3 + $0x5e8] sm:$0xff] %v406
  %479 = vst [vmem:[#allocation3 + $0x630] sm:$0xff] %v407
  %480 = vst [vmem:[#allocation3 + $0x678] sm:$0xff] %v408
  %481 = vst [vmem:[#allocation3 + $0x6c0] sm:$0xff] %v409
  %482 = vst [vmem:[#allocation3 + $0x708] sm:$0xff] %v410
  %483 = vst [vmem:[#allocation3 + $0x750] sm:$0xff] %v411
  %484 = vst [vmem:[#allocation3 + $0x798] sm:$0xff] %v412
  %485 = vst [vmem:[#allocation3 + $0x7e0] sm:$0xff] %v413
  %486 = vst [vmem:[#allocation3 + $0x828] sm:$0xff] %v414
  %487 = vst [vmem:[#allocation3 + $0x870] sm:$0xff] %v415
  %488 = vst [vmem:[#allocation3 + $0x8b8] sm:$0xff] %v416
  %489 = vst [vmem:[#allocation3 + $0x900] sm:$0xff] %v421
  %490 = vst [vmem:[#allocation3 + $0x948] sm:$0xff] %v422
  %491 = vst [vmem:[#allocation3 + $0x990] sm:$0xff] %v423
  %492 = vst [vmem:[#allocation3 + $0x9d8] sm:$0xff] %v424
  %493 = vst [vmem:[#allocation3 + $0xa20] sm:$0xff] %v425
  %494 = vst [vmem:[#allocation3 + $0xa68] sm:$0xff] %v426
  %495 = vst [vmem:[#allocation3 + $0xab0] sm:$0xff] %v427
  %496 = vst [vmem:[#allocation3 + $0xaf8] sm:$0xff] %v428
  %497 = vst [vmem:[#allocation3 + $0xb40] sm:$0xff] %v429
  %498 = vst [vmem:[#allocation3 + $0xb88] sm:$0xff] %v430
  %499 = vst [vmem:[#allocation3 + $0xbd0] sm:$0xff] %v431
  %500 = vst [vmem:[#allocation3 + $0xc18] sm:$0xff] %v432
  %501 = vst [vmem:[#allocation3 + $0xc60] sm:$0xff] %v433
  %502 = vst [vmem:[#allocation3 + $0xca8] sm:$0xff] %v434
  %503 = vst [vmem:[#allocation3 + $0xcf0] sm:$0xff] %v435
  %504 = vst [vmem:[#allocation3 + $0xd38] sm:$0xff] %v436
  %505 = vst [vmem:[#allocation3 + $0xd80] sm:$0xff] %v437
  %506 = vst [vmem:[#allocation3 + $0xdc8] sm:$0xff] %v438
  %507 = vst [vmem:[#allocation3 + $0xe10] sm:$0xff] %v439
  %508 = vst [vmem:[#allocation3 + $0xe58] sm:$0xff] %v440
  %509 = vst [vmem:[#allocation3 + $0xea0] sm:$0xff] %v441
  %510 = vst [vmem:[#allocation3 + $0xee8] sm:$0xff] %v442
  %511 = vst [vmem:[#allocation3 + $0xf30] sm:$0xff] %v443
  %512 = vst [vmem:[#allocation3 + $0xf78] sm:$0xff] %v444
  %513 = vst [vmem:[#allocation3 + $0xfc0] sm:$0xff] %v445
  %514 = vst [vmem:[#allocation3 + $0x1008] sm:$0xff] %v446
  %515 = vst [vmem:[#allocation3 + $0x1050] sm:$0xff] %v447
  %516 = vst [vmem:[#allocation3 + $0x1098] sm:$0xff] %v448
  %517 = vst [vmem:[#allocation3 + $0x10e0] sm:$0xff] %v449
  %518 = vst [vmem:[#allocation3 + $0x1128] sm:$0xff] %v450
  %519 = vst [vmem:[#allocation3 + $0x1170] sm:$0xff] %v451
  %520 = vst [vmem:[#allocation3 + $0x11b8] sm:$0xff] %v452
  %521 = vst [vmem:[#allocation3 + $0x18] sm:$0xff] %v387
  %522 = vst [vmem:[#allocation3 + $0x60] sm:$0xff] %v388
  %523 = vst [vmem:[#allocation3 + $0xa8] sm:$0xff] %v389
  %524 = vst [vmem:[#allocation3 + $0xf0] sm:$0xff] %v390
  %525 = vst [vmem:[#allocation3 + $0x138] sm:$0xff] %v391
  %526 = vst [vmem:[#allocation3 + $0x180] sm:$0xff] %v392
  %527 = vst [vmem:[#allocation3 + $0x1c8] sm:$0xff] %v393
  %528 = vst [vmem:[#allocation3 + $0x210] sm:$0xff] %v394
  %529 = vst [vmem:[#allocation3 + $0x258] sm:$0xff] %v395
  %530 = vst [vmem:[#allocation3 + $0x2a0] sm:$0xff] %v396
  %531 = vst [vmem:[#allocation3 + $0x2e8] sm:$0xff] %v397
  %532 = vst [vmem:[#allocation3 + $0x330] sm:$0xff] %v398
  %533 = vst [vmem:[#allocation3 + $0x378] sm:$0xff] %v399
  %534 = vst [vmem:[#allocation3 + $0x3c0] sm:$0xff] %v400
  %535 = vst [vmem:[#allocation3 + $0x408] sm:$0xff] %v401
  %536 = vst [vmem:[#allocation3 + $0x450] sm:$0xff] %v402
  %537 = vst [vmem:[#allocation3 + $0x498] sm:$0xff] %v403
  %538 = vst [vmem:[#allocation3 + $0x4e0] sm:$0xff] %v404
  %539 = vst [vmem:[#allocation3 + $0x528] sm:$0xff] %v405
  %540 = vst [vmem:[#allocation3 + $0x570] sm:$0xff] %v406
  %541 = vst [vmem:[#allocation3 + $0x5b8] sm:$0xff] %v407
  %542 = vst [vmem:[#allocation3 + $0x600] sm:$0xff] %v408
  %543 = vst [vmem:[#allocation3 + $0x648] sm:$0xff] %v409
  %544 = vst [vmem:[#allocation3 + $0x690] sm:$0xff] %v410
  %545 = vst [vmem:[#allocation3 + $0x6d8] sm:$0xff] %v411
  %546 = vst [vmem:[#allocation3 + $0x720] sm:$0xff] %v412
  %547 = vst [vmem:[#allocation3 + $0x768] sm:$0xff] %v413
  %548 = vst [vmem:[#allocation3 + $0x7b0] sm:$0xff] %v414
  %549 = vst [vmem:[#allocation3 + $0x7f8] sm:$0xff] %v415
  %550 = vst [vmem:[#allocation3 + $0x840] sm:$0xff] %v416
  %551 = vst [vmem:[#allocation3 + $0x888] sm:$0xff] %v417
  %552 = vst [vmem:[#allocation3 + $0x8d0] sm:$0xff] %v418
  %553 = vst [vmem:[#allocation3 + $0x918] sm:$0xff] %v423
  %554 = vst [vmem:[#allocation3 + $0x960] sm:$0xff] %v424
  %555 = vst [vmem:[#allocation3 + $0x9a8] sm:$0xff] %v425
  %556 = vst [vmem:[#allocation3 + $0x9f0] sm:$0xff] %v426
  %557 = vst [vmem:[#allocation3 + $0xa38] sm:$0xff] %v427
  %558 = vst [vmem:[#allocation3 + $0xa80] sm:$0xff] %v428
  %559 = vst [vmem:[#allocation3 + $0xac8] sm:$0xff] %v429
  %560 = vst [vmem:[#allocation3 + $0xb10] sm:$0xff] %v430
  %561 = vst [vmem:[#allocation3 + $0xb58] sm:$0xff] %v431
  %562 = vst [vmem:[#allocation3 + $0xba0] sm:$0xff] %v432
  %563 = vst [vmem:[#allocation3 + $0xbe8] sm:$0xff] %v433
  %564 = vst [vmem:[#allocation3 + $0xc30] sm:$0xff] %v434
  %565 = vst [vmem:[#allocation3 + $0xc78] sm:$0xff] %v435
  %566 = vst [vmem:[#allocation3 + $0xcc0] sm:$0xff] %v436
  %567 = vst [vmem:[#allocation3 + $0xd08] sm:$0xff] %v437
  %568 = vst [vmem:[#allocation3 + $0xd50] sm:$0xff] %v438
  %569 = vst [vmem:[#allocation3 + $0xd98] sm:$0xff] %v439
  %570 = vst [vmem:[#allocation3 + $0xde0] sm:$0xff] %v440
  %571 = vst [vmem:[#allocation3 + $0xe28] sm:$0xff] %v441
  %572 = vst [vmem:[#allocation3 + $0xe70] sm:$0xff] %v442
  %573 = vst [vmem:[#allocation3 + $0xeb8] sm:$0xff] %v443
  %574 = vst [vmem:[#allocation3 + $0xf00] sm:$0xff] %v444
  %575 = vst [vmem:[#allocation3 + $0xf48] sm:$0xff] %v445
  %576 = vst [vmem:[#allocation3 + $0xf90] sm:$0xff] %v446
  %577 = vst [vmem:[#allocation3 + $0xfd8] sm:$0xff] %v447
  %578 = vst [vmem:[#allocation3 + $0x1020] sm:$0xff] %v448
  %579 = vst [vmem:[#allocation3 + $0x1068] sm:$0xff] %v449
  %580 = vst [vmem:[#allocation3 + $0x10b0] sm:$0xff] %v450
  %581 = vst [vmem:[#allocation3 + $0x10f8] sm:$0xff] %v451
  %582 = vst [vmem:[#allocation3 + $0x1140] sm:$0xff] %v452
  %583 = vst [vmem:[#allocation3 + $0x1188] sm:$0xff] %v453
  %584 = vst [vmem:[#allocation3 + $0x11d0] sm:$0xff] %v454
  %585 = vst [vmem:[#allocation3 + $0x30] sm:$0xff] %v389
  %586 = vst [vmem:[#allocation3 + $0x78] sm:$0xff] %v390
  %587 = vst [vmem:[#allocation3 + $0xc0] sm:$0xff] %v391
  %588 = vst [vmem:[#allocation3 + $0x108] sm:$0xff] %v392
  %589 = vst [vmem:[#allocation3 + $0x150] sm:$0xff] %v393
  %590 = vst [vmem:[#allocation3 + $0x198] sm:$0xff] %v394
  %591 = vst [vmem:[#allocation3 + $0x1e0] sm:$0xff] %v395
  %592 = vst [vmem:[#allocation3 + $0x228] sm:$0xff] %v396
  %593 = vst [vmem:[#allocation3 + $0x270] sm:$0xff] %v397
  %594 = vst [vmem:[#allocation3 + $0x2b8] sm:$0xff] %v398
  %595 = vst [vmem:[#allocation3 + $0x300] sm:$0xff] %v399
  %596 = vst [vmem:[#allocation3 + $0x348] sm:$0xff] %v400
  %597 = vst [vmem:[#allocation3 + $0x390] sm:$0xff] %v401
  %598 = vst [vmem:[#allocation3 + $0x3d8] sm:$0xff] %v402
  %599 = vst [vmem:[#allocation3 + $0x420] sm:$0xff] %v403
  %600 = vst [vmem:[#allocation3 + $0x468] sm:$0xff] %v404
  %601 = vst [vmem:[#allocation3 + $0x4b0] sm:$0xff] %v405
  %602 = vst [vmem:[#allocation3 + $0x4f8] sm:$0xff] %v406
  %603 = vst [vmem:[#allocation3 + $0x540] sm:$0xff] %v407
  %604 = vst [vmem:[#allocation3 + $0x588] sm:$0xff] %v408
  %605 = vst [vmem:[#allocation3 + $0x5d0] sm:$0xff] %v409
  %606 = vst [vmem:[#allocation3 + $0x618] sm:$0xff] %v410
  %607 = vst [vmem:[#allocation3 + $0x660] sm:$0xff] %v411
  %608 = vst [vmem:[#allocation3 + $0x6a8] sm:$0xff] %v412
  %609 = vst [vmem:[#allocation3 + $0x6f0] sm:$0xff] %v413
  %610 = vst [vmem:[#allocation3 + $0x738] sm:$0xff] %v414
  %611 = vst [vmem:[#allocation3 + $0x780] sm:$0xff] %v415
  %612 = vst [vmem:[#allocation3 + $0x7c8] sm:$0xff] %v416
  %613 = vst [vmem:[#allocation3 + $0x810] sm:$0xff] %v417
  %614 = vst [vmem:[#allocation3 + $0x858] sm:$0xff] %v418
  %615 = vst [vmem:[#allocation3 + $0x8a0] sm:$0xff] %v419
  %616 = vst [vmem:[#allocation3 + $0x8e8] sm:$0xff] %v420
  %617 = vst [vmem:[#allocation3 + $0x930] sm:$0xff] %v425
  %618 = vst [vmem:[#allocation3 + $0x978] sm:$0xff] %v426
  %619 = vst [vmem:[#allocation3 + $0x9c0] sm:$0xff] %v427
  %620 = vst [vmem:[#allocation3 + $0xa08] sm:$0xff] %v428
  %621 = vst [vmem:[#allocation3 + $0xa50] sm:$0xff] %v429
  %622 = vst [vmem:[#allocation3 + $0xa98] sm:$0xff] %v430
  %623 = vst [vmem:[#allocation3 + $0xae0] sm:$0xff] %v431
  %624 = vst [vmem:[#allocation3 + $0xb28] sm:$0xff] %v432
  %625 = vst [vmem:[#allocation3 + $0xb70] sm:$0xff] %v433
  %626 = vst [vmem:[#allocation3 + $0xbb8] sm:$0xff] %v434
  %627 = vst [vmem:[#allocation3 + $0xc00] sm:$0xff] %v435
  %628 = vst [vmem:[#allocation3 + $0xc48] sm:$0xff] %v436
  %629 = vst [vmem:[#allocation3 + $0xc90] sm:$0xff] %v437
  %630 = vst [vmem:[#allocation3 + $0xcd8] sm:$0xff] %v438
  %631 = vst [vmem:[#allocation3 + $0xd20] sm:$0xff] %v439
  %632 = vst [vmem:[#allocation3 + $0xd68] sm:$0xff] %v440
  %633 = vst [vmem:[#allocation3 + $0xdb0] sm:$0xff] %v441
  %634 = vst [vmem:[#allocation3 + $0xdf8] sm:$0xff] %v442
  %635 = vst [vmem:[#allocation3 + $0xe40] sm:$0xff] %v443
  %636 = vst [vmem:[#allocation3 + $0xe88] sm:$0xff] %v444
  %637 = vst [vmem:[#allocation3 + $0xed0] sm:$0xff] %v445
  %638 = vst [vmem:[#allocation3 + $0xf18] sm:$0xff] %v446
  %639 = vst [vmem:[#allocation3 + $0xf60] sm:$0xff] %v447
  %640 = vst [vmem:[#allocation3 + $0xfa8] sm:$0xff] %v448
  %641 = vst [vmem:[#allocation3 + $0xff0] sm:$0xff] %v449
  %642 = vst [vmem:[#allocation3 + $0x1038] sm:$0xff] %v450
  %643 = vst [vmem:[#allocation3 + $0x1080] sm:$0xff] %v451
  %644 = vst [vmem:[#allocation3 + $0x10c8] sm:$0xff] %v452
  %645 = vst [vmem:[#allocation3 + $0x1110] sm:$0xff] %v453
  %646 = vst [vmem:[#allocation3 + $0x1158] sm:$0xff] %v454
  %647 = vst [vmem:[#allocation3 + $0x11a0] sm:$0xff] %v455
  %648 = vst [vmem:[#allocation3 + $0x11e8] sm:$0xff] %v456
  %v649 = vld [vmem:[#allocation2 + $0x1] sm:$0xff]
  %v650 = vld [vmem:[#allocation2 + $0x9] sm:$0xff]
  %v651 = vld [vmem:[#allocation2 + $0x19] sm:$0xff]
  %v652 = vld [vmem:[#allocation2 + $0x21] sm:$0xff]
  %v653 = vld [vmem:[#allocation2 + $0x31] sm:$0xff]
  %v654 = vld [vmem:[#allocation2 + $0x39] sm:$0xff]
  %v655 = vld [vmem:[#allocation2 + $0x49] sm:$0xff]
  %v656 = vld [vmem:[#allocation2 + $0x51] sm:$0xff]
  %v657 = vld [vmem:[#allocation2 + $0x61] sm:$0xff]
  %v658 = vld [vmem:[#allocation2 + $0x69] sm:$0xff]
  %v659 = vld [vmem:[#allocation2 + $0x79] sm:$0xff]
  %v660 = vld [vmem:[#allocation2 + $0x81] sm:$0xff]
  %v661 = vld [vmem:[#allocation2 + $0x91] sm:$0xff]
  %v662 = vld [vmem:[#allocation2 + $0x99] sm:$0xff]
  %v663 = vld [vmem:[#allocation2 + $0xa9] sm:$0xff]
  %v664 = vld [vmem:[#allocation2 + $0xb1] sm:$0xff]
  %v665 = vld [vmem:[#allocation2 + $0xc1] sm:$0xff]
  %v666 = vld [vmem:[#allocation2 + $0xc9] sm:$0xff]
  %v667 = vld [vmem:[#allocation2 + $0xd9] sm:$0xff]
  %v668 = vld [vmem:[#allocation2 + $0xe1] sm:$0xff]
  %v669 = vld [vmem:[#allocation2 + $0xf1] sm:$0xff]
  %v670 = vld [vmem:[#allocation2 + $0xf9] sm:$0xff]
  %v671 = vld [vmem:[#allocation2 + $0x109] sm:$0xff]
  %v672 = vld [vmem:[#allocation2 + $0x111] sm:$0xff]
  %v673 = vld [vmem:[#allocation2 + $0x121] sm:$0xff]
  %v674 = vld [vmem:[#allocation2 + $0x129] sm:$0xff]
  %v675 = vld [vmem:[#allocation2 + $0x139] sm:$0xff]
  %v676 = vld [vmem:[#allocation2 + $0x141] sm:$0xff]
  %v677 = vld [vmem:[#allocation2 + $0x151] sm:$0xff]
  %v678 = vld [vmem:[#allocation2 + $0x159] sm:$0xff]
  %v679 = vld [vmem:[#allocation2 + $0x169] sm:$0xff]
  %v680 = vld [vmem:[#allocation2 + $0x171] sm:$0xff]
  %v681 = vld [vmem:[#allocation2 + $0x181] sm:$0xff]
  %v682 = vld [vmem:[#allocation2 + $0x189] sm:$0xff]
  %v683 = vld [vmem:[#allocation2 + $0x199] sm:$0xff]
  %v684 = vld [vmem:[#allocation2 + $0x1a1] sm:$0xff]
  %v685 = vld [vmem:[#allocation2 + $0x1b1] sm:$0xff]
  %v686 = vld [vmem:[#allocation2 + $0x1b9] sm:$0xff]
  %v687 = vld [vmem:[#allocation2 + $0x1c9] sm:$0xff]
  %v688 = vld [vmem:[#allocation2 + $0x1d1] sm:$0xff]
  %v689 = vld [vmem:[#allocation2 + $0x1e1] sm:$0xff]
  %v690 = vld [vmem:[#allocation2 + $0x1e9] sm:$0xff]
  %v691 = vld [vmem:[#allocation2 + $0x1f9] sm:$0xff]
  %v692 = vld [vmem:[#allocation2 + $0x201] sm:$0xff]
  %v693 = vld [vmem:[#allocation2 + $0x211] sm:$0xff]
  %v694 = vld [vmem:[#allocation2 + $0x219] sm:$0xff]
  %v695 = vld [vmem:[#allocation2 + $0x229] sm:$0xff]
  %v696 = vld [vmem:[#allocation2 + $0x231] sm:$0xff]
  %v697 = vld [vmem:[#allocation2 + $0x241] sm:$0xff]
  %v698 = vld [vmem:[#allocation2 + $0x249] sm:$0xff]
  %v699 = vld [vmem:[#allocation2 + $0x259] sm:$0xff]
  %v700 = vld [vmem:[#allocation2 + $0x261] sm:$0xff]
  %v701 = vld [vmem:[#allocation2 + $0x271] sm:$0xff]
  %v702 = vld [vmem:[#allocation2 + $0x279] sm:$0xff]
  %v703 = vld [vmem:[#allocation2 + $0x289] sm:$0xff]
  %v704 = vld [vmem:[#allocation2 + $0x291] sm:$0xff]
  %v705 = vld [vmem:[#allocation2 + $0x2a1] sm:$0xff]
  %v706 = vld [vmem:[#allocation2 + $0x2a9] sm:$0xff]
  %v707 = vld [vmem:[#allocation2 + $0x2b9] sm:$0xff]
  %v708 = vld [vmem:[#allocation2 + $0x2c1] sm:$0xff]
  %v709 = vld [vmem:[#allocation2 + $0x2d1] sm:$0xff]
  %v710 = vld [vmem:[#allocation2 + $0x2d9] sm:$0xff]
  %v711 = vld [vmem:[#allocation2 + $0x2e9] sm:$0xff]
  %v712 = vld [vmem:[#allocation2 + $0x2f1] sm:$0xff]
  %v713 = vld [vmem:[#allocation2 + $0x301] sm:$0xff]
  %v714 = vld [vmem:[#allocation2 + $0x309] sm:$0xff]
  %v715 = vld [vmem:[#allocation2 + $0x319] sm:$0xff]
  %v716 = vld [vmem:[#allocation2 + $0x321] sm:$0xff]
  %v717 = vld [vmem:[#allocation2 + $0x331] sm:$0xff]
  %v718 = vld [vmem:[#allocation2 + $0x339] sm:$0xff]
  %v719 = vld [vmem:[#allocation2 + $0x349] sm:$0xff]
  %v720 = vld [vmem:[#allocation2 + $0x351] sm:$0xff]
  %721 = vst [vmem:[#allocation3 + $0x8] sm:$0xff] %v649
  %722 = vst [vmem:[#allocation3 + $0x50] sm:$0xff] %v650
  %723 = vst [vmem:[#allocation3 + $0x98] sm:$0xff] %v651
  %724 = vst [vmem:[#allocation3 + $0xe0] sm:$0xff] %v652
  %725 = vst [vmem:[#allocation3 + $0x128] sm:$0xff] %v653
  %726 = vst [vmem:[#allocation3 + $0x170] sm:$0xff] %v654
  %727 = vst [vmem:[#allocation3 + $0x1b8] sm:$0xff] %v655
  %728 = vst [vmem:[#allocation3 + $0x200] sm:$0xff] %v656
  %729 = vst [vmem:[#allocation3 + $0x248] sm:$0xff] %v657
  %730 = vst [vmem:[#allocation3 + $0x290] sm:$0xff] %v658
  %731 = vst [vmem:[#allocation3 + $0x2d8] sm:$0xff] %v659
  %732 = vst [vmem:[#allocation3 + $0x320] sm:$0xff] %v660
  %733 = vst [vmem:[#allocation3 + $0x368] sm:$0xff] %v661
  %734 = vst [vmem:[#allocation3 + $0x3b0] sm:$0xff] %v662
  %735 = vst [vmem:[#allocation3 + $0x3f8] sm:$0xff] %v663
  %736 = vst [vmem:[#allocation3 + $0x440] sm:$0xff] %v664
  %737 = vst [vmem:[#allocation3 + $0x488] sm:$0xff] %v665
  %738 = vst [vmem:[#allocation3 + $0x4d0] sm:$0xff] %v666
  %739 = vst [vmem:[#allocation3 + $0x518] sm:$0xff] %v667
  %740 = vst [vmem:[#allocation3 + $0x560] sm:$0xff] %v668
  %741 = vst [vmem:[#allocation3 + $0x5a8] sm:$0xff] %v669
  %742 = vst [vmem:[#allocation3 + $0x5f0] sm:$0xff] %v670
  %743 = vst [vmem:[#allocation3 + $0x638] sm:$0xff] %v671
  %744 = vst [vmem:[#allocation3 + $0x680] sm:$0xff] %v672
  %745 = vst [vmem:[#allocation3 + $0x6c8] sm:$0xff] %v673
  %746 = vst [vmem:[#allocation3 + $0x710] sm:$0xff] %v674
  %747 = vst [vmem:[#allocation3 + $0x758] sm:$0xff] %v675
  %748 = vst [vmem:[#allocation3 + $0x7a0] sm:$0xff] %v676
  %749 = vst [vmem:[#allocation3 + $0x7e8] sm:$0xff] %v677
  %750 = vst [vmem:[#allocation3 + $0x830] sm:$0xff] %v678
  %751 = vst [vmem:[#allocation3 + $0x878] sm:$0xff] %v679
  %752 = vst [vmem:[#allocation3 + $0x8c0] sm:$0xff] %v680
  %753 = vst [vmem:[#allocation3 + $0x908] sm:$0xff] %v685
  %754 = vst [vmem:[#allocation3 + $0x950] sm:$0xff] %v686
  %755 = vst [vmem:[#allocation3 + $0x998] sm:$0xff] %v687
  %756 = vst [vmem:[#allocation3 + $0x9e0] sm:$0xff] %v688
  %757 = vst [vmem:[#allocation3 + $0xa28] sm:$0xff] %v689
  %758 = vst [vmem:[#allocation3 + $0xa70] sm:$0xff] %v690
  %759 = vst [vmem:[#allocation3 + $0xab8] sm:$0xff] %v691
  %760 = vst [vmem:[#allocation3 + $0xb00] sm:$0xff] %v692
  %761 = vst [vmem:[#allocation3 + $0xb48] sm:$0xff] %v693
  %762 = vst [vmem:[#allocation3 + $0xb90] sm:$0xff] %v694
  %763 = vst [vmem:[#allocation3 + $0xbd8] sm:$0xff] %v695
  %764 = vst [vmem:[#allocation3 + $0xc20] sm:$0xff] %v696
  %765 = vst [vmem:[#allocation3 + $0xc68] sm:$0xff] %v697
  %766 = vst [vmem:[#allocation3 + $0xcb0] sm:$0xff] %v698
  %767 = vst [vmem:[#allocation3 + $0xcf8] sm:$0xff] %v699
  %768 = vst [vmem:[#allocation3 + $0xd40] sm:$0xff] %v700
  %769 = vst [vmem:[#allocation3 + $0xd88] sm:$0xff] %v701
  %770 = vst [vmem:[#allocation3 + $0xdd0] sm:$0xff] %v702
  %771 = vst [vmem:[#allocation3 + $0xe18] sm:$0xff] %v703
  %772 = vst [vmem:[#allocation3 + $0xe60] sm:$0xff] %v704
  %773 = vst [vmem:[#allocation3 + $0xea8] sm:$0xff] %v705
  %774 = vst [vmem:[#allocation3 + $0xef0] sm:$0xff] %v706
  %775 = vst [vmem:[#allocation3 + $0xf38] sm:$0xff] %v707
  %776 = vst [vmem:[#allocation3 + $0xf80] sm:$0xff] %v708
  %777 = vst [vmem:[#allocation3 + $0xfc8] sm:$0xff] %v709
  %778 = vst [vmem:[#allocation3 + $0x1010] sm:$0xff] %v710
  %779 = vst [vmem:[#allocation3 + $0x1058] sm:$0xff] %v711
  %780 = vst [vmem:[#allocation3 + $0x10a0] sm:$0xff] %v712
  %781 = vst [vmem:[#allocation3 + $0x10e8] sm:$0xff] %v713
  %782 = vst [vmem:[#allocation3 + $0x1130] sm:$0xff] %v714
  %783 = vst [vmem:[#allocation3 + $0x1178] sm:$0xff] %v715
  %784 = vst [vmem:[#allocation3 + $0x11c0] sm:$0xff] %v716
  %785 = vst [vmem:[#allocation3 + $0x20] sm:$0xff] %v651
  %786 = vst [vmem:[#allocation3 + $0x68] sm:$0xff] %v652
  %787 = vst [vmem:[#allocation3 + $0xb0] sm:$0xff] %v653
  %788 = vst [vmem:[#allocation3 + $0xf8] sm:$0xff] %v654
  %789 = vst [vmem:[#allocation3 + $0x140] sm:$0xff] %v655
  %790 = vst [vmem:[#allocation3 + $0x188] sm:$0xff] %v656
  %791 = vst [vmem:[#allocation3 + $0x1d0] sm:$0xff] %v657
  %792 = vst [vmem:[#allocation3 + $0x218] sm:$0xff] %v658
  %793 = vst [vmem:[#allocation3 + $0x260] sm:$0xff] %v659
  %794 = vst [vmem:[#allocation3 + $0x2a8] sm:$0xff] %v660
  %795 = vst [vmem:[#allocation3 + $0x2f0] sm:$0xff] %v661
  %796 = vst [vmem:[#allocation3 + $0x338] sm:$0xff] %v662
  %797 = vst [vmem:[#allocation3 + $0x380] sm:$0xff] %v663
  %798 = vst [vmem:[#allocation3 + $0x3c8] sm:$0xff] %v664
  %799 = vst [vmem:[#allocation3 + $0x410] sm:$0xff] %v665
  %800 = vst [vmem:[#allocation3 + $0x458] sm:$0xff] %v666
  %801 = vst [vmem:[#allocation3 + $0x4a0] sm:$0xff] %v667
  %802 = vst [vmem:[#allocation3 + $0x4e8] sm:$0xff] %v668
  %803 = vst [vmem:[#allocation3 + $0x530] sm:$0xff] %v669
  %804 = vst [vmem:[#allocation3 + $0x578] sm:$0xff] %v670
  %805 = vst [vmem:[#allocation3 + $0x5c0] sm:$0xff] %v671
  %806 = vst [vmem:[#allocation3 + $0x608] sm:$0xff] %v672
  %807 = vst [vmem:[#allocation3 + $0x650] sm:$0xff] %v673
  %808 = vst [vmem:[#allocation3 + $0x698] sm:$0xff] %v674
  %809 = vst [vmem:[#allocation3 + $0x6e0] sm:$0xff] %v675
  %810 = vst [vmem:[#allocation3 + $0x728] sm:$0xff] %v676
  %811 = vst [vmem:[#allocation3 + $0x770] sm:$0xff] %v677
  %812 = vst [vmem:[#allocation3 + $0x7b8] sm:$0xff] %v678
  %813 = vst [vmem:[#allocation3 + $0x800] sm:$0xff] %v679
  %814 = vst [vmem:[#allocation3 + $0x848] sm:$0xff] %v680
  %815 = vst [vmem:[#allocation3 + $0x890] sm:$0xff] %v681
  %816 = vst [vmem:[#allocation3 + $0x8d8] sm:$0xff] %v682
  %817 = vst [vmem:[#allocation3 + $0x920] sm:$0xff] %v687
  %818 = vst [vmem:[#allocation3 + $0x968] sm:$0xff] %v688
  %819 = vst [vmem:[#allocation3 + $0x9b0] sm:$0xff] %v689
  %820 = vst [vmem:[#allocation3 + $0x9f8] sm:$0xff] %v690
  %821 = vst [vmem:[#allocation3 + $0xa40] sm:$0xff] %v691
  %822 = vst [vmem:[#allocation3 + $0xa88] sm:$0xff] %v692
  %823 = vst [vmem:[#allocation3 + $0xad0] sm:$0xff] %v693
  %824 = vst [vmem:[#allocation3 + $0xb18] sm:$0xff] %v694
  %825 = vst [vmem:[#allocation3 + $0xb60] sm:$0xff] %v695
  %826 = vst [vmem:[#allocation3 + $0xba8] sm:$0xff] %v696
  %827 = vst [vmem:[#allocation3 + $0xbf0] sm:$0xff] %v697
  %828 = vst [vmem:[#allocation3 + $0xc38] sm:$0xff] %v698
  %829 = vst [vmem:[#allocation3 + $0xc80] sm:$0xff] %v699
  %830 = vst [vmem:[#allocation3 + $0xcc8] sm:$0xff] %v700
  %831 = vst [vmem:[#allocation3 + $0xd10] sm:$0xff] %v701
  %832 = vst [vmem:[#allocation3 + $0xd58] sm:$0xff] %v702
  %833 = vst [vmem:[#allocation3 + $0xda0] sm:$0xff] %v703
  %834 = vst [vmem:[#allocation3 + $0xde8] sm:$0xff] %v704
  %835 = vst [vmem:[#allocation3 + $0xe30] sm:$0xff] %v705
  %836 = vst [vmem:[#allocation3 + $0xe78] sm:$0xff] %v706
  %837 = vst [vmem:[#allocation3 + $0xec0] sm:$0xff] %v707
  %838 = vst [vmem:[#allocation3 + $0xf08] sm:$0xff] %v708
  %839 = vst [vmem:[#allocation3 + $0xf50] sm:$0xff] %v709
  %840 = vst [vmem:[#allocation3 + $0xf98] sm:$0xff] %v710
  %841 = vst [vmem:[#allocation3 + $0xfe0] sm:$0xff] %v711
  %842 = vst [vmem:[#allocation3 + $0x1028] sm:$0xff] %v712
  %843 = vst [vmem:[#allocation3 + $0x1070] sm:$0xff] %v713
  %844 = vst [vmem:[#allocation3 + $0x10b8] sm:$0xff] %v714
  %845 = vst [vmem:[#allocation3 + $0x1100] sm:$0xff] %v715
  %846 = vst [vmem:[#allocation3 + $0x1148] sm:$0xff] %v716
  %847 = vst [vmem:[#allocation3 + $0x1190] sm:$0xff] %v717
  %848 = vst [vmem:[#allocation3 + $0x11d8] sm:$0xff] %v718
  %849 = vst [vmem:[#allocation3 + $0x38] sm:$0xff] %v653
  %850 = vst [vmem:[#allocation3 + $0x80] sm:$0xff] %v654
  %851 = vst [vmem:[#allocation3 + $0xc8] sm:$0xff] %v655
  %852 = vst [vmem:[#allocation3 + $0x110] sm:$0xff] %v656
  %853 = vst [vmem:[#allocation3 + $0x158] sm:$0xff] %v657
  %854 = vst [vmem:[#allocation3 + $0x1a0] sm:$0xff] %v658
  %855 = vst [vmem:[#allocation3 + $0x1e8] sm:$0xff] %v659
  %856 = vst [vmem:[#allocation3 + $0x230] sm:$0xff] %v660
  %857 = vst [vmem:[#allocation3 + $0x278] sm:$0xff] %v661
  %858 = vst [vmem:[#allocation3 + $0x2c0] sm:$0xff] %v662
  %859 = vst [vmem:[#allocation3 + $0x308] sm:$0xff] %v663
  %860 = vst [vmem:[#allocation3 + $0x350] sm:$0xff] %v664
  %861 = vst [vmem:[#allocation3 + $0x398] sm:$0xff] %v665
  %862 = vst [vmem:[#allocation3 + $0x3e0] sm:$0xff] %v666
  %863 = vst [vmem:[#allocation3 + $0x428] sm:$0xff] %v667
  %864 = vst [vmem:[#allocation3 + $0x470] sm:$0xff] %v668
  %865 = vst [vmem:[#allocation3 + $0x4b8] sm:$0xff] %v669
  %866 = vst [vmem:[#allocation3 + $0x500] sm:$0xff] %v670
  %867 = vst [vmem:[#allocation3 + $0x548] sm:$0xff] %v671
  %868 = vst [vmem:[#allocation3 + $0x590] sm:$0xff] %v672
  %869 = vst [vmem:[#allocation3 + $0x5d8] sm:$0xff] %v673
  %870 = vst [vmem:[#allocation3 + $0x620] sm:$0xff] %v674
  %871 = vst [vmem:[#allocation3 + $0x668] sm:$0xff] %v675
  %872 = vst [vmem:[#allocation3 + $0x6b0] sm:$0xff] %v676
  %873 = vst [vmem:[#allocation3 + $0x6f8] sm:$0xff] %v677
  %874 = vst [vmem:[#allocation3 + $0x740] sm:$0xff] %v678
  %875 = vst [vmem:[#allocation3 + $0x788] sm:$0xff] %v679
  %876 = vst [vmem:[#allocation3 + $0x7d0] sm:$0xff] %v680
  %877 = vst [vmem:[#allocation3 + $0x818] sm:$0xff] %v681
  %878 = vst [vmem:[#allocation3 + $0x860] sm:$0xff] %v682
  %879 = vst [vmem:[#allocation3 + $0x8a8] sm:$0xff] %v683
  %880 = vst [vmem:[#allocation3 + $0x8f0] sm:$0xff] %v684
  %881 = vst [vmem:[#allocation3 + $0x938] sm:$0xff] %v689
  %882 = vst [vmem:[#allocation3 + $0x980] sm:$0xff] %v690
  %883 = vst [vmem:[#allocation3 + $0x9c8] sm:$0xff] %v691
  %884 = vst [vmem:[#allocation3 + $0xa10] sm:$0xff] %v692
  %885 = vst [vmem:[#allocation3 + $0xa58] sm:$0xff] %v693
  %886 = vst [vmem:[#allocation3 + $0xaa0] sm:$0xff] %v694
  %887 = vst [vmem:[#allocation3 + $0xae8] sm:$0xff] %v695
  %888 = vst [vmem:[#allocation3 + $0xb30] sm:$0xff] %v696
  %889 = vst [vmem:[#allocation3 + $0xb78] sm:$0xff] %v697
  %890 = vst [vmem:[#allocation3 + $0xbc0] sm:$0xff] %v698
  %891 = vst [vmem:[#allocation3 + $0xc08] sm:$0xff] %v699
  %892 = vst [vmem:[#allocation3 + $0xc50] sm:$0xff] %v700
  %893 = vst [vmem:[#allocation3 + $0xc98] sm:$0xff] %v701
  %894 = vst [vmem:[#allocation3 + $0xce0] sm:$0xff] %v702
  %895 = vst [vmem:[#allocation3 + $0xd28] sm:$0xff] %v703
  %896 = vst [vmem:[#allocation3 + $0xd70] sm:$0xff] %v704
  %897 = vst [vmem:[#allocation3 + $0xdb8] sm:$0xff] %v705
  %898 = vst [vmem:[#allocation3 + $0xe00] sm:$0xff] %v706
  %899 = vst [vmem:[#allocation3 + $0xe48] sm:$0xff] %v707
  %900 = vst [vmem:[#allocation3 + $0xe90] sm:$0xff] %v708
  %901 = vst [vmem:[#allocation3 + $0xed8] sm:$0xff] %v709
  %902 = vst [vmem:[#allocation3 + $0xf20] sm:$0xff] %v710
  %903 = vst [vmem:[#allocation3 + $0xf68] sm:$0xff] %v711
  %904 = vst [vmem:[#allocation3 + $0xfb0] sm:$0xff] %v712
  %905 = vst [vmem:[#allocation3 + $0xff8] sm:$0xff] %v713
  %906 = vst [vmem:[#allocation3 + $0x1040] sm:$0xff] %v714
  %907 = vst [vmem:[#allocation3 + $0x1088] sm:$0xff] %v715
  %908 = vst [vmem:[#allocation3 + $0x10d0] sm:$0xff] %v716
  %909 = vst [vmem:[#allocation3 + $0x1118] sm:$0xff] %v717
  %910 = vst [vmem:[#allocation3 + $0x1160] sm:$0xff] %v718
  %911 = vst [vmem:[#allocation3 + $0x11a8] sm:$0xff] %v719
  %912 = vst [vmem:[#allocation3 + $0x11f0] sm:$0xff] %v720
  %v913 = vld [vmem:[#allocation2 + $0x2] sm:$0xff]
  %v914 = vld [vmem:[#allocation2 + $0xa] sm:$0xff]
  %v915 = vld [vmem:[#allocation2 + $0x1a] sm:$0xff]
  %v916 = vld [vmem:[#allocation2 + $0x22] sm:$0xff]
  %v917 = vld [vmem:[#allocation2 + $0x32] sm:$0xff]
  %v918 = vld [vmem:[#allocation2 + $0x3a] sm:$0xff]
  %v919 = vld [vmem:[#allocation2 + $0x4a] sm:$0xff]
  %v920 = vld [vmem:[#allocation2 + $0x52] sm:$0xff]
  %v921 = vld [vmem:[#allocation2 + $0x62] sm:$0xff]
  %v922 = vld [vmem:[#allocation2 + $0x6a] sm:$0xff]
  %v923 = vld [vmem:[#allocation2 + $0x7a] sm:$0xff]
  %v924 = vld [vmem:[#allocation2 + $0x82] sm:$0xff]
  %v925 = vld [vmem:[#allocation2 + $0x92] sm:$0xff]
  %v926 = vld [vmem:[#allocation2 + $0x9a] sm:$0xff]
  %v927 = vld [vmem:[#allocation2 + $0xaa] sm:$0xff]
  %v928 = vld [vmem:[#allocation2 + $0xb2] sm:$0xff]
  %v929 = vld [vmem:[#allocation2 + $0xc2] sm:$0xff]
  %v930 = vld [vmem:[#allocation2 + $0xca] sm:$0xff]
  %v931 = vld [vmem:[#allocation2 + $0xda] sm:$0xff]
  %v932 = vld [vmem:[#allocation2 + $0xe2] sm:$0xff]
  %v933 = vld [vmem:[#allocation2 + $0xf2] sm:$0xff]
  %v934 = vld [vmem:[#allocation2 + $0xfa] sm:$0xff]
  %v935 = vld [vmem:[#allocation2 + $0x10a] sm:$0xff]
  %v936 = vld [vmem:[#allocation2 + $0x112] sm:$0xff]
  %v937 = vld [vmem:[#allocation2 + $0x122] sm:$0xff]
  %v938 = vld [vmem:[#allocation2 + $0x12a] sm:$0xff]
  %v939 = vld [vmem:[#allocation2 + $0x13a] sm:$0xff]
  %v940 = vld [vmem:[#allocation2 + $0x142] sm:$0xff]
  %v941 = vld [vmem:[#allocation2 + $0x152] sm:$0xff]
  %v942 = vld [vmem:[#allocation2 + $0x15a] sm:$0xff]
  %v943 = vld [vmem:[#allocation2 + $0x16a] sm:$0xff]
  %v944 = vld [vmem:[#allocation2 + $0x172] sm:$0xff]
  %v945 = vld [vmem:[#allocation2 + $0x182] sm:$0xff]
  %v946 = vld [vmem:[#allocation2 + $0x18a] sm:$0xff]
  %v947 = vld [vmem:[#allocation2 + $0x19a] sm:$0xff]
  %v948 = vld [vmem:[#allocation2 + $0x1a2] sm:$0xff]
  %v949 = vld [vmem:[#allocation2 + $0x1b2] sm:$0xff]
  %v950 = vld [vmem:[#allocation2 + $0x1ba] sm:$0xff]
  %v951 = vld [vmem:[#allocation2 + $0x1ca] sm:$0xff]
  %v952 = vld [vmem:[#allocation2 + $0x1d2] sm:$0xff]
  %v953 = vld [vmem:[#allocation2 + $0x1e2] sm:$0xff]
  %v954 = vld [vmem:[#allocation2 + $0x1ea] sm:$0xff]
  %v955 = vld [vmem:[#allocation2 + $0x1fa] sm:$0xff]
  %v956 = vld [vmem:[#allocation2 + $0x202] sm:$0xff]
  %v957 = vld [vmem:[#allocation2 + $0x212] sm:$0xff]
  %v958 = vld [vmem:[#allocation2 + $0x21a] sm:$0xff]
  %v959 = vld [vmem:[#allocation2 + $0x22a] sm:$0xff]
  %v960 = vld [vmem:[#allocation2 + $0x232] sm:$0xff]
  %v961 = vld [vmem:[#allocation2 + $0x242] sm:$0xff]
  %v962 = vld [vmem:[#allocation2 + $0x24a] sm:$0xff]
  %v963 = vld [vmem:[#allocation2 + $0x25a] sm:$0xff]
  %v964 = vld [vmem:[#allocation2 + $0x262] sm:$0xff]
  %v965 = vld [vmem:[#allocation2 + $0x272] sm:$0xff]
  %v966 = vld [vmem:[#allocation2 + $0x27a] sm:$0xff]
  %v967 = vld [vmem:[#allocation2 + $0x28a] sm:$0xff]
  %v968 = vld [vmem:[#allocation2 + $0x292] sm:$0xff]
  %v969 = vld [vmem:[#allocation2 + $0x2a2] sm:$0xff]
  %v970 = vld [vmem:[#allocation2 + $0x2aa] sm:$0xff]
  %v971 = vld [vmem:[#allocation2 + $0x2ba] sm:$0xff]
  %v972 = vld [vmem:[#allocation2 + $0x2c2] sm:$0xff]
  %v973 = vld [vmem:[#allocation2 + $0x2d2] sm:$0xff]
  %v974 = vld [vmem:[#allocation2 + $0x2da] sm:$0xff]
  %v975 = vld [vmem:[#allocation2 + $0x2ea] sm:$0xff]
  %v976 = vld [vmem:[#allocation2 + $0x2f2] sm:$0xff]
  %v977 = vld [vmem:[#allocation2 + $0x302] sm:$0xff]
  %v978 = vld [vmem:[#allocation2 + $0x30a] sm:$0xff]
  %v979 = vld [vmem:[#allocation2 + $0x31a] sm:$0xff]
  %v980 = vld [vmem:[#allocation2 + $0x322] sm:$0xff]
  %v981 = vld [vmem:[#allocation2 + $0x332] sm:$0xff]
  %v982 = vld [vmem:[#allocation2 + $0x33a] sm:$0xff]
  %v983 = vld [vmem:[#allocation2 + $0x34a] sm:$0xff]
  %v984 = vld [vmem:[#allocation2 + $0x352] sm:$0xff]
  %985 = vst [vmem:[#allocation3 + $0x10] sm:$0xff] %v913
  %986 = vst [vmem:[#allocation3 + $0x58] sm:$0xff] %v914
  %987 = vst [vmem:[#allocation3 + $0xa0] sm:$0xff] %v915
  %988 = vst [vmem:[#allocation3 + $0xe8] sm:$0xff] %v916
  %989 = vst [vmem:[#allocation3 + $0x130] sm:$0xff] %v917
  %990 = vst [vmem:[#allocation3 + $0x178] sm:$0xff] %v918
  %991 = vst [vmem:[#allocation3 + $0x1c0] sm:$0xff] %v919
  %992 = vst [vmem:[#allocation3 + $0x208] sm:$0xff] %v920
  %993 = vst [vmem:[#allocation3 + $0x250] sm:$0xff] %v921
  %994 = vst [vmem:[#allocation3 + $0x298] sm:$0xff] %v922
  %995 = vst [vmem:[#allocation3 + $0x2e0] sm:$0xff] %v923
  %996 = vst [vmem:[#allocation3 + $0x328] sm:$0xff] %v924
  %997 = vst [vmem:[#allocation3 + $0x370] sm:$0xff] %v925
  %998 = vst [vmem:[#allocation3 + $0x3b8] sm:$0xff] %v926
  %999 = vst [vmem:[#allocation3 + $0x400] sm:$0xff] %v927
  %1000 = vst [vmem:[#allocation3 + $0x448] sm:$0xff] %v928
  %1001 = vst [vmem:[#allocation3 + $0x490] sm:$0xff] %v929
  %1002 = vst [vmem:[#allocation3 + $0x4d8] sm:$0xff] %v930
  %1003 = vst [vmem:[#allocation3 + $0x520] sm:$0xff] %v931
  %1004 = vst [vmem:[#allocation3 + $0x568] sm:$0xff] %v932
  %1005 = vst [vmem:[#allocation3 + $0x5b0] sm:$0xff] %v933
  %1006 = vst [vmem:[#allocation3 + $0x5f8] sm:$0xff] %v934
  %1007 = vst [vmem:[#allocation3 + $0x640] sm:$0xff] %v935
  %1008 = vst [vmem:[#allocation3 + $0x688] sm:$0xff] %v936
  %1009 = vst [vmem:[#allocation3 + $0x6d0] sm:$0xff] %v937
  %1010 = vst [vmem:[#allocation3 + $0x718] sm:$0xff] %v938
  %1011 = vst [vmem:[#allocation3 + $0x760] sm:$0xff] %v939
  %1012 = vst [vmem:[#allocation3 + $0x7a8] sm:$0xff] %v940
  %1013 = vst [vmem:[#allocation3 + $0x7f0] sm:$0xff] %v941
  %1014 = vst [vmem:[#allocation3 + $0x838] sm:$0xff] %v942
  %1015 = vst [vmem:[#allocation3 + $0x880] sm:$0xff] %v943
  %1016 = vst [vmem:[#allocation3 + $0x8c8] sm:$0xff] %v944
  %1017 = vst [vmem:[#allocation3 + $0x910] sm:$0xff] %v949
  %1018 = vst [vmem:[#allocation3 + $0x958] sm:$0xff] %v950
  %1019 = vst [vmem:[#allocation3 + $0x9a0] sm:$0xff] %v951
  %1020 = vst [vmem:[#allocation3 + $0x9e8] sm:$0xff] %v952
  %1021 = vst [vmem:[#allocation3 + $0xa30] sm:$0xff] %v953
  %1022 = vst [vmem:[#allocation3 + $0xa78] sm:$0xff] %v954
  %1023 = vst [vmem:[#allocation3 + $0xac0] sm:$0xff] %v955
  %1024 = vst [vmem:[#allocation3 + $0xb08] sm:$0xff] %v956
  %1025 = vst [vmem:[#allocation3 + $0xb50] sm:$0xff] %v957
  %1026 = vst [vmem:[#allocation3 + $0xb98] sm:$0xff] %v958
  %1027 = vst [vmem:[#allocation3 + $0xbe0] sm:$0xff] %v959
  %1028 = vst [vmem:[#allocation3 + $0xc28] sm:$0xff] %v960
  %1029 = vst [vmem:[#allocation3 + $0xc70] sm:$0xff] %v961
  %1030 = vst [vmem:[#allocation3 + $0xcb8] sm:$0xff] %v962
  %1031 = vst [vmem:[#allocation3 + $0xd00] sm:$0xff] %v963
  %1032 = vst [vmem:[#allocation3 + $0xd48] sm:$0xff] %v964
  %1033 = vst [vmem:[#allocation3 + $0xd90] sm:$0xff] %v965
  %1034 = vst [vmem:[#allocation3 + $0xdd8] sm:$0xff] %v966
  %1035 = vst [vmem:[#allocation3 + $0xe20] sm:$0xff] %v967
  %1036 = vst [vmem:[#allocation3 + $0xe68] sm:$0xff] %v968
  %1037 = vst [vmem:[#allocation3 + $0xeb0] sm:$0xff] %v969
  %1038 = vst [vmem:[#allocation3 + $0xef8] sm:$0xff] %v970
  %1039 = vst [vmem:[#allocation3 + $0xf40] sm:$0xff] %v971
  %1040 = vst [vmem:[#allocation3 + $0xf88] sm:$0xff] %v972
  %1041 = vst [vmem:[#allocation3 + $0xfd0] sm:$0xff] %v973
  %1042 = vst [vmem:[#allocation3 + $0x1018] sm:$0xff] %v974
  %1043 = vst [vmem:[#allocation3 + $0x1060] sm:$0xff] %v975
  %1044 = vst [vmem:[#allocation3 + $0x10a8] sm:$0xff] %v976
  %1045 = vst [vmem:[#allocation3 + $0x10f0] sm:$0xff] %v977
  %1046 = vst [vmem:[#allocation3 + $0x1138] sm:$0xff] %v978
  %1047 = vst [vmem:[#allocation3 + $0x1180] sm:$0xff] %v979
  %1048 = vst [vmem:[#allocation3 + $0x11c8] sm:$0xff] %v980
  %1049 = vst [vmem:[#allocation3 + $0x28] sm:$0xff] %v915
  %1050 = vst [vmem:[#allocation3 + $0x70] sm:$0xff] %v916
  %1051 = vst [vmem:[#allocation3 + $0xb8] sm:$0xff] %v917
  %1052 = vst [vmem:[#allocation3 + $0x100] sm:$0xff] %v918
  %1053 = vst [vmem:[#allocation3 + $0x148] sm:$0xff] %v919
  %1054 = vst [vmem:[#allocation3 + $0x190] sm:$0xff] %v920
  %1055 = vst [vmem:[#allocation3 + $0x1d8] sm:$0xff] %v921
  %1056 = vst [vmem:[#allocation3 + $0x220] sm:$0xff] %v922
  %1057 = vst [vmem:[#allocation3 + $0x268] sm:$0xff] %v923
  %1058 = vst [vmem:[#allocation3 + $0x2b0] sm:$0xff] %v924
  %1059 = vst [vmem:[#allocation3 + $0x2f8] sm:$0xff] %v925
  %1060 = vst [vmem:[#allocation3 + $0x340] sm:$0xff] %v926
  %1061 = vst [vmem:[#allocation3 + $0x388] sm:$0xff] %v927
  %1062 = vst [vmem:[#allocation3 + $0x3d0] sm:$0xff] %v928
  %1063 = vst [vmem:[#allocation3 + $0x418] sm:$0xff] %v929
  %1064 = vst [vmem:[#allocation3 + $0x460] sm:$0xff] %v930
  %1065 = vst [vmem:[#allocation3 + $0x4a8] sm:$0xff] %v931
  %1066 = vst [vmem:[#allocation3 + $0x4f0] sm:$0xff] %v932
  %1067 = vst [vmem:[#allocation3 + $0x538] sm:$0xff] %v933
  %1068 = vst [vmem:[#allocation3 + $0x580] sm:$0xff] %v934
  %1069 = vst [vmem:[#allocation3 + $0x5c8] sm:$0xff] %v935
  %1070 = vst [vmem:[#allocation3 + $0x610] sm:$0xff] %v936
  %1071 = vst [vmem:[#allocation3 + $0x658] sm:$0xff] %v937
  %1072 = vst [vmem:[#allocation3 + $0x6a0] sm:$0xff] %v938
  %1073 = vst [vmem:[#allocation3 + $0x6e8] sm:$0xff] %v939
  %1074 = vst [vmem:[#allocation3 + $0x730] sm:$0xff] %v940
  %1075 = vst [vmem:[#allocation3 + $0x778] sm:$0xff] %v941
  %1076 = vst [vmem:[#allocation3 + $0x7c0] sm:$0xff] %v942
  %1077 = vst [vmem:[#allocation3 + $0x808] sm:$0xff] %v943
  %1078 = vst [vmem:[#allocation3 + $0x850] sm:$0xff] %v944
  %1079 = vst [vmem:[#allocation3 + $0x898] sm:$0xff] %v945
  %1080 = vst [vmem:[#allocation3 + $0x8e0] sm:$0xff] %v946
  %1081 = vst [vmem:[#allocation3 + $0x928] sm:$0xff] %v951
  %1082 = vst [vmem:[#allocation3 + $0x970] sm:$0xff] %v952
  %1083 = vst [vmem:[#allocation3 + $0x9b8] sm:$0xff] %v953
  %1084 = vst [vmem:[#allocation3 + $0xa00] sm:$0xff] %v954
  %1085 = vst [vmem:[#allocation3 + $0xa48] sm:$0xff] %v955
  %1086 = vst [vmem:[#allocation3 + $0xa90] sm:$0xff] %v956
  %1087 = vst [vmem:[#allocation3 + $0xad8] sm:$0xff] %v957
  %1088 = vst [vmem:[#allocation3 + $0xb20] sm:$0xff] %v958
  %1089 = vst [vmem:[#allocation3 + $0xb68] sm:$0xff] %v959
  %1090 = vst [vmem:[#allocation3 + $0xbb0] sm:$0xff] %v960
  %1091 = vst [vmem:[#allocation3 + $0xbf8] sm:$0xff] %v961
  %1092 = vst [vmem:[#allocation3 + $0xc40] sm:$0xff] %v962
  %1093 = vst [vmem:[#allocation3 + $0xc88] sm:$0xff] %v963
  %1094 = vst [vmem:[#allocation3 + $0xcd0] sm:$0xff] %v964
  %1095 = vst [vmem:[#allocation3 + $0xd18] sm:$0xff] %v965
  %1096 = vst [vmem:[#allocation3 + $0xd60] sm:$0xff] %v966
  %1097 = vst [vmem:[#allocation3 + $0xda8] sm:$0xff] %v967
  %1098 = vst [vmem:[#allocation3 + $0xdf0] sm:$0xff] %v968
  %1099 = vst [vmem:[#allocation3 + $0xe38] sm:$0xff] %v969
  %1100 = vst [vmem:[#allocation3 + $0xe80] sm:$0xff] %v970
  %1101 = vst [vmem:[#allocation3 + $0xec8] sm:$0xff] %v971
  %1102 = vst [vmem:[#allocation3 + $0xf10] sm:$0xff] %v972
  %1103 = vst [vmem:[#allocation3 + $0xf58] sm:$0xff] %v973
  %1104 = vst [vmem:[#allocation3 + $0xfa0] sm:$0xff] %v974
  %1105 = vst [vmem:[#allocation3 + $0xfe8] sm:$0xff] %v975
  %1106 = vst [vmem:[#allocation3 + $0x1030] sm:$0xff] %v976
  %1107 = vst [vmem:[#allocation3 + $0x1078] sm:$0xff] %v977
  %1108 = vst [vmem:[#allocation3 + $0x10c0] sm:$0xff] %v978
  %1109 = vst [vmem:[#allocation3 + $0x1108] sm:$0xff] %v979
  %1110 = vst [vmem:[#allocation3 + $0x1150] sm:$0xff] %v980
  %1111 = vst [vmem:[#allocation3 + $0x1198] sm:$0xff] %v981
  %1112 = vst [vmem:[#allocation3 + $0x11e0] sm:$0xff] %v982
  %1113 = vst [vmem:[#allocation3 + $0x40] sm:$0xff] %v917
  %1114 = vst [vmem:[#allocation3 + $0x88] sm:$0xff] %v918
  %1115 = vst [vmem:[#allocation3 + $0xd0] sm:$0xff] %v919
  %1116 = vst [vmem:[#allocation3 + $0x118] sm:$0xff] %v920
  %1117 = vst [vmem:[#allocation3 + $0x160] sm:$0xff] %v921
  %1118 = vst [vmem:[#allocation3 + $0x1a8] sm:$0xff] %v922
  %1119 = vst [vmem:[#allocation3 + $0x1f0] sm:$0xff] %v923
  %1120 = vst [vmem:[#allocation3 + $0x238] sm:$0xff] %v924
  %1121 = vst [vmem:[#allocation3 + $0x280] sm:$0xff] %v925
  %1122 = vst [vmem:[#allocation3 + $0x2c8] sm:$0xff] %v926
  %1123 = vst [vmem:[#allocation3 + $0x310] sm:$0xff] %v927
  %1124 = vst [vmem:[#allocation3 + $0x358] sm:$0xff] %v928
  %1125 = vst [vmem:[#allocation3 + $0x3a0] sm:$0xff] %v929
  %1126 = vst [vmem:[#allocation3 + $0x3e8] sm:$0xff] %v930
  %1127 = vst [vmem:[#allocation3 + $0x430] sm:$0xff] %v931
  %1128 = vst [vmem:[#allocation3 + $0x478] sm:$0xff] %v932
  %1129 = vst [vmem:[#allocation3 + $0x4c0] sm:$0xff] %v933
  %1130 = vst [vmem:[#allocation3 + $0x508] sm:$0xff] %v934
  %1131 = vst [vmem:[#allocation3 + $0x550] sm:$0xff] %v935
  %1132 = vst [vmem:[#allocation3 + $0x598] sm:$0xff] %v936
  %1133 = vst [vmem:[#allocation3 + $0x5e0] sm:$0xff] %v937
  %1134 = vst [vmem:[#allocation3 + $0x628] sm:$0xff] %v938
  %1135 = vst [vmem:[#allocation3 + $0x670] sm:$0xff] %v939
  %1136 = vst [vmem:[#allocation3 + $0x6b8] sm:$0xff] %v940
  %1137 = vst [vmem:[#allocation3 + $0x700] sm:$0xff] %v941
  %1138 = vst [vmem:[#allocation3 + $0x748] sm:$0xff] %v942
  %1139 = vst [vmem:[#allocation3 + $0x790] sm:$0xff] %v943
  %1140 = vst [vmem:[#allocation3 + $0x7d8] sm:$0xff] %v944
  %1141 = vst [vmem:[#allocation3 + $0x820] sm:$0xff] %v945
  %1142 = vst [vmem:[#allocation3 + $0x868] sm:$0xff] %v946
  %1143 = vst [vmem:[#allocation3 + $0x8b0] sm:$0xff] %v947
  %1144 = vst [vmem:[#allocation3 + $0x8f8] sm:$0xff] %v948
  %1145 = vst [vmem:[#allocation3 + $0x940] sm:$0xff] %v953
  %1146 = vst [vmem:[#allocation3 + $0x988] sm:$0xff] %v954
  %1147 = vst [vmem:[#allocation3 + $0x9d0] sm:$0xff] %v955
  %1148 = vst [vmem:[#allocation3 + $0xa18] sm:$0xff] %v956
  %1149 = vst [vmem:[#allocation3 + $0xa60] sm:$0xff] %v957
  %1150 = vst [vmem:[#allocation3 + $0xaa8] sm:$0xff] %v958
  %1151 = vst [vmem:[#allocation3 + $0xaf0] sm:$0xff] %v959
  %1152 = vst [vmem:[#allocation3 + $0xb38] sm:$0xff] %v960
  %1153 = vst [vmem:[#allocation3 + $0xb80] sm:$0xff] %v961
  %1154 = vst [vmem:[#allocation3 + $0xbc8] sm:$0xff] %v962
  %1155 = vst [vmem:[#allocation3 + $0xc10] sm:$0xff] %v963
  %1156 = vst [vmem:[#allocation3 + $0xc58] sm:$0xff] %v964
  %1157 = vst [vmem:[#allocation3 + $0xca0] sm:$0xff] %v965
  %1158 = vst [vmem:[#allocation3 + $0xce8] sm:$0xff] %v966
  %1159 = vst [vmem:[#allocation3 + $0xd30] sm:$0xff] %v967
  %1160 = vst [vmem:[#allocation3 + $0xd78] sm:$0xff] %v968
  %1161 = vst [vmem:[#allocation3 + $0xdc0] sm:$0xff] %v969
  %1162 = vst [vmem:[#allocation3 + $0xe08] sm:$0xff] %v970
  %1163 = vst [vmem:[#allocation3 + $0xe50] sm:$0xff] %v971
  %1164 = vst [vmem:[#allocation3 + $0xe98] sm:$0xff] %v972
  %1165 = vst [vmem:[#allocation3 + $0xee0] sm:$0xff] %v973
  %1166 = vst [vmem:[#allocation3 + $0xf28] sm:$0xff] %v974
  %1167 = vst [vmem:[#allocation3 + $0xf70] sm:$0xff] %v975
  %1168 = vst [vmem:[#allocation3 + $0xfb8] sm:$0xff] %v976
  %1169 = vst [vmem:[#allocation3 + $0x1000] sm:$0xff] %v977
  %1170 = vst [vmem:[#allocation3 + $0x1048] sm:$0xff] %v978
  %1171 = vst [vmem:[#allocation3 + $0x1090] sm:$0xff] %v979
  %1172 = vst [vmem:[#allocation3 + $0x10d8] sm:$0xff] %v980
  %1173 = vst [vmem:[#allocation3 + $0x1120] sm:$0xff] %v981
  %1174 = vst [vmem:[#allocation3 + $0x1168] sm:$0xff] %v982
  %1175 = vst [vmem:[#allocation3 + $0x11b0] sm:$0xff] %v983
  %1176 = vst [vmem:[#allocation3 + $0x11f8] sm:$0xff] %v984
  %v1177 = vld [vmem:[#allocation3] sm:$0xff]
  %v1178 = vld [vmem:[#allocation3 + $0x8] sm:$0xff]
  %v1179 = vld [vmem:[#allocation3 + $0x10] sm:$0xff]
  %v1180 = vld [vmem:[#allocation3 + $0x18] sm:$0xff]
  %v1181 = vld [vmem:[#allocation3 + $0x20] sm:$0xff]
  %v1182 = vld [vmem:[#allocation3 + $0x28] sm:$0xff]
  %v1183 = vld [vmem:[#allocation3 + $0x30] sm:$0xff]
  %v1184 = vld [vmem:[#allocation3 + $0x38] sm:$0xff]
  %v1185 = vld [vmem:[#allocation3 + $0x40] sm:$0xff]
  %v1186 = vld [vmem:[#allocation3 + $0x48] sm:$0xff]
  %v1187 = vld [vmem:[#allocation3 + $0x50] sm:$0xff]
  %v1188 = vld [vmem:[#allocation3 + $0x58] sm:$0xff]
  %v1189 = vld [vmem:[#allocation3 + $0x60] sm:$0xff]
  %v1190 = vld [vmem:[#allocation3 + $0x68] sm:$0xff]
  %v1191 = vld [vmem:[#allocation3 + $0x70] sm:$0xff]
  %v1192 = vld [vmem:[#allocation3 + $0x78] sm:$0xff]
  %v1193 = vld [vmem:[#allocation3 + $0x80] sm:$0xff]
  %v1194 = vld [vmem:[#allocation3 + $0x88] sm:$0xff]
  %v1195 = vld [vmem:[#allocation3 + $0x90] sm:$0xff]
  %v1196 = vld [vmem:[#allocation3 + $0x98] sm:$0xff]
  %v1197 = vld [vmem:[#allocation3 + $0xa0] sm:$0xff]
  %v1198 = vld [vmem:[#allocation3 + $0xa8] sm:$0xff]
  %v1199 = vld [vmem:[#allocation3 + $0xb0] sm:$0xff]
  %v1200 = vld [vmem:[#allocation3 + $0xb8] sm:$0xff]
  %v1201 = vld [vmem:[#allocation3 + $0xc0] sm:$0xff]
  %v1202 = vld [vmem:[#allocation3 + $0xc8] sm:$0xff]
  %v1203 = vld [vmem:[#allocation3 + $0xd0] sm:$0xff]
  %v1204 = vld [vmem:[#allocation3 + $0xd8] sm:$0xff]
  %v1205 = vld [vmem:[#allocation3 + $0xe0] sm:$0xff]
  %v1206 = vld [vmem:[#allocation3 + $0xe8] sm:$0xff]
  %v1207 = vld [vmem:[#allocation3 + $0xf0] sm:$0xff]
  %v1208 = vld [vmem:[#allocation3 + $0xf8] sm:$0xff]
  %v1209 = vld [vmem:[#allocation3 + $0x100] sm:$0xff]
  %v1210 = vld [vmem:[#allocation3 + $0x108] sm:$0xff]
  %v1211 = vld [vmem:[#allocation3 + $0x110] sm:$0xff]
  %v1212 = vld [vmem:[#allocation3 + $0x118] sm:$0xff]
  %v1213 = vld [vmem:[#allocation3 + $0x120] sm:$0xff]
  %v1214 = vld [vmem:[#allocation3 + $0x128] sm:$0xff]
  %v1215 = vld [vmem:[#allocation3 + $0x130] sm:$0xff]
  %v1216 = vld [vmem:[#allocation3 + $0x138] sm:$0xff]
  %v1217 = vld [vmem:[#allocation3 + $0x140] sm:$0xff]
  %v1218 = vld [vmem:[#allocation3 + $0x148] sm:$0xff]
  %v1219 = vld [vmem:[#allocation3 + $0x150] sm:$0xff]
  %v1220 = vld [vmem:[#allocation3 + $0x158] sm:$0xff]
  %v1221 = vld [vmem:[#allocation3 + $0x160] sm:$0xff]
  %v1222 = vld [vmem:[#allocation3 + $0x168] sm:$0xff]
  %v1223 = vld [vmem:[#allocation3 + $0x170] sm:$0xff]
  %v1224 = vld [vmem:[#allocation3 + $0x178] sm:$0xff]
  %v1225 = vld [vmem:[#allocation3 + $0x180] sm:$0xff]
  %v1226 = vld [vmem:[#allocation3 + $0x188] sm:$0xff]
  %v1227 = vld [vmem:[#allocation3 + $0x190] sm:$0xff]
  %v1228 = vld [vmem:[#allocation3 + $0x198] sm:$0xff]
  %v1229 = vld [vmem:[#allocation3 + $0x1a0] sm:$0xff]
  %v1230 = vld [vmem:[#allocation3 + $0x1a8] sm:$0xff]
  %v1231 = vld [vmem:[#allocation3 + $0x1b0] sm:$0xff]
  %v1232 = vld [vmem:[#allocation3 + $0x1b8] sm:$0xff]
  %v1233 = vld [vmem:[#allocation3 + $0x1c0] sm:$0xff]
  %v1234 = vld [vmem:[#allocation3 + $0x1c8] sm:$0xff]
  %v1235 = vld [vmem:[#allocation3 + $0x1d0] sm:$0xff]
  %v1236 = vld [vmem:[#allocation3 + $0x1d8] sm:$0xff]
  %v1237 = vld [vmem:[#allocation3 + $0x1e0] sm:$0xff]
  %v1238 = vld [vmem:[#allocation3 + $0x1e8] sm:$0xff]
  %v1239 = vld [vmem:[#allocation3 + $0x1f0] sm:$0xff]
  %v1240 = vld [vmem:[#allocation3 + $0x1f8] sm:$0xff]
  %v1241 = vld [vmem:[#allocation3 + $0x200] sm:$0xff]
  %v1242 = vld [vmem:[#allocation3 + $0x208] sm:$0xff]
  %v1243 = vld [vmem:[#allocation3 + $0x210] sm:$0xff]
  %v1244 = vld [vmem:[#allocation3 + $0x218] sm:$0xff]
  %v1245 = vld [vmem:[#allocation3 + $0x220] sm:$0xff]
  %v1246 = vld [vmem:[#allocation3 + $0x228] sm:$0xff]
  %v1247 = vld [vmem:[#allocation3 + $0x230] sm:$0xff]
  %v1248 = vld [vmem:[#allocation3 + $0x238] sm:$0xff]
  %v1249 = vld [vmem:[#allocation3 + $0x240] sm:$0xff]
  %v1250 = vld [vmem:[#allocation3 + $0x248] sm:$0xff]
  %v1251 = vld [vmem:[#allocation3 + $0x250] sm:$0xff]
  %v1252 = vld [vmem:[#allocation3 + $0x258] sm:$0xff]
  %v1253 = vld [vmem:[#allocation3 + $0x260] sm:$0xff]
  %v1254 = vld [vmem:[#allocation3 + $0x268] sm:$0xff]
  %v1255 = vld [vmem:[#allocation3 + $0x270] sm:$0xff]
  %v1256 = vld [vmem:[#allocation3 + $0x278] sm:$0xff]
  %v1257 = vld [vmem:[#allocation3 + $0x280] sm:$0xff]
  %v1258 = vld [vmem:[#allocation3 + $0x288] sm:$0xff]
  %v1259 = vld [vmem:[#allocation3 + $0x290] sm:$0xff]
  %v1260 = vld [vmem:[#allocation3 + $0x298] sm:$0xff]
  %v1261 = vld [vmem:[#allocation3 + $0x2a0] sm:$0xff]
  %v1262 = vld [vmem:[#allocation3 + $0x2a8] sm:$0xff]
  %v1263 = vld [vmem:[#allocation3 + $0x2b0] sm:$0xff]
  %v1264 = vld [vmem:[#allocation3 + $0x2b8] sm:$0xff]
  %v1265 = vld [vmem:[#allocation3 + $0x2c0] sm:$0xff]
  %v1266 = vld [vmem:[#allocation3 + $0x2c8] sm:$0xff]
  %v1267 = vld [vmem:[#allocation3 + $0x2d0] sm:$0xff]
  %v1268 = vld [vmem:[#allocation3 + $0x2d8] sm:$0xff]
  %v1269 = vld [vmem:[#allocation3 + $0x2e0] sm:$0xff]
  %v1270 = vld [vmem:[#allocation3 + $0x2e8] sm:$0xff]
  %v1271 = vld [vmem:[#allocation3 + $0x2f0] sm:$0xff]
  %v1272 = vld [vmem:[#allocation3 + $0x2f8] sm:$0xff]
  %v1273 = vld [vmem:[#allocation3 + $0x300] sm:$0xff]
  %v1274 = vld [vmem:[#allocation3 + $0x308] sm:$0xff]
  %v1275 = vld [vmem:[#allocation3 + $0x310] sm:$0xff]
  %v1276 = vld [vmem:[#allocation3 + $0x318] sm:$0xff]
  %v1277 = vld [vmem:[#allocation3 + $0x320] sm:$0xff]
  %v1278 = vld [vmem:[#allocation3 + $0x328] sm:$0xff]
  %v1279 = vld [vmem:[#allocation3 + $0x330] sm:$0xff]
  %v1280 = vld [vmem:[#allocation3 + $0x338] sm:$0xff]
  %v1281 = vld [vmem:[#allocation3 + $0x340] sm:$0xff]
  %v1282 = vld [vmem:[#allocation3 + $0x348] sm:$0xff]
  %v1283 = vld [vmem:[#allocation3 + $0x350] sm:$0xff]
  %v1284 = vld [vmem:[#allocation3 + $0x358] sm:$0xff]
  %v1285 = vld [vmem:[#allocation3 + $0x360] sm:$0xff]
  %v1286 = vld [vmem:[#allocation3 + $0x368] sm:$0xff]
  %v1287 = vld [vmem:[#allocation3 + $0x370] sm:$0xff]
  %v1288 = vld [vmem:[#allocation3 + $0x378] sm:$0xff]
  %v1289 = vld [vmem:[#allocation3 + $0x380] sm:$0xff]
  %v1290 = vld [vmem:[#allocation3 + $0x388] sm:$0xff]
  %v1291 = vld [vmem:[#allocation3 + $0x390] sm:$0xff]
  %v1292 = vld [vmem:[#allocation3 + $0x398] sm:$0xff]
  %v1293 = vld [vmem:[#allocation3 + $0x3a0] sm:$0xff]
  %v1294 = vld [vmem:[#allocation3 + $0x3a8] sm:$0xff]
  %v1295 = vld [vmem:[#allocation3 + $0x3b0] sm:$0xff]
  %v1296 = vld [vmem:[#allocation3 + $0x3b8] sm:$0xff]
  %v1297 = vld [vmem:[#allocation3 + $0x3c0] sm:$0xff]
  %v1298 = vld [vmem:[#allocation3 + $0x3c8] sm:$0xff]
  %v1299 = vld [vmem:[#allocation3 + $0x3d0] sm:$0xff]
  %v1300 = vld [vmem:[#allocation3 + $0x3d8] sm:$0xff]
  %v1301 = vld [vmem:[#allocation3 + $0x3e0] sm:$0xff]
  %v1302 = vld [vmem:[#allocation3 + $0x3e8] sm:$0xff]
  %v1303 = vld [vmem:[#allocation3 + $0x3f0] sm:$0xff]
  %v1304 = vld [vmem:[#allocation3 + $0x3f8] sm:$0xff]
  %v1305 = vld [vmem:[#allocation3 + $0x400] sm:$0xff]
  %v1306 = vld [vmem:[#allocation3 + $0x408] sm:$0xff]
  %v1307 = vld [vmem:[#allocation3 + $0x410] sm:$0xff]
  %v1308 = vld [vmem:[#allocation3 + $0x418] sm:$0xff]
  %v1309 = vld [vmem:[#allocation3 + $0x420] sm:$0xff]
  %v1310 = vld [vmem:[#allocation3 + $0x428] sm:$0xff]
  %v1311 = vld [vmem:[#allocation3 + $0x430] sm:$0xff]
  %v1312 = vld [vmem:[#allocation3 + $0x438] sm:$0xff]
  %v1313 = vld [vmem:[#allocation3 + $0x440] sm:$0xff]
  %v1314 = vld [vmem:[#allocation3 + $0x448] sm:$0xff]
  %v1315 = vld [vmem:[#allocation3 + $0x450] sm:$0xff]
  %v1316 = vld [vmem:[#allocation3 + $0x458] sm:$0xff]
  %v1317 = vld [vmem:[#allocation3 + $0x460] sm:$0xff]
  %v1318 = vld [vmem:[#allocation3 + $0x468] sm:$0xff]
  %v1319 = vld [vmem:[#allocation3 + $0x470] sm:$0xff]
  %v1320 = vld [vmem:[#allocation3 + $0x478] sm:$0xff]
  %v1321 = vld [vmem:[#allocation3 + $0x480] sm:$0xff]
  %v1322 = vld [vmem:[#allocation3 + $0x488] sm:$0xff]
  %v1323 = vld [vmem:[#allocation3 + $0x490] sm:$0xff]
  %v1324 = vld [vmem:[#allocation3 + $0x498] sm:$0xff]
  %v1325 = vld [vmem:[#allocation3 + $0x4a0] sm:$0xff]
  %v1326 = vld [vmem:[#allocation3 + $0x4a8] sm:$0xff]
  %v1327 = vld [vmem:[#allocation3 + $0x4b0] sm:$0xff]
  %v1328 = vld [vmem:[#allocation3 + $0x4b8] sm:$0xff]
  %v1329 = vld [vmem:[#allocation3 + $0x4c0] sm:$0xff]
  %v1330 = vld [vmem:[#allocation3 + $0x4c8] sm:$0xff]
  %v1331 = vld [vmem:[#allocation3 + $0x4d0] sm:$0xff]
  %v1332 = vld [vmem:[#allocation3 + $0x4d8] sm:$0xff]
  %v1333 = vld [vmem:[#allocation3 + $0x4e0] sm:$0xff]
  %v1334 = vld [vmem:[#allocation3 + $0x4e8] sm:$0xff]
  %v1335 = vld [vmem:[#allocation3 + $0x4f0] sm:$0xff]
  %v1336 = vld [vmem:[#allocation3 + $0x4f8] sm:$0xff]
  %v1337 = vld [vmem:[#allocation3 + $0x500] sm:$0xff]
  %v1338 = vld [vmem:[#allocation3 + $0x508] sm:$0xff]
  %v1339 = vld [vmem:[#allocation3 + $0x510] sm:$0xff]
  %v1340 = vld [vmem:[#allocation3 + $0x518] sm:$0xff]
  %v1341 = vld [vmem:[#allocation3 + $0x520] sm:$0xff]
  %v1342 = vld [vmem:[#allocation3 + $0x528] sm:$0xff]
  %v1343 = vld [vmem:[#allocation3 + $0x530] sm:$0xff]
  %v1344 = vld [vmem:[#allocation3 + $0x538] sm:$0xff]
  %v1345 = vld [vmem:[#allocation3 + $0x540] sm:$0xff]
  %v1346 = vld [vmem:[#allocation3 + $0x548] sm:$0xff]
  %v1347 = vld [vmem:[#allocation3 + $0x550] sm:$0xff]
  %v1348 = vld [vmem:[#allocation3 + $0x558] sm:$0xff]
  %v1349 = vld [vmem:[#allocation3 + $0x560] sm:$0xff]
  %v1350 = vld [vmem:[#allocation3 + $0x568] sm:$0xff]
  %v1351 = vld [vmem:[#allocation3 + $0x570] sm:$0xff]
  %v1352 = vld [vmem:[#allocation3 + $0x578] sm:$0xff]
  %v1353 = vld [vmem:[#allocation3 + $0x580] sm:$0xff]
  %v1354 = vld [vmem:[#allocation3 + $0x588] sm:$0xff]
  %v1355 = vld [vmem:[#allocation3 + $0x590] sm:$0xff]
  %v1356 = vld [vmem:[#allocation3 + $0x598] sm:$0xff]
  %v1357 = vld [vmem:[#allocation3 + $0x5a0] sm:$0xff]
  %v1358 = vld [vmem:[#allocation3 + $0x5a8] sm:$0xff]
  %v1359 = vld [vmem:[#allocation3 + $0x5b0] sm:$0xff]
  %v1360 = vld [vmem:[#allocation3 + $0x5b8] sm:$0xff]
  %v1361 = vld [vmem:[#allocation3 + $0x5c0] sm:$0xff]
  %v1362 = vld [vmem:[#allocation3 + $0x5c8] sm:$0xff]
  %v1363 = vld [vmem:[#allocation3 + $0x5d0] sm:$0xff]
  %v1364 = vld [vmem:[#allocation3 + $0x5d8] sm:$0xff]
  %v1365 = vld [vmem:[#allocation3 + $0x5e0] sm:$0xff]
  %v1366 = vld [vmem:[#allocation3 + $0x5e8] sm:$0xff]
  %v1367 = vld [vmem:[#allocation3 + $0x5f0] sm:$0xff]
  %v1368 = vld [vmem:[#allocation3 + $0x5f8] sm:$0xff]
  %v1369 = vld [vmem:[#allocation3 + $0x600] sm:$0xff]
  %v1370 = vld [vmem:[#allocation3 + $0x608] sm:$0xff]
  %v1371 = vld [vmem:[#allocation3 + $0x610] sm:$0xff]
  %v1372 = vld [vmem:[#allocation3 + $0x618] sm:$0xff]
  %v1373 = vld [vmem:[#allocation3 + $0x620] sm:$0xff]
  %v1374 = vld [vmem:[#allocation3 + $0x628] sm:$0xff]
  %v1375 = vld [vmem:[#allocation3 + $0x630] sm:$0xff]
  %v1376 = vld [vmem:[#allocation3 + $0x638] sm:$0xff]
  %v1377 = vld [vmem:[#allocation3 + $0x640] sm:$0xff]
  %v1378 = vld [vmem:[#allocation3 + $0x648] sm:$0xff]
  %v1379 = vld [vmem:[#allocation3 + $0x650] sm:$0xff]
  %v1380 = vld [vmem:[#allocation3 + $0x658] sm:$0xff]
  %v1381 = vld [vmem:[#allocation3 + $0x660] sm:$0xff]
  %v1382 = vld [vmem:[#allocation3 + $0x668] sm:$0xff]
  %v1383 = vld [vmem:[#allocation3 + $0x670] sm:$0xff]
  %v1384 = vld [vmem:[#allocation3 + $0x678] sm:$0xff]
  %v1385 = vld [vmem:[#allocation3 + $0x680] sm:$0xff]
  %v1386 = vld [vmem:[#allocation3 + $0x688] sm:$0xff]
  %v1387 = vld [vmem:[#allocation3 + $0x690] sm:$0xff]
  %v1388 = vld [vmem:[#allocation3 + $0x698] sm:$0xff]
  %v1389 = vld [vmem:[#allocation3 + $0x6a0] sm:$0xff]
  %v1390 = vld [vmem:[#allocation3 + $0x6a8] sm:$0xff]
  %v1391 = vld [vmem:[#allocation3 + $0x6b0] sm:$0xff]
  %v1392 = vld [vmem:[#allocation3 + $0x6b8] sm:$0xff]
  %v1393 = vld [vmem:[#allocation3 + $0x6c0] sm:$0xff]
  %v1394 = vld [vmem:[#allocation3 + $0x6c8] sm:$0xff]
  %v1395 = vld [vmem:[#allocation3 + $0x6d0] sm:$0xff]
  %v1396 = vld [vmem:[#allocation3 + $0x6d8] sm:$0xff]
  %v1397 = vld [vmem:[#allocation3 + $0x6e0] sm:$0xff]
  %v1398 = vld [vmem:[#allocation3 + $0x6e8] sm:$0xff]
  %v1399 = vld [vmem:[#allocation3 + $0x6f0] sm:$0xff]
  %v1400 = vld [vmem:[#allocation3 + $0x6f8] sm:$0xff]
  %v1401 = vld [vmem:[#allocation3 + $0x700] sm:$0xff]
  %v1402 = vld [vmem:[#allocation3 + $0x708] sm:$0xff]
  %v1403 = vld [vmem:[#allocation3 + $0x710] sm:$0xff]
  %v1404 = vld [vmem:[#allocation3 + $0x718] sm:$0xff]
  %v1405 = vld [vmem:[#allocation3 + $0x720] sm:$0xff]
  %v1406 = vld [vmem:[#allocation3 + $0x728] sm:$0xff]
  %v1407 = vld [vmem:[#allocation3 + $0x730] sm:$0xff]
  %v1408 = vld [vmem:[#allocation3 + $0x738] sm:$0xff]
  %v1409 = vld [vmem:[#allocation3 + $0x740] sm:$0xff]
  %v1410 = vld [vmem:[#allocation3 + $0x748] sm:$0xff]
  %v1411 = vld [vmem:[#allocation3 + $0x750] sm:$0xff]
  %v1412 = vld [vmem:[#allocation3 + $0x758] sm:$0xff]
  %v1413 = vld [vmem:[#allocation3 + $0x760] sm:$0xff]
  %v1414 = vld [vmem:[#allocation3 + $0x768] sm:$0xff]
  %v1415 = vld [vmem:[#allocation3 + $0x770] sm:$0xff]
  %v1416 = vld [vmem:[#allocation3 + $0x778] sm:$0xff]
  %v1417 = vld [vmem:[#allocation3 + $0x780] sm:$0xff]
  %v1418 = vld [vmem:[#allocation3 + $0x788] sm:$0xff]
  %v1419 = vld [vmem:[#allocation3 + $0x790] sm:$0xff]
  %v1420 = vld [vmem:[#allocation3 + $0x798] sm:$0xff]
  %v1421 = vld [vmem:[#allocation3 + $0x7a0] sm:$0xff]
  %v1422 = vld [vmem:[#allocation3 + $0x7a8] sm:$0xff]
  %v1423 = vld [vmem:[#allocation3 + $0x7b0] sm:$0xff]
  %v1424 = vld [vmem:[#allocation3 + $0x7b8] sm:$0xff]
  %v1425 = vld [vmem:[#allocation3 + $0x7c0] sm:$0xff]
  %v1426 = vld [vmem:[#allocation3 + $0x7c8] sm:$0xff]
  %v1427 = vld [vmem:[#allocation3 + $0x7d0] sm:$0xff]
  %v1428 = vld [vmem:[#allocation3 + $0x7d8] sm:$0xff]
  %v1429 = vld [vmem:[#allocation3 + $0x7e0] sm:$0xff]
  %v1430 = vld [vmem:[#allocation3 + $0x7e8] sm:$0xff]
  %v1431 = vld [vmem:[#allocation3 + $0x7f0] sm:$0xff]
  %v1432 = vld [vmem:[#allocation3 + $0x7f8] sm:$0xff]
  %v1433 = vld [vmem:[#allocation3 + $0x800] sm:$0xff]
  %v1434 = vld [vmem:[#allocation3 + $0x808] sm:$0xff]
  %v1435 = vld [vmem:[#allocation3 + $0x810] sm:$0xff]
  %v1436 = vld [vmem:[#allocation3 + $0x818] sm:$0xff]
  %v1437 = vld [vmem:[#allocation3 + $0x820] sm:$0xff]
  %v1438 = vld [vmem:[#allocation3 + $0x828] sm:$0xff]
  %v1439 = vld [vmem:[#allocation3 + $0x830] sm:$0xff]
  %v1440 = vld [vmem:[#allocation3 + $0x838] sm:$0xff]
  %v1441 = vld [vmem:[#allocation3 + $0x840] sm:$0xff]
  %v1442 = vld [vmem:[#allocation3 + $0x848] sm:$0xff]
  %v1443 = vld [vmem:[#allocation3 + $0x850] sm:$0xff]
  %v1444 = vld [vmem:[#allocation3 + $0x858] sm:$0xff]
  %v1445 = vld [vmem:[#allocation3 + $0x860] sm:$0xff]
  %v1446 = vld [vmem:[#allocation3 + $0x868] sm:$0xff]
  %v1447 = vld [vmem:[#allocation3 + $0x870] sm:$0xff]
  %v1448 = vld [vmem:[#allocation3 + $0x878] sm:$0xff]
  %v1449 = vld [vmem:[#allocation3 + $0x880] sm:$0xff]
  %v1450 = vld [vmem:[#allocation3 + $0x888] sm:$0xff]
  %v1451 = vld [vmem:[#allocation3 + $0x890] sm:$0xff]
  %v1452 = vld [vmem:[#allocation3 + $0x898] sm:$0xff]
  %v1453 = vld [vmem:[#allocation3 + $0x8a0] sm:$0xff]
  %v1454 = vld [vmem:[#allocation3 + $0x8a8] sm:$0xff]
  %v1455 = vld [vmem:[#allocation3 + $0x8b0] sm:$0xff]
  %v1456 = vld [vmem:[#allocation3 + $0x8b8] sm:$0xff]
  %v1457 = vld [vmem:[#allocation3 + $0x8c0] sm:$0xff]
  %v1458 = vld [vmem:[#allocation3 + $0x8c8] sm:$0xff]
  %v1459 = vld [vmem:[#allocation3 + $0x8d0] sm:$0xff]
  %v1460 = vld [vmem:[#allocation3 + $0x8d8] sm:$0xff]
  %v1461 = vld [vmem:[#allocation3 + $0x8e0] sm:$0xff]
  %v1462 = vld [vmem:[#allocation3 + $0x8e8] sm:$0xff]
  %v1463 = vld [vmem:[#allocation3 + $0x8f0] sm:$0xff]
  %v1464 = vld [vmem:[#allocation3 + $0x8f8] sm:$0xff]
  %v1465 = vld [vmem:[#allocation3 + $0x900] sm:$0xff]
  %v1466 = vld [vmem:[#allocation3 + $0x908] sm:$0xff]
  %v1467 = vld [vmem:[#allocation3 + $0x910] sm:$0xff]
  %v1468 = vld [vmem:[#allocation3 + $0x918] sm:$0xff]
  %v1469 = vld [vmem:[#allocation3 + $0x920] sm:$0xff]
  %v1470 = vld [vmem:[#allocation3 + $0x928] sm:$0xff]
  %v1471 = vld [vmem:[#allocation3 + $0x930] sm:$0xff]
  %v1472 = vld [vmem:[#allocation3 + $0x938] sm:$0xff]
  %v1473 = vld [vmem:[#allocation3 + $0x940] sm:$0xff]
  %v1474 = vld [vmem:[#allocation3 + $0x948] sm:$0xff]
  %v1475 = vld [vmem:[#allocation3 + $0x950] sm:$0xff]
  %v1476 = vld [vmem:[#allocation3 + $0x958] sm:$0xff]
  %v1477 = vld [vmem:[#allocation3 + $0x960] sm:$0xff]
  %v1478 = vld [vmem:[#allocation3 + $0x968] sm:$0xff]
  %v1479 = vld [vmem:[#allocation3 + $0x970] sm:$0xff]
  %v1480 = vld [vmem:[#allocation3 + $0x978] sm:$0xff]
  %v1481 = vld [vmem:[#allocation3 + $0x980] sm:$0xff]
  %v1482 = vld [vmem:[#allocation3 + $0x988] sm:$0xff]
  %v1483 = vld [vmem:[#allocation3 + $0x990] sm:$0xff]
  %v1484 = vld [vmem:[#allocation3 + $0x998] sm:$0xff]
  %v1485 = vld [vmem:[#allocation3 + $0x9a0] sm:$0xff]
  %v1486 = vld [vmem:[#allocation3 + $0x9a8] sm:$0xff]
  %v1487 = vld [vmem:[#allocation3 + $0x9b0] sm:$0xff]
  %v1488 = vld [vmem:[#allocation3 + $0x9b8] sm:$0xff]
  %v1489 = vld [vmem:[#allocation3 + $0x9c0] sm:$0xff]
  %v1490 = vld [vmem:[#allocation3 + $0x9c8] sm:$0xff]
  %v1491 = vld [vmem:[#allocation3 + $0x9d0] sm:$0xff]
  %v1492 = vld [vmem:[#allocation3 + $0x9d8] sm:$0xff]
  %v1493 = vld [vmem:[#allocation3 + $0x9e0] sm:$0xff]
  %v1494 = vld [vmem:[#allocation3 + $0x9e8] sm:$0xff]
  %v1495 = vld [vmem:[#allocation3 + $0x9f0] sm:$0xff]
  %v1496 = vld [vmem:[#allocation3 + $0x9f8] sm:$0xff]
  %v1497 = vld [vmem:[#allocation3 + $0xa00] sm:$0xff]
  %v1498 = vld [vmem:[#allocation3 + $0xa08] sm:$0xff]
  %v1499 = vld [vmem:[#allocation3 + $0xa10] sm:$0xff]
  %v1500 = vld [vmem:[#allocation3 + $0xa18] sm:$0xff]
  %v1501 = vld [vmem:[#allocation3 + $0xa20] sm:$0xff]
  %v1502 = vld [vmem:[#allocation3 + $0xa28] sm:$0xff]
  %v1503 = vld [vmem:[#allocation3 + $0xa30] sm:$0xff]
  %v1504 = vld [vmem:[#allocation3 + $0xa38] sm:$0xff]
  %v1505 = vld [vmem:[#allocation3 + $0xa40] sm:$0xff]
  %v1506 = vld [vmem:[#allocation3 + $0xa48] sm:$0xff]
  %v1507 = vld [vmem:[#allocation3 + $0xa50] sm:$0xff]
  %v1508 = vld [vmem:[#allocation3 + $0xa58] sm:$0xff]
  %v1509 = vld [vmem:[#allocation3 + $0xa60] sm:$0xff]
  %v1510 = vld [vmem:[#allocation3 + $0xa68] sm:$0xff]
  %v1511 = vld [vmem:[#allocation3 + $0xa70] sm:$0xff]
  %v1512 = vld [vmem:[#allocation3 + $0xa78] sm:$0xff]
  %v1513 = vld [vmem:[#allocation3 + $0xa80] sm:$0xff]
  %v1514 = vld [vmem:[#allocation3 + $0xa88] sm:$0xff]
  %v1515 = vld [vmem:[#allocation3 + $0xa90] sm:$0xff]
  %v1516 = vld [vmem:[#allocation3 + $0xa98] sm:$0xff]
  %v1517 = vld [vmem:[#allocation3 + $0xaa0] sm:$0xff]
  %v1518 = vld [vmem:[#allocation3 + $0xaa8] sm:$0xff]
  %v1519 = vld [vmem:[#allocation3 + $0xab0] sm:$0xff]
  %v1520 = vld [vmem:[#allocation3 + $0xab8] sm:$0xff]
  %v1521 = vld [vmem:[#allocation3 + $0xac0] sm:$0xff]
  %v1522 = vld [vmem:[#allocation3 + $0xac8] sm:$0xff]
  %v1523 = vld [vmem:[#allocation3 + $0xad0] sm:$0xff]
  %v1524 = vld [vmem:[#allocation3 + $0xad8] sm:$0xff]
  %v1525 = vld [vmem:[#allocation3 + $0xae0] sm:$0xff]
  %v1526 = vld [vmem:[#allocation3 + $0xae8] sm:$0xff]
  %v1527 = vld [vmem:[#allocation3 + $0xaf0] sm:$0xff]
  %v1528 = vld [vmem:[#allocation3 + $0xaf8] sm:$0xff]
  %v1529 = vld [vmem:[#allocation3 + $0xb00] sm:$0xff]
  %v1530 = vld [vmem:[#allocation3 + $0xb08] sm:$0xff]
  %v1531 = vld [vmem:[#allocation3 + $0xb10] sm:$0xff]
  %v1532 = vld [vmem:[#allocation3 + $0xb18] sm:$0xff]
  %v1533 = vld [vmem:[#allocation3 + $0xb20] sm:$0xff]
  %v1534 = vld [vmem:[#allocation3 + $0xb28] sm:$0xff]
  %v1535 = vld [vmem:[#allocation3 + $0xb30] sm:$0xff]
  %v1536 = vld [vmem:[#allocation3 + $0xb38] sm:$0xff]
  %v1537 = vld [vmem:[#allocation3 + $0xb40] sm:$0xff]
  %v1538 = vld [vmem:[#allocation3 + $0xb48] sm:$0xff]
  %v1539 = vld [vmem:[#allocation3 + $0xb50] sm:$0xff]
  %v1540 = vld [vmem:[#allocation3 + $0xb58] sm:$0xff]
  %v1541 = vld [vmem:[#allocation3 + $0xb60] sm:$0xff]
  %v1542 = vld [vmem:[#allocation3 + $0xb68] sm:$0xff]
  %v1543 = vld [vmem:[#allocation3 + $0xb70] sm:$0xff]
  %v1544 = vld [vmem:[#allocation3 + $0xb78] sm:$0xff]
  %v1545 = vld [vmem:[#allocation3 + $0xb80] sm:$0xff]
  %v1546 = vld [vmem:[#allocation3 + $0xb88] sm:$0xff]
  %v1547 = vld [vmem:[#allocation3 + $0xb90] sm:$0xff]
  %v1548 = vld [vmem:[#allocation3 + $0xb98] sm:$0xff]
  %v1549 = vld [vmem:[#allocation3 + $0xba0] sm:$0xff]
  %v1550 = vld [vmem:[#allocation3 + $0xba8] sm:$0xff]
  %v1551 = vld [vmem:[#allocation3 + $0xbb0] sm:$0xff]
  %v1552 = vld [vmem:[#allocation3 + $0xbb8] sm:$0xff]
  %v1553 = vld [vmem:[#allocation3 + $0xbc0] sm:$0xff]
  %v1554 = vld [vmem:[#allocation3 + $0xbc8] sm:$0xff]
  %v1555 = vld [vmem:[#allocation3 + $0xbd0] sm:$0xff]
  %v1556 = vld [vmem:[#allocation3 + $0xbd8] sm:$0xff]
  %v1557 = vld [vmem:[#allocation3 + $0xbe0] sm:$0xff]
  %v1558 = vld [vmem:[#allocation3 + $0xbe8] sm:$0xff]
  %v1559 = vld [vmem:[#allocation3 + $0xbf0] sm:$0xff]
  %v1560 = vld [vmem:[#allocation3 + $0xbf8] sm:$0xff]
  %v1561 = vld [vmem:[#allocation3 + $0xc00] sm:$0xff]
  %v1562 = vld [vmem:[#allocation3 + $0xc08] sm:$0xff]
  %v1563 = vld [vmem:[#allocation3 + $0xc10] sm:$0xff]
  %v1564 = vld [vmem:[#allocation3 + $0xc18] sm:$0xff]
  %v1565 = vld [vmem:[#allocation3 + $0xc20] sm:$0xff]
  %v1566 = vld [vmem:[#allocation3 + $0xc28] sm:$0xff]
  %v1567 = vld [vmem:[#allocation3 + $0xc30] sm:$0xff]
  %v1568 = vld [vmem:[#allocation3 + $0xc38] sm:$0xff]
  %v1569 = vld [vmem:[#allocation3 + $0xc40] sm:$0xff]
  %v1570 = vld [vmem:[#allocation3 + $0xc48] sm:$0xff]
  %v1571 = vld [vmem:[#allocation3 + $0xc50] sm:$0xff]
  %v1572 = vld [vmem:[#allocation3 + $0xc58] sm:$0xff]
  %v1573 = vld [vmem:[#allocation3 + $0xc60] sm:$0xff]
  %v1574 = vld [vmem:[#allocation3 + $0xc68] sm:$0xff]
  %v1575 = vld [vmem:[#allocation3 + $0xc70] sm:$0xff]
  %v1576 = vld [vmem:[#allocation3 + $0xc78] sm:$0xff]
  %v1577 = vld [vmem:[#allocation3 + $0xc80] sm:$0xff]
  %v1578 = vld [vmem:[#allocation3 + $0xc88] sm:$0xff]
  %v1579 = vld [vmem:[#allocation3 + $0xc90] sm:$0xff]
  %v1580 = vld [vmem:[#allocation3 + $0xc98] sm:$0xff]
  %v1581 = vld [vmem:[#allocation3 + $0xca0] sm:$0xff]
  %v1582 = vld [vmem:[#allocation3 + $0xca8] sm:$0xff]
  %v1583 = vld [vmem:[#allocation3 + $0xcb0] sm:$0xff]
  %v1584 = vld [vmem:[#allocation3 + $0xcb8] sm:$0xff]
  %v1585 = vld [vmem:[#allocation3 + $0xcc0] sm:$0xff]
  %v1586 = vld [vmem:[#allocation3 + $0xcc8] sm:$0xff]
  %v1587 = vld [vmem:[#allocation3 + $0xcd0] sm:$0xff]
  %v1588 = vld [vmem:[#allocation3 + $0xcd8] sm:$0xff]
  %v1589 = vld [vmem:[#allocation3 + $0xce0] sm:$0xff]
  %v1590 = vld [vmem:[#allocation3 + $0xce8] sm:$0xff]
  %v1591 = vld [vmem:[#allocation3 + $0xcf0] sm:$0xff]
  %v1592 = vld [vmem:[#allocation3 + $0xcf8] sm:$0xff]
  %v1593 = vld [vmem:[#allocation3 + $0xd00] sm:$0xff]
  %v1594 = vld [vmem:[#allocation3 + $0xd08] sm:$0xff]
  %v1595 = vld [vmem:[#allocation3 + $0xd10] sm:$0xff]
  %v1596 = vld [vmem:[#allocation3 + $0xd18] sm:$0xff]
  %v1597 = vld [vmem:[#allocation3 + $0xd20] sm:$0xff]
  %v1598 = vld [vmem:[#allocation3 + $0xd28] sm:$0xff]
  %v1599 = vld [vmem:[#allocation3 + $0xd30] sm:$0xff]
  %v1600 = vld [vmem:[#allocation3 + $0xd38] sm:$0xff]
  %v1601 = vld [vmem:[#allocation3 + $0xd40] sm:$0xff]
  %v1602 = vld [vmem:[#allocation3 + $0xd48] sm:$0xff]
  %v1603 = vld [vmem:[#allocation3 + $0xd50] sm:$0xff]
  %v1604 = vld [vmem:[#allocation3 + $0xd58] sm:$0xff]
  %v1605 = vld [vmem:[#allocation3 + $0xd60] sm:$0xff]
  %v1606 = vld [vmem:[#allocation3 + $0xd68] sm:$0xff]
  %v1607 = vld [vmem:[#allocation3 + $0xd70] sm:$0xff]
  %v1608 = vld [vmem:[#allocation3 + $0xd78] sm:$0xff]
  %v1609 = vld [vmem:[#allocation3 + $0xd80] sm:$0xff]
  %v1610 = vld [vmem:[#allocation3 + $0xd88] sm:$0xff]
  %v1611 = vld [vmem:[#allocation3 + $0xd90] sm:$0xff]
  %v1612 = vld [vmem:[#allocation3 + $0xd98] sm:$0xff]
  %v1613 = vld [vmem:[#allocation3 + $0xda0] sm:$0xff]
  %v1614 = vld [vmem:[#allocation3 + $0xda8] sm:$0xff]
  %v1615 = vld [vmem:[#allocation3 + $0xdb0] sm:$0xff]
  %v1616 = vld [vmem:[#allocation3 + $0xdb8] sm:$0xff]
  %v1617 = vld [vmem:[#allocation3 + $0xdc0] sm:$0xff]
  %v1618 = vld [vmem:[#allocation3 + $0xdc8] sm:$0xff]
  %v1619 = vld [vmem:[#allocation3 + $0xdd0] sm:$0xff]
  %v1620 = vld [vmem:[#allocation3 + $0xdd8] sm:$0xff]
  %v1621 = vld [vmem:[#allocation3 + $0xde0] sm:$0xff]
  %v1622 = vld [vmem:[#allocation3 + $0xde8] sm:$0xff]
  %v1623 = vld [vmem:[#allocation3 + $0xdf0] sm:$0xff]
  %v1624 = vld [vmem:[#allocation3 + $0xdf8] sm:$0xff]
  %v1625 = vld [vmem:[#allocation3 + $0xe00] sm:$0xff]
  %v1626 = vld [vmem:[#allocation3 + $0xe08] sm:$0xff]
  %v1627 = vld [vmem:[#allocation3 + $0xe10] sm:$0xff]
  %v1628 = vld [vmem:[#allocation3 + $0xe18] sm:$0xff]
  %v1629 = vld [vmem:[#allocation3 + $0xe20] sm:$0xff]
  %v1630 = vld [vmem:[#allocation3 + $0xe28] sm:$0xff]
  %v1631 = vld [vmem:[#allocation3 + $0xe30] sm:$0xff]
  %v1632 = vld [vmem:[#allocation3 + $0xe38] sm:$0xff]
  %v1633 = vld [vmem:[#allocation3 + $0xe40] sm:$0xff]
  %v1634 = vld [vmem:[#allocation3 + $0xe48] sm:$0xff]
  %v1635 = vld [vmem:[#allocation3 + $0xe50] sm:$0xff]
  %v1636 = vld [vmem:[#allocation3 + $0xe58] sm:$0xff]
  %v1637 = vld [vmem:[#allocation3 + $0xe60] sm:$0xff]
  %v1638 = vld [vmem:[#allocation3 + $0xe68] sm:$0xff]
  %v1639 = vld [vmem:[#allocation3 + $0xe70] sm:$0xff]
  %v1640 = vld [vmem:[#allocation3 + $0xe78] sm:$0xff]
  %v1641 = vld [vmem:[#allocation3 + $0xe80] sm:$0xff]
  %v1642 = vld [vmem:[#allocation3 + $0xe88] sm:$0xff]
  %v1643 = vld [vmem:[#allocation3 + $0xe90] sm:$0xff]
  %v1644 = vld [vmem:[#allocation3 + $0xe98] sm:$0xff]
  %v1645 = vld [vmem:[#allocation3 + $0xea0] sm:$0xff]
  %v1646 = vld [vmem:[#allocation3 + $0xea8] sm:$0xff]
  %v1647 = vld [vmem:[#allocation3 + $0xeb0] sm:$0xff]
  %v1648 = vld [vmem:[#allocation3 + $0xeb8] sm:$0xff]
  %v1649 = vld [vmem:[#allocation3 + $0xec0] sm:$0xff]
  %v1650 = vld [vmem:[#allocation3 + $0xec8] sm:$0xff]
  %v1651 = vld [vmem:[#allocation3 + $0xed0] sm:$0xff]
  %v1652 = vld [vmem:[#allocation3 + $0xed8] sm:$0xff]
  %v1653 = vld [vmem:[#allocation3 + $0xee0] sm:$0xff]
  %v1654 = vld [vmem:[#allocation3 + $0xee8] sm:$0xff]
  %v1655 = vld [vmem:[#allocation3 + $0xef0] sm:$0xff]
  %v1656 = vld [vmem:[#allocation3 + $0xef8] sm:$0xff]
  %v1657 = vld [vmem:[#allocation3 + $0xf00] sm:$0xff]
  %v1658 = vld [vmem:[#allocation3 + $0xf08] sm:$0xff]
  %v1659 = vld [vmem:[#allocation3 + $0xf10] sm:$0xff]
  %v1660 = vld [vmem:[#allocation3 + $0xf18] sm:$0xff]
  %v1661 = vld [vmem:[#allocation3 + $0xf20] sm:$0xff]
  %v1662 = vld [vmem:[#allocation3 + $0xf28] sm:$0xff]
  %v1663 = vld [vmem:[#allocation3 + $0xf30] sm:$0xff]
  %v1664 = vld [vmem:[#allocation3 + $0xf38] sm:$0xff]
  %v1665 = vld [vmem:[#allocation3 + $0xf40] sm:$0xff]
  %v1666 = vld [vmem:[#allocation3 + $0xf48] sm:$0xff]
  %v1667 = vld [vmem:[#allocation3 + $0xf50] sm:$0xff]
  %v1668 = vld [vmem:[#allocation3 + $0xf58] sm:$0xff]
  %v1669 = vld [vmem:[#allocation3 + $0xf60] sm:$0xff]
  %v1670 = vld [vmem:[#allocation3 + $0xf68] sm:$0xff]
  %v1671 = vld [vmem:[#allocation3 + $0xf70] sm:$0xff]
  %v1672 = vld [vmem:[#allocation3 + $0xf78] sm:$0xff]
  %v1673 = vld [vmem:[#allocation3 + $0xf80] sm:$0xff]
  %v1674 = vld [vmem:[#allocation3 + $0xf88] sm:$0xff]
  %v1675 = vld [vmem:[#allocation3 + $0xf90] sm:$0xff]
  %v1676 = vld [vmem:[#allocation3 + $0xf98] sm:$0xff]
  %v1677 = vld [vmem:[#allocation3 + $0xfa0] sm:$0xff]
  %v1678 = vld [vmem:[#allocation3 + $0xfa8] sm:$0xff]
  %v1679 = vld [vmem:[#allocation3 + $0xfb0] sm:$0xff]
  %v1680 = vld [vmem:[#allocation3 + $0xfb8] sm:$0xff]
  %v1681 = vld [vmem:[#allocation3 + $0xfc0] sm:$0xff]
  %v1682 = vld [vmem:[#allocation3 + $0xfc8] sm:$0xff]
  %v1683 = vld [vmem:[#allocation3 + $0xfd0] sm:$0xff]
  %v1684 = vld [vmem:[#allocation3 + $0xfd8] sm:$0xff]
  %v1685 = vld [vmem:[#allocation3 + $0xfe0] sm:$0xff]
  %v1686 = vld [vmem:[#allocation3 + $0xfe8] sm:$0xff]
  %v1687 = vld [vmem:[#allocation3 + $0xff0] sm:$0xff]
  %v1688 = vld [vmem:[#allocation3 + $0xff8] sm:$0xff]
  %v1689 = vld [vmem:[#allocation3 + $0x1000] sm:$0xff]
  %v1690 = vld [vmem:[#allocation3 + $0x1008] sm:$0xff]
  %v1691 = vld [vmem:[#allocation3 + $0x1010] sm:$0xff]
  %v1692 = vld [vmem:[#allocation3 + $0x1018] sm:$0xff]
  %v1693 = vld [vmem:[#allocation3 + $0x1020] sm:$0xff]
  %v1694 = vld [vmem:[#allocation3 + $0x1028] sm:$0xff]
  %v1695 = vld [vmem:[#allocation3 + $0x1030] sm:$0xff]
  %v1696 = vld [vmem:[#allocation3 + $0x1038] sm:$0xff]
  %v1697 = vld [vmem:[#allocation3 + $0x1040] sm:$0xff]
  %v1698 = vld [vmem:[#allocation3 + $0x1048] sm:$0xff]
  %v1699 = vld [vmem:[#allocation3 + $0x1050] sm:$0xff]
  %v1700 = vld [vmem:[#allocation3 + $0x1058] sm:$0xff]
  %v1701 = vld [vmem:[#allocation3 + $0x1060] sm:$0xff]
  %v1702 = vld [vmem:[#allocation3 + $0x1068] sm:$0xff]
  %v1703 = vld [vmem:[#allocation3 + $0x1070] sm:$0xff]
  %v1704 = vld [vmem:[#allocation3 + $0x1078] sm:$0xff]
  %v1705 = vld [vmem:[#allocation3 + $0x1080] sm:$0xff]
  %v1706 = vld [vmem:[#allocation3 + $0x1088] sm:$0xff]
  %v1707 = vld [vmem:[#allocation3 + $0x1090] sm:$0xff]
  %v1708 = vld [vmem:[#allocation3 + $0x1098] sm:$0xff]
  %v1709 = vld [vmem:[#allocation3 + $0x10a0] sm:$0xff]
  %v1710 = vld [vmem:[#allocation3 + $0x10a8] sm:$0xff]
  %v1711 = vld [vmem:[#allocation3 + $0x10b0] sm:$0xff]
  %v1712 = vld [vmem:[#allocation3 + $0x10b8] sm:$0xff]
  %v1713 = vld [vmem:[#allocation3 + $0x10c0] sm:$0xff]
  %v1714 = vld [vmem:[#allocation3 + $0x10c8] sm:$0xff]
  %v1715 = vld [vmem:[#allocation3 + $0x10d0] sm:$0xff]
  %v1716 = vld [vmem:[#allocation3 + $0x10d8] sm:$0xff]
  %v1717 = vld [vmem:[#allocation3 + $0x10e0] sm:$0xff]
  %v1718 = vld [vmem:[#allocation3 + $0x10e8] sm:$0xff]
  %v1719 = vld [vmem:[#allocation3 + $0x10f0] sm:$0xff]
  %v1720 = vld [vmem:[#allocation3 + $0x10f8] sm:$0xff]
  %v1721 = vld [vmem:[#allocation3 + $0x1100] sm:$0xff]
  %v1722 = vld [vmem:[#allocation3 + $0x1108] sm:$0xff]
  %v1723 = vld [vmem:[#allocation3 + $0x1110] sm:$0xff]
  %v1724 = vld [vmem:[#allocation3 + $0x1118] sm:$0xff]
  %v1725 = vld [vmem:[#allocation3 + $0x1120] sm:$0xff]
  %v1726 = vld [vmem:[#allocation3 + $0x1128] sm:$0xff]
  %v1727 = vld [vmem:[#allocation3 + $0x1130] sm:$0xff]
  %v1728 = vld [vmem:[#allocation3 + $0x1138] sm:$0xff]
  %v1729 = vld [vmem:[#allocation3 + $0x1140] sm:$0xff]
  %v1730 = vld [vmem:[#allocation3 + $0x1148] sm:$0xff]
  %v1731 = vld [vmem:[#allocation3 + $0x1150] sm:$0xff]
  %v1732 = vld [vmem:[#allocation3 + $0x1158] sm:$0xff]
  %v1733 = vld [vmem:[#allocation3 + $0x1160] sm:$0xff]
  %v1734 = vld [vmem:[#allocation3 + $0x1168] sm:$0xff]
  %v1735 = vld [vmem:[#allocation3 + $0x1170] sm:$0xff]
  %v1736 = vld [vmem:[#allocation3 + $0x1178] sm:$0xff]
  %v1737 = vld [vmem:[#allocation3 + $0x1180] sm:$0xff]
  %v1738 = vld [vmem:[#allocation3 + $0x1188] sm:$0xff]
  %v1739 = vld [vmem:[#allocation3 + $0x1190] sm:$0xff]
  %v1740 = vld [vmem:[#allocation3 + $0x1198] sm:$0xff]
  %v1741 = vld [vmem:[#allocation3 + $0x11a0] sm:$0xff]
  %v1742 = vld [vmem:[#allocation3 + $0x11a8] sm:$0xff]
  %v1743 = vld [vmem:[#allocation3 + $0x11b0] sm:$0xff]
  %v1744 = vld [vmem:[#allocation3 + $0x11b8] sm:$0xff]
  %v1745 = vld [vmem:[#allocation3 + $0x11c0] sm:$0xff]
  %v1746 = vld [vmem:[#allocation3 + $0x11c8] sm:$0xff]
  %v1747 = vld [vmem:[#allocation3 + $0x11d0] sm:$0xff]
  %v1748 = vld [vmem:[#allocation3 + $0x11d8] sm:$0xff]
  %v1749 = vld [vmem:[#allocation3 + $0x11e0] sm:$0xff]
  %v1750 = vld [vmem:[#allocation3 + $0x11e8] sm:$0xff]
  %v1751 = vld [vmem:[#allocation3 + $0x11f0] sm:$0xff]
  %v1752 = vld [vmem:[#allocation3 + $0x11f8] sm:$0xff]
  %v1754 = vlaneseq
  %v1755 = vshrl.u32 %v1754, 7
  %v1756 = vsub.s32 0, %v1755
  %v1757 = vrot.slane %v382, %v1756
  %1759 = vmatprep.subr.mxu0 0.0
  %1760 = vmatpush1.msra.mxu0 %v238
  %1761 = vmatprep.subr.mxu0 0.0
  %1762 = vmatpush1.msra.mxu0 %v239
  %1763 = vmatprep.subr.mxu0 0.0
  %1764 = vmatpush1.msra.mxu0 %v240
  %1765 = vmatprep.subr.mxu0 0.0
  %1766 = vmatpush1.msra.mxu0 %v241
  %1767 = vmatprep.subr.mxu0 0.0
  %1768 = vmatpush1.msra.mxu0 %v242
  %1769 = vmatprep.subr.mxu0 0.0
  %1770 = vmatpush1.msra.mxu0 %v243
  %1771 = vmatprep.subr.mxu0 0.0
  %1772 = vmatpush1.msra.mxu0 %v244
  %1773 = vmatprep.subr.mxu0 0.0
  %1774 = vmatpush1.msra.mxu0 %v245
  %1775 = vmatprep.subr.mxu0 0.0
  %1776 = vmatpush1.msra.mxu0 %v246
  %1777 = vmatprep.subr.mxu0 0.0
  %1778 = vmatpush1.msra.mxu0 %v247
  %1779 = vmatprep.subr.mxu0 0.0
  %1780 = vmatpush1.msra.mxu0 %v248
  %1781 = vmatprep.subr.mxu0 0.0
  %1782 = vmatpush1.msra.mxu0 %v249
  %1783 = vmatprep.subr.mxu0 0.0
  %1784 = vmatpush1.msra.mxu0 %v250
  %1785 = vmatprep.subr.mxu0 0.0
  %1786 = vmatpush1.msra.mxu0 %v251
  %1787 = vmatprep.subr.mxu0 0.0
  %1788 = vmatpush1.msra.mxu0 %v252
  %1789 = vmatprep.subr.mxu0 0.0
  %1790 = vmatpush1.msra.mxu0 %v253
  %1791 = vmatprep.subr.mxu0 0.0
  %1792 = vmatpush1.msra.mxu0 %v254
  %1793 = vmatprep.subr.mxu0 0.0
  %1794 = vmatpush1.msra.mxu0 %v255
  %1795 = vmatprep.subr.mxu0 0.0
  %1796 = vmatpush1.msra.mxu0 %v256
  %1797 = vmatprep.subr.mxu0 0.0
  %1798 = vmatpush1.msra.mxu0 %v257
  %1799 = vmatprep.subr.mxu0 0.0
  %1800 = vmatpush1.msra.mxu0 %v258
  %1801 = vmatprep.subr.mxu0 0.0
  %1802 = vmatpush1.msra.mxu0 %v259
  %1803 = vmatprep.subr.mxu0 0.0
  %1804 = vmatpush1.msra.mxu0 %v260
  %1805 = vmatprep.subr.mxu0 0.0
  %1806 = vmatpush1.msra.mxu0 %v261
  %1807 = vmatprep.subr.mxu0 0.0
  %1808 = vmatpush1.msra.mxu0 %v262
  %1809 = vmatprep.subr.mxu0 0.0
  %1810 = vmatpush1.msra.mxu0 %v263
  %1811 = vmatprep.subr.mxu0 0.0
  %1812 = vmatpush1.msra.mxu0 %v264
  %1813 = vmatprep.subr.mxu0 0.0
  %1814 = vmatpush1.msra.mxu0 %v265
  %1815 = vmatprep.subr.mxu0 0.0
  %1816 = vmatpush1.msra.mxu0 %v266
  %1817 = vmatprep.subr.mxu0 0.0
  %1818 = vmatpush1.msra.mxu0 %v267
  %1819 = vmatprep.subr.mxu0 0.0
  %1820 = vmatpush1.msra.mxu0 %v268
  %1821 = vmatprep.subr.mxu0 0.0
  %1822 = vmatpush1.msra.mxu0 %v269
  %1823 = vmatprep.mubr.f32.mxu0 %v1178
  %1824 = vmatmul.mubr.f32.gmra.mrb[0].mxu0 %v1177
  %v1825 = vpop.f32.mrb[0].mxu0
  %v1826 = vadd.f32 %v1757, %v1825
  %v1827 = vpop.f32.mrb[0].mxu0
  %1828 = vmatprep.mubr.f32.mxu0 %v1187
  %1829 = vmatmul.mubr.f32.gmra.mrb[0].mxu0 %v1186
  %v1830 = vpop.f32.mrb[0].mxu0
  %v1831 = vadd.f32 %v1757, %v1830
  %v1832 = vpop.f32.mrb[0].mxu0
  %1833 = vmatprep.mubr.f32.mxu0 %v1196
  %1834 = vmatmul.mubr.f32.gmra.mrb[0].mxu0 %v1195
  %v1835 = vpop.f32.mrb[0].mxu0
  %v1836 = vadd.f32 %v1757, %v1835
  %v1837 = vpop.f32.mrb[0].mxu0
  %1838 = vmatprep.mubr.f32.mxu0 %v1205
  %1839 = vmatmul.mubr.f32.gmra.mrb[0].mxu0 %v1204
  %v1840 = vpop.f32.mrb[0].mxu0
  %v1841 = vadd.f32 %v1757, %v1840
  %v1842 = vpop.f32.mrb[0].mxu0
  %1843 = vmatprep.mubr.f32.mxu0 %v1214
  %1844 = vmatmul.mubr.f32.gmra.mrb[0].mxu0 %v1213
  %v1845 = vpop.f32.mrb[0].mxu0
  %v1846 = vadd.f32 %v1757, %v1845
  %v1847 = vpop.f32.mrb[0].mxu0
  %1848 = vmatprep.mubr.f32.mxu0 %v1223
  %1849 = vmatmul.mubr.f32.gmra.mrb[0].mxu0 %v1222
  %v1850 = vpop.f32.mrb[0].mxu0
  %v1851 = vadd.f32 %v1757, %v1850
  %v1852 = vpop.f32.mrb[0].mxu0
  %1853 = vmatprep.mubr.f32.mxu0 %v1232
  %1854 = vmatmul.mubr.f32.gmra.mrb[0].mxu0 %v1231
  %v1855 = vpop.f32.mrb[0].mxu0
  %v1856 = vadd.f32 %v1757, %v1855
  %v1857 = vpop.f32.mrb[0].mxu0
  %1858 = vmatprep.mubr.f32.mxu0 %v1241
  %1859 = vmatmul.mubr.f32.gmra.mrb[0].mxu0 %v1240
  %v1860 = vpop.f32.mrb[0].mxu0
  %v1861 = vadd.f32 %v1757, %v1860
  %v1862 = vpop.f32.mrb[0].mxu0
  %1863 = vmatprep.mubr.f32.mxu0 %v1250
  %1864 = vmatmul.mubr.f32.gmra.mrb[0].mxu0 %v1249
  %v1865 = vpop.f32.mrb[0].mxu0
  %v1866 = vadd.f32 %v1757, %v1865
  %v1867 = vpop.f32.mrb[0].mxu0
  %1868 = vmatprep.mubr.f32.mxu0 %v1259
  %1869 = vmatmul.mubr.f32.gmra.mrb[0].mxu0 %v1258
  %v1870 = vpop.f32.mrb[0].mxu0
  %v1871 = vadd.f32 %v1757, %v1870
  %v1872 = vpop.f32.mrb[0].mxu0
  %1873 = vmatprep.mubr.f32.mxu0 %v1268
  %1874 = vmatmul.mubr.f32.gmra.mrb[0].mxu0 %v1267
  %v1875 = vpop.f32.mrb[0].mxu0
  %v1876 = vadd.f32 %v1757, %v1875
  %v1877 = vpop.f32.mrb[0].mxu0
  %1878 = vmatprep.mubr.f32.mxu0 %v1277
  %1879 = vmatmul.mubr.f32.gmra.mrb[0].mxu0 %v1276
  %v1880 = vpop.f32.mrb[0].mxu0
  %v1881 = vadd.f32 %v1757, %v1880
  %v1882 = vpop.f32.mrb[0].mxu0
  %1883 = vmatprep.mubr.f32.mxu0 %v1286
  %1884 = vmatmul.mubr.f32.gmra.mrb[0].mxu0 %v1285
  %v1885 = vpop.f32.mrb[0].mxu0
  %v1886 = vadd.f32 %v1757, %v1885
  %v1887 = vpop.f32.mrb[0].mxu0
  %1888 = vmatprep.mubr.f32.mxu0 %v1295
  %1889 = vmatmul.mubr.f32.gmra.mrb[0].mxu0 %v1294
  %v1890 = vpop.f32.mrb[0].mxu0
  %v1891 = vadd.f32 %v1757, %v1890
  %v1892 = vpop.f32.mrb[0].mxu0
  %1893 = vmatprep.mubr.f32.mxu0 %v1304
  %1894 = vmatmul.mubr.f32.gmra.mrb[0].mxu0 %v1303
  %v1895 = vpop.f32.mrb[0].mxu0
  %v1896 = vadd.f32 %v1757, %v1895
  %v1897 = vpop.f32.mrb[0].mxu0
  %1898 = vmatprep.mubr.f32.mxu0 %v1313
  %1899 = vmatmul.mubr.f32.gmra.mrb[0].mxu0 %v1312
  %v1900 = vpop.f32.mrb[0].mxu0
  %v1901 = vadd.f32 %v1757, %v1900
  %v1902 = vpop.f32.mrb[0].mxu0
  %1903 = vmatprep.mubr.f32.mxu0 %v1322
  %1904 = vmatmul.mubr.f32.gmra.mrb[0].mxu0 %v1321
  %v1905 = vpop.f32.mrb[0].mxu0
  %v1906 = vadd.f32 %v1757, %v1905
  %v1907 = vpop.f32.mrb[0].mxu0
  %1908 = vmatprep.mubr.f32.mxu0 %v1331
  %1909 = vmatmul.mubr.f32.gmra.mrb[0].mxu0 %v1330
  %v1910 = vpop.f32.mrb[0].mxu0
  %v1911 = vadd.f32 %v1757, %v1910
  %v1912 = vpop.f32.mrb[0].mxu0
  %1913 = vmatprep.mubr.f32.mxu0 %v1340
  %1914 = vmatmul.mubr.f32.gmra.mrb[0].mxu0 %v1339
  %v1915 = vpop.f32.mrb[0].mxu0
  %v1916 = vadd.f32 %v1757, %v1915
  %v1917 = vpop.f32.mrb[0].mxu0
  %1918 = vmatprep.mubr.f32.mxu0 %v1349
  %1919 = vmatmul.mubr.f32.gmra.mrb[0].mxu0 %v1348
  %v1920 = vpop.f32.mrb[0].mxu0
  %v1921 = vadd.f32 %v1757, %v1920
  %v1922 = vpop.f32.mrb[0].mxu0
  %1923 = vmatprep.mubr.f32.mxu0 %v1358
  %1924 = vmatmul.mubr.f32.gmra.mrb[0].mxu0 %v1357
  %v1925 = vpop.f32.mrb[0].mxu0
  %v1926 = vadd.f32 %v1757, %v1925
  %v1927 = vpop.f32.mrb[0].mxu0
  %1928 = vmatprep.mubr.f32.mxu0 %v1367
  %1929 = vmatmul.mubr.f32.gmra.mrb[0].mxu0 %v1366
  %v1930 = vpop.f32.mrb[0].mxu0
  %v1931 = vadd.f32 %v1757, %v1930
  %v1932 = vpop.f32.mrb[0].mxu0
  %1933 = vmatprep.mubr.f32.mxu0 %v1376
  %1934 = vmatmul.mubr.f32.gmra.mrb[0].mxu0 %v1375
  %v1935 = vpop.f32.mrb[0].mxu0
  %v1936 = vadd.f32 %v1757, %v1935
  %v1937 = vpop.f32.mrb[0].mxu0
  %1938 = vmatprep.mubr.f32.mxu0 %v1385
  %1939 = vmatmul.mubr.f32.gmra.mrb[0].mxu0 %v1384
  %v1940 = vpop.f32.mrb[0].mxu0
  %v1941 = vadd.f32 %v1757, %v1940
  %v1942 = vpop.f32.mrb[0].mxu0
  %1943 = vmatprep.mubr.f32.mxu0 %v1394
  %1944 = vmatmul.mubr.f32.gmra.mrb[0].mxu0 %v1393
  %v1945 = vpop.f32.mrb[0].mxu0
  %v1946 = vadd.f32 %v1757, %v1945
  %v1947 = vpop.f32.mrb[0].mxu0
  %1948 = vmatprep.mubr.f32.mxu0 %v1403
  %1949 = vmatmul.mubr.f32.gmra.mrb[0].mxu0 %v1402
  %v1950 = vpop.f32.mrb[0].mxu0
  %v1951 = vadd.f32 %v1757, %v1950
  %v1952 = vpop.f32.mrb[0].mxu0
  %1953 = vmatprep.mubr.f32.mxu0 %v1412
  %1954 = vmatmul.mubr.f32.gmra.mrb[0].mxu0 %v1411
  %v1955 = vpop.f32.mrb[0].mxu0
  %v1956 = vadd.f32 %v1757, %v1955
  %v1957 = vpop.f32.mrb[0].mxu0
  %1958 = vmatprep.mubr.f32.mxu0 %v1421
  %1959 = vmatmul.mubr.f32.gmra.mrb[0].mxu0 %v1420
  %v1960 = vpop.f32.mrb[0].mxu0
  %v1961 = vadd.f32 %v1757, %v1960
  %v1962 = vpop.f32.mrb[0].mxu0
  %1963 = vmatprep.mubr.f32.mxu0 %v1430
  %1964 = vmatmul.mubr.f32.gmra.mrb[0].mxu0 %v1429
  %v1965 = vpop.f32.mrb[0].mxu0
  %v1966 = vadd.f32 %v1757, %v1965
  %v1967 = vpop.f32.mrb[0].mxu0
  %1968 = vmatprep.mubr.f32.mxu0 %v1439
  %1969 = vmatmul.mubr.f32.gmra.mrb[0].mxu0 %v1438
  %v1970 = vpop.f32.mrb[0].mxu0
  %v1971 = vadd.f32 %v1757, %v1970
  %v1972 = vpop.f32.mrb[0].mxu0
  %1973 = vmatprep.mubr.f32.mxu0 %v1448
  %1974 = vmatmul.mubr.f32.gmra.mrb[0].mxu0 %v1447
  %v1975 = vpop.f32.mrb[0].mxu0
  %v1976 = vadd.f32 %v1757, %v1975
  %v1977 = vpop.f32.mrb[0].mxu0
  %1978 = vmatprep.mubr.f32.mxu0 %v1457
  %1979 = vmatmul.mubr.f32.gmra.mrb[0].mxu0 %v1456
  %v1980 = vpop.f32.mrb[0].mxu0
  %v1981 = vadd.f32 %v1757, %v1980
  %v1982 = vpop.f32.mrb[0].mxu0
  %1983 = vmatprep.mubr.f32.mxu0 %v1466
  %1984 = vmatmul.mubr.f32.gmra.mrb[0].mxu0 %v1465
  %v1985 = vpop.f32.mrb[0].mxu0
  %v1986 = vadd.f32 %v1757, %v1985
  %v1987 = vpop.f32.mrb[0].mxu0
  %1988 = vmatprep.mubr.f32.mxu0 %v1475
  %1989 = vmatmul.mubr.f32.gmra.mrb[0].mxu0 %v1474
  %v1990 = vpop.f32.mrb[0].mxu0
  %v1991 = vadd.f32 %v1757, %v1990
  %v1992 = vpop.f32.mrb[0].mxu0
  %1993 = vmatprep.mubr.f32.mxu0 %v1484
  %1994 = vmatmul.mubr.f32.gmra.mrb[0].mxu0 %v1483
  %v1995 = vpop.f32.mrb[0].mxu0
  %v1996 = vadd.f32 %v1757, %v1995
  %v1997 = vpop.f32.mrb[0].mxu0
  %1998 = vmatprep.mubr.f32.mxu0 %v1493
  %1999 = vmatmul.mubr.f32.gmra.mrb[0].mxu0 %v1492
  %v2000 = vpop.f32.mrb[0].mxu0
  %v2001 = vadd.f32 %v1757, %v2000
  %v2002 = vpop.f32.mrb[0].mxu0
  %2003 = vmatprep.mubr.f32.mxu0 %v1502
  %2004 = vmatmul.mubr.f32.gmra.mrb[0].mxu0 %v1501
  %v2005 = vpop.f32.mrb[0].mxu0
  %v2006 = vadd.f32 %v1757, %v2005
  %v2007 = vpop.f32.mrb[0].mxu0
  %2008 = vmatprep.mubr.f32.mxu0 %v1511
  %2009 = vmatmul.mubr.f32.gmra.mrb[0].mxu0 %v1510
  %v2010 = vpop.f32.mrb[0].mxu0
  %v2011 = vadd.f32 %v1757, %v2010
  %v2012 = vpop.f32.mrb[0].mxu0
  %2013 = vmatprep.mubr.f32.mxu0 %v1520
  %2014 = vmatmul.mubr.f32.gmra.mrb[0].mxu0 %v1519
  %v2015 = vpop.f32.mrb[0].mxu0
  %v2016 = vadd.f32 %v1757, %v2015
  %v2017 = vpop.f32.mrb[0].mxu0
  %2018 = vmatprep.mubr.f32.mxu0 %v1529
  %2019 = vmatmul.mubr.f32.gmra.mrb[0].mxu0 %v1528
  %v2020 = vpop.f32.mrb[0].mxu0
  %v2021 = vadd.f32 %v1757, %v2020
  %v2022 = vpop.f32.mrb[0].mxu0
  %2023 = vmatprep.mubr.f32.mxu0 %v1538
  %2024 = vmatmul.mubr.f32.gmra.mrb[0].mxu0 %v1537
  %v2025 = vpop.f32.mrb[0].mxu0
  %v2026 = vadd.f32 %v1757, %v2025
  %v2027 = vpop.f32.mrb[0].mxu0
  %2028 = vmatprep.mubr.f32.mxu0 %v1547
  %2029 = vmatmul.mubr.f32.gmra.mrb[0].mxu0 %v1546
  %v2030 = vpop.f32.mrb[0].mxu0
  %v2031 = vadd.f32 %v1757, %v2030
  %v2032 = vpop.f32.mrb[0].mxu0
  %2033 = vmatprep.mubr.f32.mxu0 %v1556
  %2034 = vmatmul.mubr.f32.gmra.mrb[0].mxu0 %v1555
  %v2035 = vpop.f32.mrb[0].mxu0
  %v2036 = vadd.f32 %v1757, %v2035
  %v2037 = vpop.f32.mrb[0].mxu0
  %2038 = vmatprep.mubr.f32.mxu0 %v1565
  %2039 = vmatmul.mubr.f32.gmra.mrb[0].mxu0 %v1564
  %v2040 = vpop.f32.mrb[0].mxu0
  %v2041 = vadd.f32 %v1757, %v2040
  %v2042 = vpop.f32.mrb[0].mxu0
  %2043 = vmatprep.mubr.f32.mxu0 %v1574
  %2044 = vmatmul.mubr.f32.gmra.mrb[0].mxu0 %v1573
  %v2045 = vpop.f32.mrb[0].mxu0
  %v2046 = vadd.f32 %v1757, %v2045
  %v2047 = vpop.f32.mrb[0].mxu0
  %2048 = vmatprep.mubr.f32.mxu0 %v1583
  %2049 = vmatmul.mubr.f32.gmra.mrb[0].mxu0 %v1582
  %v2050 = vpop.f32.mrb[0].mxu0
  %v2051 = vadd.f32 %v1757, %v2050
  %v2052 = vpop.f32.mrb[0].mxu0
  %2053 = vmatprep.mubr.f32.mxu0 %v1592
  %2054 = vmatmul.mubr.f32.gmra.mrb[0].mxu0 %v1591
  %v2055 = vpop.f32.mrb[0].mxu0
  %v2056 = vadd.f32 %v1757, %v2055
  %v2057 = vpop.f32.mrb[0].mxu0
  %2058 = vmatprep.mubr.f32.mxu0 %v1601
  %2059 = vmatmul.mubr.f32.gmra.mrb[0].mxu0 %v1600
  %v2060 = vpop.f32.mrb[0].mxu0
  %v2061 = vadd.f32 %v1757, %v2060
  %v2062 = vpop.f32.mrb[0].mxu0
  %2063 = vmatprep.mubr.f32.mxu0 %v1610
  %2064 = vmatmul.mubr.f32.gmra.mrb[0].mxu0 %v1609
  %v2065 = vpop.f32.mrb[0].mxu0
  %v2066 = vadd.f32 %v1757, %v2065
  %v2067 = vpop.f32.mrb[0].mxu0
  %2068 = vmatprep.mubr.f32.mxu0 %v1619
  %2069 = vmatmul.mubr.f32.gmra.mrb[0].mxu0 %v1618
  %v2070 = vpop.f32.mrb[0].mxu0
  %v2071 = vadd.f32 %v1757, %v2070
  %v2072 = vpop.f32.mrb[0].mxu0
  %2073 = vmatprep.mubr.f32.mxu0 %v1628
  %2074 = vmatmul.mubr.f32.gmra.mrb[0].mxu0 %v1627
  %v2075 = vpop.f32.mrb[0].mxu0
  %v2076 = vadd.f32 %v1757, %v2075
  %v2077 = vpop.f32.mrb[0].mxu0
  %2078 = vmatprep.mubr.f32.mxu0 %v1637
  %2079 = vmatmul.mubr.f32.gmra.mrb[0].mxu0 %v1636
  %v2080 = vpop.f32.mrb[0].mxu0
  %v2081 = vadd.f32 %v1757, %v2080
  %v2082 = vpop.f32.mrb[0].mxu0
  %2083 = vmatprep.mubr.f32.mxu0 %v1646
  %2084 = vmatmul.mubr.f32.gmra.mrb[0].mxu0 %v1645
  %v2085 = vpop.f32.mrb[0].mxu0
  %v2086 = vadd.f32 %v1757, %v2085
  %v2087 = vpop.f32.mrb[0].mxu0
  %2088 = vmatprep.mubr.f32.mxu0 %v1655
  %2089 = vmatmul.mubr.f32.gmra.mrb[0].mxu0 %v1654
  %v2090 = vpop.f32.mrb[0].mxu0
  %v2091 = vadd.f32 %v1757, %v2090
  %v2092 = vpop.f32.mrb[0].mxu0
  %2093 = vmatprep.mubr.f32.mxu0 %v1664
  %2094 = vmatmul.mubr.f32.gmra.mrb[0].mxu0 %v1663
  %v2095 = vpop.f32.mrb[0].mxu0
  %v2096 = vadd.f32 %v1757, %v2095
  %v2097 = vpop.f32.mrb[0].mxu0
  %2098 = vmatprep.mubr.f32.mxu0 %v1673
  %2099 = vmatmul.mubr.f32.gmra.mrb[0].mxu0 %v1672
  %v2100 = vpop.f32.mrb[0].mxu0
  %v2101 = vadd.f32 %v1757, %v2100
  %v2102 = vpop.f32.mrb[0].mxu0
  %2103 = vmatprep.mubr.f32.mxu0 %v1682
  %2104 = vmatmul.mubr.f32.gmra.mrb[0].mxu0 %v1681
  %v2105 = vpop.f32.mrb[0].mxu0
  %v2106 = vadd.f32 %v1757, %v2105
  %v2107 = vpop.f32.mrb[0].mxu0
  %2108 = vmatprep.mubr.f32.mxu0 %v1691
  %2109 = vmatmul.mubr.f32.gmra.mrb[0].mxu0 %v1690
  %v2110 = vpop.f32.mrb[0].mxu0
  %v2111 = vadd.f32 %v1757, %v2110
  %v2112 = vpop.f32.mrb[0].mxu0
  %2113 = vmatprep.mubr.f32.mxu0 %v1700
  %2114 = vmatmul.mubr.f32.gmra.mrb[0].mxu0 %v1699
  %v2115 = vpop.f32.mrb[0].mxu0
  %v2116 = vadd.f32 %v1757, %v2115
  %v2117 = vpop.f32.mrb[0].mxu0
  %2118 = vmatprep.mubr.f32.mxu0 %v1709
  %2119 = vmatmul.mubr.f32.gmra.mrb[0].mxu0 %v1708
  %v2120 = vpop.f32.mrb[0].mxu0
  %v2121 = vadd.f32 %v1757, %v2120
  %v2122 = vpop.f32.mrb[0].mxu0
  %2123 = vmatprep.mubr.f32.mxu0 %v1718
  %2124 = vmatmul.mubr.f32.gmra.mrb[0].mxu0 %v1717
  %v2125 = vpop.f32.mrb[0].mxu0
  %v2126 = vadd.f32 %v1757, %v2125
  %v2127 = vpop.f32.mrb[0].mxu0
  %2128 = vmatprep.mubr.f32.mxu0 %v1727
  %2129 = vmatmul.mubr.f32.gmra.mrb[0].mxu0 %v1726
  %v2130 = vpop.f32.mrb[0].mxu0
  %v2131 = vadd.f32 %v1757, %v2130
  %v2132 = vpop.f32.mrb[0].mxu0
  %2133 = vmatprep.mubr.f32.mxu0 %v1736
  %2134 = vmatmul.mubr.f32.gmra.mrb[0].mxu0 %v1735
  %v2135 = vpop.f32.mrb[0].mxu0
  %v2136 = vadd.f32 %v1757, %v2135
  %v2137 = vpop.f32.mrb[0].mxu0
  %2138 = vmatprep.mubr.f32.mxu0 %v1745
  %2139 = vmatmul.mubr.f32.gmra.mrb[0].mxu0 %v1744
  %v2140 = vpop.f32.mrb[0].mxu0
  %v2141 = vadd.f32 %v1757, %v2140
  %v2142 = vpop.f32.mrb[0].mxu0
  %2143 = vdwg.mxu0
  %2144 = vmatprep.subr.mxu0 0.0
  %2145 = vmatpush1.msra.mxu0 %v270
  %2146 = vmatprep.subr.mxu0 0.0
  %2147 = vmatpush1.msra.mxu0 %v271
  %2148 = vmatprep.subr.mxu0 0.0
  %2149 = vmatpush1.msra.mxu0 %v272
  %2150 = vmatprep.subr.mxu0 0.0
  %2151 = vmatpush1.msra.mxu0 %v273
  %2152 = vmatprep.subr.mxu0 0.0
  %2153 = vmatpush1.msra.mxu0 %v274
  %2154 = vmatprep.subr.mxu0 0.0
  %2155 = vmatpush1.msra.mxu0 %v275
  %2156 = vmatprep.subr.mxu0 0.0
  %2157 = vmatpush1.msra.mxu0 %v276
  %2158 = vmatprep.subr.mxu0 0.0
  %2159 = vmatpush1.msra.mxu0 %v277
  %2160 = vmatprep.subr.mxu0 0.0
  %2161 = vmatpush1.msra.mxu0 %v278
  %2162 = vmatprep.subr.mxu0 0.0
  %2163 = vmatpush1.msra.mxu0 %v279
  %2164 = vmatprep.subr.mxu0 0.0
  %2165 = vmatpush1.msra.mxu0 %v280
  %2166 = vmatprep.subr.mxu0 0.0
  %2167 = vmatpush1.msra.mxu0 %v281
  %2168 = vmatprep.subr.mxu0 0.0
  %2169 = vmatpush1.msra.mxu0 %v282
  %2170 = vmatprep.subr.mxu0 0.0
  %2171 = vmatpush1.msra.mxu0 %v283
  %2172 = vmatprep.subr.mxu0 0.0
  %2173 = vmatpush1.msra.mxu0 %v284
  %2174 = vmatprep.subr.mxu0 0.0
  %2175 = vmatpush1.msra.mxu0 %v285
  %2176 = vmatprep.subr.mxu0 0.0
  %2177 = vmatpush1.msra.mxu0 %v286
  %2178 = vmatprep.subr.mxu0 0.0
  %2179 = vmatpush1.msra.mxu0 %v287
  %2180 = vmatprep.subr.mxu0 0.0
  %2181 = vmatpush1.msra.mxu0 %v288
  %2182 = vmatprep.subr.mxu0 0.0
  %2183 = vmatpush1.msra.mxu0 %v289
  %2184 = vmatprep.subr.mxu0 0.0
  %2185 = vmatpush1.msra.mxu0 %v290
  %2186 = vmatprep.subr.mxu0 0.0
  %2187 = vmatpush1.msra.mxu0 %v291
  %2188 = vmatprep.subr.mxu0 0.0
  %2189 = vmatpush1.msra.mxu0 %v292
  %2190 = vmatprep.subr.mxu0 0.0
  %2191 = vmatpush1.msra.mxu0 %v293
  %2192 = vmatprep.subr.mxu0 0.0
  %2193 = vmatpush1.msra.mxu0 %v294
  %2194 = vmatprep.subr.mxu0 0.0
  %2195 = vmatpush1.msra.mxu0 %v295
  %2196 = vmatprep.subr.mxu0 0.0
  %2197 = vmatpush1.msra.mxu0 %v296
  %2198 = vmatprep.subr.mxu0 0.0
  %2199 = vmatpush1.msra.mxu0 %v297
  %2200 = vmatprep.subr.mxu0 0.0
  %2201 = vmatpush1.msra.mxu0 %v298
  %2202 = vmatprep.subr.mxu0 0.0
  %2203 = vmatpush1.msra.mxu0 %v299
  %2204 = vmatprep.subr.mxu0 0.0
  %2205 = vmatpush1.msra.mxu0 %v300
  %2206 = vmatprep.subr.mxu0 0.0
  %2207 = vmatpush1.msra.mxu0 %v301
  %2208 = vmatprep.mubr.f32.mxu0 %v1180
  %2209 = vmatmul.mubr.f32.gmra.mrb[0].mxu0 %v1179
  %v2210 = vpop.f32.mrb[0].mxu0
  %v2211 = vadd.f32 %v1826, %v2210
  %v2212 = vpop.f32.mrb[0].mxu0
  %2213 = vmatprep.mubr.f32.mxu0 %v1189
  %2214 = vmatmul.mubr.f32.gmra.mrb[0].mxu0 %v1188
  %v2215 = vpop.f32.mrb[0].mxu0
  %v2216 = vadd.f32 %v1831, %v2215
  %v2217 = vpop.f32.mrb[0].mxu0
  %2218 = vmatprep.mubr.f32.mxu0 %v1198
  %2219 = vmatmul.mubr.f32.gmra.mrb[0].mxu0 %v1197
  %v2220 = vpop.f32.mrb[0].mxu0
  %v2221 = vadd.f32 %v1836, %v2220
  %v2222 = vpop.f32.mrb[0].mxu0
  %2223 = vmatprep.mubr.f32.mxu0 %v1207
  %2224 = vmatmul.mubr.f32.gmra.mrb[0].mxu0 %v1206
  %v2225 = vpop.f32.mrb[0].mxu0
  %v2226 = vadd.f32 %v1841, %v2225
  %v2227 = vpop.f32.mrb[0].mxu0
  %2228 = vmatprep.mubr.f32.mxu0 %v1216
  %2229 = vmatmul.mubr.f32.gmra.mrb[0].mxu0 %v1215
  %v2230 = vpop.f32.mrb[0].mxu0
  %v2231 = vadd.f32 %v1846, %v2230
  %v2232 = vpop.f32.mrb[0].mxu0
  %2233 = vmatprep.mubr.f32.mxu0 %v1225
  %2234 = vmatmul.mubr.f32.gmra.mrb[0].mxu0 %v1224
  %v2235 = vpop.f32.mrb[0].mxu0
  %v2236 = vadd.f32 %v1851, %v2235
  %v2237 = vpop.f32.mrb[0].mxu0
  %2238 = vmatprep.mubr.f32.mxu0 %v1234
  %2239 = vmatmul.mubr.f32.gmra.mrb[0].mxu0 %v1233
  %v2240 = vpop.f32.mrb[0].mxu0
  %v2241 = vadd.f32 %v1856, %v2240
  %v2242 = vpop.f32.mrb[0].mxu0
  %2243 = vmatprep.mubr.f32.mxu0 %v1243
  %2244 = vmatmul.mubr.f32.gmra.mrb[0].mxu0 %v1242
  %v2245 = vpop.f32.mrb[0].mxu0
  %v2246 = vadd.f32 %v1861, %v2245
  %v2247 = vpop.f32.mrb[0].mxu0
  %2248 = vmatprep.mubr.f32.mxu0 %v1252
  %2249 = vmatmul.mubr.f32.gmra.mrb[0].mxu0 %v1251
  %v2250 = vpop.f32.mrb[0].mxu0
  %v2251 = vadd.f32 %v1866, %v2250
  %v2252 = vpop.f32.mrb[0].mxu0
  %2253 = vmatprep.mubr.f32.mxu0 %v1261
  %2254 = vmatmul.mubr.f32.gmra.mrb[0].mxu0 %v1260
  %v2255 = vpop.f32.mrb[0].mxu0
  %v2256 = vadd.f32 %v1871, %v2255
  %v2257 = vpop.f32.mrb[0].mxu0
  %2258 = vmatprep.mubr.f32.mxu0 %v1270
  %2259 = vmatmul.mubr.f32.gmra.mrb[0].mxu0 %v1269
  %v2260 = vpop.f32.mrb[0].mxu0
  %v2261 = vadd.f32 %v1876, %v2260
  %v2262 = vpop.f32.mrb[0].mxu0
  %2263 = vmatprep.mubr.f32.mxu0 %v1279
  %2264 = vmatmul.mubr.f32.gmra.mrb[0].mxu0 %v1278
  %v2265 = vpop.f32.mrb[0].mxu0
  %v2266 = vadd.f32 %v1881, %v2265
  %v2267 = vpop.f32.mrb[0].mxu0
  %2268 = vmatprep.mubr.f32.mxu0 %v1288
  %2269 = vmatmul.mubr.f32.gmra.mrb[0].mxu0 %v1287
  %v2270 = vpop.f32.mrb[0].mxu0
  %v2271 = vadd.f32 %v1886, %v2270
  %v2272 = vpop.f32.mrb[0].mxu0
  %2273 = vmatprep.mubr.f32.mxu0 %v1297
  %2274 = vmatmul.mubr.f32.gmra.mrb[0].mxu0 %v1296
  %v2275 = vpop.f32.mrb[0].mxu0
  %v2276 = vadd.f32 %v1891, %v2275
  %v2277 = vpop.f32.mrb[0].mxu0
  %2278 = vmatprep.mubr.f32.mxu0 %v1306
  %2279 = vmatmul.mubr.f32.gmra.mrb[0].mxu0 %v1305
  %v2280 = vpop.f32.mrb[0].mxu0
  %v2281 = vadd.f32 %v1896, %v2280
  %v2282 = vpop.f32.mrb[0].mxu0
  %2283 = vmatprep.mubr.f32.mxu0 %v1315
  %2284 = vmatmul.mubr.f32.gmra.mrb[0].mxu0 %v1314
  %v2285 = vpop.f32.mrb[0].mxu0
  %v2286 = vadd.f32 %v1901, %v2285
  %v2287 = vpop.f32.mrb[0].mxu0
  %2288 = vmatprep.mubr.f32.mxu0 %v1324
  %2289 = vmatmul.mubr.f32.gmra.mrb[0].mxu0 %v1323
  %v2290 = vpop.f32.mrb[0].mxu0
  %v2291 = vadd.f32 %v1906, %v2290
  %v2292 = vpop.f32.mrb[0].mxu0
  %2293 = vmatprep.mubr.f32.mxu0 %v1333
  %2294 = vmatmul.mubr.f32.gmra.mrb[0].mxu0 %v1332
  %v2295 = vpop.f32.mrb[0].mxu0
  %v2296 = vadd.f32 %v1911, %v2295
  %v2297 = vpop.f32.mrb[0].mxu0
  %2298 = vmatprep.mubr.f32.mxu0 %v1342
  %2299 = vmatmul.mubr.f32.gmra.mrb[0].mxu0 %v1341
  %v2300 = vpop.f32.mrb[0].mxu0
  %v2301 = vadd.f32 %v1916, %v2300
  %v2302 = vpop.f32.mrb[0].mxu0
  %2303 = vmatprep.mubr.f32.mxu0 %v1351
  %2304 = vmatmul.mubr.f32.gmra.mrb[0].mxu0 %v1350
  %v2305 = vpop.f32.mrb[0].mxu0
  %v2306 = vadd.f32 %v1921, %v2305
  %v2307 = vpop.f32.mrb[0].mxu0
  %2308 = vmatprep.mubr.f32.mxu0 %v1360
  %2309 = vmatmul.mubr.f32.gmra.mrb[0].mxu0 %v1359
  %v2310 = vpop.f32.mrb[0].mxu0
  %v2311 = vadd.f32 %v1926, %v2310
  %v2312 = vpop.f32.mrb[0].mxu0
  %2313 = vmatprep.mubr.f32.mxu0 %v1369
  %2314 = vmatmul.mubr.f32.gmra.mrb[0].mxu0 %v1368
  %v2315 = vpop.f32.mrb[0].mxu0
  %v2316 = vadd.f32 %v1931, %v2315
  %v2317 = vpop.f32.mrb[0].mxu0
  %2318 = vmatprep.mubr.f32.mxu0 %v1378
  %2319 = vmatmul.mubr.f32.gmra.mrb[0].mxu0 %v1377
  %v2320 = vpop.f32.mrb[0].mxu0
  %v2321 = vadd.f32 %v1936, %v2320
  %v2322 = vpop.f32.mrb[0].mxu0
  %2323 = vmatprep.mubr.f32.mxu0 %v1387
  %2324 = vmatmul.mubr.f32.gmra.mrb[0].mxu0 %v1386
  %v2325 = vpop.f32.mrb[0].mxu0
  %v2326 = vadd.f32 %v1941, %v2325
  %v2327 = vpop.f32.mrb[0].mxu0
  %2328 = vmatprep.mubr.f32.mxu0 %v1396
  %2329 = vmatmul.mubr.f32.gmra.mrb[0].mxu0 %v1395
  %v2330 = vpop.f32.mrb[0].mxu0
  %v2331 = vadd.f32 %v1946, %v2330
  %v2332 = vpop.f32.mrb[0].mxu0
  %2333 = vmatprep.mubr.f32.mxu0 %v1405
  %2334 = vmatmul.mubr.f32.gmra.mrb[0].mxu0 %v1404
  %v2335 = vpop.f32.mrb[0].mxu0
  %v2336 = vadd.f32 %v1951, %v2335
  %v2337 = vpop.f32.mrb[0].mxu0
  %2338 = vmatprep.mubr.f32.mxu0 %v1414
  %2339 = vmatmul.mubr.f32.gmra.mrb[0].mxu0 %v1413
  %v2340 = vpop.f32.mrb[0].mxu0
  %v2341 = vadd.f32 %v1956, %v2340
  %v2342 = vpop.f32.mrb[0].mxu0
  %2343 = vmatprep.mubr.f32.mxu0 %v1423
  %2344 = vmatmul.mubr.f32.gmra.mrb[0].mxu0 %v1422
  %v2345 = vpop.f32.mrb[0].mxu0
  %v2346 = vadd.f32 %v1961, %v2345
  %v2347 = vpop.f32.mrb[0].mxu0
  %2348 = vmatprep.mubr.f32.mxu0 %v1432
  %2349 = vmatmul.mubr.f32.gmra.mrb[0].mxu0 %v1431
  %v2350 = vpop.f32.mrb[0].mxu0
  %v2351 = vadd.f32 %v1966, %v2350
  %v2352 = vpop.f32.mrb[0].mxu0
  %2353 = vmatprep.mubr.f32.mxu0 %v1441
  %2354 = vmatmul.mubr.f32.gmra.mrb[0].mxu0 %v1440
  %v2355 = vpop.f32.mrb[0].mxu0
  %v2356 = vadd.f32 %v1971, %v2355
  %v2357 = vpop.f32.mrb[0].mxu0
  %2358 = vmatprep.mubr.f32.mxu0 %v1450
  %2359 = vmatmul.mubr.f32.gmra.mrb[0].mxu0 %v1449
  %v2360 = vpop.f32.mrb[0].mxu0
  %v2361 = vadd.f32 %v1976, %v2360
  %v2362 = vpop.f32.mrb[0].mxu0
  %2363 = vmatprep.mubr.f32.mxu0 %v1459
  %2364 = vmatmul.mubr.f32.gmra.mrb[0].mxu0 %v1458
  %v2365 = vpop.f32.mrb[0].mxu0
  %v2366 = vadd.f32 %v1981, %v2365
  %v2367 = vpop.f32.mrb[0].mxu0
  %2368 = vmatprep.mubr.f32.mxu0 %v1468
  %2369 = vmatmul.mubr.f32.gmra.mrb[0].mxu0 %v1467
  %v2370 = vpop.f32.mrb[0].mxu0
  %v2371 = vadd.f32 %v1986, %v2370
  %v2372 = vpop.f32.mrb[0].mxu0
  %2373 = vmatprep.mubr.f32.mxu0 %v1477
  %2374 = vmatmul.mubr.f32.gmra.mrb[0].mxu0 %v1476
  %v2375 = vpop.f32.mrb[0].mxu0
  %v2376 = vadd.f32 %v1991, %v2375
  %v2377 = vpop.f32.mrb[0].mxu0
  %2378 = vmatprep.mubr.f32.mxu0 %v1486
  %2379 = vmatmul.mubr.f32.gmra.mrb[0].mxu0 %v1485
  %v2380 = vpop.f32.mrb[0].mxu0
  %v2381 = vadd.f32 %v1996, %v2380
  %v2382 = vpop.f32.mrb[0].mxu0
  %2383 = vmatprep.mubr.f32.mxu0 %v1495
  %2384 = vmatmul.mubr.f32.gmra.mrb[0].mxu0 %v1494
  %v2385 = vpop.f32.mrb[0].mxu0
  %v2386 = vadd.f32 %v2001, %v2385
  %v2387 = vpop.f32.mrb[0].mxu0
  %2388 = vmatprep.mubr.f32.mxu0 %v1504
  %2389 = vmatmul.mubr.f32.gmra.mrb[0].mxu0 %v1503
  %v2390 = vpop.f32.mrb[0].mxu0
  %v2391 = vadd.f32 %v2006, %v2390
  %v2392 = vpop.f32.mrb[0].mxu0
  %2393 = vmatprep.mubr.f32.mxu0 %v1513
  %2394 = vmatmul.mubr.f32.gmra.mrb[0].mxu0 %v1512
  %v2395 = vpop.f32.mrb[0].mxu0
  %v2396 = vadd.f32 %v2011, %v2395
  %v2397 = vpop.f32.mrb[0].mxu0
  %2398 = vmatprep.mubr.f32.mxu0 %v1522
  %2399 = vmatmul.mubr.f32.gmra.mrb[0].mxu0 %v1521
  %v2400 = vpop.f32.mrb[0].mxu0
  %v2401 = vadd.f32 %v2016, %v2400
  %v2402 = vpop.f32.mrb[0].mxu0
  %2403 = vmatprep.mubr.f32.mxu0 %v1531
  %2404 = vmatmul.mubr.f32.gmra.mrb[0].mxu0 %v1530
  %v2405 = vpop.f32.mrb[0].mxu0
  %v2406 = vadd.f32 %v2021, %v2405
  %v2407 = vpop.f32.mrb[0].mxu0
  %2408 = vmatprep.mubr.f32.mxu0 %v1540
  %2409 = vmatmul.mubr.f32.gmra.mrb[0].mxu0 %v1539
  %v2410 = vpop.f32.mrb[0].mxu0
  %v2411 = vadd.f32 %v2026, %v2410
  %v2412 = vpop.f32.mrb[0].mxu0
  %2413 = vmatprep.mubr.f32.mxu0 %v1549
  %2414 = vmatmul.mubr.f32.gmra.mrb[0].mxu0 %v1548
  %v2415 = vpop.f32.mrb[0].mxu0
  %v2416 = vadd.f32 %v2031, %v2415
  %v2417 = vpop.f32.mrb[0].mxu0
  %2418 = vmatprep.mubr.f32.mxu0 %v1558
  %2419 = vmatmul.mubr.f32.gmra.mrb[0].mxu0 %v1557
  %v2420 = vpop.f32.mrb[0].mxu0
  %v2421 = vadd.f32 %v2036, %v2420
  %v2422 = vpop.f32.mrb[0].mxu0
  %2423 = vmatprep.mubr.f32.mxu0 %v1567
  %2424 = vmatmul.mubr.f32.gmra.mrb[0].mxu0 %v1566
  %v2425 = vpop.f32.mrb[0].mxu0
  %v2426 = vadd.f32 %v2041, %v2425
  %v2427 = vpop.f32.mrb[0].mxu0
  %2428 = vmatprep.mubr.f32.mxu0 %v1576
  %2429 = vmatmul.mubr.f32.gmra.mrb[0].mxu0 %v1575
  %v2430 = vpop.f32.mrb[0].mxu0
  %v2431 = vadd.f32 %v2046, %v2430
  %v2432 = vpop.f32.mrb[0].mxu0
  %2433 = vmatprep.mubr.f32.mxu0 %v1585
  %2434 = vmatmul.mubr.f32.gmra.mrb[0].mxu0 %v1584
  %v2435 = vpop.f32.mrb[0].mxu0
  %v2436 = vadd.f32 %v2051, %v2435
  %v2437 = vpop.f32.mrb[0].mxu0
  %2438 = vmatprep.mubr.f32.mxu0 %v1594
  %2439 = vmatmul.mubr.f32.gmra.mrb[0].mxu0 %v1593
  %v2440 = vpop.f32.mrb[0].mxu0
  %v2441 = vadd.f32 %v2056, %v2440
  %v2442 = vpop.f32.mrb[0].mxu0
  %2443 = vmatprep.mubr.f32.mxu0 %v1603
  %2444 = vmatmul.mubr.f32.gmra.mrb[0].mxu0 %v1602
  %v2445 = vpop.f32.mrb[0].mxu0
  %v2446 = vadd.f32 %v2061, %v2445
  %v2447 = vpop.f32.mrb[0].mxu0
  %2448 = vmatprep.mubr.f32.mxu0 %v1612
  %2449 = vmatmul.mubr.f32.gmra.mrb[0].mxu0 %v1611
  %v2450 = vpop.f32.mrb[0].mxu0
  %v2451 = vadd.f32 %v2066, %v2450
  %v2452 = vpop.f32.mrb[0].mxu0
  %2453 = vmatprep.mubr.f32.mxu0 %v1621
  %2454 = vmatmul.mubr.f32.gmra.mrb[0].mxu0 %v1620
  %v2455 = vpop.f32.mrb[0].mxu0
  %v2456 = vadd.f32 %v2071, %v2455
  %v2457 = vpop.f32.mrb[0].mxu0
  %2458 = vmatprep.mubr.f32.mxu0 %v1630
  %2459 = vmatmul.mubr.f32.gmra.mrb[0].mxu0 %v1629
  %v2460 = vpop.f32.mrb[0].mxu0
  %v2461 = vadd.f32 %v2076, %v2460
  %v2462 = vpop.f32.mrb[0].mxu0
  %2463 = vmatprep.mubr.f32.mxu0 %v1639
  %2464 = vmatmul.mubr.f32.gmra.mrb[0].mxu0 %v1638
  %v2465 = vpop.f32.mrb[0].mxu0
  %v2466 = vadd.f32 %v2081, %v2465
  %v2467 = vpop.f32.mrb[0].mxu0
  %2468 = vmatprep.mubr.f32.mxu0 %v1648
  %2469 = vmatmul.mubr.f32.gmra.mrb[0].mxu0 %v1647
  %v2470 = vpop.f32.mrb[0].mxu0
  %v2471 = vadd.f32 %v2086, %v2470
  %v2472 = vpop.f32.mrb[0].mxu0
  %2473 = vmatprep.mubr.f32.mxu0 %v1657
  %2474 = vmatmul.mubr.f32.gmra.mrb[0].mxu0 %v1656
  %v2475 = vpop.f32.mrb[0].mxu0
  %v2476 = vadd.f32 %v2091, %v2475
  %v2477 = vpop.f32.mrb[0].mxu0
  %2478 = vmatprep.mubr.f32.mxu0 %v1666
  %2479 = vmatmul.mubr.f32.gmra.mrb[0].mxu0 %v1665
  %v2480 = vpop.f32.mrb[0].mxu0
  %v2481 = vadd.f32 %v2096, %v2480
  %v2482 = vpop.f32.mrb[0].mxu0
  %2483 = vmatprep.mubr.f32.mxu0 %v1675
  %2484 = vmatmul.mubr.f32.gmra.mrb[0].mxu0 %v1674
  %v2485 = vpop.f32.mrb[0].mxu0
  %v2486 = vadd.f32 %v2101, %v2485
  %v2487 = vpop.f32.mrb[0].mxu0
  %2488 = vmatprep.mubr.f32.mxu0 %v1684
  %2489 = vmatmul.mubr.f32.gmra.mrb[0].mxu0 %v1683
  %v2490 = vpop.f32.mrb[0].mxu0
  %v2491 = vadd.f32 %v2106, %v2490
  %v2492 = vpop.f32.mrb[0].mxu0
  %2493 = vmatprep.mubr.f32.mxu0 %v1693
  %2494 = vmatmul.mubr.f32.gmra.mrb[0].mxu0 %v1692
  %v2495 = vpop.f32.mrb[0].mxu0
  %v2496 = vadd.f32 %v2111, %v2495
  %v2497 = vpop.f32.mrb[0].mxu0
  %2498 = vmatprep.mubr.f32.mxu0 %v1702
  %2499 = vmatmul.mubr.f32.gmra.mrb[0].mxu0 %v1701
  %v2500 = vpop.f32.mrb[0].mxu0
  %v2501 = vadd.f32 %v2116, %v2500
  %v2502 = vpop.f32.mrb[0].mxu0
  %2503 = vmatprep.mubr.f32.mxu0 %v1711
  %2504 = vmatmul.mubr.f32.gmra.mrb[0].mxu0 %v1710
  %v2505 = vpop.f32.mrb[0].mxu0
  %v2506 = vadd.f32 %v2121, %v2505
  %v2507 = vpop.f32.mrb[0].mxu0
  %2508 = vmatprep.mubr.f32.mxu0 %v1720
  %2509 = vmatmul.mubr.f32.gmra.mrb[0].mxu0 %v1719
  %v2510 = vpop.f32.mrb[0].mxu0
  %v2511 = vadd.f32 %v2126, %v2510
  %v2512 = vpop.f32.mrb[0].mxu0
  %2513 = vmatprep.mubr.f32.mxu0 %v1729
  %2514 = vmatmul.mubr.f32.gmra.mrb[0].mxu0 %v1728
  %v2515 = vpop.f32.mrb[0].mxu0
  %v2516 = vadd.f32 %v2131, %v2515
  %v2517 = vpop.f32.mrb[0].mxu0
  %2518 = vmatprep.mubr.f32.mxu0 %v1738
  %2519 = vmatmul.mubr.f32.gmra.mrb[0].mxu0 %v1737
  %v2520 = vpop.f32.mrb[0].mxu0
  %v2521 = vadd.f32 %v2136, %v2520
  %v2522 = vpop.f32.mrb[0].mxu0
  %2523 = vmatprep.mubr.f32.mxu0 %v1747
  %2524 = vmatmul.mubr.f32.gmra.mrb[0].mxu0 %v1746
  %v2525 = vpop.f32.mrb[0].mxu0
  %v2526 = vadd.f32 %v2141, %v2525
  %v2527 = vpop.f32.mrb[0].mxu0
  %2528 = vdwg.mxu0
  %2529 = vmatprep.subr.mxu0 0.0
  %2530 = vmatpush1.msra.mxu0 %v302
  %2531 = vmatprep.subr.mxu0 0.0
  %2532 = vmatpush1.msra.mxu0 %v303
  %2533 = vmatprep.subr.mxu0 0.0
  %2534 = vmatpush1.msra.mxu0 %v304
  %2535 = vmatprep.subr.mxu0 0.0
  %2536 = vmatpush1.msra.mxu0 %v305
  %2537 = vmatprep.subr.mxu0 0.0
  %2538 = vmatpush1.msra.mxu0 %v306
  %2539 = vmatprep.subr.mxu0 0.0
  %2540 = vmatpush1.msra.mxu0 %v307
  %2541 = vmatprep.subr.mxu0 0.0
  %2542 = vmatpush1.msra.mxu0 %v308
  %2543 = vmatprep.subr.mxu0 0.0
  %2544 = vmatpush1.msra.mxu0 %v309
  %2545 = vmatprep.subr.mxu0 0.0
  %2546 = vmatpush1.msra.mxu0 %v310
  %2547 = vmatprep.subr.mxu0 0.0
  %2548 = vmatpush1.msra.mxu0 %v311
  %2549 = vmatprep.subr.mxu0 0.0
  %2550 = vmatpush1.msra.mxu0 %v312
  %2551 = vmatprep.subr.mxu0 0.0
  %2552 = vmatpush1.msra.mxu0 %v313
  %2553 = vmatprep.subr.mxu0 0.0
  %2554 = vmatpush1.msra.mxu0 %v314
  %2555 = vmatprep.subr.mxu0 0.0
  %2556 = vmatpush1.msra.mxu0 %v315
  %2557 = vmatprep.subr.mxu0 0.0
  %2558 = vmatpush1.msra.mxu0 %v316
  %2559 = vmatprep.subr.mxu0 0.0
  %2560 = vmatpush1.msra.mxu0 %v317
  %2561 = vmatprep.subr.mxu0 0.0
  %2562 = vmatpush1.msra.mxu0 %v318
  %2563 = vmatprep.subr.mxu0 0.0
  %2564 = vmatpush1.msra.mxu0 %v319
  %2565 = vmatprep.subr.mxu0 0.0
  %2566 = vmatpush1.msra.mxu0 %v320
  %2567 = vmatprep.subr.mxu0 0.0
  %2568 = vmatpush1.msra.mxu0 %v321
  %2569 = vmatprep.subr.mxu0 0.0
  %2570 = vmatpush1.msra.mxu0 %v322
  %2571 = vmatprep.subr.mxu0 0.0
  %2572 = vmatpush1.msra.mxu0 %v323
  %2573 = vmatprep.subr.mxu0 0.0
  %2574 = vmatpush1.msra.mxu0 %v324
  %2575 = vmatprep.subr.mxu0 0.0
  %2576 = vmatpush1.msra.mxu0 %v325
  %2577 = vmatprep.subr.mxu0 0.0
  %2578 = vmatpush1.msra.mxu0 %v326
  %2579 = vmatprep.subr.mxu0 0.0
  %2580 = vmatpush1.msra.mxu0 %v327
  %2581 = vmatprep.subr.mxu0 0.0
  %2582 = vmatpush1.msra.mxu0 %v328
  %2583 = vmatprep.subr.mxu0 0.0
  %2584 = vmatpush1.msra.mxu0 %v329
  %2585 = vmatprep.subr.mxu0 0.0
  %2586 = vmatpush1.msra.mxu0 %v330
  %2587 = vmatprep.subr.mxu0 0.0
  %2588 = vmatpush1.msra.mxu0 %v331
  %2589 = vmatprep.subr.mxu0 0.0
  %2590 = vmatpush1.msra.mxu0 %v332
  %2591 = vmatprep.subr.mxu0 0.0
  %2592 = vmatpush1.msra.mxu0 %v333
  %2593 = vmatprep.mubr.f32.mxu0 %v1182
  %2594 = vmatmul.mubr.f32.gmra.mrb[0].mxu0 %v1181
  %v2595 = vpop.f32.mrb[0].mxu0
  %v2596 = vadd.f32 %v2211, %v2595
  %v2597 = vpop.f32.mrb[0].mxu0
  %2598 = vmatprep.mubr.f32.mxu0 %v1191
  %2599 = vmatmul.mubr.f32.gmra.mrb[0].mxu0 %v1190
  %v2600 = vpop.f32.mrb[0].mxu0
  %v2601 = vadd.f32 %v2216, %v2600
  %v2602 = vpop.f32.mrb[0].mxu0
  %2603 = vmatprep.mubr.f32.mxu0 %v1200
  %2604 = vmatmul.mubr.f32.gmra.mrb[0].mxu0 %v1199
  %v2605 = vpop.f32.mrb[0].mxu0
  %v2606 = vadd.f32 %v2221, %v2605
  %v2607 = vpop.f32.mrb[0].mxu0
  %2608 = vmatprep.mubr.f32.mxu0 %v1209
  %2609 = vmatmul.mubr.f32.gmra.mrb[0].mxu0 %v1208
  %v2610 = vpop.f32.mrb[0].mxu0
  %v2611 = vadd.f32 %v2226, %v2610
  %v2612 = vpop.f32.mrb[0].mxu0
  %2613 = vmatprep.mubr.f32.mxu0 %v1218
  %2614 = vmatmul.mubr.f32.gmra.mrb[0].mxu0 %v1217
  %v2615 = vpop.f32.mrb[0].mxu0
  %v2616 = vadd.f32 %v2231, %v2615
  %v2617 = vpop.f32.mrb[0].mxu0
  %2618 = vmatprep.mubr.f32.mxu0 %v1227
  %2619 = vmatmul.mubr.f32.gmra.mrb[0].mxu0 %v1226
  %v2620 = vpop.f32.mrb[0].mxu0
  %v2621 = vadd.f32 %v2236, %v2620
  %v2622 = vpop.f32.mrb[0].mxu0
  %2623 = vmatprep.mubr.f32.mxu0 %v1236
  %2624 = vmatmul.mubr.f32.gmra.mrb[0].mxu0 %v1235
  %v2625 = vpop.f32.mrb[0].mxu0
  %v2626 = vadd.f32 %v2241, %v2625
  %v2627 = vpop.f32.mrb[0].mxu0
  %2628 = vmatprep.mubr.f32.mxu0 %v1245
  %2629 = vmatmul.mubr.f32.gmra.mrb[0].mxu0 %v1244
  %v2630 = vpop.f32.mrb[0].mxu0
  %v2631 = vadd.f32 %v2246, %v2630
  %v2632 = vpop.f32.mrb[0].mxu0
  %2633 = vmatprep.mubr.f32.mxu0 %v1254
  %2634 = vmatmul.mubr.f32.gmra.mrb[0].mxu0 %v1253
  %v2635 = vpop.f32.mrb[0].mxu0
  %v2636 = vadd.f32 %v2251, %v2635
  %v2637 = vpop.f32.mrb[0].mxu0
  %2638 = vmatprep.mubr.f32.mxu0 %v1263
  %2639 = vmatmul.mubr.f32.gmra.mrb[0].mxu0 %v1262
  %v2640 = vpop.f32.mrb[0].mxu0
  %v2641 = vadd.f32 %v2256, %v2640
  %v2642 = vpop.f32.mrb[0].mxu0
  %2643 = vmatprep.mubr.f32.mxu0 %v1272
  %2644 = vmatmul.mubr.f32.gmra.mrb[0].mxu0 %v1271
  %v2645 = vpop.f32.mrb[0].mxu0
  %v2646 = vadd.f32 %v2261, %v2645
  %v2647 = vpop.f32.mrb[0].mxu0
  %2648 = vmatprep.mubr.f32.mxu0 %v1281
  %2649 = vmatmul.mubr.f32.gmra.mrb[0].mxu0 %v1280
  %v2650 = vpop.f32.mrb[0].mxu0
  %v2651 = vadd.f32 %v2266, %v2650
  %v2652 = vpop.f32.mrb[0].mxu0
  %2653 = vmatprep.mubr.f32.mxu0 %v1290
  %2654 = vmatmul.mubr.f32.gmra.mrb[0].mxu0 %v1289
  %v2655 = vpop.f32.mrb[0].mxu0
  %v2656 = vadd.f32 %v2271, %v2655
  %v2657 = vpop.f32.mrb[0].mxu0
  %2658 = vmatprep.mubr.f32.mxu0 %v1299
  %2659 = vmatmul.mubr.f32.gmra.mrb[0].mxu0 %v1298
  %v2660 = vpop.f32.mrb[0].mxu0
  %v2661 = vadd.f32 %v2276, %v2660
  %v2662 = vpop.f32.mrb[0].mxu0
  %2663 = vmatprep.mubr.f32.mxu0 %v1308
  %2664 = vmatmul.mubr.f32.gmra.mrb[0].mxu0 %v1307
  %v2665 = vpop.f32.mrb[0].mxu0
  %v2666 = vadd.f32 %v2281, %v2665
  %v2667 = vpop.f32.mrb[0].mxu0
  %2668 = vmatprep.mubr.f32.mxu0 %v1317
  %2669 = vmatmul.mubr.f32.gmra.mrb[0].mxu0 %v1316
  %v2670 = vpop.f32.mrb[0].mxu0
  %v2671 = vadd.f32 %v2286, %v2670
  %v2672 = vpop.f32.mrb[0].mxu0
  %2673 = vmatprep.mubr.f32.mxu0 %v1326
  %2674 = vmatmul.mubr.f32.gmra.mrb[0].mxu0 %v1325
  %v2675 = vpop.f32.mrb[0].mxu0
  %v2676 = vadd.f32 %v2291, %v2675
  %v2677 = vpop.f32.mrb[0].mxu0
  %2678 = vmatprep.mubr.f32.mxu0 %v1335
  %2679 = vmatmul.mubr.f32.gmra.mrb[0].mxu0 %v1334
  %v2680 = vpop.f32.mrb[0].mxu0
  %v2681 = vadd.f32 %v2296, %v2680
  %v2682 = vpop.f32.mrb[0].mxu0
  %2683 = vmatprep.mubr.f32.mxu0 %v1344
  %2684 = vmatmul.mubr.f32.gmra.mrb[0].mxu0 %v1343
  %v2685 = vpop.f32.mrb[0].mxu0
  %v2686 = vadd.f32 %v2301, %v2685
  %v2687 = vpop.f32.mrb[0].mxu0
  %2688 = vmatprep.mubr.f32.mxu0 %v1353
  %2689 = vmatmul.mubr.f32.gmra.mrb[0].mxu0 %v1352
  %v2690 = vpop.f32.mrb[0].mxu0
  %v2691 = vadd.f32 %v2306, %v2690
  %v2692 = vpop.f32.mrb[0].mxu0
  %2693 = vmatprep.mubr.f32.mxu0 %v1362
  %2694 = vmatmul.mubr.f32.gmra.mrb[0].mxu0 %v1361
  %v2695 = vpop.f32.mrb[0].mxu0
  %v2696 = vadd.f32 %v2311, %v2695
  %v2697 = vpop.f32.mrb[0].mxu0
  %2698 = vmatprep.mubr.f32.mxu0 %v1371
  %2699 = vmatmul.mubr.f32.gmra.mrb[0].mxu0 %v1370
  %v2700 = vpop.f32.mrb[0].mxu0
  %v2701 = vadd.f32 %v2316, %v2700
  %v2702 = vpop.f32.mrb[0].mxu0
  %2703 = vmatprep.mubr.f32.mxu0 %v1380
  %2704 = vmatmul.mubr.f32.gmra.mrb[0].mxu0 %v1379
  %v2705 = vpop.f32.mrb[0].mxu0
  %v2706 = vadd.f32 %v2321, %v2705
  %v2707 = vpop.f32.mrb[0].mxu0
  %2708 = vmatprep.mubr.f32.mxu0 %v1389
  %2709 = vmatmul.mubr.f32.gmra.mrb[0].mxu0 %v1388
  %v2710 = vpop.f32.mrb[0].mxu0
  %v2711 = vadd.f32 %v2326, %v2710
  %v2712 = vpop.f32.mrb[0].mxu0
  %2713 = vmatprep.mubr.f32.mxu0 %v1398
  %2714 = vmatmul.mubr.f32.gmra.mrb[0].mxu0 %v1397
  %v2715 = vpop.f32.mrb[0].mxu0
  %v2716 = vadd.f32 %v2331, %v2715
  %v2717 = vpop.f32.mrb[0].mxu0
  %2718 = vmatprep.mubr.f32.mxu0 %v1407
  %2719 = vmatmul.mubr.f32.gmra.mrb[0].mxu0 %v1406
  %v2720 = vpop.f32.mrb[0].mxu0
  %v2721 = vadd.f32 %v2336, %v2720
  %v2722 = vpop.f32.mrb[0].mxu0
  %2723 = vmatprep.mubr.f32.mxu0 %v1416
  %2724 = vmatmul.mubr.f32.gmra.mrb[0].mxu0 %v1415
  %v2725 = vpop.f32.mrb[0].mxu0
  %v2726 = vadd.f32 %v2341, %v2725
  %v2727 = vpop.f32.mrb[0].mxu0
  %2728 = vmatprep.mubr.f32.mxu0 %v1425
  %2729 = vmatmul.mubr.f32.gmra.mrb[0].mxu0 %v1424
  %v2730 = vpop.f32.mrb[0].mxu0
  %v2731 = vadd.f32 %v2346, %v2730
  %v2732 = vpop.f32.mrb[0].mxu0
  %2733 = vmatprep.mubr.f32.mxu0 %v1434
  %2734 = vmatmul.mubr.f32.gmra.mrb[0].mxu0 %v1433
  %v2735 = vpop.f32.mrb[0].mxu0
  %v2736 = vadd.f32 %v2351, %v2735
  %v2737 = vpop.f32.mrb[0].mxu0
  %2738 = vmatprep.mubr.f32.mxu0 %v1443
  %2739 = vmatmul.mubr.f32.gmra.mrb[0].mxu0 %v1442
  %v2740 = vpop.f32.mrb[0].mxu0
  %v2741 = vadd.f32 %v2356, %v2740
  %v2742 = vpop.f32.mrb[0].mxu0
  %2743 = vmatprep.mubr.f32.mxu0 %v1452
  %2744 = vmatmul.mubr.f32.gmra.mrb[0].mxu0 %v1451
  %v2745 = vpop.f32.mrb[0].mxu0
  %v2746 = vadd.f32 %v2361, %v2745
  %v2747 = vpop.f32.mrb[0].mxu0
  %2748 = vmatprep.mubr.f32.mxu0 %v1461
  %2749 = vmatmul.mubr.f32.gmra.mrb[0].mxu0 %v1460
  %v2750 = vpop.f32.mrb[0].mxu0
  %v2751 = vadd.f32 %v2366, %v2750
  %v2752 = vpop.f32.mrb[0].mxu0
  %2753 = vmatprep.mubr.f32.mxu0 %v1470
  %2754 = vmatmul.mubr.f32.gmra.mrb[0].mxu0 %v1469
  %v2755 = vpop.f32.mrb[0].mxu0
  %v2756 = vadd.f32 %v2371, %v2755
  %v2757 = vpop.f32.mrb[0].mxu0
  %2758 = vmatprep.mubr.f32.mxu0 %v1479
  %2759 = vmatmul.mubr.f32.gmra.mrb[0].mxu0 %v1478
  %v2760 = vpop.f32.mrb[0].mxu0
  %v2761 = vadd.f32 %v2376, %v2760
  %v2762 = vpop.f32.mrb[0].mxu0
  %2763 = vmatprep.mubr.f32.mxu0 %v1488
  %2764 = vmatmul.mubr.f32.gmra.mrb[0].mxu0 %v1487
  %v2765 = vpop.f32.mrb[0].mxu0
  %v2766 = vadd.f32 %v2381, %v2765
  %v2767 = vpop.f32.mrb[0].mxu0
  %2768 = vmatprep.mubr.f32.mxu0 %v1497
  %2769 = vmatmul.mubr.f32.gmra.mrb[0].mxu0 %v1496
  %v2770 = vpop.f32.mrb[0].mxu0
  %v2771 = vadd.f32 %v2386, %v2770
  %v2772 = vpop.f32.mrb[0].mxu0
  %2773 = vmatprep.mubr.f32.mxu0 %v1506
  %2774 = vmatmul.mubr.f32.gmra.mrb[0].mxu0 %v1505
  %v2775 = vpop.f32.mrb[0].mxu0
  %v2776 = vadd.f32 %v2391, %v2775
  %v2777 = vpop.f32.mrb[0].mxu0
  %2778 = vmatprep.mubr.f32.mxu0 %v1515
  %2779 = vmatmul.mubr.f32.gmra.mrb[0].mxu0 %v1514
  %v2780 = vpop.f32.mrb[0].mxu0
  %v2781 = vadd.f32 %v2396, %v2780
  %v2782 = vpop.f32.mrb[0].mxu0
  %2783 = vmatprep.mubr.f32.mxu0 %v1524
  %2784 = vmatmul.mubr.f32.gmra.mrb[0].mxu0 %v1523
  %v2785 = vpop.f32.mrb[0].mxu0
  %v2786 = vadd.f32 %v2401, %v2785
  %v2787 = vpop.f32.mrb[0].mxu0
  %2788 = vmatprep.mubr.f32.mxu0 %v1533
  %2789 = vmatmul.mubr.f32.gmra.mrb[0].mxu0 %v1532
  %v2790 = vpop.f32.mrb[0].mxu0
  %v2791 = vadd.f32 %v2406, %v2790
  %v2792 = vpop.f32.mrb[0].mxu0
  %2793 = vmatprep.mubr.f32.mxu0 %v1542
  %2794 = vmatmul.mubr.f32.gmra.mrb[0].mxu0 %v1541
  %v2795 = vpop.f32.mrb[0].mxu0
  %v2796 = vadd.f32 %v2411, %v2795
  %v2797 = vpop.f32.mrb[0].mxu0
  %2798 = vmatprep.mubr.f32.mxu0 %v1551
  %2799 = vmatmul.mubr.f32.gmra.mrb[0].mxu0 %v1550
  %v2800 = vpop.f32.mrb[0].mxu0
  %v2801 = vadd.f32 %v2416, %v2800
  %v2802 = vpop.f32.mrb[0].mxu0
  %2803 = vmatprep.mubr.f32.mxu0 %v1560
  %2804 = vmatmul.mubr.f32.gmra.mrb[0].mxu0 %v1559
  %v2805 = vpop.f32.mrb[0].mxu0
  %v2806 = vadd.f32 %v2421, %v2805
  %v2807 = vpop.f32.mrb[0].mxu0
  %2808 = vmatprep.mubr.f32.mxu0 %v1569
  %2809 = vmatmul.mubr.f32.gmra.mrb[0].mxu0 %v1568
  %v2810 = vpop.f32.mrb[0].mxu0
  %v2811 = vadd.f32 %v2426, %v2810
  %v2812 = vpop.f32.mrb[0].mxu0
  %2813 = vmatprep.mubr.f32.mxu0 %v1578
  %2814 = vmatmul.mubr.f32.gmra.mrb[0].mxu0 %v1577
  %v2815 = vpop.f32.mrb[0].mxu0
  %v2816 = vadd.f32 %v2431, %v2815
  %v2817 = vpop.f32.mrb[0].mxu0
  %2818 = vmatprep.mubr.f32.mxu0 %v1587
  %2819 = vmatmul.mubr.f32.gmra.mrb[0].mxu0 %v1586
  %v2820 = vpop.f32.mrb[0].mxu0
  %v2821 = vadd.f32 %v2436, %v2820
  %v2822 = vpop.f32.mrb[0].mxu0
  %2823 = vmatprep.mubr.f32.mxu0 %v1596
  %2824 = vmatmul.mubr.f32.gmra.mrb[0].mxu0 %v1595
  %v2825 = vpop.f32.mrb[0].mxu0
  %v2826 = vadd.f32 %v2441, %v2825
  %v2827 = vpop.f32.mrb[0].mxu0
  %2828 = vmatprep.mubr.f32.mxu0 %v1605
  %2829 = vmatmul.mubr.f32.gmra.mrb[0].mxu0 %v1604
  %v2830 = vpop.f32.mrb[0].mxu0
  %v2831 = vadd.f32 %v2446, %v2830
  %v2832 = vpop.f32.mrb[0].mxu0
  %2833 = vmatprep.mubr.f32.mxu0 %v1614
  %2834 = vmatmul.mubr.f32.gmra.mrb[0].mxu0 %v1613
  %v2835 = vpop.f32.mrb[0].mxu0
  %v2836 = vadd.f32 %v2451, %v2835
  %v2837 = vpop.f32.mrb[0].mxu0
  %2838 = vmatprep.mubr.f32.mxu0 %v1623
  %2839 = vmatmul.mubr.f32.gmra.mrb[0].mxu0 %v1622
  %v2840 = vpop.f32.mrb[0].mxu0
  %v2841 = vadd.f32 %v2456, %v2840
  %v2842 = vpop.f32.mrb[0].mxu0
  %2843 = vmatprep.mubr.f32.mxu0 %v1632
  %2844 = vmatmul.mubr.f32.gmra.mrb[0].mxu0 %v1631
  %v2845 = vpop.f32.mrb[0].mxu0
  %v2846 = vadd.f32 %v2461, %v2845
  %v2847 = vpop.f32.mrb[0].mxu0
  %2848 = vmatprep.mubr.f32.mxu0 %v1641
  %2849 = vmatmul.mubr.f32.gmra.mrb[0].mxu0 %v1640
  %v2850 = vpop.f32.mrb[0].mxu0
  %v2851 = vadd.f32 %v2466, %v2850
  %v2852 = vpop.f32.mrb[0].mxu0
  %2853 = vmatprep.mubr.f32.mxu0 %v1650
  %2854 = vmatmul.mubr.f32.gmra.mrb[0].mxu0 %v1649
  %v2855 = vpop.f32.mrb[0].mxu0
  %v2856 = vadd.f32 %v2471, %v2855
  %v2857 = vpop.f32.mrb[0].mxu0
  %2858 = vmatprep.mubr.f32.mxu0 %v1659
  %2859 = vmatmul.mubr.f32.gmra.mrb[0].mxu0 %v1658
  %v2860 = vpop.f32.mrb[0].mxu0
  %v2861 = vadd.f32 %v2476, %v2860
  %v2862 = vpop.f32.mrb[0].mxu0
  %2863 = vmatprep.mubr.f32.mxu0 %v1668
  %2864 = vmatmul.mubr.f32.gmra.mrb[0].mxu0 %v1667
  %v2865 = vpop.f32.mrb[0].mxu0
  %v2866 = vadd.f32 %v2481, %v2865
  %v2867 = vpop.f32.mrb[0].mxu0
  %2868 = vmatprep.mubr.f32.mxu0 %v1677
  %2869 = vmatmul.mubr.f32.gmra.mrb[0].mxu0 %v1676
  %v2870 = vpop.f32.mrb[0].mxu0
  %v2871 = vadd.f32 %v2486, %v2870
  %v2872 = vpop.f32.mrb[0].mxu0
  %2873 = vmatprep.mubr.f32.mxu0 %v1686
  %2874 = vmatmul.mubr.f32.gmra.mrb[0].mxu0 %v1685
  %v2875 = vpop.f32.mrb[0].mxu0
  %v2876 = vadd.f32 %v2491, %v2875
  %v2877 = vpop.f32.mrb[0].mxu0
  %2878 = vmatprep.mubr.f32.mxu0 %v1695
  %2879 = vmatmul.mubr.f32.gmra.mrb[0].mxu0 %v1694
  %v2880 = vpop.f32.mrb[0].mxu0
  %v2881 = vadd.f32 %v2496, %v2880
  %v2882 = vpop.f32.mrb[0].mxu0
  %2883 = vmatprep.mubr.f32.mxu0 %v1704
  %2884 = vmatmul.mubr.f32.gmra.mrb[0].mxu0 %v1703
  %v2885 = vpop.f32.mrb[0].mxu0
  %v2886 = vadd.f32 %v2501, %v2885
  %v2887 = vpop.f32.mrb[0].mxu0
  %2888 = vmatprep.mubr.f32.mxu0 %v1713
  %2889 = vmatmul.mubr.f32.gmra.mrb[0].mxu0 %v1712
  %v2890 = vpop.f32.mrb[0].mxu0
  %v2891 = vadd.f32 %v2506, %v2890
  %v2892 = vpop.f32.mrb[0].mxu0
  %2893 = vmatprep.mubr.f32.mxu0 %v1722
  %2894 = vmatmul.mubr.f32.gmra.mrb[0].mxu0 %v1721
  %v2895 = vpop.f32.mrb[0].mxu0
  %v2896 = vadd.f32 %v2511, %v2895
  %v2897 = vpop.f32.mrb[0].mxu0
  %2898 = vmatprep.mubr.f32.mxu0 %v1731
  %2899 = vmatmul.mubr.f32.gmra.mrb[0].mxu0 %v1730
  %v2900 = vpop.f32.mrb[0].mxu0
  %v2901 = vadd.f32 %v2516, %v2900
  %v2902 = vpop.f32.mrb[0].mxu0
  %2903 = vmatprep.mubr.f32.mxu0 %v1740
  %2904 = vmatmul.mubr.f32.gmra.mrb[0].mxu0 %v1739
  %v2905 = vpop.f32.mrb[0].mxu0
  %v2906 = vadd.f32 %v2521, %v2905
  %v2907 = vpop.f32.mrb[0].mxu0
  %2908 = vmatprep.mubr.f32.mxu0 %v1749
  %2909 = vmatmul.mubr.f32.gmra.mrb[0].mxu0 %v1748
  %v2910 = vpop.f32.mrb[0].mxu0
  %v2911 = vadd.f32 %v2526, %v2910
  %v2912 = vpop.f32.mrb[0].mxu0
  %2913 = vdwg.mxu0
  %2914 = vmatprep.subr.mxu0 0.0
  %2915 = vmatpush1.msra.mxu0 %v334
  %2916 = vmatprep.subr.mxu0 0.0
  %2917 = vmatpush1.msra.mxu0 %v335
  %2918 = vmatprep.subr.mxu0 0.0
  %2919 = vmatpush1.msra.mxu0 %v336
  %2920 = vmatprep.subr.mxu0 0.0
  %2921 = vmatpush1.msra.mxu0 %v337
  %2922 = vmatprep.subr.mxu0 0.0
  %2923 = vmatpush1.msra.mxu0 %v338
  %2924 = vmatprep.subr.mxu0 0.0
  %2925 = vmatpush1.msra.mxu0 %v339
  %2926 = vmatprep.subr.mxu0 0.0
  %2927 = vmatpush1.msra.mxu0 %v340
  %2928 = vmatprep.subr.mxu0 0.0
  %2929 = vmatpush1.msra.mxu0 %v341
  %2930 = vmatprep.subr.mxu0 0.0
  %2931 = vmatpush1.msra.mxu0 %v342
  %2932 = vmatprep.subr.mxu0 0.0
  %2933 = vmatpush1.msra.mxu0 %v343
  %2934 = vmatprep.subr.mxu0 0.0
  %2935 = vmatpush1.msra.mxu0 %v344
  %2936 = vmatprep.subr.mxu0 0.0
  %2937 = vmatpush1.msra.mxu0 %v345
  %2938 = vmatprep.subr.mxu0 0.0
  %2939 = vmatpush1.msra.mxu0 %v346
  %2940 = vmatprep.subr.mxu0 0.0
  %2941 = vmatpush1.msra.mxu0 %v347
  %2942 = vmatprep.subr.mxu0 0.0
  %2943 = vmatpush1.msra.mxu0 %v348
  %2944 = vmatprep.subr.mxu0 0.0
  %2945 = vmatpush1.msra.mxu0 %v349
  %2946 = vmatprep.subr.mxu0 0.0
  %2947 = vmatpush1.msra.mxu0 %v350
  %2948 = vmatprep.subr.mxu0 0.0
  %2949 = vmatpush1.msra.mxu0 %v351
  %2950 = vmatprep.subr.mxu0 0.0
  %2951 = vmatpush1.msra.mxu0 %v352
  %2952 = vmatprep.subr.mxu0 0.0
  %2953 = vmatpush1.msra.mxu0 %v353
  %2954 = vmatprep.subr.mxu0 0.0
  %2955 = vmatpush1.msra.mxu0 %v354
  %2956 = vmatprep.subr.mxu0 0.0
  %2957 = vmatpush1.msra.mxu0 %v355
  %2958 = vmatprep.subr.mxu0 0.0
  %2959 = vmatpush1.msra.mxu0 %v356
  %2960 = vmatprep.subr.mxu0 0.0
  %2961 = vmatpush1.msra.mxu0 %v357
  %2962 = vmatprep.subr.mxu0 0.0
  %2963 = vmatpush1.msra.mxu0 %v358
  %2964 = vmatprep.subr.mxu0 0.0
  %2965 = vmatpush1.msra.mxu0 %v359
  %2966 = vmatprep.subr.mxu0 0.0
  %2967 = vmatpush1.msra.mxu0 %v360
  %2968 = vmatprep.subr.mxu0 0.0
  %2969 = vmatpush1.msra.mxu0 %v361
  %2970 = vmatprep.subr.mxu0 0.0
  %2971 = vmatpush1.msra.mxu0 %v362
  %2972 = vmatprep.subr.mxu0 0.0
  %2973 = vmatpush1.msra.mxu0 %v363
  %2974 = vmatprep.subr.mxu0 0.0
  %2975 = vmatpush1.msra.mxu0 %v364
  %2976 = vmatprep.subr.mxu0 0.0
  %2977 = vmatpush1.msra.mxu0 %v365
  %2978 = vmatprep.mubr.f32.mxu0 %v1184
  %2979 = vmatmul.mubr.f32.gmra.mrb[0].mxu0 %v1183
  %v2980 = vpop.f32.mrb[0].mxu0
  %v2981 = vadd.f32 %v2596, %v2980
  %v2982 = vpop.f32.mrb[0].mxu0
  %2983 = vmatprep.mubr.f32.mxu0 %v1193
  %2984 = vmatmul.mubr.f32.gmra.mrb[0].mxu0 %v1192
  %v2985 = vpop.f32.mrb[0].mxu0
  %v2986 = vadd.f32 %v2601, %v2985
  %v2987 = vpop.f32.mrb[0].mxu0
  %2988 = vmatprep.mubr.f32.mxu0 %v1202
  %2989 = vmatmul.mubr.f32.gmra.mrb[0].mxu0 %v1201
  %v2990 = vpop.f32.mrb[0].mxu0
  %v2991 = vadd.f32 %v2606, %v2990
  %v2992 = vpop.f32.mrb[0].mxu0
  %2993 = vmatprep.mubr.f32.mxu0 %v1211
  %2994 = vmatmul.mubr.f32.gmra.mrb[0].mxu0 %v1210
  %v2995 = vpop.f32.mrb[0].mxu0
  %v2996 = vadd.f32 %v2611, %v2995
  %v2997 = vpop.f32.mrb[0].mxu0
  %2998 = vmatprep.mubr.f32.mxu0 %v1220
  %2999 = vmatmul.mubr.f32.gmra.mrb[0].mxu0 %v1219
  %v3000 = vpop.f32.mrb[0].mxu0
  %v3001 = vadd.f32 %v2616, %v3000
  %v3002 = vpop.f32.mrb[0].mxu0
  %3003 = vmatprep.mubr.f32.mxu0 %v1229
  %3004 = vmatmul.mubr.f32.gmra.mrb[0].mxu0 %v1228
  %v3005 = vpop.f32.mrb[0].mxu0
  %v3006 = vadd.f32 %v2621, %v3005
  %v3007 = vpop.f32.mrb[0].mxu0
  %3008 = vmatprep.mubr.f32.mxu0 %v1238
  %3009 = vmatmul.mubr.f32.gmra.mrb[0].mxu0 %v1237
  %v3010 = vpop.f32.mrb[0].mxu0
  %v3011 = vadd.f32 %v2626, %v3010
  %v3012 = vpop.f32.mrb[0].mxu0
  %3013 = vmatprep.mubr.f32.mxu0 %v1247
  %3014 = vmatmul.mubr.f32.gmra.mrb[0].mxu0 %v1246
  %v3015 = vpop.f32.mrb[0].mxu0
  %v3016 = vadd.f32 %v2631, %v3015
  %v3017 = vpop.f32.mrb[0].mxu0
  %3018 = vmatprep.mubr.f32.mxu0 %v1256
  %3019 = vmatmul.mubr.f32.gmra.mrb[0].mxu0 %v1255
  %v3020 = vpop.f32.mrb[0].mxu0
  %v3021 = vadd.f32 %v2636, %v3020
  %v3022 = vpop.f32.mrb[0].mxu0
  %3023 = vmatprep.mubr.f32.mxu0 %v1265
  %3024 = vmatmul.mubr.f32.gmra.mrb[0].mxu0 %v1264
  %v3025 = vpop.f32.mrb[0].mxu0
  %v3026 = vadd.f32 %v2641, %v3025
  %v3027 = vpop.f32.mrb[0].mxu0
  %3028 = vmatprep.mubr.f32.mxu0 %v1274
  %3029 = vmatmul.mubr.f32.gmra.mrb[0].mxu0 %v1273
  %v3030 = vpop.f32.mrb[0].mxu0
  %v3031 = vadd.f32 %v2646, %v3030
  %v3032 = vpop.f32.mrb[0].mxu0
  %3033 = vmatprep.mubr.f32.mxu0 %v1283
  %3034 = vmatmul.mubr.f32.gmra.mrb[0].mxu0 %v1282
  %v3035 = vpop.f32.mrb[0].mxu0
  %v3036 = vadd.f32 %v2651, %v3035
  %v3037 = vpop.f32.mrb[0].mxu0
  %3038 = vmatprep.mubr.f32.mxu0 %v1292
  %3039 = vmatmul.mubr.f32.gmra.mrb[0].mxu0 %v1291
  %v3040 = vpop.f32.mrb[0].mxu0
  %v3041 = vadd.f32 %v2656, %v3040
  %v3042 = vpop.f32.mrb[0].mxu0
  %3043 = vmatprep.mubr.f32.mxu0 %v1301
  %3044 = vmatmul.mubr.f32.gmra.mrb[0].mxu0 %v1300
  %v3045 = vpop.f32.mrb[0].mxu0
  %v3046 = vadd.f32 %v2661, %v3045
  %v3047 = vpop.f32.mrb[0].mxu0
  %3048 = vmatprep.mubr.f32.mxu0 %v1310
  %3049 = vmatmul.mubr.f32.gmra.mrb[0].mxu0 %v1309
  %v3050 = vpop.f32.mrb[0].mxu0
  %v3051 = vadd.f32 %v2666, %v3050
  %v3052 = vpop.f32.mrb[0].mxu0
  %3053 = vmatprep.mubr.f32.mxu0 %v1319
  %3054 = vmatmul.mubr.f32.gmra.mrb[0].mxu0 %v1318
  %v3055 = vpop.f32.mrb[0].mxu0
  %v3056 = vadd.f32 %v2671, %v3055
  %v3057 = vpop.f32.mrb[0].mxu0
  %3058 = vmatprep.mubr.f32.mxu0 %v1328
  %3059 = vmatmul.mubr.f32.gmra.mrb[0].mxu0 %v1327
  %v3060 = vpop.f32.mrb[0].mxu0
  %v3061 = vadd.f32 %v2676, %v3060
  %v3062 = vpop.f32.mrb[0].mxu0
  %3063 = vmatprep.mubr.f32.mxu0 %v1337
  %3064 = vmatmul.mubr.f32.gmra.mrb[0].mxu0 %v1336
  %v3065 = vpop.f32.mrb[0].mxu0
  %v3066 = vadd.f32 %v2681, %v3065
  %v3067 = vpop.f32.mrb[0].mxu0
  %3068 = vmatprep.mubr.f32.mxu0 %v1346
  %3069 = vmatmul.mubr.f32.gmra.mrb[0].mxu0 %v1345
  %v3070 = vpop.f32.mrb[0].mxu0
  %v3071 = vadd.f32 %v2686, %v3070
  %v3072 = vpop.f32.mrb[0].mxu0
  %3073 = vmatprep.mubr.f32.mxu0 %v1355
  %3074 = vmatmul.mubr.f32.gmra.mrb[0].mxu0 %v1354
  %v3075 = vpop.f32.mrb[0].mxu0
  %v3076 = vadd.f32 %v2691, %v3075
  %v3077 = vpop.f32.mrb[0].mxu0
  %3078 = vmatprep.mubr.f32.mxu0 %v1364
  %3079 = vmatmul.mubr.f32.gmra.mrb[0].mxu0 %v1363
  %v3080 = vpop.f32.mrb[0].mxu0
  %v3081 = vadd.f32 %v2696, %v3080
  %v3082 = vpop.f32.mrb[0].mxu0
  %3083 = vmatprep.mubr.f32.mxu0 %v1373
  %3084 = vmatmul.mubr.f32.gmra.mrb[0].mxu0 %v1372
  %v3085 = vpop.f32.mrb[0].mxu0
  %v3086 = vadd.f32 %v2701, %v3085
  %v3087 = vpop.f32.mrb[0].mxu0
  %3088 = vmatprep.mubr.f32.mxu0 %v1382
  %3089 = vmatmul.mubr.f32.gmra.mrb[0].mxu0 %v1381
  %v3090 = vpop.f32.mrb[0].mxu0
  %v3091 = vadd.f32 %v2706, %v3090
  %v3092 = vpop.f32.mrb[0].mxu0
  %3093 = vmatprep.mubr.f32.mxu0 %v1391
  %3094 = vmatmul.mubr.f32.gmra.mrb[0].mxu0 %v1390
  %v3095 = vpop.f32.mrb[0].mxu0
  %v3096 = vadd.f32 %v2711, %v3095
  %v3097 = vpop.f32.mrb[0].mxu0
  %3098 = vmatprep.mubr.f32.mxu0 %v1400
  %3099 = vmatmul.mubr.f32.gmra.mrb[0].mxu0 %v1399
  %v3100 = vpop.f32.mrb[0].mxu0
  %v3101 = vadd.f32 %v2716, %v3100
  %v3102 = vpop.f32.mrb[0].mxu0
  %3103 = vmatprep.mubr.f32.mxu0 %v1409
  %3104 = vmatmul.mubr.f32.gmra.mrb[0].mxu0 %v1408
  %v3105 = vpop.f32.mrb[0].mxu0
  %v3106 = vadd.f32 %v2721, %v3105
  %v3107 = vpop.f32.mrb[0].mxu0
  %3108 = vmatprep.mubr.f32.mxu0 %v1418
  %3109 = vmatmul.mubr.f32.gmra.mrb[0].mxu0 %v1417
  %v3110 = vpop.f32.mrb[0].mxu0
  %v3111 = vadd.f32 %v2726, %v3110
  %v3112 = vpop.f32.mrb[0].mxu0
  %3113 = vmatprep.mubr.f32.mxu0 %v1427
  %3114 = vmatmul.mubr.f32.gmra.mrb[0].mxu0 %v1426
  %v3115 = vpop.f32.mrb[0].mxu0
  %v3116 = vadd.f32 %v2731, %v3115
  %v3117 = vpop.f32.mrb[0].mxu0
  %3118 = vmatprep.mubr.f32.mxu0 %v1436
  %3119 = vmatmul.mubr.f32.gmra.mrb[0].mxu0 %v1435
  %v3120 = vpop.f32.mrb[0].mxu0
  %v3121 = vadd.f32 %v2736, %v3120
  %v3122 = vpop.f32.mrb[0].mxu0
  %3123 = vmatprep.mubr.f32.mxu0 %v1445
  %3124 = vmatmul.mubr.f32.gmra.mrb[0].mxu0 %v1444
  %v3125 = vpop.f32.mrb[0].mxu0
  %v3126 = vadd.f32 %v2741, %v3125
  %v3127 = vpop.f32.mrb[0].mxu0
  %3128 = vmatprep.mubr.f32.mxu0 %v1454
  %3129 = vmatmul.mubr.f32.gmra.mrb[0].mxu0 %v1453
  %v3130 = vpop.f32.mrb[0].mxu0
  %v3131 = vadd.f32 %v2746, %v3130
  %v3132 = vpop.f32.mrb[0].mxu0
  %3133 = vmatprep.mubr.f32.mxu0 %v1463
  %3134 = vmatmul.mubr.f32.gmra.mrb[0].mxu0 %v1462
  %v3135 = vpop.f32.mrb[0].mxu0
  %v3136 = vadd.f32 %v2751, %v3135
  %v3137 = vpop.f32.mrb[0].mxu0
  %3138 = vmatprep.mubr.f32.mxu0 %v1472
  %3139 = vmatmul.mubr.f32.gmra.mrb[0].mxu0 %v1471
  %v3140 = vpop.f32.mrb[0].mxu0
  %v3141 = vadd.f32 %v2756, %v3140
  %v3142 = vpop.f32.mrb[0].mxu0
  %3143 = vmatprep.mubr.f32.mxu0 %v1481
  %3144 = vmatmul.mubr.f32.gmra.mrb[0].mxu0 %v1480
  %v3145 = vpop.f32.mrb[0].mxu0
  %v3146 = vadd.f32 %v2761, %v3145
  %v3147 = vpop.f32.mrb[0].mxu0
  %3148 = vmatprep.mubr.f32.mxu0 %v1490
  %3149 = vmatmul.mubr.f32.gmra.mrb[0].mxu0 %v1489
  %v3150 = vpop.f32.mrb[0].mxu0
  %v3151 = vadd.f32 %v2766, %v3150
  %v3152 = vpop.f32.mrb[0].mxu0
  %3153 = vmatprep.mubr.f32.mxu0 %v1499
  %3154 = vmatmul.mubr.f32.gmra.mrb[0].mxu0 %v1498
  %v3155 = vpop.f32.mrb[0].mxu0
  %v3156 = vadd.f32 %v2771, %v3155
  %v3157 = vpop.f32.mrb[0].mxu0
  %3158 = vmatprep.mubr.f32.mxu0 %v1508
  %3159 = vmatmul.mubr.f32.gmra.mrb[0].mxu0 %v1507
  %v3160 = vpop.f32.mrb[0].mxu0
  %v3161 = vadd.f32 %v2776, %v3160
  %v3162 = vpop.f32.mrb[0].mxu0
  %3163 = vmatprep.mubr.f32.mxu0 %v1517
  %3164 = vmatmul.mubr.f32.gmra.mrb[0].mxu0 %v1516
  %v3165 = vpop.f32.mrb[0].mxu0
  %v3166 = vadd.f32 %v2781, %v3165
  %v3167 = vpop.f32.mrb[0].mxu0
  %3168 = vmatprep.mubr.f32.mxu0 %v1526
  %3169 = vmatmul.mubr.f32.gmra.mrb[0].mxu0 %v1525
  %v3170 = vpop.f32.mrb[0].mxu0
  %v3171 = vadd.f32 %v2786, %v3170
  %v3172 = vpop.f32.mrb[0].mxu0
  %3173 = vmatprep.mubr.f32.mxu0 %v1535
  %3174 = vmatmul.mubr.f32.gmra.mrb[0].mxu0 %v1534
  %v3175 = vpop.f32.mrb[0].mxu0
  %v3176 = vadd.f32 %v2791, %v3175
  %v3177 = vpop.f32.mrb[0].mxu0
  %3178 = vmatprep.mubr.f32.mxu0 %v1544
  %3179 = vmatmul.mubr.f32.gmra.mrb[0].mxu0 %v1543
  %v3180 = vpop.f32.mrb[0].mxu0
  %v3181 = vadd.f32 %v2796, %v3180
  %v3182 = vpop.f32.mrb[0].mxu0
  %3183 = vmatprep.mubr.f32.mxu0 %v1553
  %3184 = vmatmul.mubr.f32.gmra.mrb[0].mxu0 %v1552
  %v3185 = vpop.f32.mrb[0].mxu0
  %v3186 = vadd.f32 %v2801, %v3185
  %v3187 = vpop.f32.mrb[0].mxu0
  %3188 = vmatprep.mubr.f32.mxu0 %v1562
  %3189 = vmatmul.mubr.f32.gmra.mrb[0].mxu0 %v1561
  %v3190 = vpop.f32.mrb[0].mxu0
  %v3191 = vadd.f32 %v2806, %v3190
  %v3192 = vpop.f32.mrb[0].mxu0
  %3193 = vmatprep.mubr.f32.mxu0 %v1571
  %3194 = vmatmul.mubr.f32.gmra.mrb[0].mxu0 %v1570
  %v3195 = vpop.f32.mrb[0].mxu0
  %v3196 = vadd.f32 %v2811, %v3195
  %v3197 = vpop.f32.mrb[0].mxu0
  %3198 = vmatprep.mubr.f32.mxu0 %v1580
  %3199 = vmatmul.mubr.f32.gmra.mrb[0].mxu0 %v1579
  %v3200 = vpop.f32.mrb[0].mxu0
  %v3201 = vadd.f32 %v2816, %v3200
  %v3202 = vpop.f32.mrb[0].mxu0
  %3203 = vmatprep.mubr.f32.mxu0 %v1589
  %3204 = vmatmul.mubr.f32.gmra.mrb[0].mxu0 %v1588
  %v3205 = vpop.f32.mrb[0].mxu0
  %v3206 = vadd.f32 %v2821, %v3205
  %v3207 = vpop.f32.mrb[0].mxu0
  %3208 = vmatprep.mubr.f32.mxu0 %v1598
  %3209 = vmatmul.mubr.f32.gmra.mrb[0].mxu0 %v1597
  %v3210 = vpop.f32.mrb[0].mxu0
  %v3211 = vadd.f32 %v2826, %v3210
  %v3212 = vpop.f32.mrb[0].mxu0
  %3213 = vmatprep.mubr.f32.mxu0 %v1607
  %3214 = vmatmul.mubr.f32.gmra.mrb[0].mxu0 %v1606
  %v3215 = vpop.f32.mrb[0].mxu0
  %v3216 = vadd.f32 %v2831, %v3215
  %v3217 = vpop.f32.mrb[0].mxu0
  %3218 = vmatprep.mubr.f32.mxu0 %v1616
  %3219 = vmatmul.mubr.f32.gmra.mrb[0].mxu0 %v1615
  %v3220 = vpop.f32.mrb[0].mxu0
  %v3221 = vadd.f32 %v2836, %v3220
  %v3222 = vpop.f32.mrb[0].mxu0
  %3223 = vmatprep.mubr.f32.mxu0 %v1625
  %3224 = vmatmul.mubr.f32.gmra.mrb[0].mxu0 %v1624
  %v3225 = vpop.f32.mrb[0].mxu0
  %v3226 = vadd.f32 %v2841, %v3225
  %v3227 = vpop.f32.mrb[0].mxu0
  %3228 = vmatprep.mubr.f32.mxu0 %v1634
  %3229 = vmatmul.mubr.f32.gmra.mrb[0].mxu0 %v1633
  %v3230 = vpop.f32.mrb[0].mxu0
  %v3231 = vadd.f32 %v2846, %v3230
  %v3232 = vpop.f32.mrb[0].mxu0
  %3233 = vmatprep.mubr.f32.mxu0 %v1643
  %3234 = vmatmul.mubr.f32.gmra.mrb[0].mxu0 %v1642
  %v3235 = vpop.f32.mrb[0].mxu0
  %v3236 = vadd.f32 %v2851, %v3235
  %v3237 = vpop.f32.mrb[0].mxu0
  %3238 = vmatprep.mubr.f32.mxu0 %v1652
  %3239 = vmatmul.mubr.f32.gmra.mrb[0].mxu0 %v1651
  %v3240 = vpop.f32.mrb[0].mxu0
  %v3241 = vadd.f32 %v2856, %v3240
  %v3242 = vpop.f32.mrb[0].mxu0
  %3243 = vmatprep.mubr.f32.mxu0 %v1661
  %3244 = vmatmul.mubr.f32.gmra.mrb[0].mxu0 %v1660
  %v3245 = vpop.f32.mrb[0].mxu0
  %v3246 = vadd.f32 %v2861, %v3245
  %v3247 = vpop.f32.mrb[0].mxu0
  %3248 = vmatprep.mubr.f32.mxu0 %v1670
  %3249 = vmatmul.mubr.f32.gmra.mrb[0].mxu0 %v1669
  %v3250 = vpop.f32.mrb[0].mxu0
  %v3251 = vadd.f32 %v2866, %v3250
  %v3252 = vpop.f32.mrb[0].mxu0
  %3253 = vmatprep.mubr.f32.mxu0 %v1679
  %3254 = vmatmul.mubr.f32.gmra.mrb[0].mxu0 %v1678
  %v3255 = vpop.f32.mrb[0].mxu0
  %v3256 = vadd.f32 %v2871, %v3255
  %v3257 = vpop.f32.mrb[0].mxu0
  %3258 = vmatprep.mubr.f32.mxu0 %v1688
  %3259 = vmatmul.mubr.f32.gmra.mrb[0].mxu0 %v1687
  %v3260 = vpop.f32.mrb[0].mxu0
  %v3261 = vadd.f32 %v2876, %v3260
  %v3262 = vpop.f32.mrb[0].mxu0
  %3263 = vmatprep.mubr.f32.mxu0 %v1697
  %3264 = vmatmul.mubr.f32.gmra.mrb[0].mxu0 %v1696
  %v3265 = vpop.f32.mrb[0].mxu0
  %v3266 = vadd.f32 %v2881, %v3265
  %v3267 = vpop.f32.mrb[0].mxu0
  %3268 = vmatprep.mubr.f32.mxu0 %v1706
  %3269 = vmatmul.mubr.f32.gmra.mrb[0].mxu0 %v1705
  %v3270 = vpop.f32.mrb[0].mxu0
  %v3271 = vadd.f32 %v2886, %v3270
  %v3272 = vpop.f32.mrb[0].mxu0
  %3273 = vmatprep.mubr.f32.mxu0 %v1715
  %3274 = vmatmul.mubr.f32.gmra.mrb[0].mxu0 %v1714
  %v3275 = vpop.f32.mrb[0].mxu0
  %v3276 = vadd.f32 %v2891, %v3275
  %v3277 = vpop.f32.mrb[0].mxu0
  %3278 = vmatprep.mubr.f32.mxu0 %v1724
  %3279 = vmatmul.mubr.f32.gmra.mrb[0].mxu0 %v1723
  %v3280 = vpop.f32.mrb[0].mxu0
  %v3281 = vadd.f32 %v2896, %v3280
  %v3282 = vpop.f32.mrb[0].mxu0
  %3283 = vmatprep.mubr.f32.mxu0 %v1733
  %3284 = vmatmul.mubr.f32.gmra.mrb[0].mxu0 %v1732
  %v3285 = vpop.f32.mrb[0].mxu0
  %v3286 = vadd.f32 %v2901, %v3285
  %v3287 = vpop.f32.mrb[0].mxu0
  %3288 = vmatprep.mubr.f32.mxu0 %v1742
  %3289 = vmatmul.mubr.f32.gmra.mrb[0].mxu0 %v1741
  %v3290 = vpop.f32.mrb[0].mxu0
  %v3291 = vadd.f32 %v2906, %v3290
  %v3292 = vpop.f32.mrb[0].mxu0
  %3293 = vmatprep.mubr.f32.mxu0 %v1751
  %3294 = vmatmul.mubr.f32.gmra.mrb[0].mxu0 %v1750
  %v3295 = vpop.f32.mrb[0].mxu0
  %v3296 = vadd.f32 %v2911, %v3295
  %v3297 = vpop.f32.mrb[0].mxu0
  %3298 = vdwg.mxu0
  %3299 = vmatprep.subr.mxu0 0.0
  %3300 = vmatpush1.msra.mxu0 %v366
  %3301 = vmatprep.subr.mxu0 0.0
  %3302 = vmatpush1.msra.mxu0 %v367
  %3303 = vmatprep.subr.mxu0 0.0
  %3304 = vmatpush1.msra.mxu0 %v368
  %3305 = vmatprep.subr.mxu0 0.0
  %3306 = vmatpush1.msra.mxu0 %v369
  %3307 = vmatprep.subr.mxu0 0.0
  %3308 = vmatpush1.msra.mxu0 %v370
  %3309 = vmatprep.subr.mxu0 0.0
  %3310 = vmatpush1.msra.mxu0 %v371
  %3311 = vmatprep.subr.mxu0 0.0
  %3312 = vmatpush1.msra.mxu0 %v372
  %3313 = vmatprep.subr.mxu0 0.0
  %3314 = vmatpush1.msra.mxu0 %v373
  %3315 = vmatprep.subr.mxu0 0.0
  %3316 = vmatpush1.msra.mxu0 %v374
  %3317 = vmatprep.subr.mxu0 0.0
  %3318 = vmatpush1.msra.mxu0 %v375
  %3319 = vmatprep.subr.mxu0 0.0
  %3320 = vmatpush1.msra.mxu0 %v376
  %3321 = vmatprep.subr.mxu0 0.0
  %3322 = vmatpush1.msra.mxu0 %v377
  %3323 = vmatprep.subr.mxu0 0.0
  %3324 = vmatpush1.msra.mxu0 %v378
  %3325 = vmatprep.subr.mxu0 0.0
  %3326 = vmatpush1.msra.mxu0 %v379
  %3327 = vmatprep.subr.mxu0 0.0
  %3328 = vmatpush1.msra.mxu0 %v380
  %3329 = vmatprep.subr.mxu0 0.0
  %3330 = vmatpush1.msra.mxu0 %v381
  %3331 = vmatprep.subr.mxu0 0.0
  %3332 = vmatpush1.msra.mxu0 0.0
  %3333 = vmatprep.subr.mxu0 0.0
  %3334 = vmatpush1.msra.mxu0 0.0
  %3335 = vmatprep.subr.mxu0 0.0
  %3336 = vmatpush1.msra.mxu0 0.0
  %3337 = vmatprep.subr.mxu0 0.0
  %3338 = vmatpush1.msra.mxu0 0.0
  %3339 = vmatprep.subr.mxu0 0.0
  %3340 = vmatpush1.msra.mxu0 0.0
  %3341 = vmatprep.subr.mxu0 0.0
  %3342 = vmatpush1.msra.mxu0 0.0
  %3343 = vmatprep.subr.mxu0 0.0
  %3344 = vmatpush1.msra.mxu0 0.0
  %3345 = vmatprep.subr.mxu0 0.0
  %3346 = vmatpush1.msra.mxu0 0.0
  %3347 = vmatprep.subr.mxu0 0.0
  %3348 = vmatpush1.msra.mxu0 0.0
  %3349 = vmatprep.subr.mxu0 0.0
  %3350 = vmatpush1.msra.mxu0 0.0
  %3351 = vmatprep.subr.mxu0 0.0
  %3352 = vmatpush1.msra.mxu0 0.0
  %3353 = vmatprep.subr.mxu0 0.0
  %3354 = vmatpush1.msra.mxu0 0.0
  %3355 = vmatprep.subr.mxu0 0.0
  %3356 = vmatpush1.msra.mxu0 0.0
  %3357 = vmatprep.subr.mxu0 0.0
  %3358 = vmatpush1.msra.mxu0 0.0
  %3359 = vmatprep.subr.mxu0 0.0
  %3360 = vmatpush1.msra.mxu0 0.0
  %3361 = vmatprep.subr.mxu0 0.0
  %3362 = vmatpush1.msra.mxu0 0.0
  %3363 = vmatprep.mubr.f32.mxu0 0.0
  %3364 = vmatmul.mubr.f32.gmra.mrb[0].mxu0 %v1185
  %v3365 = vpop.f32.mrb[0].mxu0
  %v3366 = vadd.f32 %v2981, %v3365
  %v3367 = vpop.f32.mrb[0].mxu0
  %3368 = vmatprep.mubr.f32.mxu0 0.0
  %3369 = vmatmul.mubr.f32.gmra.mrb[0].mxu0 %v1194
  %v3370 = vpop.f32.mrb[0].mxu0
  %v3371 = vadd.f32 %v2986, %v3370
  %v3372 = vpop.f32.mrb[0].mxu0
  %3373 = vmatprep.mubr.f32.mxu0 0.0
  %3374 = vmatmul.mubr.f32.gmra.mrb[0].mxu0 %v1203
  %v3375 = vpop.f32.mrb[0].mxu0
  %v3376 = vadd.f32 %v2991, %v3375
  %v3377 = vpop.f32.mrb[0].mxu0
  %3378 = vmatprep.mubr.f32.mxu0 0.0
  %3379 = vmatmul.mubr.f32.gmra.mrb[0].mxu0 %v1212
  %v3380 = vpop.f32.mrb[0].mxu0
  %v3381 = vadd.f32 %v2996, %v3380
  %v3382 = vpop.f32.mrb[0].mxu0
  %3383 = vmatprep.mubr.f32.mxu0 0.0
  %3384 = vmatmul.mubr.f32.gmra.mrb[0].mxu0 %v1221
  %v3385 = vpop.f32.mrb[0].mxu0
  %v3386 = vadd.f32 %v3001, %v3385
  %v3387 = vpop.f32.mrb[0].mxu0
  %3388 = vmatprep.mubr.f32.mxu0 0.0
  %3389 = vmatmul.mubr.f32.gmra.mrb[0].mxu0 %v1230
  %v3390 = vpop.f32.mrb[0].mxu0
  %v3391 = vadd.f32 %v3006, %v3390
  %v3392 = vpop.f32.mrb[0].mxu0
  %3393 = vmatprep.mubr.f32.mxu0 0.0
  %3394 = vmatmul.mubr.f32.gmra.mrb[0].mxu0 %v1239
  %v3395 = vpop.f32.mrb[0].mxu0
  %v3396 = vadd.f32 %v3011, %v3395
  %v3397 = vpop.f32.mrb[0].mxu0
  %3398 = vmatprep.mubr.f32.mxu0 0.0
  %3399 = vmatmul.mubr.f32.gmra.mrb[0].mxu0 %v1248
  %v3400 = vpop.f32.mrb[0].mxu0
  %v3401 = vadd.f32 %v3016, %v3400
  %v3402 = vpop.f32.mrb[0].mxu0
  %3403 = vmatprep.mubr.f32.mxu0 0.0
  %3404 = vmatmul.mubr.f32.gmra.mrb[0].mxu0 %v1257
  %v3405 = vpop.f32.mrb[0].mxu0
  %v3406 = vadd.f32 %v3021, %v3405
  %v3407 = vpop.f32.mrb[0].mxu0
  %3408 = vmatprep.mubr.f32.mxu0 0.0
  %3409 = vmatmul.mubr.f32.gmra.mrb[0].mxu0 %v1266
  %v3410 = vpop.f32.mrb[0].mxu0
  %v3411 = vadd.f32 %v3026, %v3410
  %v3412 = vpop.f32.mrb[0].mxu0
  %3413 = vmatprep.mubr.f32.mxu0 0.0
  %3414 = vmatmul.mubr.f32.gmra.mrb[0].mxu0 %v1275
  %v3415 = vpop.f32.mrb[0].mxu0
  %v3416 = vadd.f32 %v3031, %v3415
  %v3417 = vpop.f32.mrb[0].mxu0
  %3418 = vmatprep.mubr.f32.mxu0 0.0
  %3419 = vmatmul.mubr.f32.gmra.mrb[0].mxu0 %v1284
  %v3420 = vpop.f32.mrb[0].mxu0
  %v3421 = vadd.f32 %v3036, %v3420
  %v3422 = vpop.f32.mrb[0].mxu0
  %3423 = vmatprep.mubr.f32.mxu0 0.0
  %3424 = vmatmul.mubr.f32.gmra.mrb[0].mxu0 %v1293
  %v3425 = vpop.f32.mrb[0].mxu0
  %v3426 = vadd.f32 %v3041, %v3425
  %v3427 = vpop.f32.mrb[0].mxu0
  %3428 = vmatprep.mubr.f32.mxu0 0.0
  %3429 = vmatmul.mubr.f32.gmra.mrb[0].mxu0 %v1302
  %v3430 = vpop.f32.mrb[0].mxu0
  %v3431 = vadd.f32 %v3046, %v3430
  %v3432 = vpop.f32.mrb[0].mxu0
  %3433 = vmatprep.mubr.f32.mxu0 0.0
  %3434 = vmatmul.mubr.f32.gmra.mrb[0].mxu0 %v1311
  %v3435 = vpop.f32.mrb[0].mxu0
  %v3436 = vadd.f32 %v3051, %v3435
  %v3437 = vpop.f32.mrb[0].mxu0
  %3438 = vmatprep.mubr.f32.mxu0 0.0
  %3439 = vmatmul.mubr.f32.gmra.mrb[0].mxu0 %v1320
  %v3440 = vpop.f32.mrb[0].mxu0
  %v3441 = vadd.f32 %v3056, %v3440
  %v3442 = vpop.f32.mrb[0].mxu0
  %3443 = vmatprep.mubr.f32.mxu0 0.0
  %3444 = vmatmul.mubr.f32.gmra.mrb[0].mxu0 %v1329
  %v3445 = vpop.f32.mrb[0].mxu0
  %v3446 = vadd.f32 %v3061, %v3445
  %v3447 = vpop.f32.mrb[0].mxu0
  %3448 = vmatprep.mubr.f32.mxu0 0.0
  %3449 = vmatmul.mubr.f32.gmra.mrb[0].mxu0 %v1338
  %v3450 = vpop.f32.mrb[0].mxu0
  %v3451 = vadd.f32 %v3066, %v3450
  %v3452 = vpop.f32.mrb[0].mxu0
  %3453 = vmatprep.mubr.f32.mxu0 0.0
  %3454 = vmatmul.mubr.f32.gmra.mrb[0].mxu0 %v1347
  %v3455 = vpop.f32.mrb[0].mxu0
  %v3456 = vadd.f32 %v3071, %v3455
  %v3457 = vpop.f32.mrb[0].mxu0
  %3458 = vmatprep.mubr.f32.mxu0 0.0
  %3459 = vmatmul.mubr.f32.gmra.mrb[0].mxu0 %v1356
  %v3460 = vpop.f32.mrb[0].mxu0
  %v3461 = vadd.f32 %v3076, %v3460
  %v3462 = vpop.f32.mrb[0].mxu0
  %3463 = vmatprep.mubr.f32.mxu0 0.0
  %3464 = vmatmul.mubr.f32.gmra.mrb[0].mxu0 %v1365
  %v3465 = vpop.f32.mrb[0].mxu0
  %v3466 = vadd.f32 %v3081, %v3465
  %v3467 = vpop.f32.mrb[0].mxu0
  %3468 = vmatprep.mubr.f32.mxu0 0.0
  %3469 = vmatmul.mubr.f32.gmra.mrb[0].mxu0 %v1374
  %v3470 = vpop.f32.mrb[0].mxu0
  %v3471 = vadd.f32 %v3086, %v3470
  %v3472 = vpop.f32.mrb[0].mxu0
  %3473 = vmatprep.mubr.f32.mxu0 0.0
  %3474 = vmatmul.mubr.f32.gmra.mrb[0].mxu0 %v1383
  %v3475 = vpop.f32.mrb[0].mxu0
  %v3476 = vadd.f32 %v3091, %v3475
  %v3477 = vpop.f32.mrb[0].mxu0
  %3478 = vmatprep.mubr.f32.mxu0 0.0
  %3479 = vmatmul.mubr.f32.gmra.mrb[0].mxu0 %v1392
  %v3480 = vpop.f32.mrb[0].mxu0
  %v3481 = vadd.f32 %v3096, %v3480
  %v3482 = vpop.f32.mrb[0].mxu0
  %3483 = vmatprep.mubr.f32.mxu0 0.0
  %3484 = vmatmul.mubr.f32.gmra.mrb[0].mxu0 %v1401
  %v3485 = vpop.f32.mrb[0].mxu0
  %v3486 = vadd.f32 %v3101, %v3485
  %v3487 = vpop.f32.mrb[0].mxu0
  %3488 = vmatprep.mubr.f32.mxu0 0.0
  %3489 = vmatmul.mubr.f32.gmra.mrb[0].mxu0 %v1410
  %v3490 = vpop.f32.mrb[0].mxu0
  %v3491 = vadd.f32 %v3106, %v3490
  %v3492 = vpop.f32.mrb[0].mxu0
  %3493 = vmatprep.mubr.f32.mxu0 0.0
  %3494 = vmatmul.mubr.f32.gmra.mrb[0].mxu0 %v1419
  %v3495 = vpop.f32.mrb[0].mxu0
  %v3496 = vadd.f32 %v3111, %v3495
  %v3497 = vpop.f32.mrb[0].mxu0
  %3498 = vmatprep.mubr.f32.mxu0 0.0
  %3499 = vmatmul.mubr.f32.gmra.mrb[0].mxu0 %v1428
  %v3500 = vpop.f32.mrb[0].mxu0
  %v3501 = vadd.f32 %v3116, %v3500
  %v3502 = vpop.f32.mrb[0].mxu0
  %3503 = vmatprep.mubr.f32.mxu0 0.0
  %3504 = vmatmul.mubr.f32.gmra.mrb[0].mxu0 %v1437
  %v3505 = vpop.f32.mrb[0].mxu0
  %v3506 = vadd.f32 %v3121, %v3505
  %v3507 = vpop.f32.mrb[0].mxu0
  %3508 = vmatprep.mubr.f32.mxu0 0.0
  %3509 = vmatmul.mubr.f32.gmra.mrb[0].mxu0 %v1446
  %v3510 = vpop.f32.mrb[0].mxu0
  %v3511 = vadd.f32 %v3126, %v3510
  %v3512 = vpop.f32.mrb[0].mxu0
  %3513 = vmatprep.mubr.f32.mxu0 0.0
  %3514 = vmatmul.mubr.f32.gmra.mrb[0].mxu0 %v1455
  %v3515 = vpop.f32.mrb[0].mxu0
  %v3516 = vadd.f32 %v3131, %v3515
  %v3517 = vpop.f32.mrb[0].mxu0
  %3518 = vmatprep.mubr.f32.mxu0 0.0
  %3519 = vmatmul.mubr.f32.gmra.mrb[0].mxu0 %v1464
  %v3520 = vpop.f32.mrb[0].mxu0
  %v3521 = vadd.f32 %v3136, %v3520
  %v3522 = vpop.f32.mrb[0].mxu0
  %3523 = vmatprep.mubr.f32.mxu0 0.0
  %3524 = vmatmul.mubr.f32.gmra.mrb[0].mxu0 %v1473
  %v3525 = vpop.f32.mrb[0].mxu0
  %v3526 = vadd.f32 %v3141, %v3525
  %v3527 = vpop.f32.mrb[0].mxu0
  %3528 = vmatprep.mubr.f32.mxu0 0.0
  %3529 = vmatmul.mubr.f32.gmra.mrb[0].mxu0 %v1482
  %v3530 = vpop.f32.mrb[0].mxu0
  %v3531 = vadd.f32 %v3146, %v3530
  %v3532 = vpop.f32.mrb[0].mxu0
  %3533 = vmatprep.mubr.f32.mxu0 0.0
  %3534 = vmatmul.mubr.f32.gmra.mrb[0].mxu0 %v1491
  %v3535 = vpop.f32.mrb[0].mxu0
  %v3536 = vadd.f32 %v3151, %v3535
  %v3537 = vpop.f32.mrb[0].mxu0
  %3538 = vmatprep.mubr.f32.mxu0 0.0
  %3539 = vmatmul.mubr.f32.gmra.mrb[0].mxu0 %v1500
  %v3540 = vpop.f32.mrb[0].mxu0
  %v3541 = vadd.f32 %v3156, %v3540
  %v3542 = vpop.f32.mrb[0].mxu0
  %3543 = vmatprep.mubr.f32.mxu0 0.0
  %3544 = vmatmul.mubr.f32.gmra.mrb[0].mxu0 %v1509
  %v3545 = vpop.f32.mrb[0].mxu0
  %v3546 = vadd.f32 %v3161, %v3545
  %v3547 = vpop.f32.mrb[0].mxu0
  %3548 = vmatprep.mubr.f32.mxu0 0.0
  %3549 = vmatmul.mubr.f32.gmra.mrb[0].mxu0 %v1518
  %v3550 = vpop.f32.mrb[0].mxu0
  %v3551 = vadd.f32 %v3166, %v3550
  %v3552 = vpop.f32.mrb[0].mxu0
  %3553 = vmatprep.mubr.f32.mxu0 0.0
  %3554 = vmatmul.mubr.f32.gmra.mrb[0].mxu0 %v1527
  %v3555 = vpop.f32.mrb[0].mxu0
  %v3556 = vadd.f32 %v3171, %v3555
  %v3557 = vpop.f32.mrb[0].mxu0
  %3558 = vmatprep.mubr.f32.mxu0 0.0
  %3559 = vmatmul.mubr.f32.gmra.mrb[0].mxu0 %v1536
  %v3560 = vpop.f32.mrb[0].mxu0
  %v3561 = vadd.f32 %v3176, %v3560
  %v3562 = vpop.f32.mrb[0].mxu0
  %3563 = vmatprep.mubr.f32.mxu0 0.0
  %3564 = vmatmul.mubr.f32.gmra.mrb[0].mxu0 %v1545
  %v3565 = vpop.f32.mrb[0].mxu0
  %v3566 = vadd.f32 %v3181, %v3565
  %v3567 = vpop.f32.mrb[0].mxu0
  %3568 = vmatprep.mubr.f32.mxu0 0.0
  %3569 = vmatmul.mubr.f32.gmra.mrb[0].mxu0 %v1554
  %v3570 = vpop.f32.mrb[0].mxu0
  %v3571 = vadd.f32 %v3186, %v3570
  %v3572 = vpop.f32.mrb[0].mxu0
  %3573 = vmatprep.mubr.f32.mxu0 0.0
  %3574 = vmatmul.mubr.f32.gmra.mrb[0].mxu0 %v1563
  %v3575 = vpop.f32.mrb[0].mxu0
  %v3576 = vadd.f32 %v3191, %v3575
  %v3577 = vpop.f32.mrb[0].mxu0
  %3578 = vmatprep.mubr.f32.mxu0 0.0
  %3579 = vmatmul.mubr.f32.gmra.mrb[0].mxu0 %v1572
  %v3580 = vpop.f32.mrb[0].mxu0
  %v3581 = vadd.f32 %v3196, %v3580
  %v3582 = vpop.f32.mrb[0].mxu0
  %3583 = vmatprep.mubr.f32.mxu0 0.0
  %3584 = vmatmul.mubr.f32.gmra.mrb[0].mxu0 %v1581
  %v3585 = vpop.f32.mrb[0].mxu0
  %v3586 = vadd.f32 %v3201, %v3585
  %v3587 = vpop.f32.mrb[0].mxu0
  %3588 = vmatprep.mubr.f32.mxu0 0.0
  %3589 = vmatmul.mubr.f32.gmra.mrb[0].mxu0 %v1590
  %v3590 = vpop.f32.mrb[0].mxu0
  %v3591 = vadd.f32 %v3206, %v3590
  %v3592 = vpop.f32.mrb[0].mxu0
  %3593 = vmatprep.mubr.f32.mxu0 0.0
  %3594 = vmatmul.mubr.f32.gmra.mrb[0].mxu0 %v1599
  %v3595 = vpop.f32.mrb[0].mxu0
  %v3596 = vadd.f32 %v3211, %v3595
  %v3597 = vpop.f32.mrb[0].mxu0
  %3598 = vmatprep.mubr.f32.mxu0 0.0
  %3599 = vmatmul.mubr.f32.gmra.mrb[0].mxu0 %v1608
  %v3600 = vpop.f32.mrb[0].mxu0
  %v3601 = vadd.f32 %v3216, %v3600
  %v3602 = vpop.f32.mrb[0].mxu0
  %3603 = vmatprep.mubr.f32.mxu0 0.0
  %3604 = vmatmul.mubr.f32.gmra.mrb[0].mxu0 %v1617
  %v3605 = vpop.f32.mrb[0].mxu0
  %v3606 = vadd.f32 %v3221, %v3605
  %v3607 = vpop.f32.mrb[0].mxu0
  %3608 = vmatprep.mubr.f32.mxu0 0.0
  %3609 = vmatmul.mubr.f32.gmra.mrb[0].mxu0 %v1626
  %v3610 = vpop.f32.mrb[0].mxu0
  %v3611 = vadd.f32 %v3226, %v3610
  %v3612 = vpop.f32.mrb[0].mxu0
  %3613 = vmatprep.mubr.f32.mxu0 0.0
  %3614 = vmatmul.mubr.f32.gmra.mrb[0].mxu0 %v1635
  %v3615 = vpop.f32.mrb[0].mxu0
  %v3616 = vadd.f32 %v3231, %v3615
  %v3617 = vpop.f32.mrb[0].mxu0
  %3618 = vmatprep.mubr.f32.mxu0 0.0
  %3619 = vmatmul.mubr.f32.gmra.mrb[0].mxu0 %v1644
  %v3620 = vpop.f32.mrb[0].mxu0
  %v3621 = vadd.f32 %v3236, %v3620
  %v3622 = vpop.f32.mrb[0].mxu0
  %3623 = vmatprep.mubr.f32.mxu0 0.0
  %3624 = vmatmul.mubr.f32.gmra.mrb[0].mxu0 %v1653
  %v3625 = vpop.f32.mrb[0].mxu0
  %v3626 = vadd.f32 %v3241, %v3625
  %v3627 = vpop.f32.mrb[0].mxu0
  %3628 = vmatprep.mubr.f32.mxu0 0.0
  %3629 = vmatmul.mubr.f32.gmra.mrb[0].mxu0 %v1662
  %v3630 = vpop.f32.mrb[0].mxu0
  %v3631 = vadd.f32 %v3246, %v3630
  %v3632 = vpop.f32.mrb[0].mxu0
  %3633 = vmatprep.mubr.f32.mxu0 0.0
  %3634 = vmatmul.mubr.f32.gmra.mrb[0].mxu0 %v1671
  %v3635 = vpop.f32.mrb[0].mxu0
  %v3636 = vadd.f32 %v3251, %v3635
  %v3637 = vpop.f32.mrb[0].mxu0
  %3638 = vmatprep.mubr.f32.mxu0 0.0
  %3639 = vmatmul.mubr.f32.gmra.mrb[0].mxu0 %v1680
  %v3640 = vpop.f32.mrb[0].mxu0
  %v3641 = vadd.f32 %v3256, %v3640
  %v3642 = vpop.f32.mrb[0].mxu0
  %3643 = vmatprep.mubr.f32.mxu0 0.0
  %3644 = vmatmul.mubr.f32.gmra.mrb[0].mxu0 %v1689
  %v3645 = vpop.f32.mrb[0].mxu0
  %v3646 = vadd.f32 %v3261, %v3645
  %v3647 = vpop.f32.mrb[0].mxu0
  %3648 = vmatprep.mubr.f32.mxu0 0.0
  %3649 = vmatmul.mubr.f32.gmra.mrb[0].mxu0 %v1698
  %v3650 = vpop.f32.mrb[0].mxu0
  %v3651 = vadd.f32 %v3266, %v3650
  %v3652 = vpop.f32.mrb[0].mxu0
  %3653 = vmatprep.mubr.f32.mxu0 0.0
  %3654 = vmatmul.mubr.f32.gmra.mrb[0].mxu0 %v1707
  %v3655 = vpop.f32.mrb[0].mxu0
  %v3656 = vadd.f32 %v3271, %v3655
  %v3657 = vpop.f32.mrb[0].mxu0
  %3658 = vmatprep.mubr.f32.mxu0 0.0
  %3659 = vmatmul.mubr.f32.gmra.mrb[0].mxu0 %v1716
  %v3660 = vpop.f32.mrb[0].mxu0
  %v3661 = vadd.f32 %v3276, %v3660
  %v3662 = vpop.f32.mrb[0].mxu0
  %3663 = vmatprep.mubr.f32.mxu0 0.0
  %3664 = vmatmul.mubr.f32.gmra.mrb[0].mxu0 %v1725
  %v3665 = vpop.f32.mrb[0].mxu0
  %v3666 = vadd.f32 %v3281, %v3665
  %v3667 = vpop.f32.mrb[0].mxu0
  %3668 = vmatprep.mubr.f32.mxu0 0.0
  %3669 = vmatmul.mubr.f32.gmra.mrb[0].mxu0 %v1734
  %v3670 = vpop.f32.mrb[0].mxu0
  %v3671 = vadd.f32 %v3286, %v3670
  %v3672 = vpop.f32.mrb[0].mxu0
  %3673 = vmatprep.mubr.f32.mxu0 0.0
  %3674 = vmatmul.mubr.f32.gmra.mrb[0].mxu0 %v1743
  %v3675 = vpop.f32.mrb[0].mxu0
  %v3676 = vadd.f32 %v3291, %v3675
  %v3677 = vpop.f32.mrb[0].mxu0
  %3678 = vmatprep.mubr.f32.mxu0 0.0
  %3679 = vmatmul.mubr.f32.gmra.mrb[0].mxu0 %v1752
  %v3680 = vpop.f32.mrb[0].mxu0
  %v3681 = vadd.f32 %v3296, %v3680
  %v3682 = vpop.f32.mrb[0].mxu0
  %3683 = vdwg.mxu0
  %v3684 = vadd.f32 %v3366, %v3371
  %v3685 = vadd.f32 %v3684, %v3376
  %v3686 = vadd.f32 %v3685, %v3381
  %v3687 = vadd.f32 %v3686, %v3386
  %v3688 = vadd.f32 %v3687, %v3391
  %v3689 = vadd.f32 %v3688, %v3396
  %v3690 = vadd.f32 %v3689, %v3401
  %v3691 = vadd.f32 %v3690, %v3406
  %v3692 = vadd.f32 %v3691, %v3411
  %v3693 = vadd.f32 %v3692, %v3416
  %v3694 = vadd.f32 %v3693, %v3421
  %v3695 = vadd.f32 %v3694, %v3426
  %v3696 = vadd.f32 %v3695, %v3431
  %v3697 = vadd.f32 %v3696, %v3436
  %v3698 = vadd.f32 %v3697, %v3441
  %v3699 = vadd.f32 %v3698, %v3446
  %v3700 = vadd.f32 %v3699, %v3451
  %v3701 = vadd.f32 %v3700, %v3456
  %v3702 = vadd.f32 %v3701, %v3461
  %v3703 = vadd.f32 %v3702, %v3466
  %v3704 = vadd.f32 %v3703, %v3471
  %v3705 = vadd.f32 %v3704, %v3476
  %v3706 = vadd.f32 %v3705, %v3481
  %v3707 = vadd.f32 %v3706, %v3486
  %v3708 = vadd.f32 %v3707, %v3491
  %v3709 = vadd.f32 %v3708, %v3496
  %v3710 = vadd.f32 %v3709, %v3501
  %v3711 = vadd.f32 %v3710, %v3506
  %v3712 = vadd.f32 %v3711, %v3511
  %v3713 = vadd.f32 %v3712, %v3516
  %v3714 = vadd.f32 %v3713, %v3521
  %v3715 = vadd.f32 %v3714, %v3526
  %v3716 = vadd.f32 %v3715, %v3531
  %v3717 = vadd.f32 %v3716, %v3536
  %v3718 = vadd.f32 %v3717, %v3541
  %v3719 = vadd.f32 %v3718, %v3546
  %v3720 = vadd.f32 %v3719, %v3551
  %v3721 = vadd.f32 %v3720, %v3556
  %v3722 = vadd.f32 %v3721, %v3561
  %v3723 = vadd.f32 %v3722, %v3566
  %v3724 = vadd.f32 %v3723, %v3571
  %v3725 = vadd.f32 %v3724, %v3576
  %v3726 = vadd.f32 %v3725, %v3581
  %v3727 = vadd.f32 %v3726, %v3586
  %v3728 = vadd.f32 %v3727, %v3591
  %v3729 = vadd.f32 %v3728, %v3596
  %v3730 = vadd.f32 %v3729, %v3601
  %v3731 = vadd.f32 %v3730, %v3606
  %v3732 = vadd.f32 %v3731, %v3611
  %v3733 = vadd.f32 %v3732, %v3616
  %v3734 = vadd.f32 %v3733, %v3621
  %v3735 = vadd.f32 %v3734, %v3626
  %v3736 = vadd.f32 %v3735, %v3631
  %v3737 = vadd.f32 %v3736, %v3636
  %v3738 = vadd.f32 %v3737, %v3641
  %v3739 = vadd.f32 %v3738, %v3646
  %v3740 = vadd.f32 %v3739, %v3651
  %v3741 = vadd.f32 %v3740, %v3656
  %v3742 = vadd.f32 %v3741, %v3661
  %v3743 = vadd.f32 %v3742, %v3666
  %v3744 = vadd.f32 %v3743, %v3671
  %v3745 = vadd.f32 %v3744, %v3676
  %v3746 = vadd.f32 %v3745, %v3681
  %v3747 = vrot.slane %v3746, 4
  %v3748 = vadd.f32 %v3746, %v3747
  %v3749 = vrot.slane %v3748, 2
  %v3750 = vadd.f32 %v3748, %v3749
  %v3751 = vrot.slane %v3750, 1
  %v3752 = vadd.f32 %v3750, %v3751
  %v3753 = vrcp.pop 512.0
  %v3754 = vmul.f32 %v3752, %v3753
  %v3755 = vsub.f32 %v3366, %v3754
  %v3756 = vsub.f32 %v3371, %v3754
  %v3757 = vsub.f32 %v3376, %v3754
  %v3758 = vsub.f32 %v3381, %v3754
  %v3759 = vsub.f32 %v3386, %v3754
  %v3760 = vsub.f32 %v3391, %v3754
  %v3761 = vsub.f32 %v3396, %v3754
  %v3762 = vsub.f32 %v3401, %v3754
  %v3763 = vsub.f32 %v3406, %v3754
  %v3764 = vsub.f32 %v3411, %v3754
  %v3765 = vsub.f32 %v3416, %v3754
  %v3766 = vsub.f32 %v3421, %v3754
  %v3767 = vsub.f32 %v3426, %v3754
  %v3768 = vsub.f32 %v3431, %v3754
  %v3769 = vsub.f32 %v3436, %v3754
  %v3770 = vsub.f32 %v3441, %v3754
  %v3771 = vsub.f32 %v3446, %v3754
  %v3772 = vsub.f32 %v3451, %v3754
  %v3773 = vsub.f32 %v3456, %v3754
  %v3774 = vsub.f32 %v3461, %v3754
  %v3775 = vsub.f32 %v3466, %v3754
  %v3776 = vsub.f32 %v3471, %v3754
  %v3777 = vsub.f32 %v3476, %v3754
  %v3778 = vsub.f32 %v3481, %v3754
  %v3779 = vsub.f32 %v3486, %v3754
  %v3780 = vsub.f32 %v3491, %v3754
  %v3781 = vsub.f32 %v3496, %v3754
  %v3782 = vsub.f32 %v3501, %v3754
  %v3783 = vsub.f32 %v3506, %v3754
  %v3784 = vsub.f32 %v3511, %v3754
  %v3785 = vsub.f32 %v3516, %v3754
  %v3786 = vsub.f32 %v3521, %v3754
  %v3787 = vsub.f32 %v3526, %v3754
  %v3788 = vsub.f32 %v3531, %v3754
  %v3789 = vsub.f32 %v3536, %v3754
  %v3790 = vsub.f32 %v3541, %v3754
  %v3791 = vsub.f32 %v3546, %v3754
  %v3792 = vsub.f32 %v3551, %v3754
  %v3793 = vsub.f32 %v3556, %v3754
  %v3794 = vsub.f32 %v3561, %v3754
  %v3795 = vsub.f32 %v3566, %v3754
  %v3796 = vsub.f32 %v3571, %v3754
  %v3797 = vsub.f32 %v3576, %v3754
  %v3798 = vsub.f32 %v3581, %v3754
  %v3799 = vsub.f32 %v3586, %v3754
  %v3800 = vsub.f32 %v3591, %v3754
  %v3801 = vsub.f32 %v3596, %v3754
  %v3802 = vsub.f32 %v3601, %v3754
  %v3803 = vsub.f32 %v3606, %v3754
  %v3804 = vsub.f32 %v3611, %v3754
  %v3805 = vsub.f32 %v3616, %v3754
  %v3806 = vsub.f32 %v3621, %v3754
  %v3807 = vsub.f32 %v3626, %v3754
  %v3808 = vsub.f32 %v3631, %v3754
  %v3809 = vsub.f32 %v3636, %v3754
  %v3810 = vsub.f32 %v3641, %v3754
  %v3811 = vsub.f32 %v3646, %v3754
  %v3812 = vsub.f32 %v3651, %v3754
  %v3813 = vsub.f32 %v3656, %v3754
  %v3814 = vsub.f32 %v3661, %v3754
  %v3815 = vsub.f32 %v3666, %v3754
  %v3816 = vsub.f32 %v3671, %v3754
  %v3817 = vsub.f32 %v3676, %v3754
  %v3818 = vsub.f32 %v3681, %v3754
  %v3819 = vmul.f32 %v3755, %v3755
  %v3820 = vmul.f32 %v3756, %v3756
  %v3821 = vmul.f32 %v3757, %v3757
  %v3822 = vmul.f32 %v3758, %v3758
  %v3823 = vmul.f32 %v3759, %v3759
  %v3824 = vmul.f32 %v3760, %v3760
  %v3825 = vmul.f32 %v3761, %v3761
  %v3826 = vmul.f32 %v3762, %v3762
  %v3827 = vmul.f32 %v3763, %v3763
  %v3828 = vmul.f32 %v3764, %v3764
  %v3829 = vmul.f32 %v3765, %v3765
  %v3830 = vmul.f32 %v3766, %v3766
  %v3831 = vmul.f32 %v3767, %v3767
  %v3832 = vmul.f32 %v3768, %v3768
  %v3833 = vmul.f32 %v3769, %v3769
  %v3834 = vmul.f32 %v3770, %v3770
  %v3835 = vmul.f32 %v3771, %v3771
  %v3836 = vmul.f32 %v3772, %v3772
  %v3837 = vmul.f32 %v3773, %v3773
  %v3838 = vmul.f32 %v3774, %v3774
  %v3839 = vmul.f32 %v3775, %v3775
  %v3840 = vmul.f32 %v3776, %v3776
  %v3841 = vmul.f32 %v3777, %v3777
  %v3842 = vmul.f32 %v3778, %v3778
  %v3843 = vmul.f32 %v3779, %v3779
  %v3844 = vmul.f32 %v3780, %v3780
  %v3845 = vmul.f32 %v3781, %v3781
  %v3846 = vmul.f32 %v3782, %v3782
  %v3847 = vmul.f32 %v3783, %v3783
  %v3848 = vmul.f32 %v3784, %v3784
  %v3849 = vmul.f32 %v3785, %v3785
  %v3850 = vmul.f32 %v3786, %v3786
  %v3851 = vmul.f32 %v3787, %v3787
  %v3852 = vmul.f32 %v3788, %v3788
  %v3853 = vmul.f32 %v3789, %v3789
  %v3854 = vmul.f32 %v3790, %v3790
  %v3855 = vmul.f32 %v3791, %v3791
  %v3856 = vmul.f32 %v3792, %v3792
  %v3857 = vmul.f32 %v3793, %v3793
  %v3858 = vmul.f32 %v3794, %v3794
  %v3859 = vmul.f32 %v3795, %v3795
  %v3860 = vmul.f32 %v3796, %v3796
  %v3861 = vmul.f32 %v3797, %v3797
  %v3862 = vmul.f32 %v3798, %v3798
  %v3863 = vmul.f32 %v3799, %v3799
  %v3864 = vmul.f32 %v3800, %v3800
  %v3865 = vmul.f32 %v3801, %v3801
  %v3866 = vmul.f32 %v3802, %v3802
  %v3867 = vmul.f32 %v3803, %v3803
  %v3868 = vmul.f32 %v3804, %v3804
  %v3869 = vmul.f32 %v3805, %v3805
  %v3870 = vmul.f32 %v3806, %v3806
  %v3871 = vmul.f32 %v3807, %v3807
  %v3872 = vmul.f32 %v3808, %v3808
  %v3873 = vmul.f32 %v3809, %v3809
  %v3874 = vmul.f32 %v3810, %v3810
  %v3875 = vmul.f32 %v3811, %v3811
  %v3876 = vmul.f32 %v3812, %v3812
  %v3877 = vmul.f32 %v3813, %v3813
  %v3878 = vmul.f32 %v3814, %v3814
  %v3879 = vmul.f32 %v3815, %v3815
  %v3880 = vmul.f32 %v3816, %v3816
  %v3881 = vmul.f32 %v3817, %v3817
  %v3882 = vmul.f32 %v3818, %v3818
  %v3883 = vadd.f32 %v3819, %v3820
  %v3884 = vadd.f32 %v3883, %v3821
  %v3885 = vadd.f32 %v3884, %v3822
  %v3886 = vadd.f32 %v3885, %v3823
  %v3887 = vadd.f32 %v3886, %v3824
  %v3888 = vadd.f32 %v3887, %v3825
  %v3889 = vadd.f32 %v3888, %v3826
  %v3890 = vadd.f32 %v3889, %v3827
  %v3891 = vadd.f32 %v3890, %v3828
  %v3892 = vadd.f32 %v3891, %v3829
  %v3893 = vadd.f32 %v3892, %v3830
  %v3894 = vadd.f32 %v3893, %v3831
  %v3895 = vadd.f32 %v3894, %v3832
  %v3896 = vadd.f32 %v3895, %v3833
  %v3897 = vadd.f32 %v3896, %v3834
  %v3898 = vadd.f32 %v3897, %v3835
  %v3899 = vadd.f32 %v3898, %v3836
  %v3900 = vadd.f32 %v3899, %v3837
  %v3901 = vadd.f32 %v3900, %v3838
  %v3902 = vadd.f32 %v3901, %v3839
  %v3903 = vadd.f32 %v3902, %v3840
  %v3904 = vadd.f32 %v3903, %v3841
  %v3905 = vadd.f32 %v3904, %v3842
  %v3906 = vadd.f32 %v3905, %v3843
  %v3907 = vadd.f32 %v3906, %v3844
  %v3908 = vadd.f32 %v3907, %v3845
  %v3909 = vadd.f32 %v3908, %v3846
  %v3910 = vadd.f32 %v3909, %v3847
  %v3911 = vadd.f32 %v3910, %v3848
  %v3912 = vadd.f32 %v3911, %v3849
  %v3913 = vadd.f32 %v3912, %v3850
  %v3914 = vadd.f32 %v3913, %v3851
  %v3915 = vadd.f32 %v3914, %v3852
  %v3916 = vadd.f32 %v3915, %v3853
  %v3917 = vadd.f32 %v3916, %v3854
  %v3918 = vadd.f32 %v3917, %v3855
  %v3919 = vadd.f32 %v3918, %v3856
  %v3920 = vadd.f32 %v3919, %v3857
  %v3921 = vadd.f32 %v3920, %v3858
  %v3922 = vadd.f32 %v3921, %v3859
  %v3923 = vadd.f32 %v3922, %v3860
  %v3924 = vadd.f32 %v3923, %v3861
  %v3925 = vadd.f32 %v3924, %v3862
  %v3926 = vadd.f32 %v3925, %v3863
  %v3927 = vadd.f32 %v3926, %v3864
  %v3928 = vadd.f32 %v3927, %v3865
  %v3929 = vadd.f32 %v3928, %v3866
  %v3930 = vadd.f32 %v3929, %v3867
  %v3931 = vadd.f32 %v3930, %v3868
  %v3932 = vadd.f32 %v3931, %v3869
  %v3933 = vadd.f32 %v3932, %v3870
  %v3934 = vadd.f32 %v3933, %v3871
  %v3935 = vadd.f32 %v3934, %v3872
  %v3936 = vadd.f32 %v3935, %v3873
  %v3937 = vadd.f32 %v3936, %v3874
  %v3938 = vadd.f32 %v3937, %v3875
  %v3939 = vadd.f32 %v3938, %v3876
  %v3940 = vadd.f32 %v3939, %v3877
  %v3941 = vadd.f32 %v3940, %v3878
  %v3942 = vadd.f32 %v3941, %v3879
  %v3943 = vadd.f32 %v3942, %v3880
  %v3944 = vadd.f32 %v3943, %v3881
  %v3945 = vadd.f32 %v3944, %v3882
  %v3946 = vrot.slane %v3945, 4
  %v3947 = vadd.f32 %v3945, %v3946
  %v3948 = vrot.slane %v3947, 2
  %v3949 = vadd.f32 %v3947, %v3948
  %v3950 = vrot.slane %v3949, 1
  %v3951 = vadd.f32 %v3949, %v3950
  %v3952 = vmul.f32 %v3951, %v3753
  %v3953 = vadd.f32 %v3952, 1e-05
  %v3954 = vrsqrt.pop %v3953
  %v3955 = vmul.f32 %v3755, %v3954
  %v3956 = vmul.f32 %v3756, %v3954
  %v3957 = vmul.f32 %v3757, %v3954
  %v3958 = vmul.f32 %v3758, %v3954
  %v3959 = vmul.f32 %v3759, %v3954
  %v3960 = vmul.f32 %v3760, %v3954
  %v3961 = vmul.f32 %v3761, %v3954
  %v3962 = vmul.f32 %v3762, %v3954
  %v3963 = vmul.f32 %v3763, %v3954
  %v3964 = vmul.f32 %v3764, %v3954
  %v3965 = vmul.f32 %v3765, %v3954
  %v3966 = vmul.f32 %v3766, %v3954
  %v3967 = vmul.f32 %v3767, %v3954
  %v3968 = vmul.f32 %v3768, %v3954
  %v3969 = vmul.f32 %v3769, %v3954
  %v3970 = vmul.f32 %v3770, %v3954
  %v3971 = vmul.f32 %v3771, %v3954
  %v3972 = vmul.f32 %v3772, %v3954
  %v3973 = vmul.f32 %v3773, %v3954
  %v3974 = vmul.f32 %v3774, %v3954
  %v3975 = vmul.f32 %v3775, %v3954
  %v3976 = vmul.f32 %v3776, %v3954
  %v3977 = vmul.f32 %v3777, %v3954
  %v3978 = vmul.f32 %v3778, %v3954
  %v3979 = vmul.f32 %v3779, %v3954
  %v3980 = vmul.f32 %v3780, %v3954
  %v3981 = vmul.f32 %v3781, %v3954
  %v3982 = vmul.f32 %v3782, %v3954
  %v3983 = vmul.f32 %v3783, %v3954
  %v3984 = vmul.f32 %v3784, %v3954
  %v3985 = vmul.f32 %v3785, %v3954
  %v3986 = vmul.f32 %v3786, %v3954
  %v3987 = vmul.f32 %v3787, %v3954
  %v3988 = vmul.f32 %v3788, %v3954
  %v3989 = vmul.f32 %v3789, %v3954
  %v3990 = vmul.f32 %v3790, %v3954
  %v3991 = vmul.f32 %v3791, %v3954
  %v3992 = vmul.f32 %v3792, %v3954
  %v3993 = vmul.f32 %v3793, %v3954
  %v3994 = vmul.f32 %v3794, %v3954
  %v3995 = vmul.f32 %v3795, %v3954
  %v3996 = vmul.f32 %v3796, %v3954
  %v3997 = vmul.f32 %v3797, %v3954
  %v3998 = vmul.f32 %v3798, %v3954
  %v3999 = vmul.f32 %v3799, %v3954
  %v4000 = vmul.f32 %v3800, %v3954
  %v4001 = vmul.f32 %v3801, %v3954
  %v4002 = vmul.f32 %v3802, %v3954
  %v4003 = vmul.f32 %v3803, %v3954
  %v4004 = vmul.f32 %v3804, %v3954
  %v4005 = vmul.f32 %v3805, %v3954
  %v4006 = vmul.f32 %v3806, %v3954
  %v4007 = vmul.f32 %v3807, %v3954
  %v4008 = vmul.f32 %v3808, %v3954
  %v4009 = vmul.f32 %v3809, %v3954
  %v4010 = vmul.f32 %v3810, %v3954
  %v4011 = vmul.f32 %v3811, %v3954
  %v4012 = vmul.f32 %v3812, %v3954
  %v4013 = vmul.f32 %v3813, %v3954
  %v4014 = vmul.f32 %v3814, %v3954
  %v4015 = vmul.f32 %v3815, %v3954
  %v4016 = vmul.f32 %v3816, %v3954
  %v4017 = vmul.f32 %v3817, %v3954
  %v4018 = vmul.f32 %v3818, %v3954
  %v4020 = vlaneseq
  %v4021 = vshrl.u32 %v4020, 7
  %v4022 = vsub.s32 0, %v4021
  %v4023 = vrot.slane %v383, %v4022
  %v4025 = vmul.f32 %v3955, %v4023
  %v4026 = vmul.f32 %v3956, %v4023
  %v4027 = vmul.f32 %v3957, %v4023
  %v4028 = vmul.f32 %v3958, %v4023
  %v4029 = vmul.f32 %v3959, %v4023
  %v4030 = vmul.f32 %v3960, %v4023
  %v4031 = vmul.f32 %v3961, %v4023
  %v4032 = vmul.f32 %v3962, %v4023
  %v4033 = vmul.f32 %v3963, %v4023
  %v4034 = vmul.f32 %v3964, %v4023
  %v4035 = vmul.f32 %v3965, %v4023
  %v4036 = vmul.f32 %v3966, %v4023
  %v4037 = vmul.f32 %v3967, %v4023
  %v4038 = vmul.f32 %v3968, %v4023
  %v4039 = vmul.f32 %v3969, %v4023
  %v4040 = vmul.f32 %v3970, %v4023
  %v4041 = vmul.f32 %v3971, %v4023
  %v4042 = vmul.f32 %v3972, %v4023
  %v4043 = vmul.f32 %v3973, %v4023
  %v4044 = vmul.f32 %v3974, %v4023
  %v4045 = vmul.f32 %v3975, %v4023
  %v4046 = vmul.f32 %v3976, %v4023
  %v4047 = vmul.f32 %v3977, %v4023
  %v4048 = vmul.f32 %v3978, %v4023
  %v4049 = vmul.f32 %v3979, %v4023
  %v4050 = vmul.f32 %v3980, %v4023
  %v4051 = vmul.f32 %v3981, %v4023
  %v4052 = vmul.f32 %v3982, %v4023
  %v4053 = vmul.f32 %v3983, %v4023
  %v4054 = vmul.f32 %v3984, %v4023
  %v4055 = vmul.f32 %v3985, %v4023
  %v4056 = vmul.f32 %v3986, %v4023
  %v4057 = vmul.f32 %v3987, %v4023
  %v4058 = vmul.f32 %v3988, %v4023
  %v4059 = vmul.f32 %v3989, %v4023
  %v4060 = vmul.f32 %v3990, %v4023
  %v4061 = vmul.f32 %v3991, %v4023
  %v4062 = vmul.f32 %v3992, %v4023
  %v4063 = vmul.f32 %v3993, %v4023
  %v4064 = vmul.f32 %v3994, %v4023
  %v4065 = vmul.f32 %v3995, %v4023
  %v4066 = vmul.f32 %v3996, %v4023
  %v4067 = vmul.f32 %v3997, %v4023
  %v4068 = vmul.f32 %v3998, %v4023
  %v4069 = vmul.f32 %v3999, %v4023
  %v4070 = vmul.f32 %v4000, %v4023
  %v4071 = vmul.f32 %v4001, %v4023
  %v4072 = vmul.f32 %v4002, %v4023
  %v4073 = vmul.f32 %v4003, %v4023
  %v4074 = vmul.f32 %v4004, %v4023
  %v4075 = vmul.f32 %v4005, %v4023
  %v4076 = vmul.f32 %v4006, %v4023
  %v4077 = vmul.f32 %v4007, %v4023
  %v4078 = vmul.f32 %v4008, %v4023
  %v4079 = vmul.f32 %v4009, %v4023
  %v4080 = vmul.f32 %v4010, %v4023
  %v4081 = vmul.f32 %v4011, %v4023
  %v4082 = vmul.f32 %v4012, %v4023
  %v4083 = vmul.f32 %v4013, %v4023
  %v4084 = vmul.f32 %v4014, %v4023
  %v4085 = vmul.f32 %v4015, %v4023
  %v4086 = vmul.f32 %v4016, %v4023
  %v4087 = vmul.f32 %v4017, %v4023
  %v4088 = vmul.f32 %v4018, %v4023
  %v4090 = vlaneseq
  %v4091 = vshrl.u32 %v4090, 7
  %v4092 = vsub.s32 0, %v4091
  %v4093 = vrot.slane %v384, %v4092
  %v4095 = vadd.f32 %v4025, %v4093
  %v4096 = vadd.f32 %v4026, %v4093
  %v4097 = vadd.f32 %v4027, %v4093
  %v4098 = vadd.f32 %v4028, %v4093
  %v4099 = vadd.f32 %v4029, %v4093
  %v4100 = vadd.f32 %v4030, %v4093
  %v4101 = vadd.f32 %v4031, %v4093
  %v4102 = vadd.f32 %v4032, %v4093
  %v4103 = vadd.f32 %v4033, %v4093
  %v4104 = vadd.f32 %v4034, %v4093
  %v4105 = vadd.f32 %v4035, %v4093
  %v4106 = vadd.f32 %v4036, %v4093
  %v4107 = vadd.f32 %v4037, %v4093
  %v4108 = vadd.f32 %v4038, %v4093
  %v4109 = vadd.f32 %v4039, %v4093
  %v4110 = vadd.f32 %v4040, %v4093
  %v4111 = vadd.f32 %v4041, %v4093
  %v4112 = vadd.f32 %v4042, %v4093
  %v4113 = vadd.f32 %v4043, %v4093
  %v4114 = vadd.f32 %v4044, %v4093
  %v4115 = vadd.f32 %v4045, %v4093
  %v4116 = vadd.f32 %v4046, %v4093
  %v4117 = vadd.f32 %v4047, %v4093
  %v4118 = vadd.f32 %v4048, %v4093
  %v4119 = vadd.f32 %v4049, %v4093
  %v4120 = vadd.f32 %v4050, %v4093
  %v4121 = vadd.f32 %v4051, %v4093
  %v4122 = vadd.f32 %v4052, %v4093
  %v4123 = vadd.f32 %v4053, %v4093
  %v4124 = vadd.f32 %v4054, %v4093
  %v4125 = vadd.f32 %v4055, %v4093
  %v4126 = vadd.f32 %v4056, %v4093
  %v4127 = vadd.f32 %v4057, %v4093
  %v4128 = vadd.f32 %v4058, %v4093
  %v4129 = vadd.f32 %v4059, %v4093
  %v4130 = vadd.f32 %v4060, %v4093
  %v4131 = vadd.f32 %v4061, %v4093
  %v4132 = vadd.f32 %v4062, %v4093
  %v4133 = vadd.f32 %v4063, %v4093
  %v4134 = vadd.f32 %v4064, %v4093
  %v4135 = vadd.f32 %v4065, %v4093
  %v4136 = vadd.f32 %v4066, %v4093
  %v4137 = vadd.f32 %v4067, %v4093
  %v4138 = vadd.f32 %v4068, %v4093
  %v4139 = vadd.f32 %v4069, %v4093
  %v4140 = vadd.f32 %v4070, %v4093
  %v4141 = vadd.f32 %v4071, %v4093
  %v4142 = vadd.f32 %v4072, %v4093
  %v4143 = vadd.f32 %v4073, %v4093
  %v4144 = vadd.f32 %v4074, %v4093
  %v4145 = vadd.f32 %v4075, %v4093
  %v4146 = vadd.f32 %v4076, %v4093
  %v4147 = vadd.f32 %v4077, %v4093
  %v4148 = vadd.f32 %v4078, %v4093
  %v4149 = vadd.f32 %v4079, %v4093
  %v4150 = vadd.f32 %v4080, %v4093
  %v4151 = vadd.f32 %v4081, %v4093
  %v4152 = vadd.f32 %v4082, %v4093
  %v4153 = vadd.f32 %v4083, %v4093
  %v4154 = vadd.f32 %v4084, %v4093
  %v4155 = vadd.f32 %v4085, %v4093
  %v4156 = vadd.f32 %v4086, %v4093
  %v4157 = vadd.f32 %v4087, %v4093
  %v4158 = vadd.f32 %v4088, %v4093
  %v4159 = vmax.f32 %v4095, 0.0
  %v4160 = vmax.f32 %v4096, 0.0
  %v4161 = vmax.f32 %v4097, 0.0
  %v4162 = vmax.f32 %v4098, 0.0
  %v4163 = vmax.f32 %v4099, 0.0
  %v4164 = vmax.f32 %v4100, 0.0
  %v4165 = vmax.f32 %v4101, 0.0
  %v4166 = vmax.f32 %v4102, 0.0
  %v4167 = vmax.f32 %v4103, 0.0
  %v4168 = vmax.f32 %v4104, 0.0
  %v4169 = vmax.f32 %v4105, 0.0
  %v4170 = vmax.f32 %v4106, 0.0
  %v4171 = vmax.f32 %v4107, 0.0
  %v4172 = vmax.f32 %v4108, 0.0
  %v4173 = vmax.f32 %v4109, 0.0
  %v4174 = vmax.f32 %v4110, 0.0
  %v4175 = vmax.f32 %v4111, 0.0
  %v4176 = vmax.f32 %v4112, 0.0
  %v4177 = vmax.f32 %v4113, 0.0
  %v4178 = vmax.f32 %v4114, 0.0
  %v4179 = vmax.f32 %v4115, 0.0
  %v4180 = vmax.f32 %v4116, 0.0
  %v4181 = vmax.f32 %v4117, 0.0
  %v4182 = vmax.f32 %v4118, 0.0
  %v4183 = vmax.f32 %v4119, 0.0
  %v4184 = vmax.f32 %v4120, 0.0
  %v4185 = vmax.f32 %v4121, 0.0
  %v4186 = vmax.f32 %v4122, 0.0
  %v4187 = vmax.f32 %v4123, 0.0
  %v4188 = vmax.f32 %v4124, 0.0
  %v4189 = vmax.f32 %v4125, 0.0
  %v4190 = vmax.f32 %v4126, 0.0
  %v4191 = vmax.f32 %v4127, 0.0
  %v4192 = vmax.f32 %v4128, 0.0
  %v4193 = vmax.f32 %v4129, 0.0
  %v4194 = vmax.f32 %v4130, 0.0
  %v4195 = vmax.f32 %v4131, 0.0
  %v4196 = vmax.f32 %v4132, 0.0
  %v4197 = vmax.f32 %v4133, 0.0
  %v4198 = vmax.f32 %v4134, 0.0
  %v4199 = vmax.f32 %v4135, 0.0
  %v4200 = vmax.f32 %v4136, 0.0
  %v4201 = vmax.f32 %v4137, 0.0
  %v4202 = vmax.f32 %v4138, 0.0
  %v4203 = vmax.f32 %v4139, 0.0
  %v4204 = vmax.f32 %v4140, 0.0
  %v4205 = vmax.f32 %v4141, 0.0
  %v4206 = vmax.f32 %v4142, 0.0
  %v4207 = vmax.f32 %v4143, 0.0
  %v4208 = vmax.f32 %v4144, 0.0
  %v4209 = vmax.f32 %v4145, 0.0
  %v4210 = vmax.f32 %v4146, 0.0
  %v4211 = vmax.f32 %v4147, 0.0
  %v4212 = vmax.f32 %v4148, 0.0
  %v4213 = vmax.f32 %v4149, 0.0
  %v4214 = vmax.f32 %v4150, 0.0
  %v4215 = vmax.f32 %v4151, 0.0
  %v4216 = vmax.f32 %v4152, 0.0
  %v4217 = vmax.f32 %v4153, 0.0
  %v4218 = vmax.f32 %v4154, 0.0
  %v4219 = vmax.f32 %v4155, 0.0
  %v4220 = vmax.f32 %v4156, 0.0
  %v4221 = vmax.f32 %v4157, 0.0
  %v4222 = vmax.f32 %v4158, 0.0
  %4223 = vst [vmem:[%s45 + $0x1] sm:$0xff] %v4159
  %4224 = vst [vmem:[%s45 + $0x9] sm:$0xff] %v4160
  %4225 = vst [vmem:[%s45 + $0x19] sm:$0xff] %v4161
  %4226 = vst [vmem:[%s45 + $0x21] sm:$0xff] %v4162
  %4227 = vst [vmem:[%s45 + $0x31] sm:$0xff] %v4163
  %4228 = vst [vmem:[%s45 + $0x39] sm:$0xff] %v4164
  %4229 = vst [vmem:[%s45 + $0x49] sm:$0xff] %v4165
  %4230 = vst [vmem:[%s45 + $0x51] sm:$0xff] %v4166
  %4231 = vst [vmem:[%s45 + $0x61] sm:$0xff] %v4167
  %4232 = vst [vmem:[%s45 + $0x69] sm:$0xff] %v4168
  %4233 = vst [vmem:[%s45 + $0x79] sm:$0xff] %v4169
  %4234 = vst [vmem:[%s45 + $0x81] sm:$0xff] %v4170
  %4235 = vst [vmem:[%s45 + $0x91] sm:$0xff] %v4171
  %4236 = vst [vmem:[%s45 + $0x99] sm:$0xff] %v4172
  %4237 = vst [vmem:[%s45 + $0xa9] sm:$0xff] %v4173
  %4238 = vst [vmem:[%s45 + $0xb1] sm:$0xff] %v4174
  %4239 = vst [vmem:[%s45 + $0xc1] sm:$0xff] %v4175
  %4240 = vst [vmem:[%s45 + $0xc9] sm:$0xff] %v4176
  %4241 = vst [vmem:[%s45 + $0xd9] sm:$0xff] %v4177
  %4242 = vst [vmem:[%s45 + $0xe1] sm:$0xff] %v4178
  %4243 = vst [vmem:[%s45 + $0xf1] sm:$0xff] %v4179
  %4244 = vst [vmem:[%s45 + $0xf9] sm:$0xff] %v4180
  %4245 = vst [vmem:[%s45 + $0x109] sm:$0xff] %v4181
  %4246 = vst [vmem:[%s45 + $0x111] sm:$0xff] %v4182
  %4247 = vst [vmem:[%s45 + $0x121] sm:$0xff] %v4183
  %4248 = vst [vmem:[%s45 + $0x129] sm:$0xff] %v4184
  %4249 = vst [vmem:[%s45 + $0x139] sm:$0xff] %v4185
  %4250 = vst [vmem:[%s45 + $0x141] sm:$0xff] %v4186
  %4251 = vst [vmem:[%s45 + $0x151] sm:$0xff] %v4187
  %4252 = vst [vmem:[%s45 + $0x159] sm:$0xff] %v4188
  %4253 = vst [vmem:[%s45 + $0x169] sm:$0xff] %v4189
  %4254 = vst [vmem:[%s45 + $0x171] sm:$0xff] %v4190
  %4255 = vst [vmem:[%s45 + $0x1b1] sm:$0xff] %v4191
  %4256 = vst [vmem:[%s45 + $0x1b9] sm:$0xff] %v4192
  %4257 = vst [vmem:[%s45 + $0x1c9] sm:$0xff] %v4193
  %4258 = vst [vmem:[%s45 + $0x1d1] sm:$0xff] %v4194
  %4259 = vst [vmem:[%s45 + $0x1e1] sm:$0xff] %v4195
  %4260 = vst [vmem:[%s45 + $0x1e9] sm:$0xff] %v4196
  %4261 = vst [vmem:[%s45 + $0x1f9] sm:$0xff] %v4197
  %4262 = vst [vmem:[%s45 + $0x201] sm:$0xff] %v4198
  %4263 = vst [vmem:[%s45 + $0x211] sm:$0xff] %v4199
  %4264 = vst [vmem:[%s45 + $0x219] sm:$0xff] %v4200
  %4265 = vst [vmem:[%s45 + $0x229] sm:$0xff] %v4201
  %4266 = vst [vmem:[%s45 + $0x231] sm:$0xff] %v4202
  %4267 = vst [vmem:[%s45 + $0x241] sm:$0xff] %v4203
  %4268 = vst [vmem:[%s45 + $0x249] sm:$0xff] %v4204
  %4269 = vst [vmem:[%s45 + $0x259] sm:$0xff] %v4205
  %4270 = vst [vmem:[%s45 + $0x261] sm:$0xff] %v4206
  %4271 = vst [vmem:[%s45 + $0x271] sm:$0xff] %v4207
  %4272 = vst [vmem:[%s45 + $0x279] sm:$0xff] %v4208
  %4273 = vst [vmem:[%s45 + $0x289] sm:$0xff] %v4209
  %4274 = vst [vmem:[%s45 + $0x291] sm:$0xff] %v4210
  %4275 = vst [vmem:[%s45 + $0x2a1] sm:$0xff] %v4211
  %4276 = vst [vmem:[%s45 + $0x2a9] sm:$0xff] %v4212
  %4277 = vst [vmem:[%s45 + $0x2b9] sm:$0xff] %v4213
  %4278 = vst [vmem:[%s45 + $0x2c1] sm:$0xff] %v4214
  %4279 = vst [vmem:[%s45 + $0x2d1] sm:$0xff] %v4215
  %4280 = vst [vmem:[%s45 + $0x2d9] sm:$0xff] %v4216
  %4281 = vst [vmem:[%s45 + $0x2e9] sm:$0xff] %v4217
  %4282 = vst [vmem:[%s45 + $0x2f1] sm:$0xff] %v4218
  %4283 = vst [vmem:[%s45 + $0x301] sm:$0xff] %v4219
  %4284 = vst [vmem:[%s45 + $0x309] sm:$0xff] %v4220
  %4285 = vst [vmem:[%s45 + $0x319] sm:$0xff] %v4221
  %4286 = vst [vmem:[%s45 + $0x321] sm:$0xff] %v4222
  %v4287 = vld [vmem:[%s5] sm:$0xff]
  %v4288 = vld [vmem:[%s5 + $0x8] sm:$0xff]
  %v4289 = vld [vmem:[%s5 + $0x10] sm:$0xff]
  %v4290 = vld [vmem:[%s5 + $0x18] sm:$0xff]
  %v4291 = vld [vmem:[%s5 + $0x20] sm:$0xff]
  %v4292 = vld [vmem:[%s5 + $0x28] sm:$0xff]
  %v4293 = vld [vmem:[%s5 + $0x30] sm:$0xff]
  %v4294 = vld [vmem:[%s5 + $0x38] sm:$0xff]
  %v4295 = vld [vmem:[%s5 + $0x40] sm:$0xff]
  %v4296 = vld [vmem:[%s5 + $0x48] sm:$0xff]
  %v4297 = vld [vmem:[%s5 + $0x50] sm:$0xff]
  %v4298 = vld [vmem:[%s5 + $0x58] sm:$0xff]
  %v4299 = vld [vmem:[%s5 + $0x60] sm:$0xff]
  %v4300 = vld [vmem:[%s5 + $0x68] sm:$0xff]
  %v4301 = vld [vmem:[%s5 + $0x70] sm:$0xff]
  %v4302 = vld [vmem:[%s5 + $0x78] sm:$0xff]
  %v4303 = vld [vmem:[%s5 + $0x80] sm:$0xff]
  %v4304 = vld [vmem:[%s5 + $0x88] sm:$0xff]
  %v4305 = vld [vmem:[%s5 + $0x90] sm:$0xff]
  %v4306 = vld [vmem:[%s5 + $0x98] sm:$0xff]
  %v4307 = vld [vmem:[%s5 + $0xa0] sm:$0xff]
  %v4308 = vld [vmem:[%s5 + $0xa8] sm:$0xff]
  %v4309 = vld [vmem:[%s5 + $0xb0] sm:$0xff]
  %v4310 = vld [vmem:[%s5 + $0xb8] sm:$0xff]
  %v4311 = vld [vmem:[%s5 + $0xc0] sm:$0xff]
  %v4312 = vld [vmem:[%s5 + $0xc8] sm:$0xff]
  %v4313 = vld [vmem:[%s5 + $0xd0] sm:$0xff]
  %v4314 = vld [vmem:[%s5 + $0xd8] sm:$0xff]
  %v4315 = vld [vmem:[%s5 + $0xe0] sm:$0xff]
  %v4316 = vld [vmem:[%s5 + $0xe8] sm:$0xff]
  %v4317 = vld [vmem:[%s5 + $0xf0] sm:$0xff]
  %v4318 = vld [vmem:[%s5 + $0xf8] sm:$0xff]
  %v4319 = vld [vmem:[%s5 + $0x100] sm:$0xff]
  %v4320 = vld [vmem:[%s5 + $0x108] sm:$0xff]
  %v4321 = vld [vmem:[%s5 + $0x110] sm:$0xff]
  %v4322 = vld [vmem:[%s5 + $0x118] sm:$0xff]
  %v4323 = vld [vmem:[%s5 + $0x120] sm:$0xff]
  %v4324 = vld [vmem:[%s5 + $0x128] sm:$0xff]
  %v4325 = vld [vmem:[%s5 + $0x130] sm:$0xff]
  %v4326 = vld [vmem:[%s5 + $0x138] sm:$0xff]
  %v4327 = vld [vmem:[%s5 + $0x140] sm:$0xff]
  %v4328 = vld [vmem:[%s5 + $0x148] sm:$0xff]
  %v4329 = vld [vmem:[%s5 + $0x150] sm:$0xff]
  %v4330 = vld [vmem:[%s5 + $0x158] sm:$0xff]
  %v4331 = vld [vmem:[%s5 + $0x160] sm:$0xff]
  %v4332 = vld [vmem:[%s5 + $0x168] sm:$0xff]
  %v4333 = vld [vmem:[%s5 + $0x170] sm:$0xff]
  %v4334 = vld [vmem:[%s5 + $0x178] sm:$0xff]
  %v4335 = vld [vmem:[%s5 + $0x180] sm:$0xff]
  %v4336 = vld [vmem:[%s5 + $0x188] sm:$0xff]
  %v4337 = vld [vmem:[%s5 + $0x190] sm:$0xff]
  %v4338 = vld [vmem:[%s5 + $0x198] sm:$0xff]
  %v4339 = vld [vmem:[%s5 + $0x1a0] sm:$0xff]
  %v4340 = vld [vmem:[%s5 + $0x1a8] sm:$0xff]
  %v4341 = vld [vmem:[%s5 + $0x1b0] sm:$0xff]
  %v4342 = vld [vmem:[%s5 + $0x1b8] sm:$0xff]
  %v4343 = vld [vmem:[%s5 + $0x1c0] sm:$0xff]
  %v4344 = vld [vmem:[%s5 + $0x1c8] sm:$0xff]
  %v4345 = vld [vmem:[%s5 + $0x1d0] sm:$0xff]
  %v4346 = vld [vmem:[%s5 + $0x1d8] sm:$0xff]
  %v4347 = vld [vmem:[%s5 + $0x1e0] sm:$0xff]
  %v4348 = vld [vmem:[%s5 + $0x1e8] sm:$0xff]
  %v4349 = vld [vmem:[%s5 + $0x1f0] sm:$0xff]
  %v4350 = vld [vmem:[%s5 + $0x1f8] sm:$0xff]
  %v4351 = vld [vmem:[%s5 + $0x200] sm:$0xff]
  %v4352 = vld [vmem:[%s5 + $0x208] sm:$0xff]
  %v4353 = vld [vmem:[%s5 + $0x210] sm:$0xff]
  %v4354 = vld [vmem:[%s5 + $0x218] sm:$0xff]
  %v4355 = vld [vmem:[%s5 + $0x220] sm:$0xff]
  %v4356 = vld [vmem:[%s5 + $0x228] sm:$0xff]
  %v4357 = vld [vmem:[%s5 + $0x230] sm:$0xff]
  %v4358 = vld [vmem:[%s5 + $0x238] sm:$0xff]
  %v4359 = vld [vmem:[%s5 + $0x240] sm:$0xff]
  %v4360 = vld [vmem:[%s5 + $0x248] sm:$0xff]
  %v4361 = vld [vmem:[%s5 + $0x250] sm:$0xff]
  %v4362 = vld [vmem:[%s5 + $0x258] sm:$0xff]
  %v4363 = vld [vmem:[%s5 + $0x260] sm:$0xff]
  %v4364 = vld [vmem:[%s5 + $0x268] sm:$0xff]
  %v4365 = vld [vmem:[%s5 + $0x270] sm:$0xff]
  %v4366 = vld [vmem:[%s5 + $0x278] sm:$0xff]
  %v4367 = vld [vmem:[%s5 + $0x280] sm:$0xff]
  %v4368 = vld [vmem:[%s5 + $0x288] sm:$0xff]
  %v4369 = vld [vmem:[%s5 + $0x290] sm:$0xff]
  %v4370 = vld [vmem:[%s5 + $0x298] sm:$0xff]
  %v4371 = vld [vmem:[%s5 + $0x2a0] sm:$0xff]
  %v4372 = vld [vmem:[%s5 + $0x2a8] sm:$0xff]
  %v4373 = vld [vmem:[%s5 + $0x2b0] sm:$0xff]
  %v4374 = vld [vmem:[%s5 + $0x2b8] sm:$0xff]
  %v4375 = vld [vmem:[%s5 + $0x2c0] sm:$0xff]
  %v4376 = vld [vmem:[%s5 + $0x2c8] sm:$0xff]
  %v4377 = vld [vmem:[%s5 + $0x2d0] sm:$0xff]
  %v4378 = vld [vmem:[%s5 + $0x2d8] sm:$0xff]
  %v4379 = vld [vmem:[%s5 + $0x2e0] sm:$0xff]
  %v4380 = vld [vmem:[%s5 + $0x2e8] sm:$0xff]
  %v4381 = vld [vmem:[%s5 + $0x2f0] sm:$0xff]
  %v4382 = vld [vmem:[%s5 + $0x2f8] sm:$0xff]
  %v4383 = vld [vmem:[%s5 + $0x300] sm:$0xff]
  %v4384 = vld [vmem:[%s5 + $0x308] sm:$0xff]
  %v4385 = vld [vmem:[%s5 + $0x310] sm:$0xff]
  %v4386 = vld [vmem:[%s5 + $0x318] sm:$0xff]
  %v4387 = vld [vmem:[%s5 + $0x320] sm:$0xff]
  %v4388 = vld [vmem:[%s5 + $0x328] sm:$0xff]
  %v4389 = vld [vmem:[%s5 + $0x330] sm:$0xff]
  %v4390 = vld [vmem:[%s5 + $0x338] sm:$0xff]
  %v4391 = vld [vmem:[%s5 + $0x340] sm:$0xff]
  %v4392 = vld [vmem:[%s5 + $0x348] sm:$0xff]
  %v4393 = vld [vmem:[%s5 + $0x350] sm:$0xff]
  %v4394 = vld [vmem:[%s5 + $0x358] sm:$0xff]
  %v4395 = vld [vmem:[%s5 + $0x360] sm:$0xff]
  %v4396 = vld [vmem:[%s5 + $0x368] sm:$0xff]
  %v4397 = vld [vmem:[%s5 + $0x370] sm:$0xff]
  %v4398 = vld [vmem:[%s5 + $0x378] sm:$0xff]
  %v4399 = vld [vmem:[%s5 + $0x380] sm:$0xff]
  %v4400 = vld [vmem:[%s5 + $0x388] sm:$0xff]
  %v4401 = vld [vmem:[%s5 + $0x390] sm:$0xff]
  %v4402 = vld [vmem:[%s5 + $0x398] sm:$0xff]
  %v4403 = vld [vmem:[%s5 + $0x3a0] sm:$0xff]
  %v4404 = vld [vmem:[%s5 + $0x3a8] sm:$0xff]
  %v4405 = vld [vmem:[%s5 + $0x3b0] sm:$0xff]
  %v4406 = vld [vmem:[%s5 + $0x3b8] sm:$0xff]
  %v4407 = vld [vmem:[%s5 + $0x3c0] sm:$0xff]
  %v4408 = vld [vmem:[%s5 + $0x3c8] sm:$0xff]
  %v4409 = vld [vmem:[%s5 + $0x3d0] sm:$0xff]
  %v4410 = vld [vmem:[%s5 + $0x3d8] sm:$0xff]
  %v4411 = vld [vmem:[%s5 + $0x3e0] sm:$0xff]
  %v4412 = vld [vmem:[%s5 + $0x3e8] sm:$0xff]
  %v4413 = vld [vmem:[%s5 + $0x3f0] sm:$0xff]
  %v4414 = vld [vmem:[%s5 + $0x3f8] sm:$0xff]
  %v4415 = vld [vmem:[%s5 + $0x400] sm:$0xff]
  %v4416 = vld [vmem:[%s5 + $0x408] sm:$0xff]
  %v4417 = vld [vmem:[%s5 + $0x410] sm:$0xff]
  %v4418 = vld [vmem:[%s5 + $0x418] sm:$0xff]
  %v4419 = vld [vmem:[%s5 + $0x420] sm:$0xff]
  %v4420 = vld [vmem:[%s5 + $0x428] sm:$0xff]
  %v4421 = vld [vmem:[%s5 + $0x430] sm:$0xff]
  %v4422 = vld [vmem:[%s5 + $0x438] sm:$0xff]
  %v4423 = vld [vmem:[%s5 + $0x440] sm:$0xff]
  %v4424 = vld [vmem:[%s5 + $0x448] sm:$0xff]
  %v4425 = vld [vmem:[%s5 + $0x450] sm:$0xff]
  %v4426 = vld [vmem:[%s5 + $0x458] sm:$0xff]
  %v4427 = vld [vmem:[%s5 + $0x460] sm:$0xff]
  %v4428 = vld [vmem:[%s5 + $0x468] sm:$0xff]
  %v4429 = vld [vmem:[%s5 + $0x470] sm:$0xff]
  %v4430 = vld [vmem:[%s5 + $0x478] sm:$0xff]
  %v4431 = vld [vmem:[%s6] sm:$0x1]
  %v4432 = vld [vmem:[%s7] sm:$0x1]
  %v4433 = vld [vmem:[%s8] sm:$0x1]
  %v4434 = vld [vmem:[#allocation2] sm:$0xff]
  %v4435 = vld [vmem:[#allocation2 + $0x8] sm:$0xff]
  %v4436 = vld [vmem:[#allocation2 + $0x18] sm:$0xff]
  %v4437 = vld [vmem:[#allocation2 + $0x20] sm:$0xff]
  %v4438 = vld [vmem:[#allocation2 + $0x30] sm:$0xff]
  %v4439 = vld [vmem:[#allocation2 + $0x38] sm:$0xff]
  %v4440 = vld [vmem:[#allocation2 + $0x48] sm:$0xff]
  %v4441 = vld [vmem:[#allocation2 + $0x50] sm:$0xff]
  %v4442 = vld [vmem:[#allocation2 + $0x60] sm:$0xff]
  %v4443 = vld [vmem:[#allocation2 + $0x68] sm:$0xff]
  %v4444 = vld [vmem:[#allocation2 + $0x78] sm:$0xff]
  %v4445 = vld [vmem:[#allocation2 + $0x80] sm:$0xff]
  %v4446 = vld [vmem:[#allocation2 + $0x90] sm:$0xff]
  %v4447 = vld [vmem:[#allocation2 + $0x98] sm:$0xff]
  %v4448 = vld [vmem:[#allocation2 + $0xa8] sm:$0xff]
  %v4449 = vld [vmem:[#allocation2 + $0xb0] sm:$0xff]
  %v4450 = vld [vmem:[#allocation2 + $0xc0] sm:$0xff]
  %v4451 = vld [vmem:[#allocation2 + $0xc8] sm:$0xff]
  %v4452 = vld [vmem:[#allocation2 + $0xd8] sm:$0xff]
  %v4453 = vld [vmem:[#allocation2 + $0xe0] sm:$0xff]
  %v4454 = vld [vmem:[#allocation2 + $0xf0] sm:$0xff]
  %v4455 = vld [vmem:[#allocation2 + $0xf8] sm:$0xff]
  %v4456 = vld [vmem:[#allocation2 + $0x108] sm:$0xff]
  %v4457 = vld [vmem:[#allocation2 + $0x110] sm:$0xff]
  %v4458 = vld [vmem:[#allocation2 + $0x120] sm:$0xff]
  %v4459 = vld [vmem:[#allocation2 + $0x128] sm:$0xff]
  %v4460 = vld [vmem:[#allocation2 + $0x138] sm:$0xff]
  %v4461 = vld [vmem:[#allocation2 + $0x140] sm:$0xff]
  %v4462 = vld [vmem:[#allocation2 + $0x150] sm:$0xff]
  %v4463 = vld [vmem:[#allocation2 + $0x158] sm:$0xff]
  %v4464 = vld [vmem:[#allocation2 + $0x168] sm:$0xff]
  %v4465 = vld [vmem:[#allocation2 + $0x170] sm:$0xff]
  %v4466 = vld [vmem:[#allocation2 + $0x180] sm:$0xff]
  %v4467 = vld [vmem:[#allocation2 + $0x188] sm:$0xff]
  %v4468 = vld [vmem:[#allocation2 + $0x198] sm:$0xff]
  %v4469 = vld [vmem:[#allocation2 + $0x1a0] sm:$0xff]
  %v4470 = vld [vmem:[#allocation2 + $0x1b0] sm:$0xff]
  %v4471 = vld [vmem:[#allocation2 + $0x1b8] sm:$0xff]
  %v4472 = vld [vmem:[#allocation2 + $0x1c8] sm:$0xff]
  %v4473 = vld [vmem:[#allocation2 + $0x1d0] sm:$0xff]
  %v4474 = vld [vmem:[#allocation2 + $0x1e0] sm:$0xff]
  %v4475 = vld [vmem:[#allocation2 + $0x1e8] sm:$0xff]
  %v4476 = vld [vmem:[#allocation2 + $0x1f8] sm:$0xff]
  %v4477 = vld [vmem:[#allocation2 + $0x200] sm:$0xff]
  %v4478 = vld [vmem:[#allocation2 + $0x210] sm:$0xff]
  %v4479 = vld [vmem:[#allocation2 + $0x218] sm:$0xff]
  %v4480 = vld [vmem:[#allocation2 + $0x228] sm:$0xff]
  %v4481 = vld [vmem:[#allocation2 + $0x230] sm:$0xff]
  %v4482 = vld [vmem:[#allocation2 + $0x240] sm:$0xff]
  %v4483 = vld [vmem:[#allocation2 + $0x248] sm:$0xff]
  %v4484 = vld [vmem:[#allocation2 + $0x258] sm:$0xff]
  %v4485 = vld [vmem:[#allocation2 + $0x260] sm:$0xff]
  %v4486 = vld [vmem:[#allocation2 + $0x270] sm:$0xff]
  %v4487 = vld [vmem:[#allocation2 + $0x278] sm:$0xff]
  %v4488 = vld [vmem:[#allocation2 + $0x288] sm:$0xff]
  %v4489 = vld [vmem:[#allocation2 + $0x290] sm:$0xff]
  %v4490 = vld [vmem:[#allocation2 + $0x2a0] sm:$0xff]
  %v4491 = vld [vmem:[#allocation2 + $0x2a8] sm:$0xff]
  %v4492 = vld [vmem:[#allocation2 + $0x2b8] sm:$0xff]
  %v4493 = vld [vmem:[#allocation2 + $0x2c0] sm:$0xff]
  %v4494 = vld [vmem:[#allocation2 + $0x2d0] sm:$0xff]
  %v4495 = vld [vmem:[#allocation2 + $0x2d8] sm:$0xff]
  %v4496 = vld [vmem:[#allocation2 + $0x2e8] sm:$0xff]
  %v4497 = vld [vmem:[#allocation2 + $0x2f0] sm:$0xff]
  %v4498 = vld [vmem:[#allocation2 + $0x300] sm:$0xff]
  %v4499 = vld [vmem:[#allocation2 + $0x308] sm:$0xff]
  %v4500 = vld [vmem:[#allocation2 + $0x318] sm:$0xff]
  %v4501 = vld [vmem:[#allocation2 + $0x320] sm:$0xff]
  %v4502 = vld [vmem:[#allocation2 + $0x330] sm:$0xff]
  %v4503 = vld [vmem:[#allocation2 + $0x338] sm:$0xff]
  %v4504 = vld [vmem:[#allocation2 + $0x348] sm:$0xff]
  %v4505 = vld [vmem:[#allocation2 + $0x350] sm:$0xff]
  %4506 = vst [vmem:[#allocation3] sm:$0xff] %v4434
  %4507 = vst [vmem:[#allocation3 + $0x48] sm:$0xff] %v4435
  %4508 = vst [vmem:[#allocation3 + $0x90] sm:$0xff] %v4436
  %4509 = vst [vmem:[#allocation3 + $0xd8] sm:$0xff] %v4437
  %4510 = vst [vmem:[#allocation3 + $0x120] sm:$0xff] %v4438
  %4511 = vst [vmem:[#allocation3 + $0x168] sm:$0xff] %v4439
  %4512 = vst [vmem:[#allocation3 + $0x1b0] sm:$0xff] %v4440
  %4513 = vst [vmem:[#allocation3 + $0x1f8] sm:$0xff] %v4441
  %4514 = vst [vmem:[#allocation3 + $0x240] sm:$0xff] %v4442
  %4515 = vst [vmem:[#allocation3 + $0x288] sm:$0xff] %v4443
  %4516 = vst [vmem:[#allocation3 + $0x2d0] sm:$0xff] %v4444
  %4517 = vst [vmem:[#allocation3 + $0x318] sm:$0xff] %v4445
  %4518 = vst [vmem:[#allocation3 + $0x360] sm:$0xff] %v4446
  %4519 = vst [vmem:[#allocation3 + $0x3a8] sm:$0xff] %v4447
  %4520 = vst [vmem:[#allocation3 + $0x3f0] sm:$0xff] %v4448
  %4521 = vst [vmem:[#allocation3 + $0x438] sm:$0xff] %v4449
  %4522 = vst [vmem:[#allocation3 + $0x480] sm:$0xff] %v4450
  %4523 = vst [vmem:[#allocation3 + $0x4c8] sm:$0xff] %v4451
  %4524 = vst [vmem:[#allocation3 + $0x510] sm:$0xff] %v4452
  %4525 = vst [vmem:[#allocation3 + $0x558] sm:$0xff] %v4453
  %4526 = vst [vmem:[#allocation3 + $0x5a0] sm:$0xff] %v4454
  %4527 = vst [vmem:[#allocation3 + $0x5e8] sm:$0xff] %v4455
  %4528 = vst [vmem:[#allocation3 + $0x630] sm:$0xff] %v4456
  %4529 = vst [vmem:[#allocation3 + $0x678] sm:$0xff] %v4457
  %4530 = vst [vmem:[#allocation3 + $0x6c0] sm:$0xff] %v4458
  %4531 = vst [vmem:[#allocation3 + $0x708] sm:$0xff] %v4459
  %4532 = vst [vmem:[#allocation3 + $0x750] sm:$0xff] %v4460
  %4533 = vst [vmem:[#allocation3 + $0x798] sm:$0xff] %v4461
  %4534 = vst [vmem:[#allocation3 + $0x7e0] sm:$0xff] %v4462
  %4535 = vst [vmem:[#allocation3 + $0x828] sm:$0xff] %v4463
  %4536 = vst [vmem:[#allocation3 + $0x870] sm:$0xff] %v4464
  %4537 = vst [vmem:[#allocation3 + $0x8b8] sm:$0xff] %v4465
  %4538 = vst [vmem:[#allocation3 + $0x900] sm:$0xff] %v4470
  %4539 = vst [vmem:[#allocation3 + $0x948] sm:$0xff] %v4471
  %4540 = vst [vmem:[#allocation3 + $0x990] sm:$0xff] %v4472
  %4541 = vst [vmem:[#allocation3 + $0x9d8] sm:$0xff] %v4473
  %4542 = vst [vmem:[#allocation3 + $0xa20] sm:$0xff] %v4474
  %4543 = vst [vmem:[#allocation3 + $0xa68] sm:$0xff] %v4475
  %4544 = vst [vmem:[#allocation3 + $0xab0] sm:$0xff] %v4476
  %4545 = vst [vmem:[#allocation3 + $0xaf8] sm:$0xff] %v4477
  %4546 = vst [vmem:[#allocation3 + $0xb40] sm:$0xff] %v4478
  %4547 = vst [vmem:[#allocation3 + $0xb88] sm:$0xff] %v4479
  %4548 = vst [vmem:[#allocation3 + $0xbd0] sm:$0xff] %v4480
  %4549 = vst [vmem:[#allocation3 + $0xc18] sm:$0xff] %v4481
  %4550 = vst [vmem:[#allocation3 + $0xc60] sm:$0xff] %v4482
  %4551 = vst [vmem:[#allocation3 + $0xca8] sm:$0xff] %v4483
  %4552 = vst [vmem:[#allocation3 + $0xcf0] sm:$0xff] %v4484
  %4553 = vst [vmem:[#allocation3 + $0xd38] sm:$0xff] %v4485
  %4554 = vst [vmem:[#allocation3 + $0xd80] sm:$0xff] %v4486
  %4555 = vst [vmem:[#allocation3 + $0xdc8] sm:$0xff] %v4487
  %4556 = vst [vmem:[#allocation3 + $0xe10] sm:$0xff] %v4488
  %4557 = vst [vmem:[#allocation3 + $0xe58] sm:$0xff] %v4489
  %4558 = vst [vmem:[#allocation3 + $0xea0] sm:$0xff] %v4490
  %4559 = vst [vmem:[#allocation3 + $0xee8] sm:$0xff] %v4491
  %4560 = vst [vmem:[#allocation3 + $0xf30] sm:$0xff] %v4492
  %4561 = vst [vmem:[#allocation3 + $0xf78] sm:$0xff] %v4493
  %4562 = vst [vmem:[#allocation3 + $0xfc0] sm:$0xff] %v4494
  %4563 = vst [vmem:[#allocation3 + $0x1008] sm:$0xff] %v4495
  %4564 = vst [vmem:[#allocation3 + $0x1050] sm:$0xff] %v4496
  %4565 = vst [vmem:[#allocation3 + $0x1098] sm:$0xff] %v4497
  %4566 = vst [vmem:[#allocation3 + $0x10e0] sm:$0xff] %v4498
  %4567 = vst [vmem:[#allocation3 + $0x1128] sm:$0xff] %v4499
  %4568 = vst [vmem:[#allocation3 + $0x1170] sm:$0xff] %v4500
  %4569 = vst [vmem:[#allocation3 + $0x11b8] sm:$0xff] %v4501
  %4570 = vst [vmem:[#allocation3 + $0x18] sm:$0xff] %v4436
  %4571 = vst [vmem:[#allocation3 + $0x60] sm:$0xff] %v4437
  %4572 = vst [vmem:[#allocation3 + $0xa8] sm:$0xff] %v4438
  %4573 = vst [vmem:[#allocation3 + $0xf0] sm:$0xff] %v4439
  %4574 = vst [vmem:[#allocation3 + $0x138] sm:$0xff] %v4440
  %4575 = vst [vmem:[#allocation3 + $0x180] sm:$0xff] %v4441
  %4576 = vst [vmem:[#allocation3 + $0x1c8] sm:$0xff] %v4442
  %4577 = vst [vmem:[#allocation3 + $0x210] sm:$0xff] %v4443
  %4578 = vst [vmem:[#allocation3 + $0x258] sm:$0xff] %v4444
  %4579 = vst [vmem:[#allocation3 + $0x2a0] sm:$0xff] %v4445
  %4580 = vst [vmem:[#allocation3 + $0x2e8] sm:$0xff] %v4446
  %4581 = vst [vmem:[#allocation3 + $0x330] sm:$0xff] %v4447
  %4582 = vst [vmem:[#allocation3 + $0x378] sm:$0xff] %v4448
  %4583 = vst [vmem:[#allocation3 + $0x3c0] sm:$0xff] %v4449
  %4584 = vst [vmem:[#allocation3 + $0x408] sm:$0xff] %v4450
  %4585 = vst [vmem:[#allocation3 + $0x450] sm:$0xff] %v4451
  %4586 = vst [vmem:[#allocation3 + $0x498] sm:$0xff] %v4452
  %4587 = vst [vmem:[#allocation3 + $0x4e0] sm:$0xff] %v4453
  %4588 = vst [vmem:[#allocation3 + $0x528] sm:$0xff] %v4454
  %4589 = vst [vmem:[#allocation3 + $0x570] sm:$0xff] %v4455
  %4590 = vst [vmem:[#allocation3 + $0x5b8] sm:$0xff] %v4456
  %4591 = vst [vmem:[#allocation3 + $0x600] sm:$0xff] %v4457
  %4592 = vst [vmem:[#allocation3 + $0x648] sm:$0xff] %v4458
  %4593 = vst [vmem:[#allocation3 + $0x690] sm:$0xff] %v4459
  %4594 = vst [vmem:[#allocation3 + $0x6d8] sm:$0xff] %v4460
  %4595 = vst [vmem:[#allocation3 + $0x720] sm:$0xff] %v4461
  %4596 = vst [vmem:[#allocation3 + $0x768] sm:$0xff] %v4462
  %4597 = vst [vmem:[#allocation3 + $0x7b0] sm:$0xff] %v4463
  %4598 = vst [vmem:[#allocation3 + $0x7f8] sm:$0xff] %v4464
  %4599 = vst [vmem:[#allocation3 + $0x840] sm:$0xff] %v4465
  %4600 = vst [vmem:[#allocation3 + $0x888] sm:$0xff] %v4466
  %4601 = vst [vmem:[#allocation3 + $0x8d0] sm:$0xff] %v4467
  %4602 = vst [vmem:[#allocation3 + $0x918] sm:$0xff] %v4472
  %4603 = vst [vmem:[#allocation3 + $0x960] sm:$0xff] %v4473
  %4604 = vst [vmem:[#allocation3 + $0x9a8] sm:$0xff] %v4474
  %4605 = vst [vmem:[#allocation3 + $0x9f0] sm:$0xff] %v4475
  %4606 = vst [vmem:[#allocation3 + $0xa38] sm:$0xff] %v4476
  %4607 = vst [vmem:[#allocation3 + $0xa80] sm:$0xff] %v4477
  %4608 = vst [vmem:[#allocation3 + $0xac8] sm:$0xff] %v4478
  %4609 = vst [vmem:[#allocation3 + $0xb10] sm:$0xff] %v4479
  %4610 = vst [vmem:[#allocation3 + $0xb58] sm:$0xff] %v4480
  %4611 = vst [vmem:[#allocation3 + $0xba0] sm:$0xff] %v4481
  %4612 = vst [vmem:[#allocation3 + $0xbe8] sm:$0xff] %v4482
  %4613 = vst [vmem:[#allocation3 + $0xc30] sm:$0xff] %v4483
  %4614 = vst [vmem:[#allocation3 + $0xc78] sm:$0xff] %v4484
  %4615 = vst [vmem:[#allocation3 + $0xcc0] sm:$0xff] %v4485
  %4616 = vst [vmem:[#allocation3 + $0xd08] sm:$0xff] %v4486
  %4617 = vst [vmem:[#allocation3 + $0xd50] sm:$0xff] %v4487
  %4618 = vst [vmem:[#allocation3 + $0xd98] sm:$0xff] %v4488
  %4619 = vst [vmem:[#allocation3 + $0xde0] sm:$0xff] %v4489
  %4620 = vst [vmem:[#allocation3 + $0xe28] sm:$0xff] %v4490
  %4621 = vst [vmem:[#allocation3 + $0xe70] sm:$0xff] %v4491
  %4622 = vst [vmem:[#allocation3 + $0xeb8] sm:$0xff] %v4492
  %4623 = vst [vmem:[#allocation3 + $0xf00] sm:$0xff] %v4493
  %4624 = vst [vmem:[#allocation3 + $0xf48] sm:$0xff] %v4494
  %4625 = vst [vmem:[#allocation3 + $0xf90] sm:$0xff] %v4495
  %4626 = vst [vmem:[#allocation3 + $0xfd8] sm:$0xff] %v4496
  %4627 = vst [vmem:[#allocation3 + $0x1020] sm:$0xff] %v4497
  %4628 = vst [vmem:[#allocation3 + $0x1068] sm:$0xff] %v4498
  %4629 = vst [vmem:[#allocation3 + $0x10b0] sm:$0xff] %v4499
  %4630 = vst [vmem:[#allocation3 + $0x10f8] sm:$0xff] %v4500
  %4631 = vst [vmem:[#allocation3 + $0x1140] sm:$0xff] %v4501
  %4632 = vst [vmem:[#allocation3 + $0x1188] sm:$0xff] %v4502
  %4633 = vst [vmem:[#allocation3 + $0x11d0] sm:$0xff] %v4503
  %4634 = vst [vmem:[#allocation3 + $0x30] sm:$0xff] %v4438
  %4635 = vst [vmem:[#allocation3 + $0x78] sm:$0xff] %v4439
  %4636 = vst [vmem:[#allocation3 + $0xc0] sm:$0xff] %v4440
  %4637 = vst [vmem:[#allocation3 + $0x108] sm:$0xff] %v4441
  %4638 = vst [vmem:[#allocation3 + $0x150] sm:$0xff] %v4442
  %4639 = vst [vmem:[#allocation3 + $0x198] sm:$0xff] %v4443
  %4640 = vst [vmem:[#allocation3 + $0x1e0] sm:$0xff] %v4444
  %4641 = vst [vmem:[#allocation3 + $0x228] sm:$0xff] %v4445
  %4642 = vst [vmem:[#allocation3 + $0x270] sm:$0xff] %v4446
  %4643 = vst [vmem:[#allocation3 + $0x2b8] sm:$0xff] %v4447
  %4644 = vst [vmem:[#allocation3 + $0x300] sm:$0xff] %v4448
  %4645 = vst [vmem:[#allocation3 + $0x348] sm:$0xff] %v4449
  %4646 = vst [vmem:[#allocation3 + $0x390] sm:$0xff] %v4450
  %4647 = vst [vmem:[#allocation3 + $0x3d8] sm:$0xff] %v4451
  %4648 = vst [vmem:[#allocation3 + $0x420] sm:$0xff] %v4452
  %4649 = vst [vmem:[#allocation3 + $0x468] sm:$0xff] %v4453
  %4650 = vst [vmem:[#allocation3 + $0x4b0] sm:$0xff] %v4454
  %4651 = vst [vmem:[#allocation3 + $0x4f8] sm:$0xff] %v4455
  %4652 = vst [vmem:[#allocation3 + $0x540] sm:$0xff] %v4456
  %4653 = vst [vmem:[#allocation3 + $0x588] sm:$0xff] %v4457
  %4654 = vst [vmem:[#allocation3 + $0x5d0] sm:$0xff] %v4458
  %4655 = vst [vmem:[#allocation3 + $0x618] sm:$0xff] %v4459
  %4656 = vst [vmem:[#allocation3 + $0x660] sm:$0xff] %v4460
  %4657 = vst [vmem:[#allocation3 + $0x6a8] sm:$0xff] %v4461
  %4658 = vst [vmem:[#allocation3 + $0x6f0] sm:$0xff] %v4462
  %4659 = vst [vmem:[#allocation3 + $0x738] sm:$0xff] %v4463
  %4660 = vst [vmem:[#allocation3 + $0x780] sm:$0xff] %v4464
  %4661 = vst [vmem:[#allocation3 + $0x7c8] sm:$0xff] %v4465
  %4662 = vst [vmem:[#allocation3 + $0x810] sm:$0xff] %v4466
  %4663 = vst [vmem:[#allocation3 + $0x858] sm:$0xff] %v4467
  %4664 = vst [vmem:[#allocation3 + $0x8a0] sm:$0xff] %v4468
  %4665 = vst [vmem:[#allocation3 + $0x8e8] sm:$0xff] %v4469
  %4666 = vst [vmem:[#allocation3 + $0x930] sm:$0xff] %v4474
  %4667 = vst [vmem:[#allocation3 + $0x978] sm:$0xff] %v4475
  %4668 = vst [vmem:[#allocation3 + $0x9c0] sm:$0xff] %v4476
  %4669 = vst [vmem:[#allocation3 + $0xa08] sm:$0xff] %v4477
  %4670 = vst [vmem:[#allocation3 + $0xa50] sm:$0xff] %v4478
  %4671 = vst [vmem:[#allocation3 + $0xa98] sm:$0xff] %v4479
  %4672 = vst [vmem:[#allocation3 + $0xae0] sm:$0xff] %v4480
  %4673 = vst [vmem:[#allocation3 + $0xb28] sm:$0xff] %v4481
  %4674 = vst [vmem:[#allocation3 + $0xb70] sm:$0xff] %v4482
  %4675 = vst [vmem:[#allocation3 + $0xbb8] sm:$0xff] %v4483
  %4676 = vst [vmem:[#allocation3 + $0xc00] sm:$0xff] %v4484
  %4677 = vst [vmem:[#allocation3 + $0xc48] sm:$0xff] %v4485
  %4678 = vst [vmem:[#allocation3 + $0xc90] sm:$0xff] %v4486
  %4679 = vst [vmem:[#allocation3 + $0xcd8] sm:$0xff] %v4487
  %4680 = vst [vmem:[#allocation3 + $0xd20] sm:$0xff] %v4488
  %4681 = vst [vmem:[#allocation3 + $0xd68] sm:$0xff] %v4489
  %4682 = vst [vmem:[#allocation3 + $0xdb0] sm:$0xff] %v4490
  %4683 = vst [vmem:[#allocation3 + $0xdf8] sm:$0xff] %v4491
  %4684 = vst [vmem:[#allocation3 + $0xe40] sm:$0xff] %v4492
  %4685 = vst [vmem:[#allocation3 + $0xe88] sm:$0xff] %v4493
  %4686 = vst [vmem:[#allocation3 + $0xed0] sm:$0xff] %v4494
  %4687 = vst [vmem:[#allocation3 + $0xf18] sm:$0xff] %v4495
  %4688 = vst [vmem:[#allocation3 + $0xf60] sm:$0xff] %v4496
  %4689 = vst [vmem:[#allocation3 + $0xfa8] sm:$0xff] %v4497
  %4690 = vst [vmem:[#allocation3 + $0xff0] sm:$0xff] %v4498
  %4691 = vst [vmem:[#allocation3 + $0x1038] sm:$0xff] %v4499
  %4692 = vst [vmem:[#allocation3 + $0x1080] sm:$0xff] %v4500
  %4693 = vst [vmem:[#allocation3 + $0x10c8] sm:$0xff] %v4501
  %4694 = vst [vmem:[#allocation3 + $0x1110] sm:$0xff] %v4502
  %4695 = vst [vmem:[#allocation3 + $0x1158] sm:$0xff] %v4503
  %4696 = vst [vmem:[#allocation3 + $0x11a0] sm:$0xff] %v4504
  %4697 = vst [vmem:[#allocation3 + $0x11e8] sm:$0xff] %v4505
  %v4698 = vld [vmem:[#allocation2 + $0x1] sm:$0xff]
  %v4699 = vld [vmem:[#allocation2 + $0x9] sm:$0xff]
  %v4700 = vld [vmem:[#allocation2 + $0x19] sm:$0xff]
  %v4701 = vld [vmem:[#allocation2 + $0x21] sm:$0xff]
  %v4702 = vld [vmem:[#allocation2 + $0x31] sm:$0xff]
  %v4703 = vld [vmem:[#allocation2 + $0x39] sm:$0xff]
  %v4704 = vld [vmem:[#allocation2 + $0x49] sm:$0xff]
  %v4705 = vld [vmem:[#allocation2 + $0x51] sm:$0xff]
  %v4706 = vld [vmem:[#allocation2 + $0x61] sm:$0xff]
  %v4707 = vld [vmem:[#allocation2 + $0x69] sm:$0xff]
  %v4708 = vld [vmem:[#allocation2 + $0x79] sm:$0xff]
  %v4709 = vld [vmem:[#allocation2 + $0x81] sm:$0xff]
  %v4710 = vld [vmem:[#allocation2 + $0x91] sm:$0xff]
  %v4711 = vld [vmem:[#allocation2 + $0x99] sm:$0xff]
  %v4712 = vld [vmem:[#allocation2 + $0xa9] sm:$0xff]
  %v4713 = vld [vmem:[#allocation2 + $0xb1] sm:$0xff]
  %v4714 = vld [vmem:[#allocation2 + $0xc1] sm:$0xff]
  %v4715 = vld [vmem:[#allocation2 + $0xc9] sm:$0xff]
  %v4716 = vld [vmem:[#allocation2 + $0xd9] sm:$0xff]
  %v4717 = vld [vmem:[#allocation2 + $0xe1] sm:$0xff]
  %v4718 = vld [vmem:[#allocation2 + $0xf1] sm:$0xff]
  %v4719 = vld [vmem:[#allocation2 + $0xf9] sm:$0xff]
  %v4720 = vld [vmem:[#allocation2 + $0x109] sm:$0xff]
  %v4721 = vld [vmem:[#allocation2 + $0x111] sm:$0xff]
  %v4722 = vld [vmem:[#allocation2 + $0x121] sm:$0xff]
  %v4723 = vld [vmem:[#allocation2 + $0x129] sm:$0xff]
  %v4724 = vld [vmem:[#allocation2 + $0x139] sm:$0xff]
  %v4725 = vld [vmem:[#allocation2 + $0x141] sm:$0xff]
  %v4726 = vld [vmem:[#allocation2 + $0x151] sm:$0xff]
  %v4727 = vld [vmem:[#allocation2 + $0x159] sm:$0xff]
  %v4728 = vld [vmem:[#allocation2 + $0x169] sm:$0xff]
  %v4729 = vld [vmem:[#allocation2 + $0x171] sm:$0xff]
  %v4730 = vld [vmem:[#allocation2 + $0x181] sm:$0xff]
  %v4731 = vld [vmem:[#allocation2 + $0x189] sm:$0xff]
  %v4732 = vld [vmem:[#allocation2 + $0x199] sm:$0xff]
  %v4733 = vld [vmem:[#allocation2 + $0x1a1] sm:$0xff]
  %v4734 = vld [vmem:[#allocation2 + $0x1b1] sm:$0xff]
  %v4735 = vld [vmem:[#allocation2 + $0x1b9] sm:$0xff]
  %v4736 = vld [vmem:[#allocation2 + $0x1c9] sm:$0xff]
  %v4737 = vld [vmem:[#allocation2 + $0x1d1] sm:$0xff]
  %v4738 = vld [vmem:[#allocation2 + $0x1e1] sm:$0xff]
  %v4739 = vld [vmem:[#allocation2 + $0x1e9] sm:$0xff]
  %v4740 = vld [vmem:[#allocation2 + $0x1f9] sm:$0xff]
  %v4741 = vld [vmem:[#allocation2 + $0x201] sm:$0xff]
  %v4742 = vld [vmem:[#allocation2 + $0x211] sm:$0xff]
  %v4743 = vld [vmem:[#allocation2 + $0x219] sm:$0xff]
  %v4744 = vld [vmem:[#allocation2 + $0x229] sm:$0xff]
  %v4745 = vld [vmem:[#allocation2 + $0x231] sm:$0xff]
  %v4746 = vld [vmem:[#allocation2 + $0x241] sm:$0xff]
  %v4747 = vld [vmem:[#allocation2 + $0x249] sm:$0xff]
  %v4748 = vld [vmem:[#allocation2 + $0x259] sm:$0xff]
  %v4749 = vld [vmem:[#allocation2 + $0x261] sm:$0xff]
  %v4750 = vld [vmem:[#allocation2 + $0x271] sm:$0xff]
  %v4751 = vld [vmem:[#allocation2 + $0x279] sm:$0xff]
  %v4752 = vld [vmem:[#allocation2 + $0x289] sm:$0xff]
  %v4753 = vld [vmem:[#allocation2 + $0x291] sm:$0xff]
  %v4754 = vld [vmem:[#allocation2 + $0x2a1] sm:$0xff]
  %v4755 = vld [vmem:[#allocation2 + $0x2a9] sm:$0xff]
  %v4756 = vld [vmem:[#allocation2 + $0x2b9] sm:$0xff]
  %v4757 = vld [vmem:[#allocation2 + $0x2c1] sm:$0xff]
  %v4758 = vld [vmem:[#allocation2 + $0x2d1] sm:$0xff]
  %v4759 = vld [vmem:[#allocation2 + $0x2d9] sm:$0xff]
  %v4760 = vld [vmem:[#allocation2 + $0x2e9] sm:$0xff]
  %v4761 = vld [vmem:[#allocation2 + $0x2f1] sm:$0xff]
  %v4762 = vld [vmem:[#allocation2 + $0x301] sm:$0xff]
  %v4763 = vld [vmem:[#allocation2 + $0x309] sm:$0xff]
  %v4764 = vld [vmem:[#allocation2 + $0x319] sm:$0xff]
  %v4765 = vld [vmem:[#allocation2 + $0x321] sm:$0xff]
  %v4766 = vld [vmem:[#allocation2 + $0x331] sm:$0xff]
  %v4767 = vld [vmem:[#allocation2 + $0x339] sm:$0xff]
  %v4768 = vld [vmem:[#allocation2 + $0x349] sm:$0xff]
  %v4769 = vld [vmem:[#allocation2 + $0x351] sm:$0xff]
  %4770 = vst [vmem:[#allocation3 + $0x8] sm:$0xff] %v4698
  %4771 = vst [vmem:[#allocation3 + $0x50] sm:$0xff] %v4699
  %4772 = vst [vmem:[#allocation3 + $0x98] sm:$0xff] %v4700
  %4773 = vst [vmem:[#allocation3 + $0xe0] sm:$0xff] %v4701
  %4774 = vst [vmem:[#allocation3 + $0x128] sm:$0xff] %v4702
  %4775 = vst [vmem:[#allocation3 + $0x170] sm:$0xff] %v4703
  %4776 = vst [vmem:[#allocation3 + $0x1b8] sm:$0xff] %v4704
  %4777 = vst [vmem:[#allocation3 + $0x200] sm:$0xff] %v4705
  %4778 = vst [vmem:[#allocation3 + $0x248] sm:$0xff] %v4706
  %4779 = vst [vmem:[#allocation3 + $0x290] sm:$0xff] %v4707
  %4780 = vst [vmem:[#allocation3 + $0x2d8] sm:$0xff] %v4708
  %4781 = vst [vmem:[#allocation3 + $0x320] sm:$0xff] %v4709
  %4782 = vst [vmem:[#allocation3 + $0x368] sm:$0xff] %v4710
  %4783 = vst [vmem:[#allocation3 + $0x3b0] sm:$0xff] %v4711
  %4784 = vst [vmem:[#allocation3 + $0x3f8] sm:$0xff] %v4712
  %4785 = vst [vmem:[#allocation3 + $0x440] sm:$0xff] %v4713
  %4786 = vst [vmem:[#allocation3 + $0x488] sm:$0xff] %v4714
  %4787 = vst [vmem:[#allocation3 + $0x4d0] sm:$0xff] %v4715
  %4788 = vst [vmem:[#allocation3 + $0x518] sm:$0xff] %v4716
  %4789 = vst [vmem:[#allocation3 + $0x560] sm:$0xff] %v4717
  %4790 = vst [vmem:[#allocation3 + $0x5a8] sm:$0xff] %v4718
  %4791 = vst [vmem:[#allocation3 + $0x5f0] sm:$0xff] %v4719
  %4792 = vst [vmem:[#allocation3 + $0x638] sm:$0xff] %v4720
  %4793 = vst [vmem:[#allocation3 + $0x680] sm:$0xff] %v4721
  %4794 = vst [vmem:[#allocation3 + $0x6c8] sm:$0xff] %v4722
  %4795 = vst [vmem:[#allocation3 + $0x710] sm:$0xff] %v4723
  %4796 = vst [vmem:[#allocation3 + $0x758] sm:$0xff] %v4724
  %4797 = vst [vmem:[#allocation3 + $0x7a0] sm:$0xff] %v4725
  %4798 = vst [vmem:[#allocation3 + $0x7e8] sm:$0xff] %v4726
  %4799 = vst [vmem:[#allocation3 + $0x830] sm:$0xff] %v4727
  %4800 = vst [vmem:[#allocation3 + $0x878] sm:$0xff] %v4728
  %4801 = vst [vmem:[#allocation3 + $0x8c0] sm:$0xff] %v4729
  %4802 = vst [vmem:[#allocation3 + $0x908] sm:$0xff] %v4734
  %4803 = vst [vmem:[#allocation3 + $0x950] sm:$0xff] %v4735
  %4804 = vst [vmem:[#allocation3 + $0x998] sm:$0xff] %v4736
  %4805 = vst [vmem:[#allocation3 + $0x9e0] sm:$0xff] %v4737
  %4806 = vst [vmem:[#allocation3 + $0xa28] sm:$0xff] %v4738
  %4807 = vst [vmem:[#allocation3 + $0xa70] sm:$0xff] %v4739
  %4808 = vst [vmem:[#allocation3 + $0xab8] sm:$0xff] %v4740
  %4809 = vst [vmem:[#allocation3 + $0xb00] sm:$0xff] %v4741
  %4810 = vst [vmem:[#allocation3 + $0xb48] sm:$0xff] %v4742
  %4811 = vst [vmem:[#allocation3 + $0xb90] sm:$0xff] %v4743
  %4812 = vst [vmem:[#allocation3 + $0xbd8] sm:$0xff] %v4744
  %4813 = vst [vmem:[#allocation3 + $0xc20] sm:$0xff] %v4745
  %4814 = vst [vmem:[#allocation3 + $0xc68] sm:$0xff] %v4746
  %4815 = vst [vmem:[#allocation3 + $0xcb0] sm:$0xff] %v4747
  %4816 = vst [vmem:[#allocation3 + $0xcf8] sm:$0xff] %v4748
  %4817 = vst [vmem:[#allocation3 + $0xd40] sm:$0xff] %v4749
  %4818 = vst [vmem:[#allocation3 + $0xd88] sm:$0xff] %v4750
  %4819 = vst [vmem:[#allocation3 + $0xdd0] sm:$0xff] %v4751
  %4820 = vst [vmem:[#allocation3 + $0xe18] sm:$0xff] %v4752
  %4821 = vst [vmem:[#allocation3 + $0xe60] sm:$0xff] %v4753
  %4822 = vst [vmem:[#allocation3 + $0xea8] sm:$0xff] %v4754
  %4823 = vst [vmem:[#allocation3 + $0xef0] sm:$0xff] %v4755
  %4824 = vst [vmem:[#allocation3 + $0xf38] sm:$0xff] %v4756
  %4825 = vst [vmem:[#allocation3 + $0xf80] sm:$0xff] %v4757
  %4826 = vst [vmem:[#allocation3 + $0xfc8] sm:$0xff] %v4758
  %4827 = vst [vmem:[#allocation3 + $0x1010] sm:$0xff] %v4759
  %4828 = vst [vmem:[#allocation3 + $0x1058] sm:$0xff] %v4760
  %4829 = vst [vmem:[#allocation3 + $0x10a0] sm:$0xff] %v4761
  %4830 = vst [vmem:[#allocation3 + $0x10e8] sm:$0xff] %v4762
  %4831 = vst [vmem:[#allocation3 + $0x1130] sm:$0xff] %v4763
  %4832 = vst [vmem:[#allocation3 + $0x1178] sm:$0xff] %v4764
  %4833 = vst [vmem:[#allocation3 + $0x11c0] sm:$0xff] %v4765
  %4834 = vst [vmem:[#allocation3 + $0x20] sm:$0xff] %v4700
  %4835 = vst [vmem:[#allocation3 + $0x68] sm:$0xff] %v4701
  %4836 = vst [vmem:[#allocation3 + $0xb0] sm:$0xff] %v4702
  %4837 = vst [vmem:[#allocation3 + $0xf8] sm:$0xff] %v4703
  %4838 = vst [vmem:[#allocation3 + $0x140] sm:$0xff] %v4704
  %4839 = vst [vmem:[#allocation3 + $0x188] sm:$0xff] %v4705
  %4840 = vst [vmem:[#allocation3 + $0x1d0] sm:$0xff] %v4706
  %4841 = vst [vmem:[#allocation3 + $0x218] sm:$0xff] %v4707
  %4842 = vst [vmem:[#allocation3 + $0x260] sm:$0xff] %v4708
  %4843 = vst [vmem:[#allocation3 + $0x2a8] sm:$0xff] %v4709
  %4844 = vst [vmem:[#allocation3 + $0x2f0] sm:$0xff] %v4710
  %4845 = vst [vmem:[#allocation3 + $0x338] sm:$0xff] %v4711
  %4846 = vst [vmem:[#allocation3 + $0x380] sm:$0xff] %v4712
  %4847 = vst [vmem:[#allocation3 + $0x3c8] sm:$0xff] %v4713
  %4848 = vst [vmem:[#allocation3 + $0x410] sm:$0xff] %v4714
  %4849 = vst [vmem:[#allocation3 + $0x458] sm:$0xff] %v4715
  %4850 = vst [vmem:[#allocation3 + $0x4a0] sm:$0xff] %v4716
  %4851 = vst [vmem:[#allocation3 + $0x4e8] sm:$0xff] %v4717
  %4852 = vst [vmem:[#allocation3 + $0x530] sm:$0xff] %v4718
  %4853 = vst [vmem:[#allocation3 + $0x578] sm:$0xff] %v4719
  %4854 = vst [vmem:[#allocation3 + $0x5c0] sm:$0xff] %v4720
  %4855 = vst [vmem:[#allocation3 + $0x608] sm:$0xff] %v4721
  %4856 = vst [vmem:[#allocation3 + $0x650] sm:$0xff] %v4722
  %4857 = vst [vmem:[#allocation3 + $0x698] sm:$0xff] %v4723
  %4858 = vst [vmem:[#allocation3 + $0x6e0] sm:$0xff] %v4724
  %4859 = vst [vmem:[#allocation3 + $0x728] sm:$0xff] %v4725
  %4860 = vst [vmem:[#allocation3 + $0x770] sm:$0xff] %v4726
  %4861 = vst [vmem:[#allocation3 + $0x7b8] sm:$0xff] %v4727
  %4862 = vst [vmem:[#allocation3 + $0x800] sm:$0xff] %v4728
  %4863 = vst [vmem:[#allocation3 + $0x848] sm:$0xff] %v4729
  %4864 = vst [vmem:[#allocation3 + $0x890] sm:$0xff] %v4730
  %4865 = vst [vmem:[#allocation3 + $0x8d8] sm:$0xff] %v4731
  %4866 = vst [vmem:[#allocation3 + $0x920] sm:$0xff] %v4736
  %4867 = vst [vmem:[#allocation3 + $0x968] sm:$0xff] %v4737
  %4868 = vst [vmem:[#allocation3 + $0x9b0] sm:$0xff] %v4738
  %4869 = vst [vmem:[#allocation3 + $0x9f8] sm:$0xff] %v4739
  %4870 = vst [vmem:[#allocation3 + $0xa40] sm:$0xff] %v4740
  %4871 = vst [vmem:[#allocation3 + $0xa88] sm:$0xff] %v4741
  %4872 = vst [vmem:[#allocation3 + $0xad0] sm:$0xff] %v4742
  %4873 = vst [vmem:[#allocation3 + $0xb18] sm:$0xff] %v4743
  %4874 = vst [vmem:[#allocation3 + $0xb60] sm:$0xff] %v4744
  %4875 = vst [vmem:[#allocation3 + $0xba8] sm:$0xff] %v4745
  %4876 = vst [vmem:[#allocation3 + $0xbf0] sm:$0xff] %v4746
  %4877 = vst [vmem:[#allocation3 + $0xc38] sm:$0xff] %v4747
  %4878 = vst [vmem:[#allocation3 + $0xc80] sm:$0xff] %v4748
  %4879 = vst [vmem:[#allocation3 + $0xcc8] sm:$0xff] %v4749
  %4880 = vst [vmem:[#allocation3 + $0xd10] sm:$0xff] %v4750
  %4881 = vst [vmem:[#allocation3 + $0xd58] sm:$0xff] %v4751
  %4882 = vst [vmem:[#allocation3 + $0xda0] sm:$0xff] %v4752
  %4883 = vst [vmem:[#allocation3 + $0xde8] sm:$0xff] %v4753
  %4884 = vst [vmem:[#allocation3 + $0xe30] sm:$0xff] %v4754
  %4885 = vst [vmem:[#allocation3 + $0xe78] sm:$0xff] %v4755
  %4886 = vst [vmem:[#allocation3 + $0xec0] sm:$0xff] %v4756
  %4887 = vst [vmem:[#allocation3 + $0xf08] sm:$0xff] %v4757
  %4888 = vst [vmem:[#allocation3 + $0xf50] sm:$0xff] %v4758
  %4889 = vst [vmem:[#allocation3 + $0xf98] sm:$0xff] %v4759
  %4890 = vst [vmem:[#allocation3 + $0xfe0] sm:$0xff] %v4760
  %4891 = vst [vmem:[#allocation3 + $0x1028] sm:$0xff] %v4761
  %4892 = vst [vmem:[#allocation3 + $0x1070] sm:$0xff] %v4762
  %4893 = vst [vmem:[#allocation3 + $0x10b8] sm:$0xff] %v4763
  %4894 = vst [vmem:[#allocation3 + $0x1100] sm:$0xff] %v4764
  %4895 = vst [vmem:[#allocation3 + $0x1148] sm:$0xff] %v4765
  %4896 = vst [vmem:[#allocation3 + $0x1190] sm:$0xff] %v4766
  %4897 = vst [vmem:[#allocation3 + $0x11d8] sm:$0xff] %v4767
  %4898 = vst [vmem:[#allocation3 + $0x38] sm:$0xff] %v4702
  %4899 = vst [vmem:[#allocation3 + $0x80] sm:$0xff] %v4703
  %4900 = vst [vmem:[#allocation3 + $0xc8] sm:$0xff] %v4704
  %4901 = vst [vmem:[#allocation3 + $0x110] sm:$0xff] %v4705
  %4902 = vst [vmem:[#allocation3 + $0x158] sm:$0xff] %v4706
  %4903 = vst [vmem:[#allocation3 + $0x1a0] sm:$0xff] %v4707
  %4904 = vst [vmem:[#allocation3 + $0x1e8] sm:$0xff] %v4708
  %4905 = vst [vmem:[#allocation3 + $0x230] sm:$0xff] %v4709
  %4906 = vst [vmem:[#allocation3 + $0x278] sm:$0xff] %v4710
  %4907 = vst [vmem:[#allocation3 + $0x2c0] sm:$0xff] %v4711
  %4908 = vst [vmem:[#allocation3 + $0x308] sm:$0xff] %v4712
  %4909 = vst [vmem:[#allocation3 + $0x350] sm:$0xff] %v4713
  %4910 = vst [vmem:[#allocation3 + $0x398] sm:$0xff] %v4714
  %4911 = vst [vmem:[#allocation3 + $0x3e0] sm:$0xff] %v4715
  %4912 = vst [vmem:[#allocation3 + $0x428] sm:$0xff] %v4716
  %4913 = vst [vmem:[#allocation3 + $0x470] sm:$0xff] %v4717
  %4914 = vst [vmem:[#allocation3 + $0x4b8] sm:$0xff] %v4718
  %4915 = vst [vmem:[#allocation3 + $0x500] sm:$0xff] %v4719
  %4916 = vst [vmem:[#allocation3 + $0x548] sm:$0xff] %v4720
  %4917 = vst [vmem:[#allocation3 + $0x590] sm:$0xff] %v4721
  %4918 = vst [vmem:[#allocation3 + $0x5d8] sm:$0xff] %v4722
  %4919 = vst [vmem:[#allocation3 + $0x620] sm:$0xff] %v4723
  %4920 = vst [vmem:[#allocation3 + $0x668] sm:$0xff] %v4724
  %4921 = vst [vmem:[#allocation3 + $0x6b0] sm:$0xff] %v4725
  %4922 = vst [vmem:[#allocation3 + $0x6f8] sm:$0xff] %v4726
  %4923 = vst [vmem:[#allocation3 + $0x740] sm:$0xff] %v4727
  %4924 = vst [vmem:[#allocation3 + $0x788] sm:$0xff] %v4728
  %4925 = vst [vmem:[#allocation3 + $0x7d0] sm:$0xff] %v4729
  %4926 = vst [vmem:[#allocation3 + $0x818] sm:$0xff] %v4730
  %4927 = vst [vmem:[#allocation3 + $0x860] sm:$0xff] %v4731
  %4928 = vst [vmem:[#allocation3 + $0x8a8] sm:$0xff] %v4732
  %4929 = vst [vmem:[#allocation3 + $0x8f0] sm:$0xff] %v4733
  %4930 = vst [vmem:[#allocation3 + $0x938] sm:$0xff] %v4738
  %4931 = vst [vmem:[#allocation3 + $0x980] sm:$0xff] %v4739
  %4932 = vst [vmem:[#allocation3 + $0x9c8] sm:$0xff] %v4740
  %4933 = vst [vmem:[#allocation3 + $0xa10] sm:$0xff] %v4741
  %4934 = vst [vmem:[#allocation3 + $0xa58] sm:$0xff] %v4742
  %4935 = vst [vmem:[#allocation3 + $0xaa0] sm:$0xff] %v4743
  %4936 = vst [vmem:[#allocation3 + $0xae8] sm:$0xff] %v4744
  %4937 = vst [vmem:[#allocation3 + $0xb30] sm:$0xff] %v4745
  %4938 = vst [vmem:[#allocation3 + $0xb78] sm:$0xff] %v4746
  %4939 = vst [vmem:[#allocation3 + $0xbc0] sm:$0xff] %v4747
  %4940 = vst [vmem:[#allocation3 + $0xc08] sm:$0xff] %v4748
  %4941 = vst [vmem:[#allocation3 + $0xc50] sm:$0xff] %v4749
  %4942 = vst [vmem:[#allocation3 + $0xc98] sm:$0xff] %v4750
  %4943 = vst [vmem:[#allocation3 + $0xce0] sm:$0xff] %v4751
  %4944 = vst [vmem:[#allocation3 + $0xd28] sm:$0xff] %v4752
  %4945 = vst [vmem:[#allocation3 + $0xd70] sm:$0xff] %v4753
  %4946 = vst [vmem:[#allocation3 + $0xdb8] sm:$0xff] %v4754
  %4947 = vst [vmem:[#allocation3 + $0xe00] sm:$0xff] %v4755
  %4948 = vst [vmem:[#allocation3 + $0xe48] sm:$0xff] %v4756
  %4949 = vst [vmem:[#allocation3 + $0xe90] sm:$0xff] %v4757
  %4950 = vst [vmem:[#allocation3 + $0xed8] sm:$0xff] %v4758
  %4951 = vst [vmem:[#allocation3 + $0xf20] sm:$0xff] %v4759
  %4952 = vst [vmem:[#allocation3 + $0xf68] sm:$0xff] %v4760
  %4953 = vst [vmem:[#allocation3 + $0xfb0] sm:$0xff] %v4761
  %4954 = vst [vmem:[#allocation3 + $0xff8] sm:$0xff] %v4762
  %4955 = vst [vmem:[#allocation3 + $0x1040] sm:$0xff] %v4763
  %4956 = vst [vmem:[#allocation3 + $0x1088] sm:$0xff] %v4764
  %4957 = vst [vmem:[#allocation3 + $0x10d0] sm:$0xff] %v4765
  %4958 = vst [vmem:[#allocation3 + $0x1118] sm:$0xff] %v4766
  %4959 = vst [vmem:[#allocation3 + $0x1160] sm:$0xff] %v4767
  %4960 = vst [vmem:[#allocation3 + $0x11a8] sm:$0xff] %v4768
  %4961 = vst [vmem:[#allocation3 + $0x11f0] sm:$0xff] %v4769
  %v4962 = vld [vmem:[#allocation2 + $0x2] sm:$0xff]
  %v4963 = vld [vmem:[#allocation2 + $0xa] sm:$0xff]
  %v4964 = vld [vmem:[#allocation2 + $0x1a] sm:$0xff]
  %v4965 = vld [vmem:[#allocation2 + $0x22] sm:$0xff]
  %v4966 = vld [vmem:[#allocation2 + $0x32] sm:$0xff]
  %v4967 = vld [vmem:[#allocation2 + $0x3a] sm:$0xff]
  %v4968 = vld [vmem:[#allocation2 + $0x4a] sm:$0xff]
  %v4969 = vld [vmem:[#allocation2 + $0x52] sm:$0xff]
  %v4970 = vld [vmem:[#allocation2 + $0x62] sm:$0xff]
  %v4971 = vld [vmem:[#allocation2 + $0x6a] sm:$0xff]
  %v4972 = vld [vmem:[#allocation2 + $0x7a] sm:$0xff]
  %v4973 = vld [vmem:[#allocation2 + $0x82] sm:$0xff]
  %v4974 = vld [vmem:[#allocation2 + $0x92] sm:$0xff]
  %v4975 = vld [vmem:[#allocation2 + $0x9a] sm:$0xff]
  %v4976 = vld [vmem:[#allocation2 + $0xaa] sm:$0xff]
  %v4977 = vld [vmem:[#allocation2 + $0xb2] sm:$0xff]
  %v4978 = vld [vmem:[#allocation2 + $0xc2] sm:$0xff]
  %v4979 = vld [vmem:[#allocation2 + $0xca] sm:$0xff]
  %v4980 = vld [vmem:[#allocation2 + $0xda] sm:$0xff]
  %v4981 = vld [vmem:[#allocation2 + $0xe2] sm:$0xff]
  %v4982 = vld [vmem:[#allocation2 + $0xf2] sm:$0xff]
  %v4983 = vld [vmem:[#allocation2 + $0xfa] sm:$0xff]
  %v4984 = vld [vmem:[#allocation2 + $0x10a] sm:$0xff]
  %v4985 = vld [vmem:[#allocation2 + $0x112] sm:$0xff]
  %v4986 = vld [vmem:[#allocation2 + $0x122] sm:$0xff]
  %v4987 = vld [vmem:[#allocation2 + $0x12a] sm:$0xff]
  %v4988 = vld [vmem:[#allocation2 + $0x13a] sm:$0xff]
  %v4989 = vld [vmem:[#allocation2 + $0x142] sm:$0xff]
  %v4990 = vld [vmem:[#allocation2 + $0x152] sm:$0xff]
  %v4991 = vld [vmem:[#allocation2 + $0x15a] sm:$0xff]
  %v4992 = vld [vmem:[#allocation2 + $0x16a] sm:$0xff]
  %v4993 = vld [vmem:[#allocation2 + $0x172] sm:$0xff]
  %v4994 = vld [vmem:[#allocation2 + $0x182] sm:$0xff]
  %v4995 = vld [vmem:[#allocation2 + $0x18a] sm:$0xff]
  %v4996 = vld [vmem:[#allocation2 + $0x19a] sm:$0xff]
  %v4997 = vld [vmem:[#allocation2 + $0x1a2] sm:$0xff]
  %v4998 = vld [vmem:[#allocation2 + $0x1b2] sm:$0xff]
  %v4999 = vld [vmem:[#allocation2 + $0x1ba] sm:$0xff]
  %v5000 = vld [vmem:[#allocation2 + $0x1ca] sm:$0xff]
  %v5001 = vld [vmem:[#allocation2 + $0x1d2] sm:$0xff]
  %v5002 = vld [vmem:[#allocation2 + $0x1e2] sm:$0xff]
  %v5003 = vld [vmem:[#allocation2 + $0x1ea] sm:$0xff]
  %v5004 = vld [vmem:[#allocation2 + $0x1fa] sm:$0xff]
  %v5005 = vld [vmem:[#allocation2 + $0x202] sm:$0xff]
  %v5006 = vld [vmem:[#allocation2 + $0x212] sm:$0xff]
  %v5007 = vld [vmem:[#allocation2 + $0x21a] sm:$0xff]
  %v5008 = vld [vmem:[#allocation2 + $0x22a] sm:$0xff]
  %v5009 = vld [vmem:[#allocation2 + $0x232] sm:$0xff]
  %v5010 = vld [vmem:[#allocation2 + $0x242] sm:$0xff]
  %v5011 = vld [vmem:[#allocation2 + $0x24a] sm:$0xff]
  %v5012 = vld [vmem:[#allocation2 + $0x25a] sm:$0xff]
  %v5013 = vld [vmem:[#allocation2 + $0x262] sm:$0xff]
  %v5014 = vld [vmem:[#allocation2 + $0x272] sm:$0xff]
  %v5015 = vld [vmem:[#allocation2 + $0x27a] sm:$0xff]
  %v5016 = vld [vmem:[#allocation2 + $0x28a] sm:$0xff]
  %v5017 = vld [vmem:[#allocation2 + $0x292] sm:$0xff]
  %v5018 = vld [vmem:[#allocation2 + $0x2a2] sm:$0xff]
  %v5019 = vld [vmem:[#allocation2 + $0x2aa] sm:$0xff]
  %v5020 = vld [vmem:[#allocation2 + $0x2ba] sm:$0xff]
  %v5021 = vld [vmem:[#allocation2 + $0x2c2] sm:$0xff]
  %v5022 = vld [vmem:[#allocation2 + $0x2d2] sm:$0xff]
  %v5023 = vld [vmem:[#allocation2 + $0x2da] sm:$0xff]
  %v5024 = vld [vmem:[#allocation2 + $0x2ea] sm:$0xff]
  %v5025 = vld [vmem:[#allocation2 + $0x2f2] sm:$0xff]
  %v5026 = vld [vmem:[#allocation2 + $0x302] sm:$0xff]
  %v5027 = vld [vmem:[#allocation2 + $0x30a] sm:$0xff]
  %v5028 = vld [vmem:[#allocation2 + $0x31a] sm:$0xff]
  %v5029 = vld [vmem:[#allocation2 + $0x322] sm:$0xff]
  %v5030 = vld [vmem:[#allocation2 + $0x332] sm:$0xff]
  %v5031 = vld [vmem:[#allocation2 + $0x33a] sm:$0xff]
  %v5032 = vld [vmem:[#allocation2 + $0x34a] sm:$0xff]
  %v5033 = vld [vmem:[#allocation2 + $0x352] sm:$0xff]
  %5034 = vst [vmem:[#allocation3 + $0x10] sm:$0xff] %v4962
  %5035 = vst [vmem:[#allocation3 + $0x58] sm:$0xff] %v4963
  %5036 = vst [vmem:[#allocation3 + $0xa0] sm:$0xff] %v4964
  %5037 = vst [vmem:[#allocation3 + $0xe8] sm:$0xff] %v4965
  %5038 = vst [vmem:[#allocation3 + $0x130] sm:$0xff] %v4966
  %5039 = vst [vmem:[#allocation3 + $0x178] sm:$0xff] %v4967
  %5040 = vst [vmem:[#allocation3 + $0x1c0] sm:$0xff] %v4968
  %5041 = vst [vmem:[#allocation3 + $0x208] sm:$0xff] %v4969
  %5042 = vst [vmem:[#allocation3 + $0x250] sm:$0xff] %v4970
  %5043 = vst [vmem:[#allocation3 + $0x298] sm:$0xff] %v4971
  %5044 = vst [vmem:[#allocation3 + $0x2e0] sm:$0xff] %v4972
  %5045 = vst [vmem:[#allocation3 + $0x328] sm:$0xff] %v4973
  %5046 = vst [vmem:[#allocation3 + $0x370] sm:$0xff] %v4974
  %5047 = vst [vmem:[#allocation3 + $0x3b8] sm:$0xff] %v4975
  %5048 = vst [vmem:[#allocation3 + $0x400] sm:$0xff] %v4976
  %5049 = vst [vmem:[#allocation3 + $0x448] sm:$0xff] %v4977
  %5050 = vst [vmem:[#allocation3 + $0x490] sm:$0xff] %v4978
  %5051 = vst [vmem:[#allocation3 + $0x4d8] sm:$0xff] %v4979
  %5052 = vst [vmem:[#allocation3 + $0x520] sm:$0xff] %v4980
  %5053 = vst [vmem:[#allocation3 + $0x568] sm:$0xff] %v4981
  %5054 = vst [vmem:[#allocation3 + $0x5b0] sm:$0xff] %v4982
  %5055 = vst [vmem:[#allocation3 + $0x5f8] sm:$0xff] %v4983
  %5056 = vst [vmem:[#allocation3 + $0x640] sm:$0xff] %v4984
  %5057 = vst [vmem:[#allocation3 + $0x688] sm:$0xff] %v4985
  %5058 = vst [vmem:[#allocation3 + $0x6d0] sm:$0xff] %v4986
  %5059 = vst [vmem:[#allocation3 + $0x718] sm:$0xff] %v4987
  %5060 = vst [vmem:[#allocation3 + $0x760] sm:$0xff] %v4988
  %5061 = vst [vmem:[#allocation3 + $0x7a8] sm:$0xff] %v4989
  %5062 = vst [vmem:[#allocation3 + $0x7f0] sm:$0xff] %v4990
  %5063 = vst [vmem:[#allocation3 + $0x838] sm:$0xff] %v4991
  %5064 = vst [vmem:[#allocation3 + $0x880] sm:$0xff] %v4992
  %5065 = vst [vmem:[#allocation3 + $0x8c8] sm:$0xff] %v4993
  %5066 = vst [vmem:[#allocation3 + $0x910] sm:$0xff] %v4998
  %5067 = vst [vmem:[#allocation3 + $0x958] sm:$0xff] %v4999
  %5068 = vst [vmem:[#allocation3 + $0x9a0] sm:$0xff] %v5000
  %5069 = vst [vmem:[#allocation3 + $0x9e8] sm:$0xff] %v5001
  %5070 = vst [vmem:[#allocation3 + $0xa30] sm:$0xff] %v5002
  %5071 = vst [vmem:[#allocation3 + $0xa78] sm:$0xff] %v5003
  %5072 = vst [vmem:[#allocation3 + $0xac0] sm:$0xff] %v5004
  %5073 = vst [vmem:[#allocation3 + $0xb08] sm:$0xff] %v5005
  %5074 = vst [vmem:[#allocation3 + $0xb50] sm:$0xff] %v5006
  %5075 = vst [vmem:[#allocation3 + $0xb98] sm:$0xff] %v5007
  %5076 = vst [vmem:[#allocation3 + $0xbe0] sm:$0xff] %v5008
  %5077 = vst [vmem:[#allocation3 + $0xc28] sm:$0xff] %v5009
  %5078 = vst [vmem:[#allocation3 + $0xc70] sm:$0xff] %v5010
  %5079 = vst [vmem:[#allocation3 + $0xcb8] sm:$0xff] %v5011
  %5080 = vst [vmem:[#allocation3 + $0xd00] sm:$0xff] %v5012
  %5081 = vst [vmem:[#allocation3 + $0xd48] sm:$0xff] %v5013
  %5082 = vst [vmem:[#allocation3 + $0xd90] sm:$0xff] %v5014
  %5083 = vst [vmem:[#allocation3 + $0xdd8] sm:$0xff] %v5015
  %5084 = vst [vmem:[#allocation3 + $0xe20] sm:$0xff] %v5016
  %5085 = vst [vmem:[#allocation3 + $0xe68] sm:$0xff] %v5017
  %5086 = vst [vmem:[#allocation3 + $0xeb0] sm:$0xff] %v5018
  %5087 = vst [vmem:[#allocation3 + $0xef8] sm:$0xff] %v5019
  %5088 = vst [vmem:[#allocation3 + $0xf40] sm:$0xff] %v5020
  %5089 = vst [vmem:[#allocation3 + $0xf88] sm:$0xff] %v5021
  %5090 = vst [vmem:[#allocation3 + $0xfd0] sm:$0xff] %v5022
  %5091 = vst [vmem:[#allocation3 + $0x1018] sm:$0xff] %v5023
  %5092 = vst [vmem:[#allocation3 + $0x1060] sm:$0xff] %v5024
  %5093 = vst [vmem:[#allocation3 + $0x10a8] sm:$0xff] %v5025
  %5094 = vst [vmem:[#allocation3 + $0x10f0] sm:$0xff] %v5026
  %5095 = vst [vmem:[#allocation3 + $0x1138] sm:$0xff] %v5027
  %5096 = vst [vmem:[#allocation3 + $0x1180] sm:$0xff] %v5028
  %5097 = vst [vmem:[#allocation3 + $0x11c8] sm:$0xff] %v5029
  %5098 = vst [vmem:[#allocation3 + $0x28] sm:$0xff] %v4964
  %5099 = vst [vmem:[#allocation3 + $0x70] sm:$0xff] %v4965
  %5100 = vst [vmem:[#allocation3 + $0xb8] sm:$0xff] %v4966
  %5101 = vst [vmem:[#allocation3 + $0x100] sm:$0xff] %v4967
  %5102 = vst [vmem:[#allocation3 + $0x148] sm:$0xff] %v4968
  %5103 = vst [vmem:[#allocation3 + $0x190] sm:$0xff] %v4969
  %5104 = vst [vmem:[#allocation3 + $0x1d8] sm:$0xff] %v4970
  %5105 = vst [vmem:[#allocation3 + $0x220] sm:$0xff] %v4971
  %5106 = vst [vmem:[#allocation3 + $0x268] sm:$0xff] %v4972
  %5107 = vst [vmem:[#allocation3 + $0x2b0] sm:$0xff] %v4973
  %5108 = vst [vmem:[#allocation3 + $0x2f8] sm:$0xff] %v4974
  %5109 = vst [vmem:[#allocation3 + $0x340] sm:$0xff] %v4975
  %5110 = vst [vmem:[#allocation3 + $0x388] sm:$0xff] %v4976
  %5111 = vst [vmem:[#allocation3 + $0x3d0] sm:$0xff] %v4977
  %5112 = vst [vmem:[#allocation3 + $0x418] sm:$0xff] %v4978
  %5113 = vst [vmem:[#allocation3 + $0x460] sm:$0xff] %v4979
  %5114 = vst [vmem:[#allocation3 + $0x4a8] sm:$0xff] %v4980
  %5115 = vst [vmem:[#allocation3 + $0x4f0] sm:$0xff] %v4981
  %5116 = vst [vmem:[#allocation3 + $0x538] sm:$0xff] %v4982
  %5117 = vst [vmem:[#allocation3 + $0x580] sm:$0xff] %v4983
  %5118 = vst [vmem:[#allocation3 + $0x5c8] sm:$0xff] %v4984
  %5119 = vst [vmem:[#allocation3 + $0x610] sm:$0xff] %v4985
  %5120 = vst [vmem:[#allocation3 + $0x658] sm:$0xff] %v4986
  %5121 = vst [vmem:[#allocation3 + $0x6a0] sm:$0xff] %v4987
  %5122 = vst [vmem:[#allocation3 + $0x6e8] sm:$0xff] %v4988
  %5123 = vst [vmem:[#allocation3 + $0x730] sm:$0xff] %v4989
  %5124 = vst [vmem:[#allocation3 + $0x778] sm:$0xff] %v4990
  %5125 = vst [vmem:[#allocation3 + $0x7c0] sm:$0xff] %v4991
  %5126 = vst [vmem:[#allocation3 + $0x808] sm:$0xff] %v4992
  %5127 = vst [vmem:[#allocation3 + $0x850] sm:$0xff] %v4993
  %5128 = vst [vmem:[#allocation3 + $0x898] sm:$0xff] %v4994
  %5129 = vst [vmem:[#allocation3 + $0x8e0] sm:$0xff] %v4995
  %5130 = vst [vmem:[#allocation3 + $0x928] sm:$0xff] %v5000
  %5131 = vst [vmem:[#allocation3 + $0x970] sm:$0xff] %v5001
  %5132 = vst [vmem:[#allocation3 + $0x9b8] sm:$0xff] %v5002
  %5133 = vst [vmem:[#allocation3 + $0xa00] sm:$0xff] %v5003
  %5134 = vst [vmem:[#allocation3 + $0xa48] sm:$0xff] %v5004
  %5135 = vst [vmem:[#allocation3 + $0xa90] sm:$0xff] %v5005
  %5136 = vst [vmem:[#allocation3 + $0xad8] sm:$0xff] %v5006
  %5137 = vst [vmem:[#allocation3 + $0xb20] sm:$0xff] %v5007
  %5138 = vst [vmem:[#allocation3 + $0xb68] sm:$0xff] %v5008
  %5139 = vst [vmem:[#allocation3 + $0xbb0] sm:$0xff] %v5009
  %5140 = vst [vmem:[#allocation3 + $0xbf8] sm:$0xff] %v5010
  %5141 = vst [vmem:[#allocation3 + $0xc40] sm:$0xff] %v5011
  %5142 = vst [vmem:[#allocation3 + $0xc88] sm:$0xff] %v5012
  %5143 = vst [vmem:[#allocation3 + $0xcd0] sm:$0xff] %v5013
  %5144 = vst [vmem:[#allocation3 + $0xd18] sm:$0xff] %v5014
  %5145 = vst [vmem:[#allocation3 + $0xd60] sm:$0xff] %v5015
  %5146 = vst [vmem:[#allocation3 + $0xda8] sm:$0xff] %v5016
  %5147 = vst [vmem:[#allocation3 + $0xdf0] sm:$0xff] %v5017
  %5148 = vst [vmem:[#allocation3 + $0xe38] sm:$0xff] %v5018
  %5149 = vst [vmem:[#allocation3 + $0xe80] sm:$0xff] %v5019
  %5150 = vst [vmem:[#allocation3 + $0xec8] sm:$0xff] %v5020
  %5151 = vst [vmem:[#allocation3 + $0xf10] sm:$0xff] %v5021
  %5152 = vst [vmem:[#allocation3 + $0xf58] sm:$0xff] %v5022
  %5153 = vst [vmem:[#allocation3 + $0xfa0] sm:$0xff] %v5023
  %5154 = vst [vmem:[#allocation3 + $0xfe8] sm:$0xff] %v5024
  %5155 = vst [vmem:[#allocation3 + $0x1030] sm:$0xff] %v5025
  %5156 = vst [vmem:[#allocation3 + $0x1078] sm:$0xff] %v5026
  %5157 = vst [vmem:[#allocation3 + $0x10c0] sm:$0xff] %v5027
  %5158 = vst [vmem:[#allocation3 + $0x1108] sm:$0xff] %v5028
  %5159 = vst [vmem:[#allocation3 + $0x1150] sm:$0xff] %v5029
  %5160 = vst [vmem:[#allocation3 + $0x1198] sm:$0xff] %v5030
  %5161 = vst [vmem:[#allocation3 + $0x11e0] sm:$0xff] %v5031
  %5162 = vst [vmem:[#allocation3 + $0x40] sm:$0xff] %v4966
  %5163 = vst [vmem:[#allocation3 + $0x88] sm:$0xff] %v4967
  %5164 = vst [vmem:[#allocation3 + $0xd0] sm:$0xff] %v4968
  %5165 = vst [vmem:[#allocation3 + $0x118] sm:$0xff] %v4969
  %5166 = vst [vmem:[#allocation3 + $0x160] sm:$0xff] %v4970
  %5167 = vst [vmem:[#allocation3 + $0x1a8] sm:$0xff] %v4971
  %5168 = vst [vmem:[#allocation3 + $0x1f0] sm:$0xff] %v4972
  %5169 = vst [vmem:[#allocation3 + $0x238] sm:$0xff] %v4973
  %5170 = vst [vmem:[#allocation3 + $0x280] sm:$0xff] %v4974
  %5171 = vst [vmem:[#allocation3 + $0x2c8] sm:$0xff] %v4975
  %5172 = vst [vmem:[#allocation3 + $0x310] sm:$0xff] %v4976
  %5173 = vst [vmem:[#allocation3 + $0x358] sm:$0xff] %v4977
  %5174 = vst [vmem:[#allocation3 + $0x3a0] sm:$0xff] %v4978
  %5175 = vst [vmem:[#allocation3 + $0x3e8] sm:$0xff] %v4979
  %5176 = vst [vmem:[#allocation3 + $0x430] sm:$0xff] %v4980
  %5177 = vst [vmem:[#allocation3 + $0x478] sm:$0xff] %v4981
  %5178 = vst [vmem:[#allocation3 + $0x4c0] sm:$0xff] %v4982
  %5179 = vst [vmem:[#allocation3 + $0x508] sm:$0xff] %v4983
  %5180 = vst [vmem:[#allocation3 + $0x550] sm:$0xff] %v4984
  %5181 = vst [vmem:[#allocation3 + $0x598] sm:$0xff] %v4985
  %5182 = vst [vmem:[#allocation3 + $0x5e0] sm:$0xff] %v4986
  %5183 = vst [vmem:[#allocation3 + $0x628] sm:$0xff] %v4987
  %5184 = vst [vmem:[#allocation3 + $0x670] sm:$0xff] %v4988
  %5185 = vst [vmem:[#allocation3 + $0x6b8] sm:$0xff] %v4989
  %5186 = vst [vmem:[#allocation3 + $0x700] sm:$0xff] %v4990
  %5187 = vst [vmem:[#allocation3 + $0x748] sm:$0xff] %v4991
  %5188 = vst [vmem:[#allocation3 + $0x790] sm:$0xff] %v4992
  %5189 = vst [vmem:[#allocation3 + $0x7d8] sm:$0xff] %v4993
  %5190 = vst [vmem:[#allocation3 + $0x820] sm:$0xff] %v4994
  %5191 = vst [vmem:[#allocation3 + $0x868] sm:$0xff] %v4995
  %5192 = vst [vmem:[#allocation3 + $0x8b0] sm:$0xff] %v4996
  %5193 = vst [vmem:[#allocation3 + $0x8f8] sm:$0xff] %v4997
  %5194 = vst [vmem:[#allocation3 + $0x940] sm:$0xff] %v5002
  %5195 = vst [vmem:[#allocation3 + $0x988] sm:$0xff] %v5003
  %5196 = vst [vmem:[#allocation3 + $0x9d0] sm:$0xff] %v5004
  %5197 = vst [vmem:[#allocation3 + $0xa18] sm:$0xff] %v5005
  %5198 = vst [vmem:[#allocation3 + $0xa60] sm:$0xff] %v5006
  %5199 = vst [vmem:[#allocation3 + $0xaa8] sm:$0xff] %v5007
  %5200 = vst [vmem:[#allocation3 + $0xaf0] sm:$0xff] %v5008
  %5201 = vst [vmem:[#allocation3 + $0xb38] sm:$0xff] %v5009
  %5202 = vst [vmem:[#allocation3 + $0xb80] sm:$0xff] %v5010
  %5203 = vst [vmem:[#allocation3 + $0xbc8] sm:$0xff] %v5011
  %5204 = vst [vmem:[#allocation3 + $0xc10] sm:$0xff] %v5012
  %5205 = vst [vmem:[#allocation3 + $0xc58] sm:$0xff] %v5013
  %5206 = vst [vmem:[#allocation3 + $0xca0] sm:$0xff] %v5014
  %5207 = vst [vmem:[#allocation3 + $0xce8] sm:$0xff] %v5015
  %5208 = vst [vmem:[#allocation3 + $0xd30] sm:$0xff] %v5016
  %5209 = vst [vmem:[#allocation3 + $0xd78] sm:$0xff] %v5017
  %5210 = vst [vmem:[#allocation3 + $0xdc0] sm:$0xff] %v5018
  %5211 = vst [vmem:[#allocation3 + $0xe08] sm:$0xff] %v5019
  %5212 = vst [vmem:[#allocation3 + $0xe50] sm:$0xff] %v5020
  %5213 = vst [vmem:[#allocation3 + $0xe98] sm:$0xff] %v5021
  %5214 = vst [vmem:[#allocation3 + $0xee0] sm:$0xff] %v5022
  %5215 = vst [vmem:[#allocation3 + $0xf28] sm:$0xff] %v5023
  %5216 = vst [vmem:[#allocation3 + $0xf70] sm:$0xff] %v5024
  %5217 = vst [vmem:[#allocation3 + $0xfb8] sm:$0xff] %v5025
  %5218 = vst [vmem:[#allocation3 + $0x1000] sm:$0xff] %v5026
  %5219 = vst [vmem:[#allocation3 + $0x1048] sm:$0xff] %v5027
  %5220 = vst [vmem:[#allocation3 + $0x1090] sm:$0xff] %v5028
  %5221 = vst [vmem:[#allocation3 + $0x10d8] sm:$0xff] %v5029
  %5222 = vst [vmem:[#allocation3 + $0x1120] sm:$0xff] %v5030
  %5223 = vst [vmem:[#allocation3 + $0x1168] sm:$0xff] %v5031
  %5224 = vst [vmem:[#allocation3 + $0x11b0] sm:$0xff] %v5032
  %5225 = vst [vmem:[#allocation3 + $0x11f8] sm:$0xff] %v5033
  %v5226 = vld [vmem:[#allocation3] sm:$0xff]
  %v5227 = vld [vmem:[#allocation3 + $0x8] sm:$0xff]
  %v5228 = vld [vmem:[#allocation3 + $0x10] sm:$0xff]
  %v5229 = vld [vmem:[#allocation3 + $0x18] sm:$0xff]
  %v5230 = vld [vmem:[#allocation3 + $0x20] sm:$0xff]
  %v5231 = vld [vmem:[#allocation3 + $0x28] sm:$0xff]
  %v5232 = vld [vmem:[#allocation3 + $0x30] sm:$0xff]
  %v5233 = vld [vmem:[#allocation3 + $0x38] sm:$0xff]
  %v5234 = vld [vmem:[#allocation3 + $0x40] sm:$0xff]
  %v5235 = vld [vmem:[#allocation3 + $0x48] sm:$0xff]
  %v5236 = vld [vmem:[#allocation3 + $0x50] sm:$0xff]
  %v5237 = vld [vmem:[#allocation3 + $0x58] sm:$0xff]
  %v5238 = vld [vmem:[#allocation3 + $0x60] sm:$0xff]
  %v5239 = vld [vmem:[#allocation3 + $0x68] sm:$0xff]
  %v5240 = vld [vmem:[#allocation3 + $0x70] sm:$0xff]
  %v5241 = vld [vmem:[#allocation3 + $0x78] sm:$0xff]
  %v5242 = vld [vmem:[#allocation3 + $0x80] sm:$0xff]
  %v5243 = vld [vmem:[#allocation3 + $0x88] sm:$0xff]
  %v5244 = vld [vmem:[#allocation3 + $0x90] sm:$0xff]
  %v5245 = vld [vmem:[#allocation3 + $0x98] sm:$0xff]
  %v5246 = vld [vmem:[#allocation3 + $0xa0] sm:$0xff]
  %v5247 = vld [vmem:[#allocation3 + $0xa8] sm:$0xff]
  %v5248 = vld [vmem:[#allocation3 + $0xb0] sm:$0xff]
  %v5249 = vld [vmem:[#allocation3 + $0xb8] sm:$0xff]
  %v5250 = vld [vmem:[#allocation3 + $0xc0] sm:$0xff]
  %v5251 = vld [vmem:[#allocation3 + $0xc8] sm:$0xff]
  %v5252 = vld [vmem:[#allocation3 + $0xd0] sm:$0xff]
  %v5253 = vld [vmem:[#allocation3 + $0xd8] sm:$0xff]
  %v5254 = vld [vmem:[#allocation3 + $0xe0] sm:$0xff]
  %v5255 = vld [vmem:[#allocation3 + $0xe8] sm:$0xff]
  %v5256 = vld [vmem:[#allocation3 + $0xf0] sm:$0xff]
  %v5257 = vld [vmem:[#allocation3 + $0xf8] sm:$0xff]
  %v5258 = vld [vmem:[#allocation3 + $0x100] sm:$0xff]
  %v5259 = vld [vmem:[#allocation3 + $0x108] sm:$0xff]
  %v5260 = vld [vmem:[#allocation3 + $0x110] sm:$0xff]
  %v5261 = vld [vmem:[#allocation3 + $0x118] sm:$0xff]
  %v5262 = vld [vmem:[#allocation3 + $0x120] sm:$0xff]
  %v5263 = vld [vmem:[#allocation3 + $0x128] sm:$0xff]
  %v5264 = vld [vmem:[#allocation3 + $0x130] sm:$0xff]
  %v5265 = vld [vmem:[#allocation3 + $0x138] sm:$0xff]
  %v5266 = vld [vmem:[#allocation3 + $0x140] sm:$0xff]
  %v5267 = vld [vmem:[#allocation3 + $0x148] sm:$0xff]
  %v5268 = vld [vmem:[#allocation3 + $0x150] sm:$0xff]
  %v5269 = vld [vmem:[#allocation3 + $0x158] sm:$0xff]
  %v5270 = vld [vmem:[#allocation3 + $0x160] sm:$0xff]
  %v5271 = vld [vmem:[#allocation3 + $0x168] sm:$0xff]
  %v5272 = vld [vmem:[#allocation3 + $0x170] sm:$0xff]
  %v5273 = vld [vmem:[#allocation3 + $0x178] sm:$0xff]
  %v5274 = vld [vmem:[#allocation3 + $0x180] sm:$0xff]
  %v5275 = vld [vmem:[#allocation3 + $0x188] sm:$0xff]
  %v5276 = vld [vmem:[#allocation3 + $0x190] sm:$0xff]
  %v5277 = vld [vmem:[#allocation3 + $0x198] sm:$0xff]
  %v5278 = vld [vmem:[#allocation3 + $0x1a0] sm:$0xff]
  %v5279 = vld [vmem:[#allocation3 + $0x1a8] sm:$0xff]
  %v5280 = vld [vmem:[#allocation3 + $0x1b0] sm:$0xff]
  %v5281 = vld [vmem:[#allocation3 + $0x1b8] sm:$0xff]
  %v5282 = vld [vmem:[#allocation3 + $0x1c0] sm:$0xff]
  %v5283 = vld [vmem:[#allocation3 + $0x1c8] sm:$0xff]
  %v5284 = vld [vmem:[#allocation3 + $0x1d0] sm:$0xff]
  %v5285 = vld [vmem:[#allocation3 + $0x1d8] sm:$0xff]
  %v5286 = vld [vmem:[#allocation3 + $0x1e0] sm:$0xff]
  %v5287 = vld [vmem:[#allocation3 + $0x1e8] sm:$0xff]
  %v5288 = vld [vmem:[#allocation3 + $0x1f0] sm:$0xff]
  %v5289 = vld [vmem:[#allocation3 + $0x1f8] sm:$0xff]
  %v5290 = vld [vmem:[#allocation3 + $0x200] sm:$0xff]
  %v5291 = vld [vmem:[#allocation3 + $0x208] sm:$0xff]
  %v5292 = vld [vmem:[#allocation3 + $0x210] sm:$0xff]
  %v5293 = vld [vmem:[#allocation3 + $0x218] sm:$0xff]
  %v5294 = vld [vmem:[#allocation3 + $0x220] sm:$0xff]
  %v5295 = vld [vmem:[#allocation3 + $0x228] sm:$0xff]
  %v5296 = vld [vmem:[#allocation3 + $0x230] sm:$0xff]
  %v5297 = vld [vmem:[#allocation3 + $0x238] sm:$0xff]
  %v5298 = vld [vmem:[#allocation3 + $0x240] sm:$0xff]
  %v5299 = vld [vmem:[#allocation3 + $0x248] sm:$0xff]
  %v5300 = vld [vmem:[#allocation3 + $0x250] sm:$0xff]
  %v5301 = vld [vmem:[#allocation3 + $0x258] sm:$0xff]
  %v5302 = vld [vmem:[#allocation3 + $0x260] sm:$0xff]
  %v5303 = vld [vmem:[#allocation3 + $0x268] sm:$0xff]
  %v5304 = vld [vmem:[#allocation3 + $0x270] sm:$0xff]
  %v5305 = vld [vmem:[#allocation3 + $0x278] sm:$0xff]
  %v5306 = vld [vmem:[#allocation3 + $0x280] sm:$0xff]
  %v5307 = vld [vmem:[#allocation3 + $0x288] sm:$0xff]
  %v5308 = vld [vmem:[#allocation3 + $0x290] sm:$0xff]
  %v5309 = vld [vmem:[#allocation3 + $0x298] sm:$0xff]
  %v5310 = vld [vmem:[#allocation3 + $0x2a0] sm:$0xff]
  %v5311 = vld [vmem:[#allocation3 + $0x2a8] sm:$0xff]
  %v5312 = vld [vmem:[#allocation3 + $0x2b0] sm:$0xff]
  %v5313 = vld [vmem:[#allocation3 + $0x2b8] sm:$0xff]
  %v5314 = vld [vmem:[#allocation3 + $0x2c0] sm:$0xff]
  %v5315 = vld [vmem:[#allocation3 + $0x2c8] sm:$0xff]
  %v5316 = vld [vmem:[#allocation3 + $0x2d0] sm:$0xff]
  %v5317 = vld [vmem:[#allocation3 + $0x2d8] sm:$0xff]
  %v5318 = vld [vmem:[#allocation3 + $0x2e0] sm:$0xff]
  %v5319 = vld [vmem:[#allocation3 + $0x2e8] sm:$0xff]
  %v5320 = vld [vmem:[#allocation3 + $0x2f0] sm:$0xff]
  %v5321 = vld [vmem:[#allocation3 + $0x2f8] sm:$0xff]
  %v5322 = vld [vmem:[#allocation3 + $0x300] sm:$0xff]
  %v5323 = vld [vmem:[#allocation3 + $0x308] sm:$0xff]
  %v5324 = vld [vmem:[#allocation3 + $0x310] sm:$0xff]
  %v5325 = vld [vmem:[#allocation3 + $0x318] sm:$0xff]
  %v5326 = vld [vmem:[#allocation3 + $0x320] sm:$0xff]
  %v5327 = vld [vmem:[#allocation3 + $0x328] sm:$0xff]
  %v5328 = vld [vmem:[#allocation3 + $0x330] sm:$0xff]
  %v5329 = vld [vmem:[#allocation3 + $0x338] sm:$0xff]
  %v5330 = vld [vmem:[#allocation3 + $0x340] sm:$0xff]
  %v5331 = vld [vmem:[#allocation3 + $0x348] sm:$0xff]
  %v5332 = vld [vmem:[#allocation3 + $0x350] sm:$0xff]
  %v5333 = vld [vmem:[#allocation3 + $0x358] sm:$0xff]
  %v5334 = vld [vmem:[#allocation3 + $0x360] sm:$0xff]
  %v5335 = vld [vmem:[#allocation3 + $0x368] sm:$0xff]
  %v5336 = vld [vmem:[#allocation3 + $0x370] sm:$0xff]
  %v5337 = vld [vmem:[#allocation3 + $0x378] sm:$0xff]
  %v5338 = vld [vmem:[#allocation3 + $0x380] sm:$0xff]
  %v5339 = vld [vmem:[#allocation3 + $0x388] sm:$0xff]
  %v5340 = vld [vmem:[#allocation3 + $0x390] sm:$0xff]
  %v5341 = vld [vmem:[#allocation3 + $0x398] sm:$0xff]
  %v5342 = vld [vmem:[#allocation3 + $0x3a0] sm:$0xff]
  %v5343 = vld [vmem:[#allocation3 + $0x3a8] sm:$0xff]
  %v5344 = vld [vmem:[#allocation3 + $0x3b0] sm:$0xff]
  %v5345 = vld [vmem:[#allocation3 + $0x3b8] sm:$0xff]
  %v5346 = vld [vmem:[#allocation3 + $0x3c0] sm:$0xff]
  %v5347 = vld [vmem:[#allocation3 + $0x3c8] sm:$0xff]
  %v5348 = vld [vmem:[#allocation3 + $0x3d0] sm:$0xff]
  %v5349 = vld [vmem:[#allocation3 + $0x3d8] sm:$0xff]
  %v5350 = vld [vmem:[#allocation3 + $0x3e0] sm:$0xff]
  %v5351 = vld [vmem:[#allocation3 + $0x3e8] sm:$0xff]
  %v5352 = vld [vmem:[#allocation3 + $0x3f0] sm:$0xff]
  %v5353 = vld [vmem:[#allocation3 + $0x3f8] sm:$0xff]
  %v5354 = vld [vmem:[#allocation3 + $0x400] sm:$0xff]
  %v5355 = vld [vmem:[#allocation3 + $0x408] sm:$0xff]
  %v5356 = vld [vmem:[#allocation3 + $0x410] sm:$0xff]
  %v5357 = vld [vmem:[#allocation3 + $0x418] sm:$0xff]
  %v5358 = vld [vmem:[#allocation3 + $0x420] sm:$0xff]
  %v5359 = vld [vmem:[#allocation3 + $0x428] sm:$0xff]
  %v5360 = vld [vmem:[#allocation3 + $0x430] sm:$0xff]
  %v5361 = vld [vmem:[#allocation3 + $0x438] sm:$0xff]
  %v5362 = vld [vmem:[#allocation3 + $0x440] sm:$0xff]
  %v5363 = vld [vmem:[#allocation3 + $0x448] sm:$0xff]
  %v5364 = vld [vmem:[#allocation3 + $0x450] sm:$0xff]
  %v5365 = vld [vmem:[#allocation3 + $0x458] sm:$0xff]
  %v5366 = vld [vmem:[#allocation3 + $0x460] sm:$0xff]
  %v5367 = vld [vmem:[#allocation3 + $0x468] sm:$0xff]
  %v5368 = vld [vmem:[#allocation3 + $0x470] sm:$0xff]
  %v5369 = vld [vmem:[#allocation3 + $0x478] sm:$0xff]
  %v5370 = vld [vmem:[#allocation3 + $0x480] sm:$0xff]
  %v5371 = vld [vmem:[#allocation3 + $0x488] sm:$0xff]
  %v5372 = vld [vmem:[#allocation3 + $0x490] sm:$0xff]
  %v5373 = vld [vmem:[#allocation3 + $0x498] sm:$0xff]
  %v5374 = vld [vmem:[#allocation3 + $0x4a0] sm:$0xff]
  %v5375 = vld [vmem:[#allocation3 + $0x4a8] sm:$0xff]
  %v5376 = vld [vmem:[#allocation3 + $0x4b0] sm:$0xff]
  %v5377 = vld [vmem:[#allocation3 + $0x4b8] sm:$0xff]
  %v5378 = vld [vmem:[#allocation3 + $0x4c0] sm:$0xff]
  %v5379 = vld [vmem:[#allocation3 + $0x4c8] sm:$0xff]
  %v5380 = vld [vmem:[#allocation3 + $0x4d0] sm:$0xff]
  %v5381 = vld [vmem:[#allocation3 + $0x4d8] sm:$0xff]
  %v5382 = vld [vmem:[#allocation3 + $0x4e0] sm:$0xff]
  %v5383 = vld [vmem:[#allocation3 + $0x4e8] sm:$0xff]
  %v5384 = vld [vmem:[#allocation3 + $0x4f0] sm:$0xff]
  %v5385 = vld [vmem:[#allocation3 + $0x4f8] sm:$0xff]
  %v5386 = vld [vmem:[#allocation3 + $0x500] sm:$0xff]
  %v5387 = vld [vmem:[#allocation3 + $0x508] sm:$0xff]
  %v5388 = vld [vmem:[#allocation3 + $0x510] sm:$0xff]
  %v5389 = vld [vmem:[#allocation3 + $0x518] sm:$0xff]
  %v5390 = vld [vmem:[#allocation3 + $0x520] sm:$0xff]
  %v5391 = vld [vmem:[#allocation3 + $0x528] sm:$0xff]
  %v5392 = vld [vmem:[#allocation3 + $0x530] sm:$0xff]
  %v5393 = vld [vmem:[#allocation3 + $0x538] sm:$0xff]
  %v5394 = vld [vmem:[#allocation3 + $0x540] sm:$0xff]
  %v5395 = vld [vmem:[#allocation3 + $0x548] sm:$0xff]
  %v5396 = vld [vmem:[#allocation3 + $0x550] sm:$0xff]
  %v5397 = vld [vmem:[#allocation3 + $0x558] sm:$0xff]
  %v5398 = vld [vmem:[#allocation3 + $0x560] sm:$0xff]
  %v5399 = vld [vmem:[#allocation3 + $0x568] sm:$0xff]
  %v5400 = vld [vmem:[#allocation3 + $0x570] sm:$0xff]
  %v5401 = vld [vmem:[#allocation3 + $0x578] sm:$0xff]
  %v5402 = vld [vmem:[#allocation3 + $0x580] sm:$0xff]
  %v5403 = vld [vmem:[#allocation3 + $0x588] sm:$0xff]
  %v5404 = vld [vmem:[#allocation3 + $0x590] sm:$0xff]
  %v5405 = vld [vmem:[#allocation3 + $0x598] sm:$0xff]
  %v5406 = vld [vmem:[#allocation3 + $0x5a0] sm:$0xff]
  %v5407 = vld [vmem:[#allocation3 + $0x5a8] sm:$0xff]
  %v5408 = vld [vmem:[#allocation3 + $0x5b0] sm:$0xff]
  %v5409 = vld [vmem:[#allocation3 + $0x5b8] sm:$0xff]
  %v5410 = vld [vmem:[#allocation3 + $0x5c0] sm:$0xff]
  %v5411 = vld [vmem:[#allocation3 + $0x5c8] sm:$0xff]
  %v5412 = vld [vmem:[#allocation3 + $0x5d0] sm:$0xff]
  %v5413 = vld [vmem:[#allocation3 + $0x5d8] sm:$0xff]
  %v5414 = vld [vmem:[#allocation3 + $0x5e0] sm:$0xff]
  %v5415 = vld [vmem:[#allocation3 + $0x5e8] sm:$0xff]
  %v5416 = vld [vmem:[#allocation3 + $0x5f0] sm:$0xff]
  %v5417 = vld [vmem:[#allocation3 + $0x5f8] sm:$0xff]
  %v5418 = vld [vmem:[#allocation3 + $0x600] sm:$0xff]
  %v5419 = vld [vmem:[#allocation3 + $0x608] sm:$0xff]
  %v5420 = vld [vmem:[#allocation3 + $0x610] sm:$0xff]
  %v5421 = vld [vmem:[#allocation3 + $0x618] sm:$0xff]
  %v5422 = vld [vmem:[#allocation3 + $0x620] sm:$0xff]
  %v5423 = vld [vmem:[#allocation3 + $0x628] sm:$0xff]
  %v5424 = vld [vmem:[#allocation3 + $0x630] sm:$0xff]
  %v5425 = vld [vmem:[#allocation3 + $0x638] sm:$0xff]
  %v5426 = vld [vmem:[#allocation3 + $0x640] sm:$0xff]
  %v5427 = vld [vmem:[#allocation3 + $0x648] sm:$0xff]
  %v5428 = vld [vmem:[#allocation3 + $0x650] sm:$0xff]
  %v5429 = vld [vmem:[#allocation3 + $0x658] sm:$0xff]
  %v5430 = vld [vmem:[#allocation3 + $0x660] sm:$0xff]
  %v5431 = vld [vmem:[#allocation3 + $0x668] sm:$0xff]
  %v5432 = vld [vmem:[#allocation3 + $0x670] sm:$0xff]
  %v5433 = vld [vmem:[#allocation3 + $0x678] sm:$0xff]
  %v5434 = vld [vmem:[#allocation3 + $0x680] sm:$0xff]
  %v5435 = vld [vmem:[#allocation3 + $0x688] sm:$0xff]
  %v5436 = vld [vmem:[#allocation3 + $0x690] sm:$0xff]
  %v5437 = vld [vmem:[#allocation3 + $0x698] sm:$0xff]
  %v5438 = vld [vmem:[#allocation3 + $0x6a0] sm:$0xff]
  %v5439 = vld [vmem:[#allocation3 + $0x6a8] sm:$0xff]
  %v5440 = vld [vmem:[#allocation3 + $0x6b0] sm:$0xff]
  %v5441 = vld [vmem:[#allocation3 + $0x6b8] sm:$0xff]
  %v5442 = vld [vmem:[#allocation3 + $0x6c0] sm:$0xff]
  %v5443 = vld [vmem:[#allocation3 + $0x6c8] sm:$0xff]
  %v5444 = vld [vmem:[#allocation3 + $0x6d0] sm:$0xff]
  %v5445 = vld [vmem:[#allocation3 + $0x6d8] sm:$0xff]
  %v5446 = vld [vmem:[#allocation3 + $0x6e0] sm:$0xff]
  %v5447 = vld [vmem:[#allocation3 + $0x6e8] sm:$0xff]
  %v5448 = vld [vmem:[#allocation3 + $0x6f0] sm:$0xff]
  %v5449 = vld [vmem:[#allocation3 + $0x6f8] sm:$0xff]
  %v5450 = vld [vmem:[#allocation3 + $0x700] sm:$0xff]
  %v5451 = vld [vmem:[#allocation3 + $0x708] sm:$0xff]
  %v5452 = vld [vmem:[#allocation3 + $0x710] sm:$0xff]
  %v5453 = vld [vmem:[#allocation3 + $0x718] sm:$0xff]
  %v5454 = vld [vmem:[#allocation3 + $0x720] sm:$0xff]
  %v5455 = vld [vmem:[#allocation3 + $0x728] sm:$0xff]
  %v5456 = vld [vmem:[#allocation3 + $0x730] sm:$0xff]
  %v5457 = vld [vmem:[#allocation3 + $0x738] sm:$0xff]
  %v5458 = vld [vmem:[#allocation3 + $0x740] sm:$0xff]
  %v5459 = vld [vmem:[#allocation3 + $0x748] sm:$0xff]
  %v5460 = vld [vmem:[#allocation3 + $0x750] sm:$0xff]
  %v5461 = vld [vmem:[#allocation3 + $0x758] sm:$0xff]
  %v5462 = vld [vmem:[#allocation3 + $0x760] sm:$0xff]
  %v5463 = vld [vmem:[#allocation3 + $0x768] sm:$0xff]
  %v5464 = vld [vmem:[#allocation3 + $0x770] sm:$0xff]
  %v5465 = vld [vmem:[#allocation3 + $0x778] sm:$0xff]
  %v5466 = vld [vmem:[#allocation3 + $0x780] sm:$0xff]
  %v5467 = vld [vmem:[#allocation3 + $0x788] sm:$0xff]
  %v5468 = vld [vmem:[#allocation3 + $0x790] sm:$0xff]
  %v5469 = vld [vmem:[#allocation3 + $0x798] sm:$0xff]
  %v5470 = vld [vmem:[#allocation3 + $0x7a0] sm:$0xff]
  %v5471 = vld [vmem:[#allocation3 + $0x7a8] sm:$0xff]
  %v5472 = vld [vmem:[#allocation3 + $0x7b0] sm:$0xff]
  %v5473 = vld [vmem:[#allocation3 + $0x7b8] sm:$0xff]
  %v5474 = vld [vmem:[#allocation3 + $0x7c0] sm:$0xff]
  %v5475 = vld [vmem:[#allocation3 + $0x7c8] sm:$0xff]
  %v5476 = vld [vmem:[#allocation3 + $0x7d0] sm:$0xff]
  %v5477 = vld [vmem:[#allocation3 + $0x7d8] sm:$0xff]
  %v5478 = vld [vmem:[#allocation3 + $0x7e0] sm:$0xff]
  %v5479 = vld [vmem:[#allocation3 + $0x7e8] sm:$0xff]
  %v5480 = vld [vmem:[#allocation3 + $0x7f0] sm:$0xff]
  %v5481 = vld [vmem:[#allocation3 + $0x7f8] sm:$0xff]
  %v5482 = vld [vmem:[#allocation3 + $0x800] sm:$0xff]
  %v5483 = vld [vmem:[#allocation3 + $0x808] sm:$0xff]
  %v5484 = vld [vmem:[#allocation3 + $0x810] sm:$0xff]
  %v5485 = vld [vmem:[#allocation3 + $0x818] sm:$0xff]
  %v5486 = vld [vmem:[#allocation3 + $0x820] sm:$0xff]
  %v5487 = vld [vmem:[#allocation3 + $0x828] sm:$0xff]
  %v5488 = vld [vmem:[#allocation3 + $0x830] sm:$0xff]
  %v5489 = vld [vmem:[#allocation3 + $0x838] sm:$0xff]
  %v5490 = vld [vmem:[#allocation3 + $0x840] sm:$0xff]
  %v5491 = vld [vmem:[#allocation3 + $0x848] sm:$0xff]
  %v5492 = vld [vmem:[#allocation3 + $0x850] sm:$0xff]
  %v5493 = vld [vmem:[#allocation3 + $0x858] sm:$0xff]
  %v5494 = vld [vmem:[#allocation3 + $0x860] sm:$0xff]
  %v5495 = vld [vmem:[#allocation3 + $0x868] sm:$0xff]
  %v5496 = vld [vmem:[#allocation3 + $0x870] sm:$0xff]
  %v5497 = vld [vmem:[#allocation3 + $0x878] sm:$0xff]
  %v5498 = vld [vmem:[#allocation3 + $0x880] sm:$0xff]
  %v5499 = vld [vmem:[#allocation3 + $0x888] sm:$0xff]
  %v5500 = vld [vmem:[#allocation3 + $0x890] sm:$0xff]
  %v5501 = vld [vmem:[#allocation3 + $0x898] sm:$0xff]
  %v5502 = vld [vmem:[#allocation3 + $0x8a0] sm:$0xff]
  %v5503 = vld [vmem:[#allocation3 + $0x8a8] sm:$0xff]
  %v5504 = vld [vmem:[#allocation3 + $0x8b0] sm:$0xff]
  %v5505 = vld [vmem:[#allocation3 + $0x8b8] sm:$0xff]
  %v5506 = vld [vmem:[#allocation3 + $0x8c0] sm:$0xff]
  %v5507 = vld [vmem:[#allocation3 + $0x8c8] sm:$0xff]
  %v5508 = vld [vmem:[#allocation3 + $0x8d0] sm:$0xff]
  %v5509 = vld [vmem:[#allocation3 + $0x8d8] sm:$0xff]
  %v5510 = vld [vmem:[#allocation3 + $0x8e0] sm:$0xff]
  %v5511 = vld [vmem:[#allocation3 + $0x8e8] sm:$0xff]
  %v5512 = vld [vmem:[#allocation3 + $0x8f0] sm:$0xff]
  %v5513 = vld [vmem:[#allocation3 + $0x8f8] sm:$0xff]
  %v5514 = vld [vmem:[#allocation3 + $0x900] sm:$0xff]
  %v5515 = vld [vmem:[#allocation3 + $0x908] sm:$0xff]
  %v5516 = vld [vmem:[#allocation3 + $0x910] sm:$0xff]
  %v5517 = vld [vmem:[#allocation3 + $0x918] sm:$0xff]
  %v5518 = vld [vmem:[#allocation3 + $0x920] sm:$0xff]
  %v5519 = vld [vmem:[#allocation3 + $0x928] sm:$0xff]
  %v5520 = vld [vmem:[#allocation3 + $0x930] sm:$0xff]
  %v5521 = vld [vmem:[#allocation3 + $0x938] sm:$0xff]
  %v5522 = vld [vmem:[#allocation3 + $0x940] sm:$0xff]
  %v5523 = vld [vmem:[#allocation3 + $0x948] sm:$0xff]
  %v5524 = vld [vmem:[#allocation3 + $0x950] sm:$0xff]
  %v5525 = vld [vmem:[#allocation3 + $0x958] sm:$0xff]
  %v5526 = vld [vmem:[#allocation3 + $0x960] sm:$0xff]
  %v5527 = vld [vmem:[#allocation3 + $0x968] sm:$0xff]
  %v5528 = vld [vmem:[#allocation3 + $0x970] sm:$0xff]
  %v5529 = vld [vmem:[#allocation3 + $0x978] sm:$0xff]
  %v5530 = vld [vmem:[#allocation3 + $0x980] sm:$0xff]
  %v5531 = vld [vmem:[#allocation3 + $0x988] sm:$0xff]
  %v5532 = vld [vmem:[#allocation3 + $0x990] sm:$0xff]
  %v5533 = vld [vmem:[#allocation3 + $0x998] sm:$0xff]
  %v5534 = vld [vmem:[#allocation3 + $0x9a0] sm:$0xff]
  %v5535 = vld [vmem:[#allocation3 + $0x9a8] sm:$0xff]
  %v5536 = vld [vmem:[#allocation3 + $0x9b0] sm:$0xff]
  %v5537 = vld [vmem:[#allocation3 + $0x9b8] sm:$0xff]
  %v5538 = vld [vmem:[#allocation3 + $0x9c0] sm:$0xff]
  %v5539 = vld [vmem:[#allocation3 + $0x9c8] sm:$0xff]
  %v5540 = vld [vmem:[#allocation3 + $0x9d0] sm:$0xff]
  %v5541 = vld [vmem:[#allocation3 + $0x9d8] sm:$0xff]
  %v5542 = vld [vmem:[#allocation3 + $0x9e0] sm:$0xff]
  %v5543 = vld [vmem:[#allocation3 + $0x9e8] sm:$0xff]
  %v5544 = vld [vmem:[#allocation3 + $0x9f0] sm:$0xff]
  %v5545 = vld [vmem:[#allocation3 + $0x9f8] sm:$0xff]
  %v5546 = vld [vmem:[#allocation3 + $0xa00] sm:$0xff]
  %v5547 = vld [vmem:[#allocation3 + $0xa08] sm:$0xff]
  %v5548 = vld [vmem:[#allocation3 + $0xa10] sm:$0xff]
  %v5549 = vld [vmem:[#allocation3 + $0xa18] sm:$0xff]
  %v5550 = vld [vmem:[#allocation3 + $0xa20] sm:$0xff]
  %v5551 = vld [vmem:[#allocation3 + $0xa28] sm:$0xff]
  %v5552 = vld [vmem:[#allocation3 + $0xa30] sm:$0xff]
  %v5553 = vld [vmem:[#allocation3 + $0xa38] sm:$0xff]
  %v5554 = vld [vmem:[#allocation3 + $0xa40] sm:$0xff]
  %v5555 = vld [vmem:[#allocation3 + $0xa48] sm:$0xff]
  %v5556 = vld [vmem:[#allocation3 + $0xa50] sm:$0xff]
  %v5557 = vld [vmem:[#allocation3 + $0xa58] sm:$0xff]
  %v5558 = vld [vmem:[#allocation3 + $0xa60] sm:$0xff]
  %v5559 = vld [vmem:[#allocation3 + $0xa68] sm:$0xff]
  %v5560 = vld [vmem:[#allocation3 + $0xa70] sm:$0xff]
  %v5561 = vld [vmem:[#allocation3 + $0xa78] sm:$0xff]
  %v5562 = vld [vmem:[#allocation3 + $0xa80] sm:$0xff]
  %v5563 = vld [vmem:[#allocation3 + $0xa88] sm:$0xff]
  %v5564 = vld [vmem:[#allocation3 + $0xa90] sm:$0xff]
  %v5565 = vld [vmem:[#allocation3 + $0xa98] sm:$0xff]
  %v5566 = vld [vmem:[#allocation3 + $0xaa0] sm:$0xff]
  %v5567 = vld [vmem:[#allocation3 + $0xaa8] sm:$0xff]
  %v5568 = vld [vmem:[#allocation3 + $0xab0] sm:$0xff]
  %v5569 = vld [vmem:[#allocation3 + $0xab8] sm:$0xff]
  %v5570 = vld [vmem:[#allocation3 + $0xac0] sm:$0xff]
  %v5571 = vld [vmem:[#allocation3 + $0xac8] sm:$0xff]
  %v5572 = vld [vmem:[#allocation3 + $0xad0] sm:$0xff]
  %v5573 = vld [vmem:[#allocation3 + $0xad8] sm:$0xff]
  %v5574 = vld [vmem:[#allocation3 + $0xae0] sm:$0xff]
  %v5575 = vld [vmem:[#allocation3 + $0xae8] sm:$0xff]
  %v5576 = vld [vmem:[#allocation3 + $0xaf0] sm:$0xff]
  %v5577 = vld [vmem:[#allocation3 + $0xaf8] sm:$0xff]
  %v5578 = vld [vmem:[#allocation3 + $0xb00] sm:$0xff]
  %v5579 = vld [vmem:[#allocation3 + $0xb08] sm:$0xff]
  %v5580 = vld [vmem:[#allocation3 + $0xb10] sm:$0xff]
  %v5581 = vld [vmem:[#allocation3 + $0xb18] sm:$0xff]
  %v5582 = vld [vmem:[#allocation3 + $0xb20] sm:$0xff]
  %v5583 = vld [vmem:[#allocation3 + $0xb28] sm:$0xff]
  %v5584 = vld [vmem:[#allocation3 + $0xb30] sm:$0xff]
  %v5585 = vld [vmem:[#allocation3 + $0xb38] sm:$0xff]
  %v5586 = vld [vmem:[#allocation3 + $0xb40] sm:$0xff]
  %v5587 = vld [vmem:[#allocation3 + $0xb48] sm:$0xff]
  %v5588 = vld [vmem:[#allocation3 + $0xb50] sm:$0xff]
  %v5589 = vld [vmem:[#allocation3 + $0xb58] sm:$0xff]
  %v5590 = vld [vmem:[#allocation3 + $0xb60] sm:$0xff]
  %v5591 = vld [vmem:[#allocation3 + $0xb68] sm:$0xff]
  %v5592 = vld [vmem:[#allocation3 + $0xb70] sm:$0xff]
  %v5593 = vld [vmem:[#allocation3 + $0xb78] sm:$0xff]
  %v5594 = vld [vmem:[#allocation3 + $0xb80] sm:$0xff]
  %v5595 = vld [vmem:[#allocation3 + $0xb88] sm:$0xff]
  %v5596 = vld [vmem:[#allocation3 + $0xb90] sm:$0xff]
  %v5597 = vld [vmem:[#allocation3 + $0xb98] sm:$0xff]
  %v5598 = vld [vmem:[#allocation3 + $0xba0] sm:$0xff]
  %v5599 = vld [vmem:[#allocation3 + $0xba8] sm:$0xff]
  %v5600 = vld [vmem:[#allocation3 + $0xbb0] sm:$0xff]
  %v5601 = vld [vmem:[#allocation3 + $0xbb8] sm:$0xff]
  %v5602 = vld [vmem:[#allocation3 + $0xbc0] sm:$0xff]
  %v5603 = vld [vmem:[#allocation3 + $0xbc8] sm:$0xff]
  %v5604 = vld [vmem:[#allocation3 + $0xbd0] sm:$0xff]
  %v5605 = vld [vmem:[#allocation3 + $0xbd8] sm:$0xff]
  %v5606 = vld [vmem:[#allocation3 + $0xbe0] sm:$0xff]
  %v5607 = vld [vmem:[#allocation3 + $0xbe8] sm:$0xff]
  %v5608 = vld [vmem:[#allocation3 + $0xbf0] sm:$0xff]
  %v5609 = vld [vmem:[#allocation3 + $0xbf8] sm:$0xff]
  %v5610 = vld [vmem:[#allocation3 + $0xc00] sm:$0xff]
  %v5611 = vld [vmem:[#allocation3 + $0xc08] sm:$0xff]
  %v5612 = vld [vmem:[#allocation3 + $0xc10] sm:$0xff]
  %v5613 = vld [vmem:[#allocation3 + $0xc18] sm:$0xff]
  %v5614 = vld [vmem:[#allocation3 + $0xc20] sm:$0xff]
  %v5615 = vld [vmem:[#allocation3 + $0xc28] sm:$0xff]
  %v5616 = vld [vmem:[#allocation3 + $0xc30] sm:$0xff]
  %v5617 = vld [vmem:[#allocation3 + $0xc38] sm:$0xff]
  %v5618 = vld [vmem:[#allocation3 + $0xc40] sm:$0xff]
  %v5619 = vld [vmem:[#allocation3 + $0xc48] sm:$0xff]
  %v5620 = vld [vmem:[#allocation3 + $0xc50] sm:$0xff]
  %v5621 = vld [vmem:[#allocation3 + $0xc58] sm:$0xff]
  %v5622 = vld [vmem:[#allocation3 + $0xc60] sm:$0xff]
  %v5623 = vld [vmem:[#allocation3 + $0xc68] sm:$0xff]
  %v5624 = vld [vmem:[#allocation3 + $0xc70] sm:$0xff]
  %v5625 = vld [vmem:[#allocation3 + $0xc78] sm:$0xff]
  %v5626 = vld [vmem:[#allocation3 + $0xc80] sm:$0xff]
  %v5627 = vld [vmem:[#allocation3 + $0xc88] sm:$0xff]
  %v5628 = vld [vmem:[#allocation3 + $0xc90] sm:$0xff]
  %v5629 = vld [vmem:[#allocation3 + $0xc98] sm:$0xff]
  %v5630 = vld [vmem:[#allocation3 + $0xca0] sm:$0xff]
  %v5631 = vld [vmem:[#allocation3 + $0xca8] sm:$0xff]
  %v5632 = vld [vmem:[#allocation3 + $0xcb0] sm:$0xff]
  %v5633 = vld [vmem:[#allocation3 + $0xcb8] sm:$0xff]
  %v5634 = vld [vmem:[#allocation3 + $0xcc0] sm:$0xff]
  %v5635 = vld [vmem:[#allocation3 + $0xcc8] sm:$0xff]
  %v5636 = vld [vmem:[#allocation3 + $0xcd0] sm:$0xff]
  %v5637 = vld [vmem:[#allocation3 + $0xcd8] sm:$0xff]
  %v5638 = vld [vmem:[#allocation3 + $0xce0] sm:$0xff]
  %v5639 = vld [vmem:[#allocation3 + $0xce8] sm:$0xff]
  %v5640 = vld [vmem:[#allocation3 + $0xcf0] sm:$0xff]
  %v5641 = vld [vmem:[#allocation3 + $0xcf8] sm:$0xff]
  %v5642 = vld [vmem:[#allocation3 + $0xd00] sm:$0xff]
  %v5643 = vld [vmem:[#allocation3 + $0xd08] sm:$0xff]
  %v5644 = vld [vmem:[#allocation3 + $0xd10] sm:$0xff]
  %v5645 = vld [vmem:[#allocation3 + $0xd18] sm:$0xff]
  %v5646 = vld [vmem:[#allocation3 + $0xd20] sm:$0xff]
  %v5647 = vld [vmem:[#allocation3 + $0xd28] sm:$0xff]
  %v5648 = vld [vmem:[#allocation3 + $0xd30] sm:$0xff]
  %v5649 = vld [vmem:[#allocation3 + $0xd38] sm:$0xff]
  %v5650 = vld [vmem:[#allocation3 + $0xd40] sm:$0xff]
  %v5651 = vld [vmem:[#allocation3 + $0xd48] sm:$0xff]
  %v5652 = vld [vmem:[#allocation3 + $0xd50] sm:$0xff]
  %v5653 = vld [vmem:[#allocation3 + $0xd58] sm:$0xff]
  %v5654 = vld [vmem:[#allocation3 + $0xd60] sm:$0xff]
  %v5655 = vld [vmem:[#allocation3 + $0xd68] sm:$0xff]
  %v5656 = vld [vmem:[#allocation3 + $0xd70] sm:$0xff]
  %v5657 = vld [vmem:[#allocation3 + $0xd78] sm:$0xff]
  %v5658 = vld [vmem:[#allocation3 + $0xd80] sm:$0xff]
  %v5659 = vld [vmem:[#allocation3 + $0xd88] sm:$0xff]
  %v5660 = vld [vmem:[#allocation3 + $0xd90] sm:$0xff]
  %v5661 = vld [vmem:[#allocation3 + $0xd98] sm:$0xff]
  %v5662 = vld [vmem:[#allocation3 + $0xda0] sm:$0xff]
  %v5663 = vld [vmem:[#allocation3 + $0xda8] sm:$0xff]
  %v5664 = vld [vmem:[#allocation3 + $0xdb0] sm:$0xff]
  %v5665 = vld [vmem:[#allocation3 + $0xdb8] sm:$0xff]
  %v5666 = vld [vmem:[#allocation3 + $0xdc0] sm:$0xff]
  %v5667 = vld [vmem:[#allocation3 + $0xdc8] sm:$0xff]
  %v5668 = vld [vmem:[#allocation3 + $0xdd0] sm:$0xff]
  %v5669 = vld [vmem:[#allocation3 + $0xdd8] sm:$0xff]
  %v5670 = vld [vmem:[#allocation3 + $0xde0] sm:$0xff]
  %v5671 = vld [vmem:[#allocation3 + $0xde8] sm:$0xff]
  %v5672 = vld [vmem:[#allocation3 + $0xdf0] sm:$0xff]
  %v5673 = vld [vmem:[#allocation3 + $0xdf8] sm:$0xff]
  %v5674 = vld [vmem:[#allocation3 + $0xe00] sm:$0xff]
  %v5675 = vld [vmem:[#allocation3 + $0xe08] sm:$0xff]
  %v5676 = vld [vmem:[#allocation3 + $0xe10] sm:$0xff]
  %v5677 = vld [vmem:[#allocation3 + $0xe18] sm:$0xff]
  %v5678 = vld [vmem:[#allocation3 + $0xe20] sm:$0xff]
  %v5679 = vld [vmem:[#allocation3 + $0xe28] sm:$0xff]
  %v5680 = vld [vmem:[#allocation3 + $0xe30] sm:$0xff]
  %v5681 = vld [vmem:[#allocation3 + $0xe38] sm:$0xff]
  %v5682 = vld [vmem:[#allocation3 + $0xe40] sm:$0xff]
  %v5683 = vld [vmem:[#allocation3 + $0xe48] sm:$0xff]
  %v5684 = vld [vmem:[#allocation3 + $0xe50] sm:$0xff]
  %v5685 = vld [vmem:[#allocation3 + $0xe58] sm:$0xff]
  %v5686 = vld [vmem:[#allocation3 + $0xe60] sm:$0xff]
  %v5687 = vld [vmem:[#allocation3 + $0xe68] sm:$0xff]
  %v5688 = vld [vmem:[#allocation3 + $0xe70] sm:$0xff]
  %v5689 = vld [vmem:[#allocation3 + $0xe78] sm:$0xff]
  %v5690 = vld [vmem:[#allocation3 + $0xe80] sm:$0xff]
  %v5691 = vld [vmem:[#allocation3 + $0xe88] sm:$0xff]
  %v5692 = vld [vmem:[#allocation3 + $0xe90] sm:$0xff]
  %v5693 = vld [vmem:[#allocation3 + $0xe98] sm:$0xff]
  %v5694 = vld [vmem:[#allocation3 + $0xea0] sm:$0xff]
  %v5695 = vld [vmem:[#allocation3 + $0xea8] sm:$0xff]
  %v5696 = vld [vmem:[#allocation3 + $0xeb0] sm:$0xff]
  %v5697 = vld [vmem:[#allocation3 + $0xeb8] sm:$0xff]
  %v5698 = vld [vmem:[#allocation3 + $0xec0] sm:$0xff]
  %v5699 = vld [vmem:[#allocation3 + $0xec8] sm:$0xff]
  %v5700 = vld [vmem:[#allocation3 + $0xed0] sm:$0xff]
  %v5701 = vld [vmem:[#allocation3 + $0xed8] sm:$0xff]
  %v5702 = vld [vmem:[#allocation3 + $0xee0] sm:$0xff]
  %v5703 = vld [vmem:[#allocation3 + $0xee8] sm:$0xff]
  %v5704 = vld [vmem:[#allocation3 + $0xef0] sm:$0xff]
  %v5705 = vld [vmem:[#allocation3 + $0xef8] sm:$0xff]
  %v5706 = vld [vmem:[#allocation3 + $0xf00] sm:$0xff]
  %v5707 = vld [vmem:[#allocation3 + $0xf08] sm:$0xff]
  %v5708 = vld [vmem:[#allocation3 + $0xf10] sm:$0xff]
  %v5709 = vld [vmem:[#allocation3 + $0xf18] sm:$0xff]
  %v5710 = vld [vmem:[#allocation3 + $0xf20] sm:$0xff]
  %v5711 = vld [vmem:[#allocation3 + $0xf28] sm:$0xff]
  %v5712 = vld [vmem:[#allocation3 + $0xf30] sm:$0xff]
  %v5713 = vld [vmem:[#allocation3 + $0xf38] sm:$0xff]
  %v5714 = vld [vmem:[#allocation3 + $0xf40] sm:$0xff]
  %v5715 = vld [vmem:[#allocation3 + $0xf48] sm:$0xff]
  %v5716 = vld [vmem:[#allocation3 + $0xf50] sm:$0xff]
  %v5717 = vld [vmem:[#allocation3 + $0xf58] sm:$0xff]
  %v5718 = vld [vmem:[#allocation3 + $0xf60] sm:$0xff]
  %v5719 = vld [vmem:[#allocation3 + $0xf68] sm:$0xff]
  %v5720 = vld [vmem:[#allocation3 + $0xf70] sm:$0xff]
  %v5721 = vld [vmem:[#allocation3 + $0xf78] sm:$0xff]
  %v5722 = vld [vmem:[#allocation3 + $0xf80] sm:$0xff]
  %v5723 = vld [vmem:[#allocation3 + $0xf88] sm:$0xff]
  %v5724 = vld [vmem:[#allocation3 + $0xf90] sm:$0xff]
  %v5725 = vld [vmem:[#allocation3 + $0xf98] sm:$0xff]
  %v5726 = vld [vmem:[#allocation3 + $0xfa0] sm:$0xff]
  %v5727 = vld [vmem:[#allocation3 + $0xfa8] sm:$0xff]
  %v5728 = vld [vmem:[#allocation3 + $0xfb0] sm:$0xff]
  %v5729 = vld [vmem:[#allocation3 + $0xfb8] sm:$0xff]
  %v5730 = vld [vmem:[#allocation3 + $0xfc0] sm:$0xff]
  %v5731 = vld [vmem:[#allocation3 + $0xfc8] sm:$0xff]
  %v5732 = vld [vmem:[#allocation3 + $0xfd0] sm:$0xff]
  %v5733 = vld [vmem:[#allocation3 + $0xfd8] sm:$0xff]
  %v5734 = vld [vmem:[#allocation3 + $0xfe0] sm:$0xff]
  %v5735 = vld [vmem:[#allocation3 + $0xfe8] sm:$0xff]
  %v5736 = vld [vmem:[#allocation3 + $0xff0] sm:$0xff]
  %v5737 = vld [vmem:[#allocation3 + $0xff8] sm:$0xff]
  %v5738 = vld [vmem:[#allocation3 + $0x1000] sm:$0xff]
  %v5739 = vld [vmem:[#allocation3 + $0x1008] sm:$0xff]
  %v5740 = vld [vmem:[#allocation3 + $0x1010] sm:$0xff]
  %v5741 = vld [vmem:[#allocation3 + $0x1018] sm:$0xff]
  %v5742 = vld [vmem:[#allocation3 + $0x1020] sm:$0xff]
  %v5743 = vld [vmem:[#allocation3 + $0x1028] sm:$0xff]
  %v5744 = vld [vmem:[#allocation3 + $0x1030] sm:$0xff]
  %v5745 = vld [vmem:[#allocation3 + $0x1038] sm:$0xff]
  %v5746 = vld [vmem:[#allocation3 + $0x1040] sm:$0xff]
  %v5747 = vld [vmem:[#allocation3 + $0x1048] sm:$0xff]
  %v5748 = vld [vmem:[#allocation3 + $0x1050] sm:$0xff]
  %v5749 = vld [vmem:[#allocation3 + $0x1058] sm:$0xff]
  %v5750 = vld [vmem:[#allocation3 + $0x1060] sm:$0xff]
  %v5751 = vld [vmem:[#allocation3 + $0x1068] sm:$0xff]
  %v5752 = vld [vmem:[#allocation3 + $0x1070] sm:$0xff]
  %v5753 = vld [vmem:[#allocation3 + $0x1078] sm:$0xff]
  %v5754 = vld [vmem:[#allocation3 + $0x1080] sm:$0xff]
  %v5755 = vld [vmem:[#allocation3 + $0x1088] sm:$0xff]
  %v5756 = vld [vmem:[#allocation3 + $0x1090] sm:$0xff]
  %v5757 = vld [vmem:[#allocation3 + $0x1098] sm:$0xff]
  %v5758 = vld [vmem:[#allocation3 + $0x10a0] sm:$0xff]
  %v5759 = vld [vmem:[#allocation3 + $0x10a8] sm:$0xff]
  %v5760 = vld [vmem:[#allocation3 + $0x10b0] sm:$0xff]
  %v5761 = vld [vmem:[#allocation3 + $0x10b8] sm:$0xff]
  %v5762 = vld [vmem:[#allocation3 + $0x10c0] sm:$0xff]
  %v5763 = vld [vmem:[#allocation3 + $0x10c8] sm:$0xff]
  %v5764 = vld [vmem:[#allocation3 + $0x10d0] sm:$0xff]
  %v5765 = vld [vmem:[#allocation3 + $0x10d8] sm:$0xff]
  %v5766 = vld [vmem:[#allocation3 + $0x10e0] sm:$0xff]
  %v5767 = vld [vmem:[#allocation3 + $0x10e8] sm:$0xff]
  %v5768 = vld [vmem:[#allocation3 + $0x10f0] sm:$0xff]
  %v5769 = vld [vmem:[#allocation3 + $0x10f8] sm:$0xff]
  %v5770 = vld [vmem:[#allocation3 + $0x1100] sm:$0xff]
  %v5771 = vld [vmem:[#allocation3 + $0x1108] sm:$0xff]
  %v5772 = vld [vmem:[#allocation3 + $0x1110] sm:$0xff]
  %v5773 = vld [vmem:[#allocation3 + $0x1118] sm:$0xff]
  %v5774 = vld [vmem:[#allocation3 + $0x1120] sm:$0xff]
  %v5775 = vld [vmem:[#allocation3 + $0x1128] sm:$0xff]
  %v5776 = vld [vmem:[#allocation3 + $0x1130] sm:$0xff]
  %v5777 = vld [vmem:[#allocation3 + $0x1138] sm:$0xff]
  %v5778 = vld [vmem:[#allocation3 + $0x1140] sm:$0xff]
  %v5779 = vld [vmem:[#allocation3 + $0x1148] sm:$0xff]
  %v5780 = vld [vmem:[#allocation3 + $0x1150] sm:$0xff]
  %v5781 = vld [vmem:[#allocation3 + $0x1158] sm:$0xff]
  %v5782 = vld [vmem:[#allocation3 + $0x1160] sm:$0xff]
  %v5783 = vld [vmem:[#allocation3 + $0x1168] sm:$0xff]
  %v5784 = vld [vmem:[#allocation3 + $0x1170] sm:$0xff]
  %v5785 = vld [vmem:[#allocation3 + $0x1178] sm:$0xff]
  %v5786 = vld [vmem:[#allocation3 + $0x1180] sm:$0xff]
  %v5787 = vld [vmem:[#allocation3 + $0x1188] sm:$0xff]
  %v5788 = vld [vmem:[#allocation3 + $0x1190] sm:$0xff]
  %v5789 = vld [vmem:[#allocation3 + $0x1198] sm:$0xff]
  %v5790 = vld [vmem:[#allocation3 + $0x11a0] sm:$0xff]
  %v5791 = vld [vmem:[#allocation3 + $0x11a8] sm:$0xff]
  %v5792 = vld [vmem:[#allocation3 + $0x11b0] sm:$0xff]
  %v5793 = vld [vmem:[#allocation3 + $0x11b8] sm:$0xff]
  %v5794 = vld [vmem:[#allocation3 + $0x11c0] sm:$0xff]
  %v5795 = vld [vmem:[#allocation3 + $0x11c8] sm:$0xff]
  %v5796 = vld [vmem:[#allocation3 + $0x11d0] sm:$0xff]
  %v5797 = vld [vmem:[#allocation3 + $0x11d8] sm:$0xff]
  %v5798 = vld [vmem:[#allocation3 + $0x11e0] sm:$0xff]
  %v5799 = vld [vmem:[#allocation3 + $0x11e8] sm:$0xff]
  %v5800 = vld [vmem:[#allocation3 + $0x11f0] sm:$0xff]
  %v5801 = vld [vmem:[#allocation3 + $0x11f8] sm:$0xff]
  %v5803 = vlaneseq
  %v5804 = vshrl.u32 %v5803, 7
  %v5805 = vsub.s32 0, %v5804
  %v5806 = vrot.slane %v4431, %v5805
  %5808 = vmatprep.subr.mxu0 0.0
  %5809 = vmatpush1.msra.mxu0 %v4287
  %5810 = vmatprep.subr.mxu0 0.0
  %5811 = vmatpush1.msra.mxu0 %v4288
  %5812 = vmatprep.subr.mxu0 0.0
  %5813 = vmatpush1.msra.mxu0 %v4289
  %5814 = vmatprep.subr.mxu0 0.0
  %5815 = vmatpush1.msra.mxu0 %v4290
  %5816 = vmatprep.subr.mxu0 0.0
  %5817 = vmatpush1.msra.mxu0 %v4291
  %5818 = vmatprep.subr.mxu0 0.0
  %5819 = vmatpush1.msra.mxu0 %v4292
  %5820 = vmatprep.subr.mxu0 0.0
  %5821 = vmatpush1.msra.mxu0 %v4293
  %5822 = vmatprep.subr.mxu0 0.0
  %5823 = vmatpush1.msra.mxu0 %v4294
  %5824 = vmatprep.subr.mxu0 0.0
  %5825 = vmatpush1.msra.mxu0 %v4295
  %5826 = vmatprep.subr.mxu0 0.0
  %5827 = vmatpush1.msra.mxu0 %v4296
  %5828 = vmatprep.subr.mxu0 0.0
  %5829 = vmatpush1.msra.mxu0 %v4297
  %5830 = vmatprep.subr.mxu0 0.0
  %5831 = vmatpush1.msra.mxu0 %v4298
  %5832 = vmatprep.subr.mxu0 0.0
  %5833 = vmatpush1.msra.mxu0 %v4299
  %5834 = vmatprep.subr.mxu0 0.0
  %5835 = vmatpush1.msra.mxu0 %v4300
  %5836 = vmatprep.subr.mxu0 0.0
  %5837 = vmatpush1.msra.mxu0 %v4301
  %5838 = vmatprep.subr.mxu0 0.0
  %5839 = vmatpush1.msra.mxu0 %v4302
  %5840 = vmatprep.subr.mxu0 0.0
  %5841 = vmatpush1.msra.mxu0 %v4303
  %5842 = vmatprep.subr.mxu0 0.0
  %5843 = vmatpush1.msra.mxu0 %v4304
  %5844 = vmatprep.subr.mxu0 0.0
  %5845 = vmatpush1.msra.mxu0 %v4305
  %5846 = vmatprep.subr.mxu0 0.0
  %5847 = vmatpush1.msra.mxu0 %v4306
  %5848 = vmatprep.subr.mxu0 0.0
  %5849 = vmatpush1.msra.mxu0 %v4307
  %5850 = vmatprep.subr.mxu0 0.0
  %5851 = vmatpush1.msra.mxu0 %v4308
  %5852 = vmatprep.subr.mxu0 0.0
  %5853 = vmatpush1.msra.mxu0 %v4309
  %5854 = vmatprep.subr.mxu0 0.0
  %5855 = vmatpush1.msra.mxu0 %v4310
  %5856 = vmatprep.subr.mxu0 0.0
  %5857 = vmatpush1.msra.mxu0 %v4311
  %5858 = vmatprep.subr.mxu0 0.0
  %5859 = vmatpush1.msra.mxu0 %v4312
  %5860 = vmatprep.subr.mxu0 0.0
  %5861 = vmatpush1.msra.mxu0 %v4313
  %5862 = vmatprep.subr.mxu0 0.0
  %5863 = vmatpush1.msra.mxu0 %v4314
  %5864 = vmatprep.subr.mxu0 0.0
  %5865 = vmatpush1.msra.mxu0 %v4315
  %5866 = vmatprep.subr.mxu0 0.0
  %5867 = vmatpush1.msra.mxu0 %v4316
  %5868 = vmatprep.subr.mxu0 0.0
  %5869 = vmatpush1.msra.mxu0 %v4317
  %5870 = vmatprep.subr.mxu0 0.0
  %5871 = vmatpush1.msra.mxu0 %v4318
  %5872 = vmatprep.mubr.f32.mxu0 %v5227
  %5873 = vmatmul.mubr.f32.gmra.mrb[0].mxu0 %v5226
  %v5874 = vpop.f32.mrb[0].mxu0
  %v5875 = vadd.f32 %v5806, %v5874
  %v5876 = vpop.f32.mrb[0].mxu0
  %5877 = vmatprep.mubr.f32.mxu0 %v5236
  %5878 = vmatmul.mubr.f32.gmra.mrb[0].mxu0 %v5235
  %v5879 = vpop.f32.mrb[0].mxu0
  %v5880 = vadd.f32 %v5806, %v5879
  %v5881 = vpop.f32.mrb[0].mxu0
  %5882 = vmatprep.mubr.f32.mxu0 %v5245
  %5883 = vmatmul.mubr.f32.gmra.mrb[0].mxu0 %v5244
  %v5884 = vpop.f32.mrb[0].mxu0
  %v5885 = vadd.f32 %v5806, %v5884
  %v5886 = vpop.f32.mrb[0].mxu0
  %5887 = vmatprep.mubr.f32.mxu0 %v5254
  %5888 = vmatmul.mubr.f32.gmra.mrb[0].mxu0 %v5253
  %v5889 = vpop.f32.mrb[0].mxu0
  %v5890 = vadd.f32 %v5806, %v5889
  %v5891 = vpop.f32.mrb[0].mxu0
  %5892 = vmatprep.mubr.f32.mxu0 %v5263
  %5893 = vmatmul.mubr.f32.gmra.mrb[0].mxu0 %v5262
  %v5894 = vpop.f32.mrb[0].mxu0
  %v5895 = vadd.f32 %v5806, %v5894
  %v5896 = vpop.f32.mrb[0].mxu0
  %5897 = vmatprep.mubr.f32.mxu0 %v5272
  %5898 = vmatmul.mubr.f32.gmra.mrb[0].mxu0 %v5271
  %v5899 = vpop.f32.mrb[0].mxu0
  %v5900 = vadd.f32 %v5806, %v5899
  %v5901 = vpop.f32.mrb[0].mxu0
  %5902 = vmatprep.mubr.f32.mxu0 %v5281
  %5903 = vmatmul.mubr.f32.gmra.mrb[0].mxu0 %v5280
  %v5904 = vpop.f32.mrb[0].mxu0
  %v5905 = vadd.f32 %v5806, %v5904
  %v5906 = vpop.f32.mrb[0].mxu0
  %5907 = vmatprep.mubr.f32.mxu0 %v5290
  %5908 = vmatmul.mubr.f32.gmra.mrb[0].mxu0 %v5289
  %v5909 = vpop.f32.mrb[0].mxu0
  %v5910 = vadd.f32 %v5806, %v5909
  %v5911 = vpop.f32.mrb[0].mxu0
  %5912 = vmatprep.mubr.f32.mxu0 %v5299
  %5913 = vmatmul.mubr.f32.gmra.mrb[0].mxu0 %v5298
  %v5914 = vpop.f32.mrb[0].mxu0
  %v5915 = vadd.f32 %v5806, %v5914
  %v5916 = vpop.f32.mrb[0].mxu0
  %5917 = vmatprep.mubr.f32.mxu0 %v5308
  %5918 = vmatmul.mubr.f32.gmra.mrb[0].mxu0 %v5307
  %v5919 = vpop.f32.mrb[0].mxu0
  %v5920 = vadd.f32 %v5806, %v5919
  %v5921 = vpop.f32.mrb[0].mxu0
  %5922 = vmatprep.mubr.f32.mxu0 %v5317
  %5923 = vmatmul.mubr.f32.gmra.mrb[0].mxu0 %v5316
  %v5924 = vpop.f32.mrb[0].mxu0
  %v5925 = vadd.f32 %v5806, %v5924
  %v5926 = vpop.f32.mrb[0].mxu0
  %5927 = vmatprep.mubr.f32.mxu0 %v5326
  %5928 = vmatmul.mubr.f32.gmra.mrb[0].mxu0 %v5325
  %v5929 = vpop.f32.mrb[0].mxu0
  %v5930 = vadd.f32 %v5806, %v5929
  %v5931 = vpop.f32.mrb[0].mxu0
  %5932 = vmatprep.mubr.f32.mxu0 %v5335
  %5933 = vmatmul.mubr.f32.gmra.mrb[0].mxu0 %v5334
  %v5934 = vpop.f32.mrb[0].mxu0
  %v5935 = vadd.f32 %v5806, %v5934
  %v5936 = vpop.f32.mrb[0].mxu0
  %5937 = vmatprep.mubr.f32.mxu0 %v5344
  %5938 = vmatmul.mubr.f32.gmra.mrb[0].mxu0 %v5343
  %v5939 = vpop.f32.mrb[0].mxu0
  %v5940 = vadd.f32 %v5806, %v5939
  %v5941 = vpop.f32.mrb[0].mxu0
  %5942 = vmatprep.mubr.f32.mxu0 %v5353
  %5943 = vmatmul.mubr.f32.gmra.mrb[0].mxu0 %v5352
  %v5944 = vpop.f32.mrb[0].mxu0
  %v5945 = vadd.f32 %v5806, %v5944
  %v5946 = vpop.f32.mrb[0].mxu0
  %5947 = vmatprep.mubr.f32.mxu0 %v5362
  %5948 = vmatmul.mubr.f32.gmra.mrb[0].mxu0 %v5361
  %v5949 = vpop.f32.mrb[0].mxu0
  %v5950 = vadd.f32 %v5806, %v5949
  %v5951 = vpop.f32.mrb[0].mxu0
  %5952 = vmatprep.mubr.f32.mxu0 %v5371
  %5953 = vmatmul.mubr.f32.gmra.mrb[0].mxu0 %v5370
  %v5954 = vpop.f32.mrb[0].mxu0
  %v5955 = vadd.f32 %v5806, %v5954
  %v5956 = vpop.f32.mrb[0].mxu0
  %5957 = vmatprep.mubr.f32.mxu0 %v5380
  %5958 = vmatmul.mubr.f32.gmra.mrb[0].mxu0 %v5379
  %v5959 = vpop.f32.mrb[0].mxu0
  %v5960 = vadd.f32 %v5806, %v5959
  %v5961 = vpop.f32.mrb[0].mxu0
  %5962 = vmatprep.mubr.f32.mxu0 %v5389
  %5963 = vmatmul.mubr.f32.gmra.mrb[0].mxu0 %v5388
  %v5964 = vpop.f32.mrb[0].mxu0
  %v5965 = vadd.f32 %v5806, %v5964
  %v5966 = vpop.f32.mrb[0].mxu0
  %5967 = vmatprep.mubr.f32.mxu0 %v5398
  %5968 = vmatmul.mubr.f32.gmra.mrb[0].mxu0 %v5397
  %v5969 = vpop.f32.mrb[0].mxu0
  %v5970 = vadd.f32 %v5806, %v5969
  %v5971 = vpop.f32.mrb[0].mxu0
  %5972 = vmatprep.mubr.f32.mxu0 %v5407
  %5973 = vmatmul.mubr.f32.gmra.mrb[0].mxu0 %v5406
  %v5974 = vpop.f32.mrb[0].mxu0
  %v5975 = vadd.f32 %v5806, %v5974
  %v5976 = vpop.f32.mrb[0].mxu0
  %5977 = vmatprep.mubr.f32.mxu0 %v5416
  %5978 = vmatmul.mubr.f32.gmra.mrb[0].mxu0 %v5415
  %v5979 = vpop.f32.mrb[0].mxu0
  %v5980 = vadd.f32 %v5806, %v5979
  %v5981 = vpop.f32.mrb[0].mxu0
  %5982 = vmatprep.mubr.f32.mxu0 %v5425
  %5983 = vmatmul.mubr.f32.gmra.mrb[0].mxu0 %v5424
  %v5984 = vpop.f32.mrb[0].mxu0
  %v5985 = vadd.f32 %v5806, %v5984
  %v5986 = vpop.f32.mrb[0].mxu0
  %5987 = vmatprep.mubr.f32.mxu0 %v5434
  %5988 = vmatmul.mubr.f32.gmra.mrb[0].mxu0 %v5433
  %v5989 = vpop.f32.mrb[0].mxu0
  %v5990 = vadd.f32 %v5806, %v5989
  %v5991 = vpop.f32.mrb[0].mxu0
  %5992 = vmatprep.mubr.f32.mxu0 %v5443
  %5993 = vmatmul.mubr.f32.gmra.mrb[0].mxu0 %v5442
  %v5994 = vpop.f32.mrb[0].mxu0
  %v5995 = vadd.f32 %v5806, %v5994
  %v5996 = vpop.f32.mrb[0].mxu0
  %5997 = vmatprep.mubr.f32.mxu0 %v5452
  %5998 = vmatmul.mubr.f32.gmra.mrb[0].mxu0 %v5451
  %v5999 = vpop.f32.mrb[0].mxu0
  %v6000 = vadd.f32 %v5806, %v5999
  %v6001 = vpop.f32.mrb[0].mxu0
  %6002 = vmatprep.mubr.f32.mxu0 %v5461
  %6003 = vmatmul.mubr.f32.gmra.mrb[0].mxu0 %v5460
  %v6004 = vpop.f32.mrb[0].mxu0
  %v6005 = vadd.f32 %v5806, %v6004
  %v6006 = vpop.f32.mrb[0].mxu0
  %6007 = vmatprep.mubr.f32.mxu0 %v5470
  %6008 = vmatmul.mubr.f32.gmra.mrb[0].mxu0 %v5469
  %v6009 = vpop.f32.mrb[0].mxu0
  %v6010 = vadd.f32 %v5806, %v6009
  %v6011 = vpop.f32.mrb[0].mxu0
  %6012 = vmatprep.mubr.f32.mxu0 %v5479
  %6013 = vmatmul.mubr.f32.gmra.mrb[0].mxu0 %v5478
  %v6014 = vpop.f32.mrb[0].mxu0
  %v6015 = vadd.f32 %v5806, %v6014
  %v6016 = vpop.f32.mrb[0].mxu0
  %6017 = vmatprep.mubr.f32.mxu0 %v5488
  %6018 = vmatmul.mubr.f32.gmra.mrb[0].mxu0 %v5487
  %v6019 = vpop.f32.mrb[0].mxu0
  %v6020 = vadd.f32 %v5806, %v6019
  %v6021 = vpop.f32.mrb[0].mxu0
  %6022 = vmatprep.mubr.f32.mxu0 %v5497
  %6023 = vmatmul.mubr.f32.gmra.mrb[0].mxu0 %v5496
  %v6024 = vpop.f32.mrb[0].mxu0
  %v6025 = vadd.f32 %v5806, %v6024
  %v6026 = vpop.f32.mrb[0].mxu0
  %6027 = vmatprep.mubr.f32.mxu0 %v5506
  %6028 = vmatmul.mubr.f32.gmra.mrb[0].mxu0 %v5505
  %v6029 = vpop.f32.mrb[0].mxu0
  %v6030 = vadd.f32 %v5806, %v6029
  %v6031 = vpop.f32.mrb[0].mxu0
  %6032 = vmatprep.mubr.f32.mxu0 %v5515
  %6033 = vmatmul.mubr.f32.gmra.mrb[0].mxu0 %v5514
  %v6034 = vpop.f32.mrb[0].mxu0
  %v6035 = vadd.f32 %v5806, %v6034
  %v6036 = vpop.f32.mrb[0].mxu0
  %6037 = vmatprep.mubr.f32.mxu0 %v5524
  %6038 = vmatmul.mubr.f32.gmra.mrb[0].mxu0 %v5523
  %v6039 = vpop.f32.mrb[0].mxu0
  %v6040 = vadd.f32 %v5806, %v6039
  %v6041 = vpop.f32.mrb[0].mxu0
  %6042 = vmatprep.mubr.f32.mxu0 %v5533
  %6043 = vmatmul.mubr.f32.gmra.mrb[0].mxu0 %v5532
  %v6044 = vpop.f32.mrb[0].mxu0
  %v6045 = vadd.f32 %v5806, %v6044
  %v6046 = vpop.f32.mrb[0].mxu0
  %6047 = vmatprep.mubr.f32.mxu0 %v5542
  %6048 = vmatmul.mubr.f32.gmra.mrb[0].mxu0 %v5541
  %v6049 = vpop.f32.mrb[0].mxu0
  %v6050 = vadd.f32 %v5806, %v6049
  %v6051 = vpop.f32.mrb[0].mxu0
  %6052 = vmatprep.mubr.f32.mxu0 %v5551
  %6053 = vmatmul.mubr.f32.gmra.mrb[0].mxu0 %v5550
  %v6054 = vpop.f32.mrb[0].mxu0
  %v6055 = vadd.f32 %v5806, %v6054
  %v6056 = vpop.f32.mrb[0].mxu0
  %6057 = vmatprep.mubr.f32.mxu0 %v5560
  %6058 = vmatmul.mubr.f32.gmra.mrb[0].mxu0 %v5559
  %v6059 = vpop.f32.mrb[0].mxu0
  %v6060 = vadd.f32 %v5806, %v6059
  %v6061 = vpop.f32.mrb[0].mxu0
  %6062 = vmatprep.mubr.f32.mxu0 %v5569
  %6063 = vmatmul.mubr.f32.gmra.mrb[0].mxu0 %v5568
  %v6064 = vpop.f32.mrb[0].mxu0
  %v6065 = vadd.f32 %v5806, %v6064
  %v6066 = vpop.f32.mrb[0].mxu0
  %6067 = vmatprep.mubr.f32.mxu0 %v5578
  %6068 = vmatmul.mubr.f32.gmra.mrb[0].mxu0 %v5577
  %v6069 = vpop.f32.mrb[0].mxu0
  %v6070 = vadd.f32 %v5806, %v6069
  %v6071 = vpop.f32.mrb[0].mxu0
  %6072 = vmatprep.mubr.f32.mxu0 %v5587
  %6073 = vmatmul.mubr.f32.gmra.mrb[0].mxu0 %v5586
  %v6074 = vpop.f32.mrb[0].mxu0
  %v6075 = vadd.f32 %v5806, %v6074
  %v6076 = vpop.f32.mrb[0].mxu0
  %6077 = vmatprep.mubr.f32.mxu0 %v5596
  %6078 = vmatmul.mubr.f32.gmra.mrb[0].mxu0 %v5595
  %v6079 = vpop.f32.mrb[0].mxu0
  %v6080 = vadd.f32 %v5806, %v6079
  %v6081 = vpop.f32.mrb[0].mxu0
  %6082 = vmatprep.mubr.f32.mxu0 %v5605
  %6083 = vmatmul.mubr.f32.gmra.mrb[0].mxu0 %v5604
  %v6084 = vpop.f32.mrb[0].mxu0
  %v6085 = vadd.f32 %v5806, %v6084
  %v6086 = vpop.f32.mrb[0].mxu0
  %6087 = vmatprep.mubr.f32.mxu0 %v5614
  %6088 = vmatmul.mubr.f32.gmra.mrb[0].mxu0 %v5613
  %v6089 = vpop.f32.mrb[0].mxu0
  %v6090 = vadd.f32 %v5806, %v6089
  %v6091 = vpop.f32.mrb[0].mxu0
  %6092 = vmatprep.mubr.f32.mxu0 %v5623
  %6093 = vmatmul.mubr.f32.gmra.mrb[0].mxu0 %v5622
  %v6094 = vpop.f32.mrb[0].mxu0
  %v6095 = vadd.f32 %v5806, %v6094
  %v6096 = vpop.f32.mrb[0].mxu0
  %6097 = vmatprep.mubr.f32.mxu0 %v5632
  %6098 = vmatmul.mubr.f32.gmra.mrb[0].mxu0 %v5631
  %v6099 = vpop.f32.mrb[0].mxu0
  %v6100 = vadd.f32 %v5806, %v6099
  %v6101 = vpop.f32.mrb[0].mxu0
  %6102 = vmatprep.mubr.f32.mxu0 %v5641
  %6103 = vmatmul.mubr.f32.gmra.mrb[0].mxu0 %v5640
  %v6104 = vpop.f32.mrb[0].mxu0
  %v6105 = vadd.f32 %v5806, %v6104
  %v6106 = vpop.f32.mrb[0].mxu0
  %6107 = vmatprep.mubr.f32.mxu0 %v5650
  %6108 = vmatmul.mubr.f32.gmra.mrb[0].mxu0 %v5649
  %v6109 = vpop.f32.mrb[0].mxu0
  %v6110 = vadd.f32 %v5806, %v6109
  %v6111 = vpop.f32.mrb[0].mxu0
  %6112 = vmatprep.mubr.f32.mxu0 %v5659
  %6113 = vmatmul.mubr.f32.gmra.mrb[0].mxu0 %v5658
  %v6114 = vpop.f32.mrb[0].mxu0
  %v6115 = vadd.f32 %v5806, %v6114
  %v6116 = vpop.f32.mrb[0].mxu0
  %6117 = vmatprep.mubr.f32.mxu0 %v5668
  %6118 = vmatmul.mubr.f32.gmra.mrb[0].mxu0 %v5667
  %v6119 = vpop.f32.mrb[0].mxu0
  %v6120 = vadd.f32 %v5806, %v6119
  %v6121 = vpop.f32.mrb[0].mxu0
  %6122 = vmatprep.mubr.f32.mxu0 %v5677
  %6123 = vmatmul.mubr.f32.gmra.mrb[0].mxu0 %v5676
  %v6124 = vpop.f32.mrb[0].mxu0
  %v6125 = vadd.f32 %v5806, %v6124
  %v6126 = vpop.f32.mrb[0].mxu0
  %6127 = vmatprep.mubr.f32.mxu0 %v5686
  %6128 = vmatmul.mubr.f32.gmra.mrb[0].mxu0 %v5685
  %v6129 = vpop.f32.mrb[0].mxu0
  %v6130 = vadd.f32 %v5806, %v6129
  %v6131 = vpop.f32.mrb[0].mxu0
  %6132 = vmatprep.mubr.f32.mxu0 %v5695
  %6133 = vmatmul.mubr.f32.gmra.mrb[0].mxu0 %v5694
  %v6134 = vpop.f32.mrb[0].mxu0
  %v6135 = vadd.f32 %v5806, %v6134
  %v6136 = vpop.f32.mrb[0].mxu0
  %6137 = vmatprep.mubr.f32.mxu0 %v5704
  %6138 = vmatmul.mubr.f32.gmra.mrb[0].mxu0 %v5703
  %v6139 = vpop.f32.mrb[0].mxu0
  %v6140 = vadd.f32 %v5806, %v6139
  %v6141 = vpop.f32.mrb[0].mxu0
  %6142 = vmatprep.mubr.f32.mxu0 %v5713
  %6143 = vmatmul.mubr.f32.gmra.mrb[0].mxu0 %v5712
  %v6144 = vpop.f32.mrb[0].mxu0
  %v6145 = vadd.f32 %v5806, %v6144
  %v6146 = vpop.f32.mrb[0].mxu0
  %6147 = vmatprep.mubr.f32.mxu0 %v5722
  %6148 = vmatmul.mubr.f32.gmra.mrb[0].mxu0 %v5721
  %v6149 = vpop.f32.mrb[0].mxu0
  %v6150 = vadd.f32 %v5806, %v6149
  %v6151 = vpop.f32.mrb[0].mxu0
  %6152 = vmatprep.mubr.f32.mxu0 %v5731
  %6153 = vmatmul.mubr.f32.gmra.mrb[0].mxu0 %v5730
  %v6154 = vpop.f32.mrb[0].mxu0
  %v6155 = vadd.f32 %v5806, %v6154
  %v6156 = vpop.f32.mrb[0].mxu0
  %6157 = vmatprep.mubr.f32.mxu0 %v5740
  %6158 = vmatmul.mubr.f32.gmra.mrb[0].mxu0 %v5739
  %v6159 = vpop.f32.mrb[0].mxu0
  %v6160 = vadd.f32 %v5806, %v6159
  %v6161 = vpop.f32.mrb[0].mxu0
  %6162 = vmatprep.mubr.f32.mxu0 %v5749
  %6163 = vmatmul.mubr.f32.gmra.mrb[0].mxu0 %v5748
  %v6164 = vpop.f32.mrb[0].mxu0
  %v6165 = vadd.f32 %v5806, %v6164
  %v6166 = vpop.f32.mrb[0].mxu0
  %6167 = vmatprep.mubr.f32.mxu0 %v5758
  %6168 = vmatmul.mubr.f32.gmra.mrb[0].mxu0 %v5757
  %v6169 = vpop.f32.mrb[0].mxu0
  %v6170 = vadd.f32 %v5806, %v6169
  %v6171 = vpop.f32.mrb[0].mxu0
  %6172 = vmatprep.mubr.f32.mxu0 %v5767
  %6173 = vmatmul.mubr.f32.gmra.mrb[0].mxu0 %v5766
  %v6174 = vpop.f32.mrb[0].mxu0
  %v6175 = vadd.f32 %v5806, %v6174
  %v6176 = vpop.f32.mrb[0].mxu0
  %6177 = vmatprep.mubr.f32.mxu0 %v5776
  %6178 = vmatmul.mubr.f32.gmra.mrb[0].mxu0 %v5775
  %v6179 = vpop.f32.mrb[0].mxu0
  %v6180 = vadd.f32 %v5806, %v6179
  %v6181 = vpop.f32.mrb[0].mxu0
  %6182 = vmatprep.mubr.f32.mxu0 %v5785
  %6183 = vmatmul.mubr.f32.gmra.mrb[0].mxu0 %v5784
  %v6184 = vpop.f32.mrb[0].mxu0
  %v6185 = vadd.f32 %v5806, %v6184
  %v6186 = vpop.f32.mrb[0].mxu0
  %6187 = vmatprep.mubr.f32.mxu0 %v5794
  %6188 = vmatmul.mubr.f32.gmra.mrb[0].mxu0 %v5793
  %v6189 = vpop.f32.mrb[0].mxu0
  %v6190 = vadd.f32 %v5806, %v6189
  %v6191 = vpop.f32.mrb[0].mxu0
  %6192 = vdwg.mxu0
  %6193 = vmatprep.subr.mxu0 0.0
  %6194 = vmatpush1.msra.mxu0 %v4319
  %6195 = vmatprep.subr.mxu0 0.0
  %6196 = vmatpush1.msra.mxu0 %v4320
  %6197 = vmatprep.subr.mxu0 0.0
  %6198 = vmatpush1.msra.mxu0 %v4321
  %6199 = vmatprep.subr.mxu0 0.0
  %6200 = vmatpush1.msra.mxu0 %v4322
  %6201 = vmatprep.subr.mxu0 0.0
  %6202 = vmatpush1.msra.mxu0 %v4323
  %6203 = vmatprep.subr.mxu0 0.0
  %6204 = vmatpush1.msra.mxu0 %v4324
  %6205 = vmatprep.subr.mxu0 0.0
  %6206 = vmatpush1.msra.mxu0 %v4325
  %6207 = vmatprep.subr.mxu0 0.0
  %6208 = vmatpush1.msra.mxu0 %v4326
  %6209 = vmatprep.subr.mxu0 0.0
  %6210 = vmatpush1.msra.mxu0 %v4327
  %6211 = vmatprep.subr.mxu0 0.0
  %6212 = vmatpush1.msra.mxu0 %v4328
  %6213 = vmatprep.subr.mxu0 0.0
  %6214 = vmatpush1.msra.mxu0 %v4329
  %6215 = vmatprep.subr.mxu0 0.0
  %6216 = vmatpush1.msra.mxu0 %v4330
  %6217 = vmatprep.subr.mxu0 0.0
  %6218 = vmatpush1.msra.mxu0 %v4331
  %6219 = vmatprep.subr.mxu0 0.0
  %6220 = vmatpush1.msra.mxu0 %v4332
  %6221 = vmatprep.subr.mxu0 0.0
  %6222 = vmatpush1.msra.mxu0 %v4333
  %6223 = vmatprep.subr.mxu0 0.0
  %6224 = vmatpush1.msra.mxu0 %v4334
  %6225 = vmatprep.subr.mxu0 0.0
  %6226 = vmatpush1.msra.mxu0 %v4335
  %6227 = vmatprep.subr.mxu0 0.0
  %6228 = vmatpush1.msra.mxu0 %v4336
  %6229 = vmatprep.subr.mxu0 0.0
  %6230 = vmatpush1.msra.mxu0 %v4337
  %6231 = vmatprep.subr.mxu0 0.0
  %6232 = vmatpush1.msra.mxu0 %v4338
  %6233 = vmatprep.subr.mxu0 0.0
  %6234 = vmatpush1.msra.mxu0 %v4339
  %6235 = vmatprep.subr.mxu0 0.0
  %6236 = vmatpush1.msra.mxu0 %v4340
  %6237 = vmatprep.subr.mxu0 0.0
  %6238 = vmatpush1.msra.mxu0 %v4341
  %6239 = vmatprep.subr.mxu0 0.0
  %6240 = vmatpush1.msra.mxu0 %v4342
  %6241 = vmatprep.subr.mxu0 0.0
  %6242 = vmatpush1.msra.mxu0 %v4343
  %6243 = vmatprep.subr.mxu0 0.0
  %6244 = vmatpush1.msra.mxu0 %v4344
  %6245 = vmatprep.subr.mxu0 0.0
  %6246 = vmatpush1.msra.mxu0 %v4345
  %6247 = vmatprep.subr.mxu0 0.0
  %6248 = vmatpush1.msra.mxu0 %v4346
  %6249 = vmatprep.subr.mxu0 0.0
  %6250 = vmatpush1.msra.mxu0 %v4347
  %6251 = vmatprep.subr.mxu0 0.0
  %6252 = vmatpush1.msra.mxu0 %v4348
  %6253 = vmatprep.subr.mxu0 0.0
  %6254 = vmatpush1.msra.mxu0 %v4349
  %6255 = vmatprep.subr.mxu0 0.0
  %6256 = vmatpush1.msra.mxu0 %v4350
  %6257 = vmatprep.mubr.f32.mxu0 %v5229
  %6258 = vmatmul.mubr.f32.gmra.mrb[0].mxu0 %v5228
  %v6259 = vpop.f32.mrb[0].mxu0
  %v6260 = vadd.f32 %v5875, %v6259
  %v6261 = vpop.f32.mrb[0].mxu0
  %6262 = vmatprep.mubr.f32.mxu0 %v5238
  %6263 = vmatmul.mubr.f32.gmra.mrb[0].mxu0 %v5237
  %v6264 = vpop.f32.mrb[0].mxu0
  %v6265 = vadd.f32 %v5880, %v6264
  %v6266 = vpop.f32.mrb[0].mxu0
  %6267 = vmatprep.mubr.f32.mxu0 %v5247
  %6268 = vmatmul.mubr.f32.gmra.mrb[0].mxu0 %v5246
  %v6269 = vpop.f32.mrb[0].mxu0
  %v6270 = vadd.f32 %v5885, %v6269
  %v6271 = vpop.f32.mrb[0].mxu0
  %6272 = vmatprep.mubr.f32.mxu0 %v5256
  %6273 = vmatmul.mubr.f32.gmra.mrb[0].mxu0 %v5255
  %v6274 = vpop.f32.mrb[0].mxu0
  %v6275 = vadd.f32 %v5890, %v6274
  %v6276 = vpop.f32.mrb[0].mxu0
  %6277 = vmatprep.mubr.f32.mxu0 %v5265
  %6278 = vmatmul.mubr.f32.gmra.mrb[0].mxu0 %v5264
  %v6279 = vpop.f32.mrb[0].mxu0
  %v6280 = vadd.f32 %v5895, %v6279
  %v6281 = vpop.f32.mrb[0].mxu0
  %6282 = vmatprep.mubr.f32.mxu0 %v5274
  %6283 = vmatmul.mubr.f32.gmra.mrb[0].mxu0 %v5273
  %v6284 = vpop.f32.mrb[0].mxu0
  %v6285 = vadd.f32 %v5900, %v6284
  %v6286 = vpop.f32.mrb[0].mxu0
  %6287 = vmatprep.mubr.f32.mxu0 %v5283
  %6288 = vmatmul.mubr.f32.gmra.mrb[0].mxu0 %v5282
  %v6289 = vpop.f32.mrb[0].mxu0
  %v6290 = vadd.f32 %v5905, %v6289
  %v6291 = vpop.f32.mrb[0].mxu0
  %6292 = vmatprep.mubr.f32.mxu0 %v5292
  %6293 = vmatmul.mubr.f32.gmra.mrb[0].mxu0 %v5291
  %v6294 = vpop.f32.mrb[0].mxu0
  %v6295 = vadd.f32 %v5910, %v6294
  %v6296 = vpop.f32.mrb[0].mxu0
  %6297 = vmatprep.mubr.f32.mxu0 %v5301
  %6298 = vmatmul.mubr.f32.gmra.mrb[0].mxu0 %v5300
  %v6299 = vpop.f32.mrb[0].mxu0
  %v6300 = vadd.f32 %v5915, %v6299
  %v6301 = vpop.f32.mrb[0].mxu0
  %6302 = vmatprep.mubr.f32.mxu0 %v5310
  %6303 = vmatmul.mubr.f32.gmra.mrb[0].mxu0 %v5309
  %v6304 = vpop.f32.mrb[0].mxu0
  %v6305 = vadd.f32 %v5920, %v6304
  %v6306 = vpop.f32.mrb[0].mxu0
  %6307 = vmatprep.mubr.f32.mxu0 %v5319
  %6308 = vmatmul.mubr.f32.gmra.mrb[0].mxu0 %v5318
  %v6309 = vpop.f32.mrb[0].mxu0
  %v6310 = vadd.f32 %v5925, %v6309
  %v6311 = vpop.f32.mrb[0].mxu0
  %6312 = vmatprep.mubr.f32.mxu0 %v5328
  %6313 = vmatmul.mubr.f32.gmra.mrb[0].mxu0 %v5327
  %v6314 = vpop.f32.mrb[0].mxu0
  %v6315 = vadd.f32 %v5930, %v6314
  %v6316 = vpop.f32.mrb[0].mxu0
  %6317 = vmatprep.mubr.f32.mxu0 %v5337
  %6318 = vmatmul.mubr.f32.gmra.mrb[0].mxu0 %v5336
  %v6319 = vpop.f32.mrb[0].mxu0
  %v6320 = vadd.f32 %v5935, %v6319
  %v6321 = vpop.f32.mrb[0].mxu0
  %6322 = vmatprep.mubr.f32.mxu0 %v5346
  %6323 = vmatmul.mubr.f32.gmra.mrb[0].mxu0 %v5345
  %v6324 = vpop.f32.mrb[0].mxu0
  %v6325 = vadd.f32 %v5940, %v6324
  %v6326 = vpop.f32.mrb[0].mxu0
  %6327 = vmatprep.mubr.f32.mxu0 %v5355
  %6328 = vmatmul.mubr.f32.gmra.mrb[0].mxu0 %v5354
  %v6329 = vpop.f32.mrb[0].mxu0
  %v6330 = vadd.f32 %v5945, %v6329
  %v6331 = vpop.f32.mrb[0].mxu0
  %6332 = vmatprep.mubr.f32.mxu0 %v5364
  %6333 = vmatmul.mubr.f32.gmra.mrb[0].mxu0 %v5363
  %v6334 = vpop.f32.mrb[0].mxu0
  %v6335 = vadd.f32 %v5950, %v6334
  %v6336 = vpop.f32.mrb[0].mxu0
  %6337 = vmatprep.mubr.f32.mxu0 %v5373
  %6338 = vmatmul.mubr.f32.gmra.mrb[0].mxu0 %v5372
  %v6339 = vpop.f32.mrb[0].mxu0
  %v6340 = vadd.f32 %v5955, %v6339
  %v6341 = vpop.f32.mrb[0].mxu0
  %6342 = vmatprep.mubr.f32.mxu0 %v5382
  %6343 = vmatmul.mubr.f32.gmra.mrb[0].mxu0 %v5381
  %v6344 = vpop.f32.mrb[0].mxu0
  %v6345 = vadd.f32 %v5960, %v6344
  %v6346 = vpop.f32.mrb[0].mxu0
  %6347 = vmatprep.mubr.f32.mxu0 %v5391
  %6348 = vmatmul.mubr.f32.gmra.mrb[0].mxu0 %v5390
  %v6349 = vpop.f32.mrb[0].mxu0
  %v6350 = vadd.f32 %v5965, %v6349
  %v6351 = vpop.f32.mrb[0].mxu0
  %6352 = vmatprep.mubr.f32.mxu0 %v5400
  %6353 = vmatmul.mubr.f32.gmra.mrb[0].mxu0 %v5399
  %v6354 = vpop.f32.mrb[0].mxu0
  %v6355 = vadd.f32 %v5970, %v6354
  %v6356 = vpop.f32.mrb[0].mxu0
  %6357 = vmatprep.mubr.f32.mxu0 %v5409
  %6358 = vmatmul.mubr.f32.gmra.mrb[0].mxu0 %v5408
  %v6359 = vpop.f32.mrb[0].mxu0
  %v6360 = vadd.f32 %v5975, %v6359
  %v6361 = vpop.f32.mrb[0].mxu0
  %6362 = vmatprep.mubr.f32.mxu0 %v5418
  %6363 = vmatmul.mubr.f32.gmra.mrb[0].mxu0 %v5417
  %v6364 = vpop.f32.mrb[0].mxu0
  %v6365 = vadd.f32 %v5980, %v6364
  %v6366 = vpop.f32.mrb[0].mxu0
  %6367 = vmatprep.mubr.f32.mxu0 %v5427
  %6368 = vmatmul.mubr.f32.gmra.mrb[0].mxu0 %v5426
  %v6369 = vpop.f32.mrb[0].mxu0
  %v6370 = vadd.f32 %v5985, %v6369
  %v6371 = vpop.f32.mrb[0].mxu0
  %6372 = vmatprep.mubr.f32.mxu0 %v5436
  %6373 = vmatmul.mubr.f32.gmra.mrb[0].mxu0 %v5435
  %v6374 = vpop.f32.mrb[0].mxu0
  %v6375 = vadd.f32 %v5990, %v6374
  %v6376 = vpop.f32.mrb[0].mxu0
  %6377 = vmatprep.mubr.f32.mxu0 %v5445
  %6378 = vmatmul.mubr.f32.gmra.mrb[0].mxu0 %v5444
  %v6379 = vpop.f32.mrb[0].mxu0
  %v6380 = vadd.f32 %v5995, %v6379
  %v6381 = vpop.f32.mrb[0].mxu0
  %6382 = vmatprep.mubr.f32.mxu0 %v5454
  %6383 = vmatmul.mubr.f32.gmra.mrb[0].mxu0 %v5453
  %v6384 = vpop.f32.mrb[0].mxu0
  %v6385 = vadd.f32 %v6000, %v6384
  %v6386 = vpop.f32.mrb[0].mxu0
  %6387 = vmatprep.mubr.f32.mxu0 %v5463
  %6388 = vmatmul.mubr.f32.gmra.mrb[0].mxu0 %v5462
  %v6389 = vpop.f32.mrb[0].mxu0
  %v6390 = vadd.f32 %v6005, %v6389
  %v6391 = vpop.f32.mrb[0].mxu0
  %6392 = vmatprep.mubr.f32.mxu0 %v5472
  %6393 = vmatmul.mubr.f32.gmra.mrb[0].mxu0 %v5471
  %v6394 = vpop.f32.mrb[0].mxu0
  %v6395 = vadd.f32 %v6010, %v6394
  %v6396 = vpop.f32.mrb[0].mxu0
  %6397 = vmatprep.mubr.f32.mxu0 %v5481
  %6398 = vmatmul.mubr.f32.gmra.mrb[0].mxu0 %v5480
  %v6399 = vpop.f32.mrb[0].mxu0
  %v6400 = vadd.f32 %v6015, %v6399
  %v6401 = vpop.f32.mrb[0].mxu0
  %6402 = vmatprep.mubr.f32.mxu0 %v5490
  %6403 = vmatmul.mubr.f32.gmra.mrb[0].mxu0 %v5489
  %v6404 = vpop.f32.mrb[0].mxu0
  %v6405 = vadd.f32 %v6020, %v6404
  %v6406 = vpop.f32.mrb[0].mxu0
  %6407 = vmatprep.mubr.f32.mxu0 %v5499
  %6408 = vmatmul.mubr.f32.gmra.mrb[0].mxu0 %v5498
  %v6409 = vpop.f32.mrb[0].mxu0
  %v6410 = vadd.f32 %v6025, %v6409
  %v6411 = vpop.f32.mrb[0].mxu0
  %6412 = vmatprep.mubr.f32.mxu0 %v5508
  %6413 = vmatmul.mubr.f32.gmra.mrb[0].mxu0 %v5507
  %v6414 = vpop.f32.mrb[0].mxu0
  %v6415 = vadd.f32 %v6030, %v6414
  %v6416 = vpop.f32.mrb[0].mxu0
  %6417 = vmatprep.mubr.f32.mxu0 %v5517
  %6418 = vmatmul.mubr.f32.gmra.mrb[0].mxu0 %v5516
  %v6419 = vpop.f32.mrb[0].mxu0
  %v6420 = vadd.f32 %v6035, %v6419
  %v6421 = vpop.f32.mrb[0].mxu0
  %6422 = vmatprep.mubr.f32.mxu0 %v5526
  %6423 = vmatmul.mubr.f32.gmra.mrb[0].mxu0 %v5525
  %v6424 = vpop.f32.mrb[0].mxu0
  %v6425 = vadd.f32 %v6040, %v6424
  %v6426 = vpop.f32.mrb[0].mxu0
  %6427 = vmatprep.mubr.f32.mxu0 %v5535
  %6428 = vmatmul.mubr.f32.gmra.mrb[0].mxu0 %v5534
  %v6429 = vpop.f32.mrb[0].mxu0
  %v6430 = vadd.f32 %v6045, %v6429
  %v6431 = vpop.f32.mrb[0].mxu0
  %6432 = vmatprep.mubr.f32.mxu0 %v5544
  %6433 = vmatmul.mubr.f32.gmra.mrb[0].mxu0 %v5543
  %v6434 = vpop.f32.mrb[0].mxu0
  %v6435 = vadd.f32 %v6050, %v6434
  %v6436 = vpop.f32.mrb[0].mxu0
  %6437 = vmatprep.mubr.f32.mxu0 %v5553
  %6438 = vmatmul.mubr.f32.gmra.mrb[0].mxu0 %v5552
  %v6439 = vpop.f32.mrb[0].mxu0
  %v6440 = vadd.f32 %v6055, %v6439
  %v6441 = vpop.f32.mrb[0].mxu0
  %6442 = vmatprep.mubr.f32.mxu0 %v5562
  %6443 = vmatmul.mubr.f32.gmra.mrb[0].mxu0 %v5561
  %v6444 = vpop.f32.mrb[0].mxu0
  %v6445 = vadd.f32 %v6060, %v6444
  %v6446 = vpop.f32.mrb[0].mxu0
  %6447 = vmatprep.mubr.f32.mxu0 %v5571
  %6448 = vmatmul.mubr.f32.gmra.mrb[0].mxu0 %v5570
  %v6449 = vpop.f32.mrb[0].mxu0
  %v6450 = vadd.f32 %v6065, %v6449
  %v6451 = vpop.f32.mrb[0].mxu0
  %6452 = vmatprep.mubr.f32.mxu0 %v5580
  %6453 = vmatmul.mubr.f32.gmra.mrb[0].mxu0 %v5579
  %v6454 = vpop.f32.mrb[0].mxu0
  %v6455 = vadd.f32 %v6070, %v6454
  %v6456 = vpop.f32.mrb[0].mxu0
  %6457 = vmatprep.mubr.f32.mxu0 %v5589
  %6458 = vmatmul.mubr.f32.gmra.mrb[0].mxu0 %v5588
  %v6459 = vpop.f32.mrb[0].mxu0
  %v6460 = vadd.f32 %v6075, %v6459
  %v6461 = vpop.f32.mrb[0].mxu0
  %6462 = vmatprep.mubr.f32.mxu0 %v5598
  %6463 = vmatmul.mubr.f32.gmra.mrb[0].mxu0 %v5597
  %v6464 = vpop.f32.mrb[0].mxu0
  %v6465 = vadd.f32 %v6080, %v6464
  %v6466 = vpop.f32.mrb[0].mxu0
  %6467 = vmatprep.mubr.f32.mxu0 %v5607
  %6468 = vmatmul.mubr.f32.gmra.mrb[0].mxu0 %v5606
  %v6469 = vpop.f32.mrb[0].mxu0
  %v6470 = vadd.f32 %v6085, %v6469
  %v6471 = vpop.f32.mrb[0].mxu0
  %6472 = vmatprep.mubr.f32.mxu0 %v5616
  %6473 = vmatmul.mubr.f32.gmra.mrb[0].mxu0 %v5615
  %v6474 = vpop.f32.mrb[0].mxu0
  %v6475 = vadd.f32 %v6090, %v6474
  %v6476 = vpop.f32.mrb[0].mxu0
  %6477 = vmatprep.mubr.f32.mxu0 %v5625
  %6478 = vmatmul.mubr.f32.gmra.mrb[0].mxu0 %v5624
  %v6479 = vpop.f32.mrb[0].mxu0
  %v6480 = vadd.f32 %v6095, %v6479
  %v6481 = vpop.f32.mrb[0].mxu0
  %6482 = vmatprep.mubr.f32.mxu0 %v5634
  %6483 = vmatmul.mubr.f32.gmra.mrb[0].mxu0 %v5633
  %v6484 = vpop.f32.mrb[0].mxu0
  %v6485 = vadd.f32 %v6100, %v6484
  %v6486 = vpop.f32.mrb[0].mxu0
  %6487 = vmatprep.mubr.f32.mxu0 %v5643
  %6488 = vmatmul.mubr.f32.gmra.mrb[0].mxu0 %v5642
  %v6489 = vpop.f32.mrb[0].mxu0
  %v6490 = vadd.f32 %v6105, %v6489
  %v6491 = vpop.f32.mrb[0].mxu0
  %6492 = vmatprep.mubr.f32.mxu0 %v5652
  %6493 = vmatmul.mubr.f32.gmra.mrb[0].mxu0 %v5651
  %v6494 = vpop.f32.mrb[0].mxu0
  %v6495 = vadd.f32 %v6110, %v6494
  %v6496 = vpop.f32.mrb[0].mxu0
  %6497 = vmatprep.mubr.f32.mxu0 %v5661
  %6498 = vmatmul.mubr.f32.gmra.mrb[0].mxu0 %v5660
  %v6499 = vpop.f32.mrb[0].mxu0
  %v6500 = vadd.f32 %v6115, %v6499
  %v6501 = vpop.f32.mrb[0].mxu0
  %6502 = vmatprep.mubr.f32.mxu0 %v5670
  %6503 = vmatmul.mubr.f32.gmra.mrb[0].mxu0 %v5669
  %v6504 = vpop.f32.mrb[0].mxu0
  %v6505 = vadd.f32 %v6120, %v6504
  %v6506 = vpop.f32.mrb[0].mxu0
  %6507 = vmatprep.mubr.f32.mxu0 %v5679
  %6508 = vmatmul.mubr.f32.gmra.mrb[0].mxu0 %v5678
  %v6509 = vpop.f32.mrb[0].mxu0
  %v6510 = vadd.f32 %v6125, %v6509
  %v6511 = vpop.f32.mrb[0].mxu0
  %6512 = vmatprep.mubr.f32.mxu0 %v5688
  %6513 = vmatmul.mubr.f32.gmra.mrb[0].mxu0 %v5687
  %v6514 = vpop.f32.mrb[0].mxu0
  %v6515 = vadd.f32 %v6130, %v6514
  %v6516 = vpop.f32.mrb[0].mxu0
  %6517 = vmatprep.mubr.f32.mxu0 %v5697
  %6518 = vmatmul.mubr.f32.gmra.mrb[0].mxu0 %v5696
  %v6519 = vpop.f32.mrb[0].mxu0
  %v6520 = vadd.f32 %v6135, %v6519
  %v6521 = vpop.f32.mrb[0].mxu0
  %6522 = vmatprep.mubr.f32.mxu0 %v5706
  %6523 = vmatmul.mubr.f32.gmra.mrb[0].mxu0 %v5705
  %v6524 = vpop.f32.mrb[0].mxu0
  %v6525 = vadd.f32 %v6140, %v6524
  %v6526 = vpop.f32.mrb[0].mxu0
  %6527 = vmatprep.mubr.f32.mxu0 %v5715
  %6528 = vmatmul.mubr.f32.gmra.mrb[0].mxu0 %v5714
  %v6529 = vpop.f32.mrb[0].mxu0
  %v6530 = vadd.f32 %v6145, %v6529
  %v6531 = vpop.f32.mrb[0].mxu0
  %6532 = vmatprep.mubr.f32.mxu0 %v5724
  %6533 = vmatmul.mubr.f32.gmra.mrb[0].mxu0 %v5723
  %v6534 = vpop.f32.mrb[0].mxu0
  %v6535 = vadd.f32 %v6150, %v6534
  %v6536 = vpop.f32.mrb[0].mxu0
  %6537 = vmatprep.mubr.f32.mxu0 %v5733
  %6538 = vmatmul.mubr.f32.gmra.mrb[0].mxu0 %v5732
  %v6539 = vpop.f32.mrb[0].mxu0
  %v6540 = vadd.f32 %v6155, %v6539
  %v6541 = vpop.f32.mrb[0].mxu0
  %6542 = vmatprep.mubr.f32.mxu0 %v5742
  %6543 = vmatmul.mubr.f32.gmra.mrb[0].mxu0 %v5741
  %v6544 = vpop.f32.mrb[0].mxu0
  %v6545 = vadd.f32 %v6160, %v6544
  %v6546 = vpop.f32.mrb[0].mxu0
  %6547 = vmatprep.mubr.f32.mxu0 %v5751
  %6548 = vmatmul.mubr.f32.gmra.mrb[0].mxu0 %v5750
  %v6549 = vpop.f32.mrb[0].mxu0
  %v6550 = vadd.f32 %v6165, %v6549
  %v6551 = vpop.f32.mrb[0].mxu0
  %6552 = vmatprep.mubr.f32.mxu0 %v5760
  %6553 = vmatmul.mubr.f32.gmra.mrb[0].mxu0 %v5759
  %v6554 = vpop.f32.mrb[0].mxu0
  %v6555 = vadd.f32 %v6170, %v6554
  %v6556 = vpop.f32.mrb[0].mxu0
  %6557 = vmatprep.mubr.f32.mxu0 %v5769
  %6558 = vmatmul.mubr.f32.gmra.mrb[0].mxu0 %v5768
  %v6559 = vpop.f32.mrb[0].mxu0
  %v6560 = vadd.f32 %v6175, %v6559
  %v6561 = vpop.f32.mrb[0].mxu0
  %6562 = vmatprep.mubr.f32.mxu0 %v5778
  %6563 = vmatmul.mubr.f32.gmra.mrb[0].mxu0 %v5777
  %v6564 = vpop.f32.mrb[0].mxu0
  %v6565 = vadd.f32 %v6180, %v6564
  %v6566 = vpop.f32.mrb[0].mxu0
  %6567 = vmatprep.mubr.f32.mxu0 %v5787
  %6568 = vmatmul.mubr.f32.gmra.mrb[0].mxu0 %v5786
  %v6569 = vpop.f32.mrb[0].mxu0
  %v6570 = vadd.f32 %v6185, %v6569
  %v6571 = vpop.f32.mrb[0].mxu0
  %6572 = vmatprep.mubr.f32.mxu0 %v5796
  %6573 = vmatmul.mubr.f32.gmra.mrb[0].mxu0 %v5795
  %v6574 = vpop.f32.mrb[0].mxu0
  %v6575 = vadd.f32 %v6190, %v6574
  %v6576 = vpop.f32.mrb[0].mxu0
  %6577 = vdwg.mxu0
  %6578 = vmatprep.subr.mxu0 0.0
  %6579 = vmatpush1.msra.mxu0 %v4351
  %6580 = vmatprep.subr.mxu0 0.0
  %6581 = vmatpush1.msra.mxu0 %v4352
  %6582 = vmatprep.subr.mxu0 0.0
  %6583 = vmatpush1.msra.mxu0 %v4353
  %6584 = vmatprep.subr.mxu0 0.0
  %6585 = vmatpush1.msra.mxu0 %v4354
  %6586 = vmatprep.subr.mxu0 0.0
  %6587 = vmatpush1.msra.mxu0 %v4355
  %6588 = vmatprep.subr.mxu0 0.0
  %6589 = vmatpush1.msra.mxu0 %v4356
  %6590 = vmatprep.subr.mxu0 0.0
  %6591 = vmatpush1.msra.mxu0 %v4357
  %6592 = vmatprep.subr.mxu0 0.0
  %6593 = vmatpush1.msra.mxu0 %v4358
  %6594 = vmatprep.subr.mxu0 0.0
  %6595 = vmatpush1.msra.mxu0 %v4359
  %6596 = vmatprep.subr.mxu0 0.0
  %6597 = vmatpush1.msra.mxu0 %v4360
  %6598 = vmatprep.subr.mxu0 0.0
  %6599 = vmatpush1.msra.mxu0 %v4361
  %6600 = vmatprep.subr.mxu0 0.0
  %6601 = vmatpush1.msra.mxu0 %v4362
  %6602 = vmatprep.subr.mxu0 0.0
  %6603 = vmatpush1.msra.mxu0 %v4363
  %6604 = vmatprep.subr.mxu0 0.0
  %6605 = vmatpush1.msra.mxu0 %v4364
  %6606 = vmatprep.subr.mxu0 0.0
  %6607 = vmatpush1.msra.mxu0 %v4365
  %6608 = vmatprep.subr.mxu0 0.0
  %6609 = vmatpush1.msra.mxu0 %v4366
  %6610 = vmatprep.subr.mxu0 0.0
  %6611 = vmatpush1.msra.mxu0 %v4367
  %6612 = vmatprep.subr.mxu0 0.0
  %6613 = vmatpush1.msra.mxu0 %v4368
  %6614 = vmatprep.subr.mxu0 0.0
  %6615 = vmatpush1.msra.mxu0 %v4369
  %6616 = vmatprep.subr.mxu0 0.0
  %6617 = vmatpush1.msra.mxu0 %v4370
  %6618 = vmatprep.subr.mxu0 0.0
  %6619 = vmatpush1.msra.mxu0 %v4371
  %6620 = vmatprep.subr.mxu0 0.0
  %6621 = vmatpush1.msra.mxu0 %v4372
  %6622 = vmatprep.subr.mxu0 0.0
  %6623 = vmatpush1.msra.mxu0 %v4373
  %6624 = vmatprep.subr.mxu0 0.0
  %6625 = vmatpush1.msra.mxu0 %v4374
  %6626 = vmatprep.subr.mxu0 0.0
  %6627 = vmatpush1.msra.mxu0 %v4375
  %6628 = vmatprep.subr.mxu0 0.0
  %6629 = vmatpush1.msra.mxu0 %v4376
  %6630 = vmatprep.subr.mxu0 0.0
  %6631 = vmatpush1.msra.mxu0 %v4377
  %6632 = vmatprep.subr.mxu0 0.0
  %6633 = vmatpush1.msra.mxu0 %v4378
  %6634 = vmatprep.subr.mxu0 0.0
  %6635 = vmatpush1.msra.mxu0 %v4379
  %6636 = vmatprep.subr.mxu0 0.0
  %6637 = vmatpush1.msra.mxu0 %v4380
  %6638 = vmatprep.subr.mxu0 0.0
  %6639 = vmatpush1.msra.mxu0 %v4381
  %6640 = vmatprep.subr.mxu0 0.0
  %6641 = vmatpush1.msra.mxu0 %v4382
  %6642 = vmatprep.mubr.f32.mxu0 %v5231
  %6643 = vmatmul.mubr.f32.gmra.mrb[0].mxu0 %v5230
  %v6644 = vpop.f32.mrb[0].mxu0
  %v6645 = vadd.f32 %v6260, %v6644
  %v6646 = vpop.f32.mrb[0].mxu0
  %6647 = vmatprep.mubr.f32.mxu0 %v5240
  %6648 = vmatmul.mubr.f32.gmra.mrb[0].mxu0 %v5239
  %v6649 = vpop.f32.mrb[0].mxu0
  %v6650 = vadd.f32 %v6265, %v6649
  %v6651 = vpop.f32.mrb[0].mxu0
  %6652 = vmatprep.mubr.f32.mxu0 %v5249
  %6653 = vmatmul.mubr.f32.gmra.mrb[0].mxu0 %v5248
  %v6654 = vpop.f32.mrb[0].mxu0
  %v6655 = vadd.f32 %v6270, %v6654
  %v6656 = vpop.f32.mrb[0].mxu0
  %6657 = vmatprep.mubr.f32.mxu0 %v5258
  %6658 = vmatmul.mubr.f32.gmra.mrb[0].mxu0 %v5257
  %v6659 = vpop.f32.mrb[0].mxu0
  %v6660 = vadd.f32 %v6275, %v6659
  %v6661 = vpop.f32.mrb[0].mxu0
  %6662 = vmatprep.mubr.f32.mxu0 %v5267
  %6663 = vmatmul.mubr.f32.gmra.mrb[0].mxu0 %v5266
  %v6664 = vpop.f32.mrb[0].mxu0
  %v6665 = vadd.f32 %v6280, %v6664
  %v6666 = vpop.f32.mrb[0].mxu0
  %6667 = vmatprep.mubr.f32.mxu0 %v5276
  %6668 = vmatmul.mubr.f32.gmra.mrb[0].mxu0 %v5275
  %v6669 = vpop.f32.mrb[0].mxu0
  %v6670 = vadd.f32 %v6285, %v6669
  %v6671 = vpop.f32.mrb[0].mxu0
  %6672 = vmatprep.mubr.f32.mxu0 %v5285
  %6673 = vmatmul.mubr.f32.gmra.mrb[0].mxu0 %v5284
  %v6674 = vpop.f32.mrb[0].mxu0
  %v6675 = vadd.f32 %v6290, %v6674
  %v6676 = vpop.f32.mrb[0].mxu0
  %6677 = vmatprep.mubr.f32.mxu0 %v5294
  %6678 = vmatmul.mubr.f32.gmra.mrb[0].mxu0 %v5293
  %v6679 = vpop.f32.mrb[0].mxu0
  %v6680 = vadd.f32 %v6295, %v6679
  %v6681 = vpop.f32.mrb[0].mxu0
  %6682 = vmatprep.mubr.f32.mxu0 %v5303
  %6683 = vmatmul.mubr.f32.gmra.mrb[0].mxu0 %v5302
  %v6684 = vpop.f32.mrb[0].mxu0
  %v6685 = vadd.f32 %v6300, %v6684
  %v6686 = vpop.f32.mrb[0].mxu0
  %6687 = vmatprep.mubr.f32.mxu0 %v5312
  %6688 = vmatmul.mubr.f32.gmra.mrb[0].mxu0 %v5311
  %v6689 = vpop.f32.mrb[0].mxu0
  %v6690 = vadd.f32 %v6305, %v6689
  %v6691 = vpop.f32.mrb[0].mxu0
  %6692 = vmatprep.mubr.f32.mxu0 %v5321
  %6693 = vmatmul.mubr.f32.gmra.mrb[0].mxu0 %v5320
  %v6694 = vpop.f32.mrb[0].mxu0
  %v6695 = vadd.f32 %v6310, %v6694
  %v6696 = vpop.f32.mrb[0].mxu0
  %6697 = vmatprep.mubr.f32.mxu0 %v5330
  %6698 = vmatmul.mubr.f32.gmra.mrb[0].mxu0 %v5329
  %v6699 = vpop.f32.mrb[0].mxu0
  %v6700 = vadd.f32 %v6315, %v6699
  %v6701 = vpop.f32.mrb[0].mxu0
  %6702 = vmatprep.mubr.f32.mxu0 %v5339
  %6703 = vmatmul.mubr.f32.gmra.mrb[0].mxu0 %v5338
  %v6704 = vpop.f32.mrb[0].mxu0
  %v6705 = vadd.f32 %v6320, %v6704
  %v6706 = vpop.f32.mrb[0].mxu0
  %6707 = vmatprep.mubr.f32.mxu0 %v5348
  %6708 = vmatmul.mubr.f32.gmra.mrb[0].mxu0 %v5347
  %v6709 = vpop.f32.mrb[0].mxu0
  %v6710 = vadd.f32 %v6325, %v6709
  %v6711 = vpop.f32.mrb[0].mxu0
  %6712 = vmatprep.mubr.f32.mxu0 %v5357
  %6713 = vmatmul.mubr.f32.gmra.mrb[0].mxu0 %v5356
  %v6714 = vpop.f32.mrb[0].mxu0
  %v6715 = vadd.f32 %v6330, %v6714
  %v6716 = vpop.f32.mrb[0].mxu0
  %6717 = vmatprep.mubr.f32.mxu0 %v5366
  %6718 = vmatmul.mubr.f32.gmra.mrb[0].mxu0 %v5365
  %v6719 = vpop.f32.mrb[0].mxu0
  %v6720 = vadd.f32 %v6335, %v6719
  %v6721 = vpop.f32.mrb[0].mxu0
  %6722 = vmatprep.mubr.f32.mxu0 %v5375
  %6723 = vmatmul.mubr.f32.gmra.mrb[0].mxu0 %v5374
  %v6724 = vpop.f32.mrb[0].mxu0
  %v6725 = vadd.f32 %v6340, %v6724
  %v6726 = vpop.f32.mrb[0].mxu0
  %6727 = vmatprep.mubr.f32.mxu0 %v5384
  %6728 = vmatmul.mubr.f32.gmra.mrb[0].mxu0 %v5383
  %v6729 = vpop.f32.mrb[0].mxu0
  %v6730 = vadd.f32 %v6345, %v6729
  %v6731 = vpop.f32.mrb[0].mxu0
  %6732 = vmatprep.mubr.f32.mxu0 %v5393
  %6733 = vmatmul.mubr.f32.gmra.mrb[0].mxu0 %v5392
  %v6734 = vpop.f32.mrb[0].mxu0
  %v6735 = vadd.f32 %v6350, %v6734
  %v6736 = vpop.f32.mrb[0].mxu0
  %6737 = vmatprep.mubr.f32.mxu0 %v5402
  %6738 = vmatmul.mubr.f32.gmra.mrb[0].mxu0 %v5401
  %v6739 = vpop.f32.mrb[0].mxu0
  %v6740 = vadd.f32 %v6355, %v6739
  %v6741 = vpop.f32.mrb[0].mxu0
  %6742 = vmatprep.mubr.f32.mxu0 %v5411
  %6743 = vmatmul.mubr.f32.gmra.mrb[0].mxu0 %v5410
  %v6744 = vpop.f32.mrb[0].mxu0
  %v6745 = vadd.f32 %v6360, %v6744
  %v6746 = vpop.f32.mrb[0].mxu0
  %6747 = vmatprep.mubr.f32.mxu0 %v5420
  %6748 = vmatmul.mubr.f32.gmra.mrb[0].mxu0 %v5419
  %v6749 = vpop.f32.mrb[0].mxu0
  %v6750 = vadd.f32 %v6365, %v6749
  %v6751 = vpop.f32.mrb[0].mxu0
  %6752 = vmatprep.mubr.f32.mxu0 %v5429
  %6753 = vmatmul.mubr.f32.gmra.mrb[0].mxu0 %v5428
  %v6754 = vpop.f32.mrb[0].mxu0
  %v6755 = vadd.f32 %v6370, %v6754
  %v6756 = vpop.f32.mrb[0].mxu0
  %6757 = vmatprep.mubr.f32.mxu0 %v5438
  %6758 = vmatmul.mubr.f32.gmra.mrb[0].mxu0 %v5437
  %v6759 = vpop.f32.mrb[0].mxu0
  %v6760 = vadd.f32 %v6375, %v6759
  %v6761 = vpop.f32.mrb[0].mxu0
  %6762 = vmatprep.mubr.f32.mxu0 %v5447
  %6763 = vmatmul.mubr.f32.gmra.mrb[0].mxu0 %v5446
  %v6764 = vpop.f32.mrb[0].mxu0
  %v6765 = vadd.f32 %v6380, %v6764
  %v6766 = vpop.f32.mrb[0].mxu0
  %6767 = vmatprep.mubr.f32.mxu0 %v5456
  %6768 = vmatmul.mubr.f32.gmra.mrb[0].mxu0 %v5455
  %v6769 = vpop.f32.mrb[0].mxu0
  %v6770 = vadd.f32 %v6385, %v6769
  %v6771 = vpop.f32.mrb[0].mxu0
  %6772 = vmatprep.mubr.f32.mxu0 %v5465
  %6773 = vmatmul.mubr.f32.gmra.mrb[0].mxu0 %v5464
  %v6774 = vpop.f32.mrb[0].mxu0
  %v6775 = vadd.f32 %v6390, %v6774
  %v6776 = vpop.f32.mrb[0].mxu0
  %6777 = vmatprep.mubr.f32.mxu0 %v5474
  %6778 = vmatmul.mubr.f32.gmra.mrb[0].mxu0 %v5473
  %v6779 = vpop.f32.mrb[0].mxu0
  %v6780 = vadd.f32 %v6395, %v6779
  %v6781 = vpop.f32.mrb[0].mxu0
  %6782 = vmatprep.mubr.f32.mxu0 %v5483
  %6783 = vmatmul.mubr.f32.gmra.mrb[0].mxu0 %v5482
  %v6784 = vpop.f32.mrb[0].mxu0
  %v6785 = vadd.f32 %v6400, %v6784
  %v6786 = vpop.f32.mrb[0].mxu0
  %6787 = vmatprep.mubr.f32.mxu0 %v5492
  %6788 = vmatmul.mubr.f32.gmra.mrb[0].mxu0 %v5491
  %v6789 = vpop.f32.mrb[0].mxu0
  %v6790 = vadd.f32 %v6405, %v6789
  %v6791 = vpop.f32.mrb[0].mxu0
  %6792 = vmatprep.mubr.f32.mxu0 %v5501
  %6793 = vmatmul.mubr.f32.gmra.mrb[0].mxu0 %v5500
  %v6794 = vpop.f32.mrb[0].mxu0
  %v6795 = vadd.f32 %v6410, %v6794
  %v6796 = vpop.f32.mrb[0].mxu0
  %6797 = vmatprep.mubr.f32.mxu0 %v5510
  %6798 = vmatmul.mubr.f32.gmra.mrb[0].mxu0 %v5509
  %v6799 = vpop.f32.mrb[0].mxu0
  %v6800 = vadd.f32 %v6415, %v6799
  %v6801 = vpop.f32.mrb[0].mxu0
  %6802 = vmatprep.mubr.f32.mxu0 %v5519
  %6803 = vmatmul.mubr.f32.gmra.mrb[0].mxu0 %v5518
  %v6804 = vpop.f32.mrb[0].mxu0
  %v6805 = vadd.f32 %v6420, %v6804
  %v6806 = vpop.f32.mrb[0].mxu0
  %6807 = vmatprep.mubr.f32.mxu0 %v5528
  %6808 = vmatmul.mubr.f32.gmra.mrb[0].mxu0 %v5527
  %v6809 = vpop.f32.mrb[0].mxu0
  %v6810 = vadd.f32 %v6425, %v6809
  %v6811 = vpop.f32.mrb[0].mxu0
  %6812 = vmatprep.mubr.f32.mxu0 %v5537
  %6813 = vmatmul.mubr.f32.gmra.mrb[0].mxu0 %v5536
  %v6814 = vpop.f32.mrb[0].mxu0
  %v6815 = vadd.f32 %v6430, %v6814
  %v6816 = vpop.f32.mrb[0].mxu0
  %6817 = vmatprep.mubr.f32.mxu0 %v5546
  %6818 = vmatmul.mubr.f32.gmra.mrb[0].mxu0 %v5545
  %v6819 = vpop.f32.mrb[0].mxu0
  %v6820 = vadd.f32 %v6435, %v6819
  %v6821 = vpop.f32.mrb[0].mxu0
  %6822 = vmatprep.mubr.f32.mxu0 %v5555
  %6823 = vmatmul.mubr.f32.gmra.mrb[0].mxu0 %v5554
  %v6824 = vpop.f32.mrb[0].mxu0
  %v6825 = vadd.f32 %v6440, %v6824
  %v6826 = vpop.f32.mrb[0].mxu0
  %6827 = vmatprep.mubr.f32.mxu0 %v5564
  %6828 = vmatmul.mubr.f32.gmra.mrb[0].mxu0 %v5563
  %v6829 = vpop.f32.mrb[0].mxu0
  %v6830 = vadd.f32 %v6445, %v6829
  %v6831 = vpop.f32.mrb[0].mxu0
  %6832 = vmatprep.mubr.f32.mxu0 %v5573
  %6833 = vmatmul.mubr.f32.gmra.mrb[0].mxu0 %v5572
  %v6834 = vpop.f32.mrb[0].mxu0
  %v6835 = vadd.f32 %v6450, %v6834
  %v6836 = vpop.f32.mrb[0].mxu0
  %6837 = vmatprep.mubr.f32.mxu0 %v5582
  %6838 = vmatmul.mubr.f32.gmra.mrb[0].mxu0 %v5581
  %v6839 = vpop.f32.mrb[0].mxu0
  %v6840 = vadd.f32 %v6455, %v6839
  %v6841 = vpop.f32.mrb[0].mxu0
  %6842 = vmatprep.mubr.f32.mxu0 %v5591
  %6843 = vmatmul.mubr.f32.gmra.mrb[0].mxu0 %v5590
  %v6844 = vpop.f32.mrb[0].mxu0
  %v6845 = vadd.f32 %v6460, %v6844
  %v6846 = vpop.f32.mrb[0].mxu0
  %6847 = vmatprep.mubr.f32.mxu0 %v5600
  %6848 = vmatmul.mubr.f32.gmra.mrb[0].mxu0 %v5599
  %v6849 = vpop.f32.mrb[0].mxu0
  %v6850 = vadd.f32 %v6465, %v6849
  %v6851 = vpop.f32.mrb[0].mxu0
  %6852 = vmatprep.mubr.f32.mxu0 %v5609
  %6853 = vmatmul.mubr.f32.gmra.mrb[0].mxu0 %v5608
  %v6854 = vpop.f32.mrb[0].mxu0
  %v6855 = vadd.f32 %v6470, %v6854
  %v6856 = vpop.f32.mrb[0].mxu0
  %6857 = vmatprep.mubr.f32.mxu0 %v5618
  %6858 = vmatmul.mubr.f32.gmra.mrb[0].mxu0 %v5617
  %v6859 = vpop.f32.mrb[0].mxu0
  %v6860 = vadd.f32 %v6475, %v6859
  %v6861 = vpop.f32.mrb[0].mxu0
  %6862 = vmatprep.mubr.f32.mxu0 %v5627
  %6863 = vmatmul.mubr.f32.gmra.mrb[0].mxu0 %v5626
  %v6864 = vpop.f32.mrb[0].mxu0
  %v6865 = vadd.f32 %v6480, %v6864
  %v6866 = vpop.f32.mrb[0].mxu0
  %6867 = vmatprep.mubr.f32.mxu0 %v5636
  %6868 = vmatmul.mubr.f32.gmra.mrb[0].mxu0 %v5635
  %v6869 = vpop.f32.mrb[0].mxu0
  %v6870 = vadd.f32 %v6485, %v6869
  %v6871 = vpop.f32.mrb[0].mxu0
  %6872 = vmatprep.mubr.f32.mxu0 %v5645
  %6873 = vmatmul.mubr.f32.gmra.mrb[0].mxu0 %v5644
  %v6874 = vpop.f32.mrb[0].mxu0
  %v6875 = vadd.f32 %v6490, %v6874
  %v6876 = vpop.f32.mrb[0].mxu0
  %6877 = vmatprep.mubr.f32.mxu0 %v5654
  %6878 = vmatmul.mubr.f32.gmra.mrb[0].mxu0 %v5653
  %v6879 = vpop.f32.mrb[0].mxu0
  %v6880 = vadd.f32 %v6495, %v6879
  %v6881 = vpop.f32.mrb[0].mxu0
  %6882 = vmatprep.mubr.f32.mxu0 %v5663
  %6883 = vmatmul.mubr.f32.gmra.mrb[0].mxu0 %v5662
  %v6884 = vpop.f32.mrb[0].mxu0
  %v6885 = vadd.f32 %v6500, %v6884
  %v6886 = vpop.f32.mrb[0].mxu0
  %6887 = vmatprep.mubr.f32.mxu0 %v5672
  %6888 = vmatmul.mubr.f32.gmra.mrb[0].mxu0 %v5671
  %v6889 = vpop.f32.mrb[0].mxu0
  %v6890 = vadd.f32 %v6505, %v6889
  %v6891 = vpop.f32.mrb[0].mxu0
  %6892 = vmatprep.mubr.f32.mxu0 %v5681
  %6893 = vmatmul.mubr.f32.gmra.mrb[0].mxu0 %v5680
  %v6894 = vpop.f32.mrb[0].mxu0
  %v6895 = vadd.f32 %v6510, %v6894
  %v6896 = vpop.f32.mrb[0].mxu0
  %6897 = vmatprep.mubr.f32.mxu0 %v5690
  %6898 = vmatmul.mubr.f32.gmra.mrb[0].mxu0 %v5689
  %v6899 = vpop.f32.mrb[0].mxu0
  %v6900 = vadd.f32 %v6515, %v6899
  %v6901 = vpop.f32.mrb[0].mxu0
  %6902 = vmatprep.mubr.f32.mxu0 %v5699
  %6903 = vmatmul.mubr.f32.gmra.mrb[0].mxu0 %v5698
  %v6904 = vpop.f32.mrb[0].mxu0
  %v6905 = vadd.f32 %v6520, %v6904
  %v6906 = vpop.f32.mrb[0].mxu0
  %6907 = vmatprep.mubr.f32.mxu0 %v5708
  %6908 = vmatmul.mubr.f32.gmra.mrb[0].mxu0 %v5707
  %v6909 = vpop.f32.mrb[0].mxu0
  %v6910 = vadd.f32 %v6525, %v6909
  %v6911 = vpop.f32.mrb[0].mxu0
  %6912 = vmatprep.mubr.f32.mxu0 %v5717
  %6913 = vmatmul.mubr.f32.gmra.mrb[0].mxu0 %v5716
  %v6914 = vpop.f32.mrb[0].mxu0
  %v6915 = vadd.f32 %v6530, %v6914
  %v6916 = vpop.f32.mrb[0].mxu0
  %6917 = vmatprep.mubr.f32.mxu0 %v5726
  %6918 = vmatmul.mubr.f32.gmra.mrb[0].mxu0 %v5725
  %v6919 = vpop.f32.mrb[0].mxu0
  %v6920 = vadd.f32 %v6535, %v6919
  %v6921 = vpop.f32.mrb[0].mxu0
  %6922 = vmatprep.mubr.f32.mxu0 %v5735
  %6923 = vmatmul.mubr.f32.gmra.mrb[0].mxu0 %v5734
  %v6924 = vpop.f32.mrb[0].mxu0
  %v6925 = vadd.f32 %v6540, %v6924
  %v6926 = vpop.f32.mrb[0].mxu0
  %6927 = vmatprep.mubr.f32.mxu0 %v5744
  %6928 = vmatmul.mubr.f32.gmra.mrb[0].mxu0 %v5743
  %v6929 = vpop.f32.mrb[0].mxu0
  %v6930 = vadd.f32 %v6545, %v6929
  %v6931 = vpop.f32.mrb[0].mxu0
  %6932 = vmatprep.mubr.f32.mxu0 %v5753
  %6933 = vmatmul.mubr.f32.gmra.mrb[0].mxu0 %v5752
  %v6934 = vpop.f32.mrb[0].mxu0
  %v6935 = vadd.f32 %v6550, %v6934
  %v6936 = vpop.f32.mrb[0].mxu0
  %6937 = vmatprep.mubr.f32.mxu0 %v5762
  %6938 = vmatmul.mubr.f32.gmra.mrb[0].mxu0 %v5761
  %v6939 = vpop.f32.mrb[0].mxu0
  %v6940 = vadd.f32 %v6555, %v6939
  %v6941 = vpop.f32.mrb[0].mxu0
  %6942 = vmatprep.mubr.f32.mxu0 %v5771
  %6943 = vmatmul.mubr.f32.gmra.mrb[0].mxu0 %v5770
  %v6944 = vpop.f32.mrb[0].mxu0
  %v6945 = vadd.f32 %v6560, %v6944
  %v6946 = vpop.f32.mrb[0].mxu0
  %6947 = vmatprep.mubr.f32.mxu0 %v5780
  %6948 = vmatmul.mubr.f32.gmra.mrb[0].mxu0 %v5779
  %v6949 = vpop.f32.mrb[0].mxu0
  %v6950 = vadd.f32 %v6565, %v6949
  %v6951 = vpop.f32.mrb[0].mxu0
  %6952 = vmatprep.mubr.f32.mxu0 %v5789
  %6953 = vmatmul.mubr.f32.gmra.mrb[0].mxu0 %v5788
  %v6954 = vpop.f32.mrb[0].mxu0
  %v6955 = vadd.f32 %v6570, %v6954
  %v6956 = vpop.f32.mrb[0].mxu0
  %6957 = vmatprep.mubr.f32.mxu0 %v5798
  %6958 = vmatmul.mubr.f32.gmra.mrb[0].mxu0 %v5797
  %v6959 = vpop.f32.mrb[0].mxu0
  %v6960 = vadd.f32 %v6575, %v6959
  %v6961 = vpop.f32.mrb[0].mxu0
  %6962 = vdwg.mxu0
  %6963 = vmatprep.subr.mxu0 0.0
  %6964 = vmatpush1.msra.mxu0 %v4383
  %6965 = vmatprep.subr.mxu0 0.0
  %6966 = vmatpush1.msra.mxu0 %v4384
  %6967 = vmatprep.subr.mxu0 0.0
  %6968 = vmatpush1.msra.mxu0 %v4385
  %6969 = vmatprep.subr.mxu0 0.0
  %6970 = vmatpush1.msra.mxu0 %v4386
  %6971 = vmatprep.subr.mxu0 0.0
  %6972 = vmatpush1.msra.mxu0 %v4387
  %6973 = vmatprep.subr.mxu0 0.0
  %6974 = vmatpush1.msra.mxu0 %v4388
  %6975 = vmatprep.subr.mxu0 0.0
  %6976 = vmatpush1.msra.mxu0 %v4389
  %6977 = vmatprep.subr.mxu0 0.0
  %6978 = vmatpush1.msra.mxu0 %v4390
  %6979 = vmatprep.subr.mxu0 0.0
  %6980 = vmatpush1.msra.mxu0 %v4391
  %6981 = vmatprep.subr.mxu0 0.0
  %6982 = vmatpush1.msra.mxu0 %v4392
  %6983 = vmatprep.subr.mxu0 0.0
  %6984 = vmatpush1.msra.mxu0 %v4393
  %6985 = vmatprep.subr.mxu0 0.0
  %6986 = vmatpush1.msra.mxu0 %v4394
  %6987 = vmatprep.subr.mxu0 0.0
  %6988 = vmatpush1.msra.mxu0 %v4395
  %6989 = vmatprep.subr.mxu0 0.0
  %6990 = vmatpush1.msra.mxu0 %v4396
  %6991 = vmatprep.subr.mxu0 0.0
  %6992 = vmatpush1.msra.mxu0 %v4397
  %6993 = vmatprep.subr.mxu0 0.0
  %6994 = vmatpush1.msra.mxu0 %v4398
  %6995 = vmatprep.subr.mxu0 0.0
  %6996 = vmatpush1.msra.mxu0 %v4399
  %6997 = vmatprep.subr.mxu0 0.0
  %6998 = vmatpush1.msra.mxu0 %v4400
  %6999 = vmatprep.subr.mxu0 0.0
  %7000 = vmatpush1.msra.mxu0 %v4401
  %7001 = vmatprep.subr.mxu0 0.0
  %7002 = vmatpush1.msra.mxu0 %v4402
  %7003 = vmatprep.subr.mxu0 0.0
  %7004 = vmatpush1.msra.mxu0 %v4403
  %7005 = vmatprep.subr.mxu0 0.0
  %7006 = vmatpush1.msra.mxu0 %v4404
  %7007 = vmatprep.subr.mxu0 0.0
  %7008 = vmatpush1.msra.mxu0 %v4405
  %7009 = vmatprep.subr.mxu0 0.0
  %7010 = vmatpush1.msra.mxu0 %v4406
  %7011 = vmatprep.subr.mxu0 0.0
  %7012 = vmatpush1.msra.mxu0 %v4407
  %7013 = vmatprep.subr.mxu0 0.0
  %7014 = vmatpush1.msra.mxu0 %v4408
  %7015 = vmatprep.subr.mxu0 0.0
  %7016 = vmatpush1.msra.mxu0 %v4409
  %7017 = vmatprep.subr.mxu0 0.0
  %7018 = vmatpush1.msra.mxu0 %v4410
  %7019 = vmatprep.subr.mxu0 0.0
  %7020 = vmatpush1.msra.mxu0 %v4411
  %7021 = vmatprep.subr.mxu0 0.0
  %7022 = vmatpush1.msra.mxu0 %v4412
  %7023 = vmatprep.subr.mxu0 0.0
  %7024 = vmatpush1.msra.mxu0 %v4413
  %7025 = vmatprep.subr.mxu0 0.0
  %7026 = vmatpush1.msra.mxu0 %v4414
  %7027 = vmatprep.mubr.f32.mxu0 %v5233
  %7028 = vmatmul.mubr.f32.gmra.mrb[0].mxu0 %v5232
  %v7029 = vpop.f32.mrb[0].mxu0
  %v7030 = vadd.f32 %v6645, %v7029
  %v7031 = vpop.f32.mrb[0].mxu0
  %7032 = vmatprep.mubr.f32.mxu0 %v5242
  %7033 = vmatmul.mubr.f32.gmra.mrb[0].mxu0 %v5241
  %v7034 = vpop.f32.mrb[0].mxu0
  %v7035 = vadd.f32 %v6650, %v7034
  %v7036 = vpop.f32.mrb[0].mxu0
  %7037 = vmatprep.mubr.f32.mxu0 %v5251
  %7038 = vmatmul.mubr.f32.gmra.mrb[0].mxu0 %v5250
  %v7039 = vpop.f32.mrb[0].mxu0
  %v7040 = vadd.f32 %v6655, %v7039
  %v7041 = vpop.f32.mrb[0].mxu0
  %7042 = vmatprep.mubr.f32.mxu0 %v5260
  %7043 = vmatmul.mubr.f32.gmra.mrb[0].mxu0 %v5259
  %v7044 = vpop.f32.mrb[0].mxu0
  %v7045 = vadd.f32 %v6660, %v7044
  %v7046 = vpop.f32.mrb[0].mxu0
  %7047 = vmatprep.mubr.f32.mxu0 %v5269
  %7048 = vmatmul.mubr.f32.gmra.mrb[0].mxu0 %v5268
  %v7049 = vpop.f32.mrb[0].mxu0
  %v7050 = vadd.f32 %v6665, %v7049
  %v7051 = vpop.f32.mrb[0].mxu0
  %7052 = vmatprep.mubr.f32.mxu0 %v5278
  %7053 = vmatmul.mubr.f32.gmra.mrb[0].mxu0 %v5277
  %v7054 = vpop.f32.mrb[0].mxu0
  %v7055 = vadd.f32 %v6670, %v7054
  %v7056 = vpop.f32.mrb[0].mxu0
  %7057 = vmatprep.mubr.f32.mxu0 %v5287
  %7058 = vmatmul.mubr.f32.gmra.mrb[0].mxu0 %v5286
  %v7059 = vpop.f32.mrb[0].mxu0
  %v7060 = vadd.f32 %v6675, %v7059
  %v7061 = vpop.f32.mrb[0].mxu0
  %7062 = vmatprep.mubr.f32.mxu0 %v5296
  %7063 = vmatmul.mubr.f32.gmra.mrb[0].mxu0 %v5295
  %v7064 = vpop.f32.mrb[0].mxu0
  %v7065 = vadd.f32 %v6680, %v7064
  %v7066 = vpop.f32.mrb[0].mxu0
  %7067 = vmatprep.mubr.f32.mxu0 %v5305
  %7068 = vmatmul.mubr.f32.gmra.mrb[0].mxu0 %v5304
  %v7069 = vpop.f32.mrb[0].mxu0
  %v7070 = vadd.f32 %v6685, %v7069
  %v7071 = vpop.f32.mrb[0].mxu0
  %7072 = vmatprep.mubr.f32.mxu0 %v5314
  %7073 = vmatmul.mubr.f32.gmra.mrb[0].mxu0 %v5313
  %v7074 = vpop.f32.mrb[0].mxu0
  %v7075 = vadd.f32 %v6690, %v7074
  %v7076 = vpop.f32.mrb[0].mxu0
  %7077 = vmatprep.mubr.f32.mxu0 %v5323
  %7078 = vmatmul.mubr.f32.gmra.mrb[0].mxu0 %v5322
  %v7079 = vpop.f32.mrb[0].mxu0
  %v7080 = vadd.f32 %v6695, %v7079
  %v7081 = vpop.f32.mrb[0].mxu0
  %7082 = vmatprep.mubr.f32.mxu0 %v5332
  %7083 = vmatmul.mubr.f32.gmra.mrb[0].mxu0 %v5331
  %v7084 = vpop.f32.mrb[0].mxu0
  %v7085 = vadd.f32 %v6700, %v7084
  %v7086 = vpop.f32.mrb[0].mxu0
  %7087 = vmatprep.mubr.f32.mxu0 %v5341
  %7088 = vmatmul.mubr.f32.gmra.mrb[0].mxu0 %v5340
  %v7089 = vpop.f32.mrb[0].mxu0
  %v7090 = vadd.f32 %v6705, %v7089
  %v7091 = vpop.f32.mrb[0].mxu0
  %7092 = vmatprep.mubr.f32.mxu0 %v5350
  %7093 = vmatmul.mubr.f32.gmra.mrb[0].mxu0 %v5349
  %v7094 = vpop.f32.mrb[0].mxu0
  %v7095 = vadd.f32 %v6710, %v7094
  %v7096 = vpop.f32.mrb[0].mxu0
  %7097 = vmatprep.mubr.f32.mxu0 %v5359
  %7098 = vmatmul.mubr.f32.gmra.mrb[0].mxu0 %v5358
  %v7099 = vpop.f32.mrb[0].mxu0
  %v7100 = vadd.f32 %v6715, %v7099
  %v7101 = vpop.f32.mrb[0].mxu0
  %7102 = vmatprep.mubr.f32.mxu0 %v5368
  %7103 = vmatmul.mubr.f32.gmra.mrb[0].mxu0 %v5367
  %v7104 = vpop.f32.mrb[0].mxu0
  %v7105 = vadd.f32 %v6720, %v7104
  %v7106 = vpop.f32.mrb[0].mxu0
  %7107 = vmatprep.mubr.f32.mxu0 %v5377
  %7108 = vmatmul.mubr.f32.gmra.mrb[0].mxu0 %v5376
  %v7109 = vpop.f32.mrb[0].mxu0
  %v7110 = vadd.f32 %v6725, %v7109
  %v7111 = vpop.f32.mrb[0].mxu0
  %7112 = vmatprep.mubr.f32.mxu0 %v5386
  %7113 = vmatmul.mubr.f32.gmra.mrb[0].mxu0 %v5385
  %v7114 = vpop.f32.mrb[0].mxu0
  %v7115 = vadd.f32 %v6730, %v7114
  %v7116 = vpop.f32.mrb[0].mxu0
  %7117 = vmatprep.mubr.f32.mxu0 %v5395
  %7118 = vmatmul.mubr.f32.gmra.mrb[0].mxu0 %v5394
  %v7119 = vpop.f32.mrb[0].mxu0
  %v7120 = vadd.f32 %v6735, %v7119
  %v7121 = vpop.f32.mrb[0].mxu0
  %7122 = vmatprep.mubr.f32.mxu0 %v5404
  %7123 = vmatmul.mubr.f32.gmra.mrb[0].mxu0 %v5403
  %v7124 = vpop.f32.mrb[0].mxu0
  %v7125 = vadd.f32 %v6740, %v7124
  %v7126 = vpop.f32.mrb[0].mxu0
  %7127 = vmatprep.mubr.f32.mxu0 %v5413
  %7128 = vmatmul.mubr.f32.gmra.mrb[0].mxu0 %v5412
  %v7129 = vpop.f32.mrb[0].mxu0
  %v7130 = vadd.f32 %v6745, %v7129
  %v7131 = vpop.f32.mrb[0].mxu0
  %7132 = vmatprep.mubr.f32.mxu0 %v5422
  %7133 = vmatmul.mubr.f32.gmra.mrb[0].mxu0 %v5421
  %v7134 = vpop.f32.mrb[0].mxu0
  %v7135 = vadd.f32 %v6750, %v7134
  %v7136 = vpop.f32.mrb[0].mxu0
  %7137 = vmatprep.mubr.f32.mxu0 %v5431
  %7138 = vmatmul.mubr.f32.gmra.mrb[0].mxu0 %v5430
  %v7139 = vpop.f32.mrb[0].mxu0
  %v7140 = vadd.f32 %v6755, %v7139
  %v7141 = vpop.f32.mrb[0].mxu0
  %7142 = vmatprep.mubr.f32.mxu0 %v5440
  %7143 = vmatmul.mubr.f32.gmra.mrb[0].mxu0 %v5439
  %v7144 = vpop.f32.mrb[0].mxu0
  %v7145 = vadd.f32 %v6760, %v7144
  %v7146 = vpop.f32.mrb[0].mxu0
  %7147 = vmatprep.mubr.f32.mxu0 %v5449
  %7148 = vmatmul.mubr.f32.gmra.mrb[0].mxu0 %v5448
  %v7149 = vpop.f32.mrb[0].mxu0
  %v7150 = vadd.f32 %v6765, %v7149
  %v7151 = vpop.f32.mrb[0].mxu0
  %7152 = vmatprep.mubr.f32.mxu0 %v5458
  %7153 = vmatmul.mubr.f32.gmra.mrb[0].mxu0 %v5457
  %v7154 = vpop.f32.mrb[0].mxu0
  %v7155 = vadd.f32 %v6770, %v7154
  %v7156 = vpop.f32.mrb[0].mxu0
  %7157 = vmatprep.mubr.f32.mxu0 %v5467
  %7158 = vmatmul.mubr.f32.gmra.mrb[0].mxu0 %v5466
  %v7159 = vpop.f32.mrb[0].mxu0
  %v7160 = vadd.f32 %v6775, %v7159
  %v7161 = vpop.f32.mrb[0].mxu0
  %7162 = vmatprep.mubr.f32.mxu0 %v5476
  %7163 = vmatmul.mubr.f32.gmra.mrb[0].mxu0 %v5475
  %v7164 = vpop.f32.mrb[0].mxu0
  %v7165 = vadd.f32 %v6780, %v7164
  %v7166 = vpop.f32.mrb[0].mxu0
  %7167 = vmatprep.mubr.f32.mxu0 %v5485
  %7168 = vmatmul.mubr.f32.gmra.mrb[0].mxu0 %v5484
  %v7169 = vpop.f32.mrb[0].mxu0
  %v7170 = vadd.f32 %v6785, %v7169
  %v7171 = vpop.f32.mrb[0].mxu0
  %7172 = vmatprep.mubr.f32.mxu0 %v5494
  %7173 = vmatmul.mubr.f32.gmra.mrb[0].mxu0 %v5493
  %v7174 = vpop.f32.mrb[0].mxu0
  %v7175 = vadd.f32 %v6790, %v7174
  %v7176 = vpop.f32.mrb[0].mxu0
  %7177 = vmatprep.mubr.f32.mxu0 %v5503
  %7178 = vmatmul.mubr.f32.gmra.mrb[0].mxu0 %v5502
  %v7179 = vpop.f32.mrb[0].mxu0
  %v7180 = vadd.f32 %v6795, %v7179
  %v7181 = vpop.f32.mrb[0].mxu0
  %7182 = vmatprep.mubr.f32.mxu0 %v5512
  %7183 = vmatmul.mubr.f32.gmra.mrb[0].mxu0 %v5511
  %v7184 = vpop.f32.mrb[0].mxu0
  %v7185 = vadd.f32 %v6800, %v7184
  %v7186 = vpop.f32.mrb[0].mxu0
  %7187 = vmatprep.mubr.f32.mxu0 %v5521
  %7188 = vmatmul.mubr.f32.gmra.mrb[0].mxu0 %v5520
  %v7189 = vpop.f32.mrb[0].mxu0
  %v7190 = vadd.f32 %v6805, %v7189
  %v7191 = vpop.f32.mrb[0].mxu0
  %7192 = vmatprep.mubr.f32.mxu0 %v5530
  %7193 = vmatmul.mubr.f32.gmra.mrb[0].mxu0 %v5529
  %v7194 = vpop.f32.mrb[0].mxu0
  %v7195 = vadd.f32 %v6810, %v7194
  %v7196 = vpop.f32.mrb[0].mxu0
  %7197 = vmatprep.mubr.f32.mxu0 %v5539
  %7198 = vmatmul.mubr.f32.gmra.mrb[0].mxu0 %v5538
  %v7199 = vpop.f32.mrb[0].mxu0
  %v7200 = vadd.f32 %v6815, %v7199
  %v7201 = vpop.f32.mrb[0].mxu0
  %7202 = vmatprep.mubr.f32.mxu0 %v5548
  %7203 = vmatmul.mubr.f32.gmra.mrb[0].mxu0 %v5547
  %v7204 = vpop.f32.mrb[0].mxu0
  %v7205 = vadd.f32 %v6820, %v7204
  %v7206 = vpop.f32.mrb[0].mxu0
  %7207 = vmatprep.mubr.f32.mxu0 %v5557
  %7208 = vmatmul.mubr.f32.gmra.mrb[0].mxu0 %v5556
  %v7209 = vpop.f32.mrb[0].mxu0
  %v7210 = vadd.f32 %v6825, %v7209
  %v7211 = vpop.f32.mrb[0].mxu0
  %7212 = vmatprep.mubr.f32.mxu0 %v5566
  %7213 = vmatmul.mubr.f32.gmra.mrb[0].mxu0 %v5565
  %v7214 = vpop.f32.mrb[0].mxu0
  %v7215 = vadd.f32 %v6830, %v7214
  %v7216 = vpop.f32.mrb[0].mxu0
  %7217 = vmatprep.mubr.f32.mxu0 %v5575
  %7218 = vmatmul.mubr.f32.gmra.mrb[0].mxu0 %v5574
  %v7219 = vpop.f32.mrb[0].mxu0
  %v7220 = vadd.f32 %v6835, %v7219
  %v7221 = vpop.f32.mrb[0].mxu0
  %7222 = vmatprep.mubr.f32.mxu0 %v5584
  %7223 = vmatmul.mubr.f32.gmra.mrb[0].mxu0 %v5583
  %v7224 = vpop.f32.mrb[0].mxu0
  %v7225 = vadd.f32 %v6840, %v7224
  %v7226 = vpop.f32.mrb[0].mxu0
  %7227 = vmatprep.mubr.f32.mxu0 %v5593
  %7228 = vmatmul.mubr.f32.gmra.mrb[0].mxu0 %v5592
  %v7229 = vpop.f32.mrb[0].mxu0
  %v7230 = vadd.f32 %v6845, %v7229
  %v7231 = vpop.f32.mrb[0].mxu0
  %7232 = vmatprep.mubr.f32.mxu0 %v5602
  %7233 = vmatmul.mubr.f32.gmra.mrb[0].mxu0 %v5601
  %v7234 = vpop.f32.mrb[0].mxu0
  %v7235 = vadd.f32 %v6850, %v7234
  %v7236 = vpop.f32.mrb[0].mxu0
  %7237 = vmatprep.mubr.f32.mxu0 %v5611
  %7238 = vmatmul.mubr.f32.gmra.mrb[0].mxu0 %v5610
  %v7239 = vpop.f32.mrb[0].mxu0
  %v7240 = vadd.f32 %v6855, %v7239
  %v7241 = vpop.f32.mrb[0].mxu0
  %7242 = vmatprep.mubr.f32.mxu0 %v5620
  %7243 = vmatmul.mubr.f32.gmra.mrb[0].mxu0 %v5619
  %v7244 = vpop.f32.mrb[0].mxu0
  %v7245 = vadd.f32 %v6860, %v7244
  %v7246 = vpop.f32.mrb[0].mxu0
  %7247 = vmatprep.mubr.f32.mxu0 %v5629
  %7248 = vmatmul.mubr.f32.gmra.mrb[0].mxu0 %v5628
  %v7249 = vpop.f32.mrb[0].mxu0
  %v7250 = vadd.f32 %v6865, %v7249
  %v7251 = vpop.f32.mrb[0].mxu0
  %7252 = vmatprep.mubr.f32.mxu0 %v5638
  %7253 = vmatmul.mubr.f32.gmra.mrb[0].mxu0 %v5637
  %v7254 = vpop.f32.mrb[0].mxu0
  %v7255 = vadd.f32 %v6870, %v7254
  %v7256 = vpop.f32.mrb[0].mxu0
  %7257 = vmatprep.mubr.f32.mxu0 %v5647
  %7258 = vmatmul.mubr.f32.gmra.mrb[0].mxu0 %v5646
  %v7259 = vpop.f32.mrb[0].mxu0
  %v7260 = vadd.f32 %v6875, %v7259
  %v7261 = vpop.f32.mrb[0].mxu0
  %7262 = vmatprep.mubr.f32.mxu0 %v5656
  %7263 = vmatmul.mubr.f32.gmra.mrb[0].mxu0 %v5655
  %v7264 = vpop.f32.mrb[0].mxu0
  %v7265 = vadd.f32 %v6880, %v7264
  %v7266 = vpop.f32.mrb[0].mxu0
  %7267 = vmatprep.mubr.f32.mxu0 %v5665
  %7268 = vmatmul.mubr.f32.gmra.mrb[0].mxu0 %v5664
  %v7269 = vpop.f32.mrb[0].mxu0
  %v7270 = vadd.f32 %v6885, %v7269
  %v7271 = vpop.f32.mrb[0].mxu0
  %7272 = vmatprep.mubr.f32.mxu0 %v5674
  %7273 = vmatmul.mubr.f32.gmra.mrb[0].mxu0 %v5673
  %v7274 = vpop.f32.mrb[0].mxu0
  %v7275 = vadd.f32 %v6890, %v7274
  %v7276 = vpop.f32.mrb[0].mxu0
  %7277 = vmatprep.mubr.f32.mxu0 %v5683
  %7278 = vmatmul.mubr.f32.gmra.mrb[0].mxu0 %v5682
  %v7279 = vpop.f32.mrb[0].mxu0
  %v7280 = vadd.f32 %v6895, %v7279
  %v7281 = vpop.f32.mrb[0].mxu0
  %7282 = vmatprep.mubr.f32.mxu0 %v5692
  %7283 = vmatmul.mubr.f32.gmra.mrb[0].mxu0 %v5691
  %v7284 = vpop.f32.mrb[0].mxu0
  %v7285 = vadd.f32 %v6900, %v7284
  %v7286 = vpop.f32.mrb[0].mxu0
  %7287 = vmatprep.mubr.f32.mxu0 %v5701
  %7288 = vmatmul.mubr.f32.gmra.mrb[0].mxu0 %v5700
  %v7289 = vpop.f32.mrb[0].mxu0
  %v7290 = vadd.f32 %v6905, %v7289
  %v7291 = vpop.f32.mrb[0].mxu0
  %7292 = vmatprep.mubr.f32.mxu0 %v5710
  %7293 = vmatmul.mubr.f32.gmra.mrb[0].mxu0 %v5709
  %v7294 = vpop.f32.mrb[0].mxu0
  %v7295 = vadd.f32 %v6910, %v7294
  %v7296 = vpop.f32.mrb[0].mxu0
  %7297 = vmatprep.mubr.f32.mxu0 %v5719
  %7298 = vmatmul.mubr.f32.gmra.mrb[0].mxu0 %v5718
  %v7299 = vpop.f32.mrb[0].mxu0
  %v7300 = vadd.f32 %v6915, %v7299
  %v7301 = vpop.f32.mrb[0].mxu0
  %7302 = vmatprep.mubr.f32.mxu0 %v5728
  %7303 = vmatmul.mubr.f32.gmra.mrb[0].mxu0 %v5727
  %v7304 = vpop.f32.mrb[0].mxu0
  %v7305 = vadd.f32 %v6920, %v7304
  %v7306 = vpop.f32.mrb[0].mxu0
  %7307 = vmatprep.mubr.f32.mxu0 %v5737
  %7308 = vmatmul.mubr.f32.gmra.mrb[0].mxu0 %v5736
  %v7309 = vpop.f32.mrb[0].mxu0
  %v7310 = vadd.f32 %v6925, %v7309
  %v7311 = vpop.f32.mrb[0].mxu0
  %7312 = vmatprep.mubr.f32.mxu0 %v5746
  %7313 = vmatmul.mubr.f32.gmra.mrb[0].mxu0 %v5745
  %v7314 = vpop.f32.mrb[0].mxu0
  %v7315 = vadd.f32 %v6930, %v7314
  %v7316 = vpop.f32.mrb[0].mxu0
  %7317 = vmatprep.mubr.f32.mxu0 %v5755
  %7318 = vmatmul.mubr.f32.gmra.mrb[0].mxu0 %v5754
  %v7319 = vpop.f32.mrb[0].mxu0
  %v7320 = vadd.f32 %v6935, %v7319
  %v7321 = vpop.f32.mrb[0].mxu0
  %7322 = vmatprep.mubr.f32.mxu0 %v5764
  %7323 = vmatmul.mubr.f32.gmra.mrb[0].mxu0 %v5763
  %v7324 = vpop.f32.mrb[0].mxu0
  %v7325 = vadd.f32 %v6940, %v7324
  %v7326 = vpop.f32.mrb[0].mxu0
  %7327 = vmatprep.mubr.f32.mxu0 %v5773
  %7328 = vmatmul.mubr.f32.gmra.mrb[0].mxu0 %v5772
  %v7329 = vpop.f32.mrb[0].mxu0
  %v7330 = vadd.f32 %v6945, %v7329
  %v7331 = vpop.f32.mrb[0].mxu0
  %7332 = vmatprep.mubr.f32.mxu0 %v5782
  %7333 = vmatmul.mubr.f32.gmra.mrb[0].mxu0 %v5781
  %v7334 = vpop.f32.mrb[0].mxu0
  %v7335 = vadd.f32 %v6950, %v7334
  %v7336 = vpop.f32.mrb[0].mxu0
  %7337 = vmatprep.mubr.f32.mxu0 %v5791
  %7338 = vmatmul.mubr.f32.gmra.mrb[0].mxu0 %v5790
  %v7339 = vpop.f32.mrb[0].mxu0
  %v7340 = vadd.f32 %v6955, %v7339
  %v7341 = vpop.f32.mrb[0].mxu0
  %7342 = vmatprep.mubr.f32.mxu0 %v5800
  %7343 = vmatmul.mubr.f32.gmra.mrb[0].mxu0 %v5799
  %v7344 = vpop.f32.mrb[0].mxu0
  %v7345 = vadd.f32 %v6960, %v7344
  %v7346 = vpop.f32.mrb[0].mxu0
  %7347 = vdwg.mxu0
  %7348 = vmatprep.subr.mxu0 0.0
  %7349 = vmatpush1.msra.mxu0 %v4415
  %7350 = vmatprep.subr.mxu0 0.0
  %7351 = vmatpush1.msra.mxu0 %v4416
  %7352 = vmatprep.subr.mxu0 0.0
  %7353 = vmatpush1.msra.mxu0 %v4417
  %7354 = vmatprep.subr.mxu0 0.0
  %7355 = vmatpush1.msra.mxu0 %v4418
  %7356 = vmatprep.subr.mxu0 0.0
  %7357 = vmatpush1.msra.mxu0 %v4419
  %7358 = vmatprep.subr.mxu0 0.0
  %7359 = vmatpush1.msra.mxu0 %v4420
  %7360 = vmatprep.subr.mxu0 0.0
  %7361 = vmatpush1.msra.mxu0 %v4421
  %7362 = vmatprep.subr.mxu0 0.0
  %7363 = vmatpush1.msra.mxu0 %v4422
  %7364 = vmatprep.subr.mxu0 0.0
  %7365 = vmatpush1.msra.mxu0 %v4423
  %7366 = vmatprep.subr.mxu0 0.0
  %7367 = vmatpush1.msra.mxu0 %v4424
  %7368 = vmatprep.subr.mxu0 0.0
  %7369 = vmatpush1.msra.mxu0 %v4425
  %7370 = vmatprep.subr.mxu0 0.0
  %7371 = vmatpush1.msra.mxu0 %v4426
  %7372 = vmatprep.subr.mxu0 0.0
  %7373 = vmatpush1.msra.mxu0 %v4427
  %7374 = vmatprep.subr.mxu0 0.0
  %7375 = vmatpush1.msra.mxu0 %v4428
  %7376 = vmatprep.subr.mxu0 0.0
  %7377 = vmatpush1.msra.mxu0 %v4429
  %7378 = vmatprep.subr.mxu0 0.0
  %7379 = vmatpush1.msra.mxu0 %v4430
  %7380 = vmatprep.subr.mxu0 0.0
  %7381 = vmatpush1.msra.mxu0 0.0
  %7382 = vmatprep.subr.mxu0 0.0
  %7383 = vmatpush1.msra.mxu0 0.0
  %7384 = vmatprep.subr.mxu0 0.0
  %7385 = vmatpush1.msra.mxu0 0.0
  %7386 = vmatprep.subr.mxu0 0.0
  %7387 = vmatpush1.msra.mxu0 0.0
  %7388 = vmatprep.subr.mxu0 0.0
  %7389 = vmatpush1.msra.mxu0 0.0
  %7390 = vmatprep.subr.mxu0 0.0
  %7391 = vmatpush1.msra.mxu0 0.0
  %7392 = vmatprep.subr.mxu0 0.0
  %7393 = vmatpush1.msra.mxu0 0.0
  %7394 = vmatprep.subr.mxu0 0.0
  %7395 = vmatpush1.msra.mxu0 0.0
  %7396 = vmatprep.subr.mxu0 0.0
  %7397 = vmatpush1.msra.mxu0 0.0
  %7398 = vmatprep.subr.mxu0 0.0
  %7399 = vmatpush1.msra.mxu0 0.0
  %7400 = vmatprep.subr.mxu0 0.0
  %7401 = vmatpush1.msra.mxu0 0.0
  %7402 = vmatprep.subr.mxu0 0.0
  %7403 = vmatpush1.msra.mxu0 0.0
  %7404 = vmatprep.subr.mxu0 0.0
  %7405 = vmatpush1.msra.mxu0 0.0
  %7406 = vmatprep.subr.mxu0 0.0
  %7407 = vmatpush1.msra.mxu0 0.0
  %7408 = vmatprep.subr.mxu0 0.0
  %7409 = vmatpush1.msra.mxu0 0.0
  %7410 = vmatprep.subr.mxu0 0.0
  %7411 = vmatpush1.msra.mxu0 0.0
  %7412 = vmatprep.mubr.f32.mxu0 0.0
  %7413 = vmatmul.mubr.f32.gmra.mrb[0].mxu0 %v5234
  %v7414 = vpop.f32.mrb[0].mxu0
  %v7415 = vadd.f32 %v7030, %v7414
  %v7416 = vpop.f32.mrb[0].mxu0
  %7417 = vmatprep.mubr.f32.mxu0 0.0
  %7418 = vmatmul.mubr.f32.gmra.mrb[0].mxu0 %v5243
  %v7419 = vpop.f32.mrb[0].mxu0
  %v7420 = vadd.f32 %v7035, %v7419
  %v7421 = vpop.f32.mrb[0].mxu0
  %7422 = vmatprep.mubr.f32.mxu0 0.0
  %7423 = vmatmul.mubr.f32.gmra.mrb[0].mxu0 %v5252
  %v7424 = vpop.f32.mrb[0].mxu0
  %v7425 = vadd.f32 %v7040, %v7424
  %v7426 = vpop.f32.mrb[0].mxu0
  %7427 = vmatprep.mubr.f32.mxu0 0.0
  %7428 = vmatmul.mubr.f32.gmra.mrb[0].mxu0 %v5261
  %v7429 = vpop.f32.mrb[0].mxu0
  %v7430 = vadd.f32 %v7045, %v7429
  %v7431 = vpop.f32.mrb[0].mxu0
  %7432 = vmatprep.mubr.f32.mxu0 0.0
  %7433 = vmatmul.mubr.f32.gmra.mrb[0].mxu0 %v5270
  %v7434 = vpop.f32.mrb[0].mxu0
  %v7435 = vadd.f32 %v7050, %v7434
  %v7436 = vpop.f32.mrb[0].mxu0
  %7437 = vmatprep.mubr.f32.mxu0 0.0
  %7438 = vmatmul.mubr.f32.gmra.mrb[0].mxu0 %v5279
  %v7439 = vpop.f32.mrb[0].mxu0
  %v7440 = vadd.f32 %v7055, %v7439
  %v7441 = vpop.f32.mrb[0].mxu0
  %7442 = vmatprep.mubr.f32.mxu0 0.0
  %7443 = vmatmul.mubr.f32.gmra.mrb[0].mxu0 %v5288
  %v7444 = vpop.f32.mrb[0].mxu0
  %v7445 = vadd.f32 %v7060, %v7444
  %v7446 = vpop.f32.mrb[0].mxu0
  %7447 = vmatprep.mubr.f32.mxu0 0.0
  %7448 = vmatmul.mubr.f32.gmra.mrb[0].mxu0 %v5297
  %v7449 = vpop.f32.mrb[0].mxu0
  %v7450 = vadd.f32 %v7065, %v7449
  %v7451 = vpop.f32.mrb[0].mxu0
  %7452 = vmatprep.mubr.f32.mxu0 0.0
  %7453 = vmatmul.mubr.f32.gmra.mrb[0].mxu0 %v5306
  %v7454 = vpop.f32.mrb[0].mxu0
  %v7455 = vadd.f32 %v7070, %v7454
  %v7456 = vpop.f32.mrb[0].mxu0
  %7457 = vmatprep.mubr.f32.mxu0 0.0
  %7458 = vmatmul.mubr.f32.gmra.mrb[0].mxu0 %v5315
  %v7459 = vpop.f32.mrb[0].mxu0
  %v7460 = vadd.f32 %v7075, %v7459
  %v7461 = vpop.f32.mrb[0].mxu0
  %7462 = vmatprep.mubr.f32.mxu0 0.0
  %7463 = vmatmul.mubr.f32.gmra.mrb[0].mxu0 %v5324
  %v7464 = vpop.f32.mrb[0].mxu0
  %v7465 = vadd.f32 %v7080, %v7464
  %v7466 = vpop.f32.mrb[0].mxu0
  %7467 = vmatprep.mubr.f32.mxu0 0.0
  %7468 = vmatmul.mubr.f32.gmra.mrb[0].mxu0 %v5333
  %v7469 = vpop.f32.mrb[0].mxu0
  %v7470 = vadd.f32 %v7085, %v7469
  %v7471 = vpop.f32.mrb[0].mxu0
  %7472 = vmatprep.mubr.f32.mxu0 0.0
  %7473 = vmatmul.mubr.f32.gmra.mrb[0].mxu0 %v5342
  %v7474 = vpop.f32.mrb[0].mxu0
  %v7475 = vadd.f32 %v7090, %v7474
  %v7476 = vpop.f32.mrb[0].mxu0
  %7477 = vmatprep.mubr.f32.mxu0 0.0
  %7478 = vmatmul.mubr.f32.gmra.mrb[0].mxu0 %v5351
  %v7479 = vpop.f32.mrb[0].mxu0
  %v7480 = vadd.f32 %v7095, %v7479
  %v7481 = vpop.f32.mrb[0].mxu0
  %7482 = vmatprep.mubr.f32.mxu0 0.0
  %7483 = vmatmul.mubr.f32.gmra.mrb[0].mxu0 %v5360
  %v7484 = vpop.f32.mrb[0].mxu0
  %v7485 = vadd.f32 %v7100, %v7484
  %v7486 = vpop.f32.mrb[0].mxu0
  %7487 = vmatprep.mubr.f32.mxu0 0.0
  %7488 = vmatmul.mubr.f32.gmra.mrb[0].mxu0 %v5369
  %v7489 = vpop.f32.mrb[0].mxu0
  %v7490 = vadd.f32 %v7105, %v7489
  %v7491 = vpop.f32.mrb[0].mxu0
  %7492 = vmatprep.mubr.f32.mxu0 0.0
  %7493 = vmatmul.mubr.f32.gmra.mrb[0].mxu0 %v5378
  %v7494 = vpop.f32.mrb[0].mxu0
  %v7495 = vadd.f32 %v7110, %v7494
  %v7496 = vpop.f32.mrb[0].mxu0
  %7497 = vmatprep.mubr.f32.mxu0 0.0
  %7498 = vmatmul.mubr.f32.gmra.mrb[0].mxu0 %v5387
  %v7499 = vpop.f32.mrb[0].mxu0
  %v7500 = vadd.f32 %v7115, %v7499
  %v7501 = vpop.f32.mrb[0].mxu0
  %7502 = vmatprep.mubr.f32.mxu0 0.0
  %7503 = vmatmul.mubr.f32.gmra.mrb[0].mxu0 %v5396
  %v7504 = vpop.f32.mrb[0].mxu0
  %v7505 = vadd.f32 %v7120, %v7504
  %v7506 = vpop.f32.mrb[0].mxu0
  %7507 = vmatprep.mubr.f32.mxu0 0.0
  %7508 = vmatmul.mubr.f32.gmra.mrb[0].mxu0 %v5405
  %v7509 = vpop.f32.mrb[0].mxu0
  %v7510 = vadd.f32 %v7125, %v7509
  %v7511 = vpop.f32.mrb[0].mxu0
  %7512 = vmatprep.mubr.f32.mxu0 0.0
  %7513 = vmatmul.mubr.f32.gmra.mrb[0].mxu0 %v5414
  %v7514 = vpop.f32.mrb[0].mxu0
  %v7515 = vadd.f32 %v7130, %v7514
  %v7516 = vpop.f32.mrb[0].mxu0
  %7517 = vmatprep.mubr.f32.mxu0 0.0
  %7518 = vmatmul.mubr.f32.gmra.mrb[0].mxu0 %v5423
  %v7519 = vpop.f32.mrb[0].mxu0
  %v7520 = vadd.f32 %v7135, %v7519
  %v7521 = vpop.f32.mrb[0].mxu0
  %7522 = vmatprep.mubr.f32.mxu0 0.0
  %7523 = vmatmul.mubr.f32.gmra.mrb[0].mxu0 %v5432
  %v7524 = vpop.f32.mrb[0].mxu0
  %v7525 = vadd.f32 %v7140, %v7524
  %v7526 = vpop.f32.mrb[0].mxu0
  %7527 = vmatprep.mubr.f32.mxu0 0.0
  %7528 = vmatmul.mubr.f32.gmra.mrb[0].mxu0 %v5441
  %v7529 = vpop.f32.mrb[0].mxu0
  %v7530 = vadd.f32 %v7145, %v7529
  %v7531 = vpop.f32.mrb[0].mxu0
  %7532 = vmatprep.mubr.f32.mxu0 0.0
  %7533 = vmatmul.mubr.f32.gmra.mrb[0].mxu0 %v5450
  %v7534 = vpop.f32.mrb[0].mxu0
  %v7535 = vadd.f32 %v7150, %v7534
  %v7536 = vpop.f32.mrb[0].mxu0
  %7537 = vmatprep.mubr.f32.mxu0 0.0
  %7538 = vmatmul.mubr.f32.gmra.mrb[0].mxu0 %v5459
  %v7539 = vpop.f32.mrb[0].mxu0
  %v7540 = vadd.f32 %v7155, %v7539
  %v7541 = vpop.f32.mrb[0].mxu0
  %7542 = vmatprep.mubr.f32.mxu0 0.0
  %7543 = vmatmul.mubr.f32.gmra.mrb[0].mxu0 %v5468
  %v7544 = vpop.f32.mrb[0].mxu0
  %v7545 = vadd.f32 %v7160, %v7544
  %v7546 = vpop.f32.mrb[0].mxu0
  %7547 = vmatprep.mubr.f32.mxu0 0.0
  %7548 = vmatmul.mubr.f32.gmra.mrb[0].mxu0 %v5477
  %v7549 = vpop.f32.mrb[0].mxu0
  %v7550 = vadd.f32 %v7165, %v7549
  %v7551 = vpop.f32.mrb[0].mxu0
  %7552 = vmatprep.mubr.f32.mxu0 0.0
  %7553 = vmatmul.mubr.f32.gmra.mrb[0].mxu0 %v5486
  %v7554 = vpop.f32.mrb[0].mxu0
  %v7555 = vadd.f32 %v7170, %v7554
  %v7556 = vpop.f32.mrb[0].mxu0
  %7557 = vmatprep.mubr.f32.mxu0 0.0
  %7558 = vmatmul.mubr.f32.gmra.mrb[0].mxu0 %v5495
  %v7559 = vpop.f32.mrb[0].mxu0
  %v7560 = vadd.f32 %v7175, %v7559
  %v7561 = vpop.f32.mrb[0].mxu0
  %7562 = vmatprep.mubr.f32.mxu0 0.0
  %7563 = vmatmul.mubr.f32.gmra.mrb[0].mxu0 %v5504
  %v7564 = vpop.f32.mrb[0].mxu0
  %v7565 = vadd.f32 %v7180, %v7564
  %v7566 = vpop.f32.mrb[0].mxu0
  %7567 = vmatprep.mubr.f32.mxu0 0.0
  %7568 = vmatmul.mubr.f32.gmra.mrb[0].mxu0 %v5513
  %v7569 = vpop.f32.mrb[0].mxu0
  %v7570 = vadd.f32 %v7185, %v7569
  %v7571 = vpop.f32.mrb[0].mxu0
  %7572 = vmatprep.mubr.f32.mxu0 0.0
  %7573 = vmatmul.mubr.f32.gmra.mrb[0].mxu0 %v5522
  %v7574 = vpop.f32.mrb[0].mxu0
  %v7575 = vadd.f32 %v7190, %v7574
  %v7576 = vpop.f32.mrb[0].mxu0
  %7577 = vmatprep.mubr.f32.mxu0 0.0
  %7578 = vmatmul.mubr.f32.gmra.mrb[0].mxu0 %v5531
  %v7579 = vpop.f32.mrb[0].mxu0
  %v7580 = vadd.f32 %v7195, %v7579
  %v7581 = vpop.f32.mrb[0].mxu0
  %7582 = vmatprep.mubr.f32.mxu0 0.0
  %7583 = vmatmul.mubr.f32.gmra.mrb[0].mxu0 %v5540
  %v7584 = vpop.f32.mrb[0].mxu0
  %v7585 = vadd.f32 %v7200, %v7584
  %v7586 = vpop.f32.mrb[0].mxu0
  %7587 = vmatprep.mubr.f32.mxu0 0.0
  %7588 = vmatmul.mubr.f32.gmra.mrb[0].mxu0 %v5549
  %v7589 = vpop.f32.mrb[0].mxu0
  %v7590 = vadd.f32 %v7205, %v7589
  %v7591 = vpop.f32.mrb[0].mxu0
  %7592 = vmatprep.mubr.f32.mxu0 0.0
  %7593 = vmatmul.mubr.f32.gmra.mrb[0].mxu0 %v5558
  %v7594 = vpop.f32.mrb[0].mxu0
  %v7595 = vadd.f32 %v7210, %v7594
  %v7596 = vpop.f32.mrb[0].mxu0
  %7597 = vmatprep.mubr.f32.mxu0 0.0
  %7598 = vmatmul.mubr.f32.gmra.mrb[0].mxu0 %v5567
  %v7599 = vpop.f32.mrb[0].mxu0
  %v7600 = vadd.f32 %v7215, %v7599
  %v7601 = vpop.f32.mrb[0].mxu0
  %7602 = vmatprep.mubr.f32.mxu0 0.0
  %7603 = vmatmul.mubr.f32.gmra.mrb[0].mxu0 %v5576
  %v7604 = vpop.f32.mrb[0].mxu0
  %v7605 = vadd.f32 %v7220, %v7604
  %v7606 = vpop.f32.mrb[0].mxu0
  %7607 = vmatprep.mubr.f32.mxu0 0.0
  %7608 = vmatmul.mubr.f32.gmra.mrb[0].mxu0 %v5585
  %v7609 = vpop.f32.mrb[0].mxu0
  %v7610 = vadd.f32 %v7225, %v7609
  %v7611 = vpop.f32.mrb[0].mxu0
  %7612 = vmatprep.mubr.f32.mxu0 0.0
  %7613 = vmatmul.mubr.f32.gmra.mrb[0].mxu0 %v5594
  %v7614 = vpop.f32.mrb[0].mxu0
  %v7615 = vadd.f32 %v7230, %v7614
  %v7616 = vpop.f32.mrb[0].mxu0
  %7617 = vmatprep.mubr.f32.mxu0 0.0
  %7618 = vmatmul.mubr.f32.gmra.mrb[0].mxu0 %v5603
  %v7619 = vpop.f32.mrb[0].mxu0
  %v7620 = vadd.f32 %v7235, %v7619
  %v7621 = vpop.f32.mrb[0].mxu0
  %7622 = vmatprep.mubr.f32.mxu0 0.0
  %7623 = vmatmul.mubr.f32.gmra.mrb[0].mxu0 %v5612
  %v7624 = vpop.f32.mrb[0].mxu0
  %v7625 = vadd.f32 %v7240, %v7624
  %v7626 = vpop.f32.mrb[0].mxu0
  %7627 = vmatprep.mubr.f32.mxu0 0.0
  %7628 = vmatmul.mubr.f32.gmra.mrb[0].mxu0 %v5621
  %v7629 = vpop.f32.mrb[0].mxu0
  %v7630 = vadd.f32 %v7245, %v7629
  %v7631 = vpop.f32.mrb[0].mxu0
  %7632 = vmatprep.mubr.f32.mxu0 0.0
  %7633 = vmatmul.mubr.f32.gmra.mrb[0].mxu0 %v5630
  %v7634 = vpop.f32.mrb[0].mxu0
  %v7635 = vadd.f32 %v7250, %v7634
  %v7636 = vpop.f32.mrb[0].mxu0
  %7637 = vmatprep.mubr.f32.mxu0 0.0
  %7638 = vmatmul.mubr.f32.gmra.mrb[0].mxu0 %v5639
  %v7639 = vpop.f32.mrb[0].mxu0
  %v7640 = vadd.f32 %v7255, %v7639
  %v7641 = vpop.f32.mrb[0].mxu0
  %7642 = vmatprep.mubr.f32.mxu0 0.0
  %7643 = vmatmul.mubr.f32.gmra.mrb[0].mxu0 %v5648
  %v7644 = vpop.f32.mrb[0].mxu0
  %v7645 = vadd.f32 %v7260, %v7644
  %v7646 = vpop.f32.mrb[0].mxu0
  %7647 = vmatprep.mubr.f32.mxu0 0.0
  %7648 = vmatmul.mubr.f32.gmra.mrb[0].mxu0 %v5657
  %v7649 = vpop.f32.mrb[0].mxu0
  %v7650 = vadd.f32 %v7265, %v7649
  %v7651 = vpop.f32.mrb[0].mxu0
  %7652 = vmatprep.mubr.f32.mxu0 0.0
  %7653 = vmatmul.mubr.f32.gmra.mrb[0].mxu0 %v5666
  %v7654 = vpop.f32.mrb[0].mxu0
  %v7655 = vadd.f32 %v7270, %v7654
  %v7656 = vpop.f32.mrb[0].mxu0
  %7657 = vmatprep.mubr.f32.mxu0 0.0
  %7658 = vmatmul.mubr.f32.gmra.mrb[0].mxu0 %v5675
  %v7659 = vpop.f32.mrb[0].mxu0
  %v7660 = vadd.f32 %v7275, %v7659
  %v7661 = vpop.f32.mrb[0].mxu0
  %7662 = vmatprep.mubr.f32.mxu0 0.0
  %7663 = vmatmul.mubr.f32.gmra.mrb[0].mxu0 %v5684
  %v7664 = vpop.f32.mrb[0].mxu0
  %v7665 = vadd.f32 %v7280, %v7664
  %v7666 = vpop.f32.mrb[0].mxu0
  %7667 = vmatprep.mubr.f32.mxu0 0.0
  %7668 = vmatmul.mubr.f32.gmra.mrb[0].mxu0 %v5693
  %v7669 = vpop.f32.mrb[0].mxu0
  %v7670 = vadd.f32 %v7285, %v7669
  %v7671 = vpop.f32.mrb[0].mxu0
  %7672 = vmatprep.mubr.f32.mxu0 0.0
  %7673 = vmatmul.mubr.f32.gmra.mrb[0].mxu0 %v5702
  %v7674 = vpop.f32.mrb[0].mxu0
  %v7675 = vadd.f32 %v7290, %v7674
  %v7676 = vpop.f32.mrb[0].mxu0
  %7677 = vmatprep.mubr.f32.mxu0 0.0
  %7678 = vmatmul.mubr.f32.gmra.mrb[0].mxu0 %v5711
  %v7679 = vpop.f32.mrb[0].mxu0
  %v7680 = vadd.f32 %v7295, %v7679
  %v7681 = vpop.f32.mrb[0].mxu0
  %7682 = vmatprep.mubr.f32.mxu0 0.0
  %7683 = vmatmul.mubr.f32.gmra.mrb[0].mxu0 %v5720
  %v7684 = vpop.f32.mrb[0].mxu0
  %v7685 = vadd.f32 %v7300, %v7684
  %v7686 = vpop.f32.mrb[0].mxu0
  %7687 = vmatprep.mubr.f32.mxu0 0.0
  %7688 = vmatmul.mubr.f32.gmra.mrb[0].mxu0 %v5729
  %v7689 = vpop.f32.mrb[0].mxu0
  %v7690 = vadd.f32 %v7305, %v7689
  %v7691 = vpop.f32.mrb[0].mxu0
  %7692 = vmatprep.mubr.f32.mxu0 0.0
  %7693 = vmatmul.mubr.f32.gmra.mrb[0].mxu0 %v5738
  %v7694 = vpop.f32.mrb[0].mxu0
  %v7695 = vadd.f32 %v7310, %v7694
  %v7696 = vpop.f32.mrb[0].mxu0
  %7697 = vmatprep.mubr.f32.mxu0 0.0
  %7698 = vmatmul.mubr.f32.gmra.mrb[0].mxu0 %v5747
  %v7699 = vpop.f32.mrb[0].mxu0
  %v7700 = vadd.f32 %v7315, %v7699
  %v7701 = vpop.f32.mrb[0].mxu0
  %7702 = vmatprep.mubr.f32.mxu0 0.0
  %7703 = vmatmul.mubr.f32.gmra.mrb[0].mxu0 %v5756
  %v7704 = vpop.f32.mrb[0].mxu0
  %v7705 = vadd.f32 %v7320, %v7704
  %v7706 = vpop.f32.mrb[0].mxu0
  %7707 = vmatprep.mubr.f32.mxu0 0.0
  %7708 = vmatmul.mubr.f32.gmra.mrb[0].mxu0 %v5765
  %v7709 = vpop.f32.mrb[0].mxu0
  %v7710 = vadd.f32 %v7325, %v7709
  %v7711 = vpop.f32.mrb[0].mxu0
  %7712 = vmatprep.mubr.f32.mxu0 0.0
  %7713 = vmatmul.mubr.f32.gmra.mrb[0].mxu0 %v5774
  %v7714 = vpop.f32.mrb[0].mxu0
  %v7715 = vadd.f32 %v7330, %v7714
  %v7716 = vpop.f32.mrb[0].mxu0
  %7717 = vmatprep.mubr.f32.mxu0 0.0
  %7718 = vmatmul.mubr.f32.gmra.mrb[0].mxu0 %v5783
  %v7719 = vpop.f32.mrb[0].mxu0
  %v7720 = vadd.f32 %v7335, %v7719
  %v7721 = vpop.f32.mrb[0].mxu0
  %7722 = vmatprep.mubr.f32.mxu0 0.0
  %7723 = vmatmul.mubr.f32.gmra.mrb[0].mxu0 %v5792
  %v7724 = vpop.f32.mrb[0].mxu0
  %v7725 = vadd.f32 %v7340, %v7724
  %v7726 = vpop.f32.mrb[0].mxu0
  %7727 = vmatprep.mubr.f32.mxu0 0.0
  %7728 = vmatmul.mubr.f32.gmra.mrb[0].mxu0 %v5801
  %v7729 = vpop.f32.mrb[0].mxu0
  %v7730 = vadd.f32 %v7345, %v7729
  %v7731 = vpop.f32.mrb[0].mxu0
  %7732 = vdwg.mxu0
  %v7733 = vadd.f32 %v7415, %v7420
  %v7734 = vadd.f32 %v7733, %v7425
  %v7735 = vadd.f32 %v7734, %v7430
  %v7736 = vadd.f32 %v7735, %v7435
  %v7737 = vadd.f32 %v7736, %v7440
  %v7738 = vadd.f32 %v7737, %v7445
  %v7739 = vadd.f32 %v7738, %v7450
  %v7740 = vadd.f32 %v7739, %v7455
  %v7741 = vadd.f32 %v7740, %v7460
  %v7742 = vadd.f32 %v7741, %v7465
  %v7743 = vadd.f32 %v7742, %v7470
  %v7744 = vadd.f32 %v7743, %v7475
  %v7745 = vadd.f32 %v7744, %v7480
  %v7746 = vadd.f32 %v7745, %v7485
  %v7747 = vadd.f32 %v7746, %v7490
  %v7748 = vadd.f32 %v7747, %v7495
  %v7749 = vadd.f32 %v7748, %v7500
  %v7750 = vadd.f32 %v7749, %v7505
  %v7751 = vadd.f32 %v7750, %v7510
  %v7752 = vadd.f32 %v7751, %v7515
  %v7753 = vadd.f32 %v7752, %v7520
  %v7754 = vadd.f32 %v7753, %v7525
  %v7755 = vadd.f32 %v7754, %v7530
  %v7756 = vadd.f32 %v7755, %v7535
  %v7757 = vadd.f32 %v7756, %v7540
  %v7758 = vadd.f32 %v7757, %v7545
  %v7759 = vadd.f32 %v7758, %v7550
  %v7760 = vadd.f32 %v7759, %v7555
  %v7761 = vadd.f32 %v7760, %v7560
  %v7762 = vadd.f32 %v7761, %v7565
  %v7763 = vadd.f32 %v7762, %v7570
  %v7764 = vadd.f32 %v7763, %v7575
  %v7765 = vadd.f32 %v7764, %v7580
  %v7766 = vadd.f32 %v7765, %v7585
  %v7767 = vadd.f32 %v7766, %v7590
  %v7768 = vadd.f32 %v7767, %v7595
  %v7769 = vadd.f32 %v7768, %v7600
  %v7770 = vadd.f32 %v7769, %v7605
  %v7771 = vadd.f32 %v7770, %v7610
  %v7772 = vadd.f32 %v7771, %v7615
  %v7773 = vadd.f32 %v7772, %v7620
  %v7774 = vadd.f32 %v7773, %v7625
  %v7775 = vadd.f32 %v7774, %v7630
  %v7776 = vadd.f32 %v7775, %v7635
  %v7777 = vadd.f32 %v7776, %v7640
  %v7778 = vadd.f32 %v7777, %v7645
  %v7779 = vadd.f32 %v7778, %v7650
  %v7780 = vadd.f32 %v7779, %v7655
  %v7781 = vadd.f32 %v7780, %v7660
  %v7782 = vadd.f32 %v7781, %v7665
  %v7783 = vadd.f32 %v7782, %v7670
  %v7784 = vadd.f32 %v7783, %v7675
  %v7785 = vadd.f32 %v7784, %v7680
  %v7786 = vadd.f32 %v7785, %v7685
  %v7787 = vadd.f32 %v7786, %v7690
  %v7788 = vadd.f32 %v7787, %v7695
  %v7789 = vadd.f32 %v7788, %v7700
  %v7790 = vadd.f32 %v7789, %v7705
  %v7791 = vadd.f32 %v7790, %v7710
  %v7792 = vadd.f32 %v7791, %v7715
  %v7793 = vadd.f32 %v7792, %v7720
  %v7794 = vadd.f32 %v7793, %v7725
  %v7795 = vadd.f32 %v7794, %v7730
  %v7796 = vrot.slane %v7795, 4
  %v7797 = vadd.f32 %v7795, %v7796
  %v7798 = vrot.slane %v7797, 2
  %v7799 = vadd.f32 %v7797, %v7798
  %v7800 = vrot.slane %v7799, 1
  %v7801 = vadd.f32 %v7799, %v7800
  %v7802 = vmul.f32 %v7801, %v3753
  %v7803 = vsub.f32 %v7415, %v7802
  %v7804 = vsub.f32 %v7420, %v7802
  %v7805 = vsub.f32 %v7425, %v7802
  %v7806 = vsub.f32 %v7430, %v7802
  %v7807 = vsub.f32 %v7435, %v7802
  %v7808 = vsub.f32 %v7440, %v7802
  %v7809 = vsub.f32 %v7445, %v7802
  %v7810 = vsub.f32 %v7450, %v7802
  %v7811 = vsub.f32 %v7455, %v7802
  %v7812 = vsub.f32 %v7460, %v7802
  %v7813 = vsub.f32 %v7465, %v7802
  %v7814 = vsub.f32 %v7470, %v7802
  %v7815 = vsub.f32 %v7475, %v7802
  %v7816 = vsub.f32 %v7480, %v7802
  %v7817 = vsub.f32 %v7485, %v7802
  %v7818 = vsub.f32 %v7490, %v7802
  %v7819 = vsub.f32 %v7495, %v7802
  %v7820 = vsub.f32 %v7500, %v7802
  %v7821 = vsub.f32 %v7505, %v7802
  %v7822 = vsub.f32 %v7510, %v7802
  %v7823 = vsub.f32 %v7515, %v7802
  %v7824 = vsub.f32 %v7520, %v7802
  %v7825 = vsub.f32 %v7525, %v7802
  %v7826 = vsub.f32 %v7530, %v7802
  %v7827 = vsub.f32 %v7535, %v7802
  %v7828 = vsub.f32 %v7540, %v7802
  %v7829 = vsub.f32 %v7545, %v7802
  %v7830 = vsub.f32 %v7550, %v7802
  %v7831 = vsub.f32 %v7555, %v7802
  %v7832 = vsub.f32 %v7560, %v7802
  %v7833 = vsub.f32 %v7565, %v7802
  %v7834 = vsub.f32 %v7570, %v7802
  %v7835 = vsub.f32 %v7575, %v7802
  %v7836 = vsub.f32 %v7580, %v7802
  %v7837 = vsub.f32 %v7585, %v7802
  %v7838 = vsub.f32 %v7590, %v7802
  %v7839 = vsub.f32 %v7595, %v7802
  %v7840 = vsub.f32 %v7600, %v7802
  %v7841 = vsub.f32 %v7605, %v7802
  %v7842 = vsub.f32 %v7610, %v7802
  %v7843 = vsub.f32 %v7615, %v7802
  %v7844 = vsub.f32 %v7620, %v7802
  %v7845 = vsub.f32 %v7625, %v7802
  %v7846 = vsub.f32 %v7630, %v7802
  %v7847 = vsub.f32 %v7635, %v7802
  %v7848 = vsub.f32 %v7640, %v7802
  %v7849 = vsub.f32 %v7645, %v7802
  %v7850 = vsub.f32 %v7650, %v7802
  %v7851 = vsub.f32 %v7655, %v7802
  %v7852 = vsub.f32 %v7660, %v7802
  %v7853 = vsub.f32 %v7665, %v7802
  %v7854 = vsub.f32 %v7670, %v7802
  %v7855 = vsub.f32 %v7675, %v7802
  %v7856 = vsub.f32 %v7680, %v7802
  %v7857 = vsub.f32 %v7685, %v7802
  %v7858 = vsub.f32 %v7690, %v7802
  %v7859 = vsub.f32 %v7695, %v7802
  %v7860 = vsub.f32 %v7700, %v7802
  %v7861 = vsub.f32 %v7705, %v7802
  %v7862 = vsub.f32 %v7710, %v7802
  %v7863 = vsub.f32 %v7715, %v7802
  %v7864 = vsub.f32 %v7720, %v7802
  %v7865 = vsub.f32 %v7725, %v7802
  %v7866 = vsub.f32 %v7730, %v7802
  %v7867 = vmul.f32 %v7803, %v7803
  %v7868 = vmul.f32 %v7804, %v7804
  %v7869 = vmul.f32 %v7805, %v7805
  %v7870 = vmul.f32 %v7806, %v7806
  %v7871 = vmul.f32 %v7807, %v7807
  %v7872 = vmul.f32 %v7808, %v7808
  %v7873 = vmul.f32 %v7809, %v7809
  %v7874 = vmul.f32 %v7810, %v7810
  %v7875 = vmul.f32 %v7811, %v7811
  %v7876 = vmul.f32 %v7812, %v7812
  %v7877 = vmul.f32 %v7813, %v7813
  %v7878 = vmul.f32 %v7814, %v7814
  %v7879 = vmul.f32 %v7815, %v7815
  %v7880 = vmul.f32 %v7816, %v7816
  %v7881 = vmul.f32 %v7817, %v7817
  %v7882 = vmul.f32 %v7818, %v7818
  %v7883 = vmul.f32 %v7819, %v7819
  %v7884 = vmul.f32 %v7820, %v7820
  %v7885 = vmul.f32 %v7821, %v7821
  %v7886 = vmul.f32 %v7822, %v7822
  %v7887 = vmul.f32 %v7823, %v7823
  %v7888 = vmul.f32 %v7824, %v7824
  %v7889 = vmul.f32 %v7825, %v7825
  %v7890 = vmul.f32 %v7826, %v7826
  %v7891 = vmul.f32 %v7827, %v7827
  %v7892 = vmul.f32 %v7828, %v7828
  %v7893 = vmul.f32 %v7829, %v7829
  %v7894 = vmul.f32 %v7830, %v7830
  %v7895 = vmul.f32 %v7831, %v7831
  %v7896 = vmul.f32 %v7832, %v7832
  %v7897 = vmul.f32 %v7833, %v7833
  %v7898 = vmul.f32 %v7834, %v7834
  %v7899 = vmul.f32 %v7835, %v7835
  %v7900 = vmul.f32 %v7836, %v7836
  %v7901 = vmul.f32 %v7837, %v7837
  %v7902 = vmul.f32 %v7838, %v7838
  %v7903 = vmul.f32 %v7839, %v7839
  %v7904 = vmul.f32 %v7840, %v7840
  %v7905 = vmul.f32 %v7841, %v7841
  %v7906 = vmul.f32 %v7842, %v7842
  %v7907 = vmul.f32 %v7843, %v7843
  %v7908 = vmul.f32 %v7844, %v7844
  %v7909 = vmul.f32 %v7845, %v7845
  %v7910 = vmul.f32 %v7846, %v7846
  %v7911 = vmul.f32 %v7847, %v7847
  %v7912 = vmul.f32 %v7848, %v7848
  %v7913 = vmul.f32 %v7849, %v7849
  %v7914 = vmul.f32 %v7850, %v7850
  %v7915 = vmul.f32 %v7851, %v7851
  %v7916 = vmul.f32 %v7852, %v7852
  %v7917 = vmul.f32 %v7853, %v7853
  %v7918 = vmul.f32 %v7854, %v7854
  %v7919 = vmul.f32 %v7855, %v7855
  %v7920 = vmul.f32 %v7856, %v7856
  %v7921 = vmul.f32 %v7857, %v7857
  %v7922 = vmul.f32 %v7858, %v7858
  %v7923 = vmul.f32 %v7859, %v7859
  %v7924 = vmul.f32 %v7860, %v7860
  %v7925 = vmul.f32 %v7861, %v7861
  %v7926 = vmul.f32 %v7862, %v7862
  %v7927 = vmul.f32 %v7863, %v7863
  %v7928 = vmul.f32 %v7864, %v7864
  %v7929 = vmul.f32 %v7865, %v7865
  %v7930 = vmul.f32 %v7866, %v7866
  %v7931 = vadd.f32 %v7867, %v7868
  %v7932 = vadd.f32 %v7931, %v7869
  %v7933 = vadd.f32 %v7932, %v7870
  %v7934 = vadd.f32 %v7933, %v7871
  %v7935 = vadd.f32 %v7934, %v7872
  %v7936 = vadd.f32 %v7935, %v7873
  %v7937 = vadd.f32 %v7936, %v7874
  %v7938 = vadd.f32 %v7937, %v7875
  %v7939 = vadd.f32 %v7938, %v7876
  %v7940 = vadd.f32 %v7939, %v7877
  %v7941 = vadd.f32 %v7940, %v7878
  %v7942 = vadd.f32 %v7941, %v7879
  %v7943 = vadd.f32 %v7942, %v7880
  %v7944 = vadd.f32 %v7943, %v7881
  %v7945 = vadd.f32 %v7944, %v7882
  %v7946 = vadd.f32 %v7945, %v7883
  %v7947 = vadd.f32 %v7946, %v7884
  %v7948 = vadd.f32 %v7947, %v7885
  %v7949 = vadd.f32 %v7948, %v7886
  %v7950 = vadd.f32 %v7949, %v7887
  %v7951 = vadd.f32 %v7950, %v7888
  %v7952 = vadd.f32 %v7951, %v7889
  %v7953 = vadd.f32 %v7952, %v7890
  %v7954 = vadd.f32 %v7953, %v7891
  %v7955 = vadd.f32 %v7954, %v7892
  %v7956 = vadd.f32 %v7955, %v7893
  %v7957 = vadd.f32 %v7956, %v7894
  %v7958 = vadd.f32 %v7957, %v7895
  %v7959 = vadd.f32 %v7958, %v7896
  %v7960 = vadd.f32 %v7959, %v7897
  %v7961 = vadd.f32 %v7960, %v7898
  %v7962 = vadd.f32 %v7961, %v7899
  %v7963 = vadd.f32 %v7962, %v7900
  %v7964 = vadd.f32 %v7963, %v7901
  %v7965 = vadd.f32 %v7964, %v7902
  %v7966 = vadd.f32 %v7965, %v7903
  %v7967 = vadd.f32 %v7966, %v7904
  %v7968 = vadd.f32 %v7967, %v7905
  %v7969 = vadd.f32 %v7968, %v7906
  %v7970 = vadd.f32 %v7969, %v7907
  %v7971 = vadd.f32 %v7970, %v7908
  %v7972 = vadd.f32 %v7971, %v7909
  %v7973 = vadd.f32 %v7972, %v7910
  %v7974 = vadd.f32 %v7973, %v7911
  %v7975 = vadd.f32 %v7974, %v7912
  %v7976 = vadd.f32 %v7975, %v7913
  %v7977 = vadd.f32 %v7976, %v7914
  %v7978 = vadd.f32 %v7977, %v7915
  %v7979 = vadd.f32 %v7978, %v7916
  %v7980 = vadd.f32 %v7979, %v7917
  %v7981 = vadd.f32 %v7980, %v7918
  %v7982 = vadd.f32 %v7981, %v7919
  %v7983 = vadd.f32 %v7982, %v7920
  %v7984 = vadd.f32 %v7983, %v7921
  %v7985 = vadd.f32 %v7984, %v7922
  %v7986 = vadd.f32 %v7985, %v7923
  %v7987 = vadd.f32 %v7986, %v7924
  %v7988 = vadd.f32 %v7987, %v7925
  %v7989 = vadd.f32 %v7988, %v7926
  %v7990 = vadd.f32 %v7989, %v7927
  %v7991 = vadd.f32 %v7990, %v7928
  %v7992 = vadd.f32 %v7991, %v7929
  %v7993 = vadd.f32 %v7992, %v7930
  %v7994 = vrot.slane %v7993, 4
  %v7995 = vadd.f32 %v7993, %v7994
  %v7996 = vrot.slane %v7995, 2
  %v7997 = vadd.f32 %v7995, %v7996
  %v7998 = vrot.slane %v7997, 1
  %v7999 = vadd.f32 %v7997, %v7998
  %v8000 = vmul.f32 %v7999, %v3753
  %v8001 = vadd.f32 %v8000, 1e-05
  %v8002 = vrsqrt.pop %v8001
  %v8003 = vmul.f32 %v7803, %v8002
  %v8004 = vmul.f32 %v7804, %v8002
  %v8005 = vmul.f32 %v7805, %v8002
  %v8006 = vmul.f32 %v7806, %v8002
  %v8007 = vmul.f32 %v7807, %v8002
  %v8008 = vmul.f32 %v7808, %v8002
  %v8009 = vmul.f32 %v7809, %v8002
  %v8010 = vmul.f32 %v7810, %v8002
  %v8011 = vmul.f32 %v7811, %v8002
  %v8012 = vmul.f32 %v7812, %v8002
  %v8013 = vmul.f32 %v7813, %v8002
  %v8014 = vmul.f32 %v7814, %v8002
  %v8015 = vmul.f32 %v7815, %v8002
  %v8016 = vmul.f32 %v7816, %v8002
  %v8017 = vmul.f32 %v7817, %v8002
  %v8018 = vmul.f32 %v7818, %v8002
  %v8019 = vmul.f32 %v7819, %v8002
  %v8020 = vmul.f32 %v7820, %v8002
  %v8021 = vmul.f32 %v7821, %v8002
  %v8022 = vmul.f32 %v7822, %v8002
  %v8023 = vmul.f32 %v7823, %v8002
  %v8024 = vmul.f32 %v7824, %v8002
  %v8025 = vmul.f32 %v7825, %v8002
  %v8026 = vmul.f32 %v7826, %v8002
  %v8027 = vmul.f32 %v7827, %v8002
  %v8028 = vmul.f32 %v7828, %v8002
  %v8029 = vmul.f32 %v7829, %v8002
  %v8030 = vmul.f32 %v7830, %v8002
  %v8031 = vmul.f32 %v7831, %v8002
  %v8032 = vmul.f32 %v7832, %v8002
  %v8033 = vmul.f32 %v7833, %v8002
  %v8034 = vmul.f32 %v7834, %v8002
  %v8035 = vmul.f32 %v7835, %v8002
  %v8036 = vmul.f32 %v7836, %v8002
  %v8037 = vmul.f32 %v7837, %v8002
  %v8038 = vmul.f32 %v7838, %v8002
  %v8039 = vmul.f32 %v7839, %v8002
  %v8040 = vmul.f32 %v7840, %v8002
  %v8041 = vmul.f32 %v7841, %v8002
  %v8042 = vmul.f32 %v7842, %v8002
  %v8043 = vmul.f32 %v7843, %v8002
  %v8044 = vmul.f32 %v7844, %v8002
  %v8045 = vmul.f32 %v7845, %v8002
  %v8046 = vmul.f32 %v7846, %v8002
  %v8047 = vmul.f32 %v7847, %v8002
  %v8048 = vmul.f32 %v7848, %v8002
  %v8049 = vmul.f32 %v7849, %v8002
  %v8050 = vmul.f32 %v7850, %v8002
  %v8051 = vmul.f32 %v7851, %v8002
  %v8052 = vmul.f32 %v7852, %v8002
  %v8053 = vmul.f32 %v7853, %v8002
  %v8054 = vmul.f32 %v7854, %v8002
  %v8055 = vmul.f32 %v7855, %v8002
  %v8056 = vmul.f32 %v7856, %v8002
  %v8057 = vmul.f32 %v7857, %v8002
  %v8058 = vmul.f32 %v7858, %v8002
  %v8059 = vmul.f32 %v7859, %v8002
  %v8060 = vmul.f32 %v7860, %v8002
  %v8061 = vmul.f32 %v7861, %v8002
  %v8062 = vmul.f32 %v7862, %v8002
  %v8063 = vmul.f32 %v7863, %v8002
  %v8064 = vmul.f32 %v7864, %v8002
  %v8065 = vmul.f32 %v7865, %v8002
  %v8066 = vmul.f32 %v7866, %v8002
  %v8068 = vlaneseq
  %v8069 = vshrl.u32 %v8068, 7
  %v8070 = vsub.s32 0, %v8069
  %v8071 = vrot.slane %v4432, %v8070
  %v8073 = vmul.f32 %v8003, %v8071
  %v8074 = vmul.f32 %v8004, %v8071
  %v8075 = vmul.f32 %v8005, %v8071
  %v8076 = vmul.f32 %v8006, %v8071
  %v8077 = vmul.f32 %v8007, %v8071
  %v8078 = vmul.f32 %v8008, %v8071
  %v8079 = vmul.f32 %v8009, %v8071
  %v8080 = vmul.f32 %v8010, %v8071
  %v8081 = vmul.f32 %v8011, %v8071
  %v8082 = vmul.f32 %v8012, %v8071
  %v8083 = vmul.f32 %v8013, %v8071
  %v8084 = vmul.f32 %v8014, %v8071
  %v8085 = vmul.f32 %v8015, %v8071
  %v8086 = vmul.f32 %v8016, %v8071
  %v8087 = vmul.f32 %v8017, %v8071
  %v8088 = vmul.f32 %v8018, %v8071
  %v8089 = vmul.f32 %v8019, %v8071
  %v8090 = vmul.f32 %v8020, %v8071
  %v8091 = vmul.f32 %v8021, %v8071
  %v8092 = vmul.f32 %v8022, %v8071
  %v8093 = vmul.f32 %v8023, %v8071
  %v8094 = vmul.f32 %v8024, %v8071
  %v8095 = vmul.f32 %v8025, %v8071
  %v8096 = vmul.f32 %v8026, %v8071
  %v8097 = vmul.f32 %v8027, %v8071
  %v8098 = vmul.f32 %v8028, %v8071
  %v8099 = vmul.f32 %v8029, %v8071
  %v8100 = vmul.f32 %v8030, %v8071
  %v8101 = vmul.f32 %v8031, %v8071
  %v8102 = vmul.f32 %v8032, %v8071
  %v8103 = vmul.f32 %v8033, %v8071
  %v8104 = vmul.f32 %v8034, %v8071
  %v8105 = vmul.f32 %v8035, %v8071
  %v8106 = vmul.f32 %v8036, %v8071
  %v8107 = vmul.f32 %v8037, %v8071
  %v8108 = vmul.f32 %v8038, %v8071
  %v8109 = vmul.f32 %v8039, %v8071
  %v8110 = vmul.f32 %v8040, %v8071
  %v8111 = vmul.f32 %v8041, %v8071
  %v8112 = vmul.f32 %v8042, %v8071
  %v8113 = vmul.f32 %v8043, %v8071
  %v8114 = vmul.f32 %v8044, %v8071
  %v8115 = vmul.f32 %v8045, %v8071
  %v8116 = vmul.f32 %v8046, %v8071
  %v8117 = vmul.f32 %v8047, %v8071
  %v8118 = vmul.f32 %v8048, %v8071
  %v8119 = vmul.f32 %v8049, %v8071
  %v8120 = vmul.f32 %v8050, %v8071
  %v8121 = vmul.f32 %v8051, %v8071
  %v8122 = vmul.f32 %v8052, %v8071
  %v8123 = vmul.f32 %v8053, %v8071
  %v8124 = vmul.f32 %v8054, %v8071
  %v8125 = vmul.f32 %v8055, %v8071
  %v8126 = vmul.f32 %v8056, %v8071
  %v8127 = vmul.f32 %v8057, %v8071
  %v8128 = vmul.f32 %v8058, %v8071
  %v8129 = vmul.f32 %v8059, %v8071
  %v8130 = vmul.f32 %v8060, %v8071
  %v8131 = vmul.f32 %v8061, %v8071
  %v8132 = vmul.f32 %v8062, %v8071
  %v8133 = vmul.f32 %v8063, %v8071
  %v8134 = vmul.f32 %v8064, %v8071
  %v8135 = vmul.f32 %v8065, %v8071
  %v8136 = vmul.f32 %v8066, %v8071
  %v8138 = vlaneseq
  %v8139 = vshrl.u32 %v8138, 7
  %v8140 = vsub.s32 0, %v8139
  %v8141 = vrot.slane %v4433, %v8140
  %v8143 = vadd.f32 %v8073, %v8141
  %v8144 = vadd.f32 %v8074, %v8141
  %v8145 = vadd.f32 %v8075, %v8141
  %v8146 = vadd.f32 %v8076, %v8141
  %v8147 = vadd.f32 %v8077, %v8141
  %v8148 = vadd.f32 %v8078, %v8141
  %v8149 = vadd.f32 %v8079, %v8141
  %v8150 = vadd.f32 %v8080, %v8141
  %v8151 = vadd.f32 %v8081, %v8141
  %v8152 = vadd.f32 %v8082, %v8141
  %v8153 = vadd.f32 %v8083, %v8141
  %v8154 = vadd.f32 %v8084, %v8141
  %v8155 = vadd.f32 %v8085, %v8141
  %v8156 = vadd.f32 %v8086, %v8141
  %v8157 = vadd.f32 %v8087, %v8141
  %v8158 = vadd.f32 %v8088, %v8141
  %v8159 = vadd.f32 %v8089, %v8141
  %v8160 = vadd.f32 %v8090, %v8141
  %v8161 = vadd.f32 %v8091, %v8141
  %v8162 = vadd.f32 %v8092, %v8141
  %v8163 = vadd.f32 %v8093, %v8141
  %v8164 = vadd.f32 %v8094, %v8141
  %v8165 = vadd.f32 %v8095, %v8141
  %v8166 = vadd.f32 %v8096, %v8141
  %v8167 = vadd.f32 %v8097, %v8141
  %v8168 = vadd.f32 %v8098, %v8141
  %v8169 = vadd.f32 %v8099, %v8141
  %v8170 = vadd.f32 %v8100, %v8141
  %v8171 = vadd.f32 %v8101, %v8141
  %v8172 = vadd.f32 %v8102, %v8141
  %v8173 = vadd.f32 %v8103, %v8141
  %v8174 = vadd.f32 %v8104, %v8141
  %v8175 = vadd.f32 %v8105, %v8141
  %v8176 = vadd.f32 %v8106, %v8141
  %v8177 = vadd.f32 %v8107, %v8141
  %v8178 = vadd.f32 %v8108, %v8141
  %v8179 = vadd.f32 %v8109, %v8141
  %v8180 = vadd.f32 %v8110, %v8141
  %v8181 = vadd.f32 %v8111, %v8141
  %v8182 = vadd.f32 %v8112, %v8141
  %v8183 = vadd.f32 %v8113, %v8141
  %v8184 = vadd.f32 %v8114, %v8141
  %v8185 = vadd.f32 %v8115, %v8141
  %v8186 = vadd.f32 %v8116, %v8141
  %v8187 = vadd.f32 %v8117, %v8141
  %v8188 = vadd.f32 %v8118, %v8141
  %v8189 = vadd.f32 %v8119, %v8141
  %v8190 = vadd.f32 %v8120, %v8141
  %v8191 = vadd.f32 %v8121, %v8141
  %v8192 = vadd.f32 %v8122, %v8141
  %v8193 = vadd.f32 %v8123, %v8141
  %v8194 = vadd.f32 %v8124, %v8141
  %v8195 = vadd.f32 %v8125, %v8141
  %v8196 = vadd.f32 %v8126, %v8141
  %v8197 = vadd.f32 %v8127, %v8141
  %v8198 = vadd.f32 %v8128, %v8141
  %v8199 = vadd.f32 %v8129, %v8141
  %v8200 = vadd.f32 %v8130, %v8141
  %v8201 = vadd.f32 %v8131, %v8141
  %v8202 = vadd.f32 %v8132, %v8141
  %v8203 = vadd.f32 %v8133, %v8141
  %v8204 = vadd.f32 %v8134, %v8141
  %v8205 = vadd.f32 %v8135, %v8141
  %v8206 = vadd.f32 %v8136, %v8141
  %v8207 = vmax.f32 %v8143, 0.0
  %v8208 = vmax.f32 %v8144, 0.0
  %v8209 = vmax.f32 %v8145, 0.0
  %v8210 = vmax.f32 %v8146, 0.0
  %v8211 = vmax.f32 %v8147, 0.0
  %v8212 = vmax.f32 %v8148, 0.0
  %v8213 = vmax.f32 %v8149, 0.0
  %v8214 = vmax.f32 %v8150, 0.0
  %v8215 = vmax.f32 %v8151, 0.0
  %v8216 = vmax.f32 %v8152, 0.0
  %v8217 = vmax.f32 %v8153, 0.0
  %v8218 = vmax.f32 %v8154, 0.0
  %v8219 = vmax.f32 %v8155, 0.0
  %v8220 = vmax.f32 %v8156, 0.0
  %v8221 = vmax.f32 %v8157, 0.0
  %v8222 = vmax.f32 %v8158, 0.0
  %v8223 = vmax.f32 %v8159, 0.0
  %v8224 = vmax.f32 %v8160, 0.0
  %v8225 = vmax.f32 %v8161, 0.0
  %v8226 = vmax.f32 %v8162, 0.0
  %v8227 = vmax.f32 %v8163, 0.0
  %v8228 = vmax.f32 %v8164, 0.0
  %v8229 = vmax.f32 %v8165, 0.0
  %v8230 = vmax.f32 %v8166, 0.0
  %v8231 = vmax.f32 %v8167, 0.0
  %v8232 = vmax.f32 %v8168, 0.0
  %v8233 = vmax.f32 %v8169, 0.0
  %v8234 = vmax.f32 %v8170, 0.0
  %v8235 = vmax.f32 %v8171, 0.0
  %v8236 = vmax.f32 %v8172, 0.0
  %v8237 = vmax.f32 %v8173, 0.0
  %v8238 = vmax.f32 %v8174, 0.0
  %v8239 = vmax.f32 %v8175, 0.0
  %v8240 = vmax.f32 %v8176, 0.0
  %v8241 = vmax.f32 %v8177, 0.0
  %v8242 = vmax.f32 %v8178, 0.0
  %v8243 = vmax.f32 %v8179, 0.0
  %v8244 = vmax.f32 %v8180, 0.0
  %v8245 = vmax.f32 %v8181, 0.0
  %v8246 = vmax.f32 %v8182, 0.0
  %v8247 = vmax.f32 %v8183, 0.0
  %v8248 = vmax.f32 %v8184, 0.0
  %v8249 = vmax.f32 %v8185, 0.0
  %v8250 = vmax.f32 %v8186, 0.0
  %v8251 = vmax.f32 %v8187, 0.0
  %v8252 = vmax.f32 %v8188, 0.0
  %v8253 = vmax.f32 %v8189, 0.0
  %v8254 = vmax.f32 %v8190, 0.0
  %v8255 = vmax.f32 %v8191, 0.0
  %v8256 = vmax.f32 %v8192, 0.0
  %v8257 = vmax.f32 %v8193, 0.0
  %v8258 = vmax.f32 %v8194, 0.0
  %v8259 = vmax.f32 %v8195, 0.0
  %v8260 = vmax.f32 %v8196, 0.0
  %v8261 = vmax.f32 %v8197, 0.0
  %v8262 = vmax.f32 %v8198, 0.0
  %v8263 = vmax.f32 %v8199, 0.0
  %v8264 = vmax.f32 %v8200, 0.0
  %v8265 = vmax.f32 %v8201, 0.0
  %v8266 = vmax.f32 %v8202, 0.0
  %v8267 = vmax.f32 %v8203, 0.0
  %v8268 = vmax.f32 %v8204, 0.0
  %v8269 = vmax.f32 %v8205, 0.0
  %v8270 = vmax.f32 %v8206, 0.0
  %v8271 = vld [vmem:[%s0] sm:$0xff]
  %v8272 = vld [vmem:[%s0 + $0x8] sm:$0xff]
  %v8273 = vld [vmem:[%s0 + $0x10] sm:$0xff]
  %v8274 = vld [vmem:[%s0 + $0x18] sm:$0xff]
  %v8275 = vld [vmem:[%s0 + $0x20] sm:$0xff]
  %v8276 = vld [vmem:[%s0 + $0x28] sm:$0xff]
  %v8277 = vld [vmem:[%s0 + $0x30] sm:$0xff]
  %v8278 = vld [vmem:[%s0 + $0x38] sm:$0xff]
  %v8279 = vld [vmem:[%s0 + $0x40] sm:$0xff]
  %v8280 = vld [vmem:[%s0 + $0x48] sm:$0xff]
  %v8281 = vld [vmem:[%s0 + $0x50] sm:$0xff]
  %v8282 = vld [vmem:[%s0 + $0x58] sm:$0xff]
  %v8283 = vld [vmem:[%s0 + $0x60] sm:$0xff]
  %v8284 = vld [vmem:[%s0 + $0x68] sm:$0xff]
  %v8285 = vld [vmem:[%s0 + $0x70] sm:$0xff]
  %v8286 = vld [vmem:[%s0 + $0x78] sm:$0xff]
  %v8287 = vld [vmem:[%s0 + $0x80] sm:$0xff]
  %v8288 = vld [vmem:[%s0 + $0x88] sm:$0xff]
  %v8289 = vld [vmem:[%s0 + $0x90] sm:$0xff]
  %v8290 = vld [vmem:[%s0 + $0x98] sm:$0xff]
  %v8291 = vld [vmem:[%s0 + $0xa0] sm:$0xff]
  %v8292 = vld [vmem:[%s0 + $0xa8] sm:$0xff]
  %v8293 = vld [vmem:[%s0 + $0xb0] sm:$0xff]
  %v8294 = vld [vmem:[%s0 + $0xb8] sm:$0xff]
  %v8295 = vld [vmem:[%s0 + $0xc0] sm:$0xff]
  %v8296 = vld [vmem:[%s0 + $0xc8] sm:$0xff]
  %v8297 = vld [vmem:[%s0 + $0xd0] sm:$0xff]
  %v8298 = vld [vmem:[%s0 + $0xd8] sm:$0xff]
  %v8299 = vld [vmem:[%s0 + $0xe0] sm:$0xff]
  %v8300 = vld [vmem:[%s0 + $0xe8] sm:$0xff]
  %v8301 = vld [vmem:[%s0 + $0xf0] sm:$0xff]
  %v8302 = vld [vmem:[%s0 + $0xf8] sm:$0xff]
  %v8303 = vld [vmem:[%s0 + $0x100] sm:$0xff]
  %v8304 = vld [vmem:[%s0 + $0x108] sm:$0xff]
  %v8305 = vld [vmem:[%s0 + $0x110] sm:$0xff]
  %v8306 = vld [vmem:[%s0 + $0x118] sm:$0xff]
  %v8307 = vld [vmem:[%s0 + $0x120] sm:$0xff]
  %v8308 = vld [vmem:[%s0 + $0x128] sm:$0xff]
  %v8309 = vld [vmem:[%s0 + $0x130] sm:$0xff]
  %v8310 = vld [vmem:[%s0 + $0x138] sm:$0xff]
  %v8311 = vld [vmem:[%s0 + $0x140] sm:$0xff]
  %v8312 = vld [vmem:[%s0 + $0x148] sm:$0xff]
  %v8313 = vld [vmem:[%s0 + $0x150] sm:$0xff]
  %v8314 = vld [vmem:[%s0 + $0x158] sm:$0xff]
  %v8315 = vld [vmem:[%s0 + $0x160] sm:$0xff]
  %v8316 = vld [vmem:[%s0 + $0x168] sm:$0xff]
  %v8317 = vld [vmem:[%s0 + $0x170] sm:$0xff]
  %v8318 = vld [vmem:[%s0 + $0x178] sm:$0xff]
  %v8319 = vld [vmem:[%s0 + $0x180] sm:$0xff]
  %v8320 = vld [vmem:[%s0 + $0x188] sm:$0xff]
  %v8321 = vld [vmem:[%s0 + $0x190] sm:$0xff]
  %v8322 = vld [vmem:[%s0 + $0x198] sm:$0xff]
  %v8323 = vld [vmem:[%s0 + $0x1a0] sm:$0xff]
  %v8324 = vld [vmem:[%s0 + $0x1a8] sm:$0xff]
  %v8325 = vld [vmem:[%s0 + $0x1b0] sm:$0xff]
  %v8326 = vld [vmem:[%s0 + $0x1b8] sm:$0xff]
  %v8327 = vld [vmem:[%s0 + $0x1c0] sm:$0xff]
  %v8328 = vld [vmem:[%s0 + $0x1c8] sm:$0xff]
  %v8329 = vld [vmem:[%s0 + $0x1d0] sm:$0xff]
  %v8330 = vld [vmem:[%s0 + $0x1d8] sm:$0xff]
  %v8331 = vld [vmem:[%s0 + $0x1e0] sm:$0xff]
  %v8332 = vld [vmem:[%s0 + $0x1e8] sm:$0xff]
  %v8333 = vld [vmem:[%s0 + $0x1f0] sm:$0xff]
  %v8334 = vld [vmem:[%s0 + $0x1f8] sm:$0xff]
  %v8335 = vadd.f32 %v8207, %v8271
  %v8336 = vadd.f32 %v8208, %v8272
  %v8337 = vadd.f32 %v8209, %v8273
  %v8338 = vadd.f32 %v8210, %v8274
  %v8339 = vadd.f32 %v8211, %v8275
  %v8340 = vadd.f32 %v8212, %v8276
  %v8341 = vadd.f32 %v8213, %v8277
  %v8342 = vadd.f32 %v8214, %v8278
  %v8343 = vadd.f32 %v8215, %v8279
  %v8344 = vadd.f32 %v8216, %v8280
  %v8345 = vadd.f32 %v8217, %v8281
  %v8346 = vadd.f32 %v8218, %v8282
  %v8347 = vadd.f32 %v8219, %v8283
  %v8348 = vadd.f32 %v8220, %v8284
  %v8349 = vadd.f32 %v8221, %v8285
  %v8350 = vadd.f32 %v8222, %v8286
  %v8351 = vadd.f32 %v8223, %v8287
  %v8352 = vadd.f32 %v8224, %v8288
  %v8353 = vadd.f32 %v8225, %v8289
  %v8354 = vadd.f32 %v8226, %v8290
  %v8355 = vadd.f32 %v8227, %v8291
  %v8356 = vadd.f32 %v8228, %v8292
  %v8357 = vadd.f32 %v8229, %v8293
  %v8358 = vadd.f32 %v8230, %v8294
  %v8359 = vadd.f32 %v8231, %v8295
  %v8360 = vadd.f32 %v8232, %v8296
  %v8361 = vadd.f32 %v8233, %v8297
  %v8362 = vadd.f32 %v8234, %v8298
  %v8363 = vadd.f32 %v8235, %v8299
  %v8364 = vadd.f32 %v8236, %v8300
  %v8365 = vadd.f32 %v8237, %v8301
  %v8366 = vadd.f32 %v8238, %v8302
  %v8367 = vadd.f32 %v8239, %v8303
  %v8368 = vadd.f32 %v8240, %v8304
  %v8369 = vadd.f32 %v8241, %v8305
  %v8370 = vadd.f32 %v8242, %v8306
  %v8371 = vadd.f32 %v8243, %v8307
  %v8372 = vadd.f32 %v8244, %v8308
  %v8373 = vadd.f32 %v8245, %v8309
  %v8374 = vadd.f32 %v8246, %v8310
  %v8375 = vadd.f32 %v8247, %v8311
  %v8376 = vadd.f32 %v8248, %v8312
  %v8377 = vadd.f32 %v8249, %v8313
  %v8378 = vadd.f32 %v8250, %v8314
  %v8379 = vadd.f32 %v8251, %v8315
  %v8380 = vadd.f32 %v8252, %v8316
  %v8381 = vadd.f32 %v8253, %v8317
  %v8382 = vadd.f32 %v8254, %v8318
  %v8383 = vadd.f32 %v8255, %v8319
  %v8384 = vadd.f32 %v8256, %v8320
  %v8385 = vadd.f32 %v8257, %v8321
  %v8386 = vadd.f32 %v8258, %v8322
  %v8387 = vadd.f32 %v8259, %v8323
  %v8388 = vadd.f32 %v8260, %v8324
  %v8389 = vadd.f32 %v8261, %v8325
  %v8390 = vadd.f32 %v8262, %v8326
  %v8391 = vadd.f32 %v8263, %v8327
  %v8392 = vadd.f32 %v8264, %v8328
  %v8393 = vadd.f32 %v8265, %v8329
  %v8394 = vadd.f32 %v8266, %v8330
  %v8395 = vadd.f32 %v8267, %v8331
  %v8396 = vadd.f32 %v8268, %v8332
  %v8397 = vadd.f32 %v8269, %v8333
  %v8398 = vadd.f32 %v8270, %v8334
  %8399 = vst [vmem:[%s9] sm:$0xff] %v8335
  %8400 = vst [vmem:[%s9 + $0x8] sm:$0xff] %v8336
  %8401 = vst [vmem:[%s9 + $0x10] sm:$0xff] %v8337
  %8402 = vst [vmem:[%s9 + $0x18] sm:$0xff] %v8338
  %8403 = vst [vmem:[%s9 + $0x20] sm:$0xff] %v8339
  %8404 = vst [vmem:[%s9 + $0x28] sm:$0xff] %v8340
  %8405 = vst [vmem:[%s9 + $0x30] sm:$0xff] %v8341
  %8406 = vst [vmem:[%s9 + $0x38] sm:$0xff] %v8342
  %8407 = vst [vmem:[%s9 + $0x40] sm:$0xff] %v8343
  %8408 = vst [vmem:[%s9 + $0x48] sm:$0xff] %v8344
  %8409 = vst [vmem:[%s9 + $0x50] sm:$0xff] %v8345
  %8410 = vst [vmem:[%s9 + $0x58] sm:$0xff] %v8346
  %8411 = vst [vmem:[%s9 + $0x60] sm:$0xff] %v8347
  %8412 = vst [vmem:[%s9 + $0x68] sm:$0xff] %v8348
  %8413 = vst [vmem:[%s9 + $0x70] sm:$0xff] %v8349
  %8414 = vst [vmem:[%s9 + $0x78] sm:$0xff] %v8350
  %8415 = vst [vmem:[%s9 + $0x80] sm:$0xff] %v8351
  %8416 = vst [vmem:[%s9 + $0x88] sm:$0xff] %v8352
  %8417 = vst [vmem:[%s9 + $0x90] sm:$0xff] %v8353
  %8418 = vst [vmem:[%s9 + $0x98] sm:$0xff] %v8354
  %8419 = vst [vmem:[%s9 + $0xa0] sm:$0xff] %v8355
  %8420 = vst [vmem:[%s9 + $0xa8] sm:$0xff] %v8356
  %8421 = vst [vmem:[%s9 + $0xb0] sm:$0xff] %v8357
  %8422 = vst [vmem:[%s9 + $0xb8] sm:$0xff] %v8358
  %8423 = vst [vmem:[%s9 + $0xc0] sm:$0xff] %v8359
  %8424 = vst [vmem:[%s9 + $0xc8] sm:$0xff] %v8360
  %8425 = vst [vmem:[%s9 + $0xd0] sm:$0xff] %v8361
  %8426 = vst [vmem:[%s9 + $0xd8] sm:$0xff] %v8362
  %8427 = vst [vmem:[%s9 + $0xe0] sm:$0xff] %v8363
  %8428 = vst [vmem:[%s9 + $0xe8] sm:$0xff] %v8364
  %8429 = vst [vmem:[%s9 + $0xf0] sm:$0xff] %v8365
  %8430 = vst [vmem:[%s9 + $0xf8] sm:$0xff] %v8366
  %8431 = vst [vmem:[%s9 + $0x100] sm:$0xff] %v8367
  %8432 = vst [vmem:[%s9 + $0x108] sm:$0xff] %v8368
  %8433 = vst [vmem:[%s9 + $0x110] sm:$0xff] %v8369
  %8434 = vst [vmem:[%s9 + $0x118] sm:$0xff] %v8370
  %8435 = vst [vmem:[%s9 + $0x120] sm:$0xff] %v8371
  %8436 = vst [vmem:[%s9 + $0x128] sm:$0xff] %v8372
  %8437 = vst [vmem:[%s9 + $0x130] sm:$0xff] %v8373
  %8438 = vst [vmem:[%s9 + $0x138] sm:$0xff] %v8374
  %8439 = vst [vmem:[%s9 + $0x140] sm:$0xff] %v8375
  %8440 = vst [vmem:[%s9 + $0x148] sm:$0xff] %v8376
  %8441 = vst [vmem:[%s9 + $0x150] sm:$0xff] %v8377
  %8442 = vst [vmem:[%s9 + $0x158] sm:$0xff] %v8378
  %8443 = vst [vmem:[%s9 + $0x160] sm:$0xff] %v8379
  %8444 = vst [vmem:[%s9 + $0x168] sm:$0xff] %v8380
  %8445 = vst [vmem:[%s9 + $0x170] sm:$0xff] %v8381
  %8446 = vst [vmem:[%s9 + $0x178] sm:$0xff] %v8382
  %8447 = vst [vmem:[%s9 + $0x180] sm:$0xff] %v8383
  %8448 = vst [vmem:[%s9 + $0x188] sm:$0xff] %v8384
  %8449 = vst [vmem:[%s9 + $0x190] sm:$0xff] %v8385
  %8450 = vst [vmem:[%s9 + $0x198] sm:$0xff] %v8386
  %8451 = vst [vmem:[%s9 + $0x1a0] sm:$0xff] %v8387
  %8452 = vst [vmem:[%s9 + $0x1a8] sm:$0xff] %v8388
  %8453 = vst [vmem:[%s9 + $0x1b0] sm:$0xff] %v8389
  %8454 = vst [vmem:[%s9 + $0x1b8] sm:$0xff] %v8390
  %8455 = vst [vmem:[%s9 + $0x1c0] sm:$0xff] %v8391
  %8456 = vst [vmem:[%s9 + $0x1c8] sm:$0xff] %v8392
  %8457 = vst [vmem:[%s9 + $0x1d0] sm:$0xff] %v8393
  %8458 = vst [vmem:[%s9 + $0x1d8] sm:$0xff] %v8394
  %8459 = vst [vmem:[%s9 + $0x1e0] sm:$0xff] %v8395
  %8460 = vst [vmem:[%s9 + $0x1e8] sm:$0xff] %v8396
  %8461 = vst [vmem:[%s9 + $0x1f0] sm:$0xff] %v8397
  %8462 = vst [vmem:[%s9 + $0x1f8] sm:$0xff] %v8398
  // Predicated region
  $region38: #{resnet_block.1} parent=0 // pred_check
    _
  $region39: #{resnet_block.1} parent=0 // pred_check_branch
    %8464 = sbr.rel (0) target = $region41
  $region40: #{resnet_block.1} parent=0 // pred_region
    _
  $region41: #{resnet_block.1} parent=0 // pred_fallthru
    _
  // Predicated region
  $region42: #{resnet_block.1} parent=0 // pred_check
    _
  $region43: #{resnet_block.1} parent=0 // pred_check_branch
    %8466 = sbr.rel (0) target = $region45
  $region44: #{resnet_block.1} parent=0 // pred_region
    _
  $region45: #{resnet_block.1} parent=0 // pred_fallthru
    _

</llo_original>
